<compile_context>
chip_gen: v5e
topology: v5e:2x2
jax: 0.10.0
libtpu: 0.0.40
codegen_flags: <defaults>
</compile_context>

<pallas_src>
import functools

import jax
import jax.numpy as jnp
from jax.experimental import pallas as pl
from jax.experimental.pallas import tpu as pltpu

EMB_DIM = 256
H1, H2, H3 = 1024, 512, 256
OUT_PAD = 128            # lane-dense padded width for the 1-wide output


def _round_up(x, m):
    return ((x + m - 1) // m) * m


def _choose_tk(d_img):
    """K-tile for the layer-1 reduction over the flattened image."""
    return min(2048, _round_up(d_img, 128))


def _choose_tb(batch):
    """Batch tile: sublane-aligned for tiny batches, 128 for real ones."""
    return min(128, _round_up(max(batch, 1), 8))


def _disc_kernel(img_ref, emb_ref, w1i_ref, w1e_ref, b1_ref,
                 w2_ref, b2_ref, w3_ref, b3_ref, w4_ref, b4_ref,
                 out_ref, acc_ref):
    """Grid = (batch_blocks, k_blocks).  acc_ref: (tb, H1) f32 accumulator."""
    k = pl.program_id(1)
    nk = pl.num_programs(1)

    # First K step: initialize the layer-1 accumulator with the (tiny)
    # label-embedding contribution plus the bias.  This absorbs torch.cat.
    @pl.when(k == 0)
    def _init():
        acc_ref[...] = (
            jnp.dot(emb_ref[...], w1e_ref[...],
                    preferred_element_type=jnp.float32)
            + b1_ref[...])

    # Streamed K block of the image part of layer 1 (bf16 x bf16 -> f32).
    acc_ref[...] += jnp.dot(img_ref[...], w1i_ref[...],
                            preferred_element_type=jnp.float32)

    # Last K step: run the remaining (small) layers fused in VMEM.
    @pl.when(k == nk - 1)
    def _finish():
        h = jnp.maximum(acc_ref[...], 0.0).astype(jnp.bfloat16)       # ReLU
        h = jnp.dot(h, w2_ref[...],
                    preferred_element_type=jnp.float32) + b2_ref[...]
        h = jnp.maximum(h, 0.0).astype(jnp.bfloat16)
        h = jnp.dot(h, w3_ref[...],
                    preferred_element_type=jnp.float32) + b3_ref[...]
        h = jnp.maximum(h, 0.0).astype(jnp.bfloat16)
        logit = jnp.dot(h, w4_ref[...],
                        preferred_element_type=jnp.float32) + b4_ref[...]
        # Sigmoid via EUP exp + approx reciprocal (VALU stays free).
        out_ref[...] = pl.reciprocal(1.0 + jnp.exp(-logit), approx=True)


def prepare_params(params, d_img):
    """One-time conversion: split w1, pad, cast to bf16."""
    tk = _choose_tk(d_img)
    d_img_pad = _round_up(d_img, tk)
    w1 = params["w1"]                          # (d_img + EMB_DIM, H1)
    w1_img = jnp.pad(w1[:d_img], ((0, d_img_pad - d_img), (0, 0)))
    w1_emb = w1[d_img:]
    return {
        "emb": params["emb"].astype(jnp.bfloat16),
        "w1_img": w1_img.astype(jnp.bfloat16),       # (d_img_pad, H1)
        "w1_emb": w1_emb.astype(jnp.bfloat16),       # (EMB_DIM, H1)
        "b1": params["b1"],                          # f32 (1, H1)
        "w2": params["w2"].astype(jnp.bfloat16),
        "b2": params["b2"],
        "w3": params["w3"].astype(jnp.bfloat16),
        "b3": params["b3"],
        # pad N=1 -> 128 lanes so the output store is lane-dense
        "w4": jnp.pad(params["w4"], ((0, 0), (0, OUT_PAD - 1))).astype(jnp.bfloat16),
        "b4": jnp.pad(params["b4"], ((0, 0), (0, OUT_PAD - 1))),
    }


@functools.partial(jax.jit, static_argnames=("d_img",))
def discriminator_forward(image, labels, prepped, *, d_img):
    """image: (B, C, H, W) f32, labels: (B,) int32 -> validity (B, 1) f32."""
    B = image.shape[0]
    assert image.shape[1] * image.shape[2] * image.shape[3] == d_img

    tk = _choose_tk(d_img)
    d_img_pad = prepped["w1_img"].shape[0]
    tb = _choose_tb(B)
    b_pad = _round_up(B, tb)

    img_flat = image.reshape(B, -1).astype(jnp.bfloat16)
    img_flat = jnp.pad(img_flat, ((0, b_pad - B), (0, d_img_pad - d_img)))
    label_emb = prepped["emb"][labels]                 # nn.Embedding gather (glue)
    label_emb = jnp.pad(label_emb, ((0, b_pad - B), (0, 0)))

    n_b = b_pad // tb
    n_k = d_img_pad // tk

    grid_spec = pltpu.PrefetchScalarGridSpec(
        num_scalar_prefetch=0,
        grid=(n_b, n_k),
        in_specs=[
            pl.BlockSpec((tb, tk), lambda bi, ki: (bi, ki)),        # img block
            pl.BlockSpec((tb, EMB_DIM), lambda bi, ki: (bi, 0)),    # label emb
            pl.BlockSpec((tk, H1), lambda bi, ki: (ki, 0)),         # w1 (image part)
            pl.BlockSpec((EMB_DIM, H1), lambda bi, ki: (0, 0)),     # w1 (emb part)
            pl.BlockSpec((1, H1), lambda bi, ki: (0, 0)),           # b1
            pl.BlockSpec((H1, H2), lambda bi, ki: (0, 0)),          # w2
            pl.BlockSpec((1, H2), lambda bi, ki: (0, 0)),           # b2
            pl.BlockSpec((H2, H3), lambda bi, ki: (0, 0)),          # w3
            pl.BlockSpec((1, H3), lambda bi, ki: (0, 0)),           # b3
            pl.BlockSpec((H3, OUT_PAD), lambda bi, ki: (0, 0)),     # w4 (padded)
            pl.BlockSpec((1, OUT_PAD), lambda bi, ki: (0, 0)),      # b4 (padded)
        ],
        out_specs=pl.BlockSpec((tb, OUT_PAD), lambda bi, ki: (bi, 0)),
        scratch_shapes=[pltpu.VMEM((tb, H1), jnp.float32)],
    )

    out = pl.pallas_call(
        _disc_kernel,
        out_shape=jax.ShapeDtypeStruct((b_pad, OUT_PAD), jnp.float32),
        grid_spec=grid_spec,
        compiler_params=pltpu.CompilerParams(
            dimension_semantics=("parallel", "arbitrary"),
            vmem_limit_bytes=32 * 1024 * 1024,
        ),
    )(img_flat, label_emb,
      prepped["w1_img"], prepped["w1_emb"], prepped["b1"],
      prepped["w2"], prepped["b2"],
      prepped["w3"], prepped["b3"],
      prepped["w4"], prepped["b4"])

    return out[:B, :1]


def init_params(key, in_dim, num_classes):
    """PyTorch-style init (uniform +-1/sqrt(fan_in)), f32 master copy."""
    dims = [in_dim, H1, H2, H3, 1]
    keys = jax.random.split(key, 1 + 2 * 4)
    params = {"emb": jax.random.normal(keys[0], (num_classes, EMB_DIM), jnp.float32)}
    for i in range(4):
        fan_in = dims[i]
        bound = 1.0 / (fan_in ** 0.5)
        params[f"w{i + 1}"] = jax.random.uniform(
            keys[1 + 2 * i], (dims[i], dims[i + 1]), jnp.float32, -bound, bound)
        params[f"b{i + 1}"] = jax.random.uniform(
            keys[2 + 2 * i], (1, dims[i + 1]), jnp.float32, -bound, bound)
    return params


def _reference_forward(image, labels, params, bf16):
    """Pure-JAX reference (optionally mimicking the kernel's bf16 casts)."""
    B = image.shape[0]
    h = jnp.concatenate([image.reshape(B, -1), params["emb"][labels]], axis=1)
    for i in range(1, 5):
        w, b = params[f"w{i}"], params[f"b{i}"]
        if bf16:
            h = jnp.dot(h.astype(jnp.bfloat16), w.astype(jnp.bfloat16),
                        preferred_element_type=jnp.float32) + b
        else:
            h = jnp.dot(h, w, preferred_element_type=jnp.float32) + b
        if i < 4:
            h = jnp.maximum(h, 0.0)
    return jax.nn.sigmoid(h)


if __name__ == "__main__":
    IMAGE_CHANNELS = 1
    NUM_CLASSES = 2
    IMG_SIZE = 32          # module hardcodes 256; small demo size (kernel scales)
    BATCH = 2

    d_img = IMAGE_CHANNELS * IMG_SIZE * IMG_SIZE
    in_dim = d_img + EMB_DIM

    key = jax.random.PRNGKey(0)
    k_img, k_lab, k_par = jax.random.split(key, 3)
    image = jax.random.normal(
        k_img, (BATCH, IMAGE_CHANNELS, IMG_SIZE, IMG_SIZE), jnp.float32)
    labels = jax.random.randint(k_lab, (BATCH,), 0, NUM_CLASSES, jnp.int32)

    params = init_params(k_par, in_dim, NUM_CLASSES)
    prepped = prepare_params(params, d_img)

    validity = jax.block_until_ready(
        discriminator_forward(image, labels, prepped, d_img=d_img))

    assert validity.shape == (BATCH, 1)
    assert bool(jnp.all((validity >= 0.0) & (validity <= 1.0)))

    # Check against a bf16-matched reference (tight) and the f32 reference (loose).
    ref_bf16 = _reference_forward(image, labels, params, bf16=True)
    ref_f32 = _reference_forward(image, labels, params, bf16=False)
    assert bool(jnp.allclose(validity, ref_bf16, atol=1e-2, rtol=1e-2)), (
        validity, ref_bf16)
    assert bool(jnp.allclose(validity, ref_f32, atol=5e-2, rtol=5e-2)), (
        validity, ref_f32)

    print("KERNEL_OK")
</pallas_src>

<mosaic_0001>
module attributes {stable_mosaic.version = 11 : i64} {
  func.func @_disc_kernel(%arg0: i32, %arg1: i32, %arg2: memref<8x1024xbf16, #tpu.memory_space<vmem>>, %arg3: memref<8x256xbf16, #tpu.memory_space<vmem>>, %arg4: memref<1024x1024xbf16, #tpu.memory_space<vmem>>, %arg5: memref<256x1024xbf16, #tpu.memory_space<vmem>>, %arg6: memref<1x1024xf32, #tpu.memory_space<vmem>>, %arg7: memref<1024x512xbf16, #tpu.memory_space<vmem>>, %arg8: memref<1x512xf32, #tpu.memory_space<vmem>>, %arg9: memref<512x256xbf16, #tpu.memory_space<vmem>>, %arg10: memref<1x256xf32, #tpu.memory_space<vmem>>, %arg11: memref<256x128xbf16, #tpu.memory_space<vmem>>, %arg12: memref<1x128xf32, #tpu.memory_space<vmem>>, %arg13: memref<8x128xf32, #tpu.memory_space<vmem>>, %arg14: memref<8x1024xf32, #tpu.memory_space<vmem>>) attributes {dimension_semantics = [#tpu.dimension_semantics<parallel>, #tpu.dimension_semantics<arbitrary>], iteration_bounds = array<i64: 1, 1>, scalar_prefetch = 0 : i64, scratch_operands = 1 : i64, tpu.core_type = #tpu.core_type<tc>, window_params = [{transform_indices = @transform_0, window_bounds = array<i64: 8, 1024>}, {transform_indices = @transform_1, window_bounds = array<i64: 8, 256>}, {transform_indices = @transform_2, window_bounds = array<i64: 1024, 1024>}, {pipeline_mode = #tpu.pipeline_mode<synchronous>, transform_indices = @transform_3, window_bounds = array<i64: 256, 1024>}, {pipeline_mode = #tpu.pipeline_mode<synchronous>, transform_indices = @transform_4, window_bounds = array<i64: 1, 1024>}, {pipeline_mode = #tpu.pipeline_mode<synchronous>, transform_indices = @transform_5, window_bounds = array<i64: 1024, 512>}, {pipeline_mode = #tpu.pipeline_mode<synchronous>, transform_indices = @transform_6, window_bounds = array<i64: 1, 512>}, {pipeline_mode = #tpu.pipeline_mode<synchronous>, transform_indices = @transform_7, window_bounds = array<i64: 512, 256>}, {pipeline_mode = #tpu.pipeline_mode<synchronous>, transform_indices = @transform_8, window_bounds = array<i64: 1, 256>}, {pipeline_mode = #tpu.pipeline_mode<synchronous>, transform_indices = @transform_9, window_bounds = array<i64: 256, 128>}, {pipeline_mode = #tpu.pipeline_mode<synchronous>, transform_indices = @transform_10, window_bounds = array<i64: 1, 128>}, {transform_indices = @transform_11, window_bounds = array<i64: 8, 128>}]} {
    %c0_i32 = arith.constant 0 : i32
    %0 = arith.cmpi eq, %arg1, %c0_i32 : i32
    %1 = arith.extui %0 : i1 to i32
    %c0_i32_0 = arith.constant 0 : i32
    %2 = arith.cmpi ne, %1, %c0_i32_0 : i32
    scf.if %2 {
      %c0_10 = arith.constant 0 : index
      %c0_11 = arith.constant 0 : index
      %12 = vector.load %arg3[%c0_10, %c0_11] : memref<8x256xbf16, #tpu.memory_space<vmem>>, vector<8x256xbf16>
      %c0_12 = arith.constant 0 : index
      %c0_13 = arith.constant 0 : index
      %13 = vector.load %arg5[%c0_12, %c0_13] : memref<256x1024xbf16, #tpu.memory_space<vmem>>, vector<256x1024xbf16>
      %cst_14 = arith.constant dense<0.000000e+00> : vector<8x1024xf32>
      %14 = tpu.matmul %12, %13, %cst_14 {dimension_numbers = #tpu.dot_dimension_numbers<[1], [0], [0], [1], [0, 0, 1, 1], [], []>} : vector<8x256xbf16>, vector<256x1024xbf16>, vector<8x1024xf32> -> vector<8x1024xf32>
      %c0_15 = arith.constant 0 : index
      %c0_16 = arith.constant 0 : index
      %15 = vector.load %arg6[%c0_15, %c0_16] : memref<1x1024xf32, #tpu.memory_space<vmem>>, vector<1x1024xf32>
      %16 = vector.broadcast %15 : vector<1x1024xf32> to vector<8x1024xf32>
      %17 = arith.addf %14, %16 : vector<8x1024xf32>
      %c0_17 = arith.constant 0 : index
      %c0_18 = arith.constant 0 : index
      %18 = vector.load %arg14[%c0_17, %c0_18] : memref<8x1024xf32, #tpu.memory_space<vmem>>, vector<8x1024xf32>
      tpu.vector_store %arg14[%c0_17, %c0_18], %17 {strides = array<i32>} : memref<8x1024xf32, #tpu.memory_space<vmem>>, vector<8x1024xf32>,
    } else {
    }
    %c0 = arith.constant 0 : index
    %c0_1 = arith.constant 0 : index
    %3 = vector.load %arg14[%c0, %c0_1] : memref<8x1024xf32, #tpu.memory_space<vmem>>, vector<8x1024xf32>
    %c0_2 = arith.constant 0 : index
    %c0_3 = arith.constant 0 : index
    %4 = vector.load %arg2[%c0_2, %c0_3] : memref<8x1024xbf16, #tpu.memory_space<vmem>>, vector<8x1024xbf16>
    %c0_4 = arith.constant 0 : index
    %c0_5 = arith.constant 0 : index
    %5 = vector.load %arg4[%c0_4, %c0_5] : memref<1024x1024xbf16, #tpu.memory_space<vmem>>, vector<1024x1024xbf16>
    %cst = arith.constant dense<0.000000e+00> : vector<8x1024xf32>
    %6 = tpu.matmul %4, %5, %cst {dimension_numbers = #tpu.dot_dimension_numbers<[1], [0], [0], [1], [0, 0, 1, 1], [], []>} : vector<8x1024xbf16>, vector<1024x1024xbf16>, vector<8x1024xf32> -> vector<8x1024xf32>
    %7 = arith.addf %3, %6 : vector<8x1024xf32>
    %c0_6 = arith.constant 0 : index
    %c0_7 = arith.constant 0 : index
    %8 = vector.load %arg14[%c0_6, %c0_7] : memref<8x1024xf32, #tpu.memory_space<vmem>>, vector<8x1024xf32>
    tpu.vector_store %arg14[%c0_6, %c0_7], %7 {strides = array<i32>} : memref<8x1024xf32, #tpu.memory_space<vmem>>, vector<8x1024xf32>,
    %c0_i32_8 = arith.constant 0 : i32
    %9 = arith.cmpi eq, %arg1, %c0_i32_8 : i32
    %10 = arith.extui %9 : i1 to i32
    %c0_i32_9 = arith.constant 0 : i32
    %11 = arith.cmpi ne, %10, %c0_i32_9 : i32
    scf.if %11 {
      %c0_10 = arith.constant 0 : index
      %c0_11 = arith.constant 0 : index
      %12 = vector.load %arg14[%c0_10, %c0_11] : memref<8x1024xf32, #tpu.memory_space<vmem>>, vector<8x1024xf32>
      %cst_12 = arith.constant 0.000000e+00 : f32
      %13 = vector.broadcast %cst_12 : f32 to vector<8x1024xf32>
      %14 = arith.maximumf %12, %13 : vector<8x1024xf32>
      %15 = arith.truncf %14 : vector<8x1024xf32> to vector<8x1024xbf16>
      %c0_13 = arith.constant 0 : index
      %c0_14 = arith.constant 0 : index
      %16 = vector.load %arg7[%c0_13, %c0_14] : memref<1024x512xbf16, #tpu.memory_space<vmem>>, vector<1024x512xbf16>
      %cst_15 = arith.constant dense<0.000000e+00> : vector<8x512xf32>
      %17 = tpu.matmul %15, %16, %cst_15 {dimension_numbers = #tpu.dot_dimension_numbers<[1], [0], [0], [1], [0, 0, 1, 1], [], []>} : vector<8x1024xbf16>, vector<1024x512xbf16>, vector<8x512xf32> -> vector<8x512xf32>
      %c0_16 = arith.constant 0 : index
      %c0_17 = arith.constant 0 : index
      %18 = vector.load %arg8[%c0_16, %c0_17] : memref<1x512xf32, #tpu.memory_space<vmem>>, vector<1x512xf32>
      %19 = vector.broadcast %18 : vector<1x512xf32> to vector<8x512xf32>
      %20 = arith.addf %17, %19 : vector<8x512xf32>
      %cst_18 = arith.constant 0.000000e+00 : f32
      %21 = vector.broadcast %cst_18 : f32 to vector<8x512xf32>
      %22 = arith.maximumf %20, %21 : vector<8x512xf32>
      %23 = arith.truncf %22 : vector<8x512xf32> to vector<8x512xbf16>
      %c0_19 = arith.constant 0 : index
      %c0_20 = arith.constant 0 : index
      %24 = vector.load %arg9[%c0_19, %c0_20] : memref<512x256xbf16, #tpu.memory_space<vmem>>, vector<512x256xbf16>
      %cst_21 = arith.constant dense<0.000000e+00> : vector<8x256xf32>
      %25 = tpu.matmul %23, %24, %cst_21 {dimension_numbers = #tpu.dot_dimension_numbers<[1], [0], [0], [1], [0, 0, 1, 1], [], []>} : vector<8x512xbf16>, vector<512x256xbf16>, vector<8x256xf32> -> vector<8x256xf32>
      %c0_22 = arith.constant 0 : index
      %c0_23 = arith.constant 0 : index
      %26 = vector.load %arg10[%c0_22, %c0_23] : memref<1x256xf32, #tpu.memory_space<vmem>>, vector<1x256xf32>
      %27 = vector.broadcast %26 : vector<1x256xf32> to vector<8x256xf32>
      %28 = arith.addf %25, %27 : vector<8x256xf32>
      %cst_24 = arith.constant 0.000000e+00 : f32
      %29 = vector.broadcast %cst_24 : f32 to vector<8x256xf32>
      %30 = arith.maximumf %28, %29 : vector<8x256xf32>
      %31 = arith.truncf %30 : vector<8x256xf32> to vector<8x256xbf16>
      %c0_25 = arith.constant 0 : index
      %c0_26 = arith.constant 0 : index
      %32 = vector.load %arg11[%c0_25, %c0_26] : memref<256x128xbf16, #tpu.memory_space<vmem>>, vector<256x128xbf16>
      %cst_27 = arith.constant dense<0.000000e+00> : vector<8x128xf32>
      %33 = tpu.matmul %31, %32, %cst_27 {dimension_numbers = #tpu.dot_dimension_numbers<[1], [0], [0], [1], [0, 0, 1, 1], [], []>} : vector<8x256xbf16>, vector<256x128xbf16>, vector<8x128xf32> -> vector<8x128xf32>
      %c0_28 = arith.constant 0 : index
      %c0_29 = arith.constant 0 : index
      %34 = vector.load %arg12[%c0_28, %c0_29] : memref<1x128xf32, #tpu.memory_space<vmem>>, vector<1x128xf32>
      %35 = vector.broadcast %34 : vector<1x128xf32> to vector<8x128xf32>
      %36 = arith.addf %33, %35 : vector<8x128xf32>
      %cst_30 = arith.constant 0.000000e+00 : f32
      %37 = vector.broadcast %cst_30 : f32 to vector<8x128xf32>
      %38 = arith.subf %37, %36 : vector<8x128xf32>
      %39 = math.exp %38 : vector<8x128xf32>
      %cst_31 = arith.constant 1.000000e+00 : f32
      %40 = vector.broadcast %cst_31 : f32 to vector<8x128xf32>
      %41 = arith.addf %40, %39 : vector<8x128xf32>
      %42 = tpu.reciprocal %41 {approx = true} : vector<8x128xf32> -> vector<8x128xf32>
      %c0_32 = arith.constant 0 : index
      %c0_33 = arith.constant 0 : index
      %43 = vector.load %arg13[%c0_32, %c0_33] : memref<8x128xf32, #tpu.memory_space<vmem>>, vector<8x128xf32>
      tpu.vector_store %arg13[%c0_32, %c0_33], %42 {strides = array<i32>} : memref<8x128xf32, #tpu.memory_space<vmem>>, vector<8x128xf32>,
    } else {
    }
    return
  }
  func.func @transform_0(%arg0: i32, %arg1: i32) -> (i32, i32) {
    %c0_i32 = arith.constant 0 : i32
    return %arg0, %arg1 : i32, i32
  }
  func.func @transform_1(%arg0: i32, %arg1: i32) -> (i32, i32) {
    %c0_i32 = arith.constant 0 : i32
    %c0_i32_0 = arith.constant 0 : i32
    return %arg0, %c0_i32 : i32, i32
  }
  func.func @transform_2(%arg0: i32, %arg1: i32) -> (i32, i32) {
    %c0_i32 = arith.constant 0 : i32
    %c0_i32_0 = arith.constant 0 : i32
    return %arg1, %c0_i32 : i32, i32
  }
  func.func @transform_3(%arg0: i32, %arg1: i32) -> (i32, i32) {
    %c0_i32 = arith.constant 0 : i32
    %c0_i32_0 = arith.constant 0 : i32
    %c0_i32_1 = arith.constant 0 : i32
    return %c0_i32, %c0_i32_0 : i32, i32
  }
  func.func @transform_4(%arg0: i32, %arg1: i32) -> (i32, i32) {
    %c0_i32 = arith.constant 0 : i32
    %c0_i32_0 = arith.constant 0 : i32
    %c0_i32_1 = arith.constant 0 : i32
    return %c0_i32, %c0_i32_0 : i32, i32
  }
  func.func @transform_5(%arg0: i32, %arg1: i32) -> (i32, i32) {
    %c0_i32 = arith.constant 0 : i32
    %c0_i32_0 = arith.constant 0 : i32
    %c0_i32_1 = arith.constant 0 : i32
    return %c0_i32, %c0_i32_0 : i32, i32
  }
  func.func @transform_6(%arg0: i32, %arg1: i32) -> (i32, i32) {
    %c0_i32 = arith.constant 0 : i32
    %c0_i32_0 = arith.constant 0 : i32
    %c0_i32_1 = arith.constant 0 : i32
    return %c0_i32, %c0_i32_0 : i32, i32
  }
  func.func @transform_7(%arg0: i32, %arg1: i32) -> (i32, i32) {
    %c0_i32 = arith.constant 0 : i32
    %c0_i32_0 = arith.constant 0 : i32
    %c0_i32_1 = arith.constant 0 : i32
    return %c0_i32, %c0_i32_0 : i32, i32
  }
  func.func @transform_8(%arg0: i32, %arg1: i32) -> (i32, i32) {
    %c0_i32 = arith.constant 0 : i32
    %c0_i32_0 = arith.constant 0 : i32
    %c0_i32_1 = arith.constant 0 : i32
    return %c0_i32, %c0_i32_0 : i32, i32
  }
  func.func @transform_9(%arg0: i32, %arg1: i32) -> (i32, i32) {
    %c0_i32 = arith.constant 0 : i32
    %c0_i32_0 = arith.constant 0 : i32
    %c0_i32_1 = arith.constant 0 : i32
    return %c0_i32, %c0_i32_0 : i32, i32
  }
  func.func @transform_10(%arg0: i32, %arg1: i32) -> (i32, i32) {
    %c0_i32 = arith.constant 0 : i32
    %c0_i32_0 = arith.constant 0 : i32
    %c0_i32_1 = arith.constant 0 : i32
    return %c0_i32, %c0_i32_0 : i32, i32
  }
  func.func @transform_11(%arg0: i32, %arg1: i32) -> (i32, i32) {
    %c0_i32 = arith.constant 0 : i32
    %c0_i32_0 = arith.constant 0 : i32
    return %arg0, %c0_i32 : i32, i32
  }
}

</mosaic_0001>

<llo_original>
// kernel: discriminator_forward.1
$region0: #{discriminator_forward.1}
  #allocation0 [shape = 'u32[]', space=smem, size = 0x4, offset = 0x4, fixed_abs, tag = 'smem constant byte address 0x4 - core index']
  #allocation1 [shape = 'u32[72,128]{1,0:T(1,128)}', space=vmem, size = 0x9000, scoped, tag = 'internal scratch']
  #allocation2 [shape = 'f32[8,1024]{1,0:T(8,128)}', space=vmem, size = 0x8000, scoped, tag = 'scratch operand']
  %s0 = inlined_call_operand.vmem [shape: bf16[8,1024], index: 0, kind: input, shape index: {}]
  %s1 = inlined_call_operand.vmem [shape: bf16[8,256], index: 1, kind: input, shape index: {}]
  %s2 = inlined_call_operand.hbm [shape: bf16[1024,1024], index: 2, kind: input, shape index: {}]
  %s3 = inlined_call_operand.hbm [shape: bf16[256,1024], index: 3, kind: input, shape index: {}]
  %s4 = inlined_call_operand.hbm [shape: f32[1,1024], index: 4, kind: input, shape index: {}]
  %s5 = inlined_call_operand.hbm [shape: bf16[1024,512], index: 5, kind: input, shape index: {}]
  %s6 = inlined_call_operand.hbm [shape: f32[1,512], index: 6, kind: input, shape index: {}]
  %s7 = inlined_call_operand.hbm [shape: bf16[512,256], index: 7, kind: input, shape index: {}]
  %s8 = inlined_call_operand.hbm [shape: f32[1,256], index: 8, kind: input, shape index: {}]
  %s9 = inlined_call_operand.hbm [shape: bf16[256,128], index: 9, kind: input, shape index: {}]
  %s10 = inlined_call_operand.hbm [shape: f32[1,128], index: 10, kind: input, shape index: {}]
  %s11 = inlined_call_operand.vmem [shape: f32[8,128], index: 11, kind: output, shape index: {}]
  %s12 = sld [smem:[#allocation0]]
  $region98: #{discriminator_forward.1} parent=0
    _
  %s14 = ssub.s32 1, %s12
  %s15 = scalar_select 0, %s14, %s12
  $region1: #{discriminator_forward.1} parent=0
    #allocation3 [shape = 'u8[2097152]{0}', space=vmem, size = 0x200000, scoped, tag = 'input window, operand 2, single buffered']
    #allocation4 [shape = 's32[1]{0}', space=sflag, size = 0x4, scoped, tag = 'scoped memory for discriminator_forward.1']
    #allocation5 [shape = 'u8[524288]{0}', space=vmem, size = 0x80000, scoped, tag = 'input window, operand 3, single buffered']
    #allocation6 [shape = 's32[1]{0}', space=sflag, size = 0x4, scoped, tag = 'scoped memory for discriminator_forward.1']
    #allocation7 [shape = 'u8[4096]{0}', space=vmem, size = 0x1000, scoped, tag = 'input window, operand 4, single buffered']
    #allocation8 [shape = 'u8[1048576]{0}', space=vmem, size = 0x100000, scoped, tag = 'input window, operand 5, single buffered']
    #allocation9 [shape = 's32[1]{0}', space=sflag, size = 0x4, scoped, tag = 'scoped memory for discriminator_forward.1']
    #allocation10 [shape = 'u8[2048]{0}', space=vmem, size = 0x800, scoped, tag = 'input window, operand 6, single buffered']
    #allocation11 [shape = 'u8[262144]{0}', space=vmem, size = 0x40000, scoped, tag = 'input window, operand 7, single buffered']
    #allocation12 [shape = 's32[1]{0}', space=sflag, size = 0x4, scoped, tag = 'scoped memory for discriminator_forward.1']
    #allocation13 [shape = 'u8[1024]{0}', space=vmem, size = 0x400, scoped, tag = 'input window, operand 8, single buffered']
    #allocation14 [shape = 'u8[65536]{0}', space=vmem, size = 0x10000, scoped, tag = 'input window, operand 9, single buffered']
    #allocation15 [shape = 's32[1]{0}', space=sflag, size = 0x4, scoped, tag = 'scoped memory for discriminator_forward.1']
    #allocation16 [shape = 'u8[512]{0}', space=vmem, size = 0x400, scoped, tag = 'input window, operand 10, single buffered']
    %16 = vsyncpa [#allocation4], 0
    %17 = vsyncpa [#allocation6], 0
    %18 = vsyncpa [#allocation9], 0
    %19 = vsyncpa [#allocation12], 0
    %20 = vsyncpa [#allocation15], 0
    // Predicated region
    $region2: #{discriminator_forward.1} parent=1 // pred_check
      _
    $region3: #{discriminator_forward.1} parent=1 // pred_check_branch
      %22 = sbr.rel (0) target = $region5
    $region4: #{discriminator_forward.1} parent=1 // pred_region
      _
    $region5: #{discriminator_forward.1} parent=1 // pred_fallthru
      _
    // Predicated region
    $region6: #{discriminator_forward.1} parent=1 // pred_check
      _
    $region7: #{discriminator_forward.1} parent=1 // pred_check_branch
      %24 = sbr.rel (0) target = $region9
    $region8: #{discriminator_forward.1} parent=1 // pred_region
      _
    $region9: #{discriminator_forward.1} parent=1 // pred_fallthru
      _
    // Predicated region
    $region10: #{discriminator_forward.1} parent=1 // pred_check
      _
    $region11: #{discriminator_forward.1} parent=1 // pred_check_branch
      %26 = sbr.rel (0) target = $region13
    $region12: #{discriminator_forward.1} parent=1 // pred_region
      %28 = vsyncadd [#allocation4], 0
      %s29 = sshll.u32 %s2, 4
      %s30 = int_to_ptr.hbm [resolvable:$true] %s29
      %s31 = sshll.u32 [#allocation3], 4
      %s32 = int_to_ptr.vmem [resolvable:$true] %s31
      %37 = dma.hbm_to_vmem [thread:$0]  %s30, 65536, %s32, [#allocation4], 512, 512, 32
    $region13: #{discriminator_forward.1} parent=1 // pred_fallthru
      _
    // Predicated region
    $region14: #{discriminator_forward.1} parent=1 // pred_check
      _
    $region15: #{discriminator_forward.1} parent=1 // pred_check_branch
      %39 = sbr.rel (0) target = $region17
    $region16: #{discriminator_forward.1} parent=1 // pred_region
      %41 = vsyncadd [#allocation6], 0
      %s42 = sshll.u32 %s3, 4
      %s43 = int_to_ptr.hbm [resolvable:$true] %s42
      %s44 = sshll.u32 [#allocation5], 4
      %s45 = int_to_ptr.vmem [resolvable:$true] %s44
      %50 = dma.hbm_to_vmem [thread:$0]  %s43, 16384, %s45, [#allocation6], 512, 512, 32
    $region17: #{discriminator_forward.1} parent=1 // pred_fallthru
      _
    // Predicated region
    $region18: #{discriminator_forward.1} parent=1 // pred_check
      _
    $region19: #{discriminator_forward.1} parent=1 // pred_check_branch
      %52 = sbr.rel (0) target = $region21
    $region20: #{discriminator_forward.1} parent=1 // pred_region
      %54 = vsyncadd [#allocation6], 0
      %s56 = sshll.u32 %s4, 4
      %s57 = int_to_ptr.hbm [resolvable:$true] %s56
      %s58 = sshll.u32 [#allocation7], 4
      %s59 = int_to_ptr.vmem [resolvable:$true] %s58
      %61 = dma.hbm_to_vmem [thread:$0]  %s57, 128, %s59, [#allocation6]
    $region21: #{discriminator_forward.1} parent=1 // pred_fallthru
      _
    // Predicated region
    $region22: #{discriminator_forward.1} parent=1 // pred_check
      _
    $region23: #{discriminator_forward.1} parent=1 // pred_check_branch
      %63 = sbr.rel (0) target = $region25
    $region24: #{discriminator_forward.1} parent=1 // pred_region
      %65 = vsyncadd [#allocation9], 0
      %s66 = sshll.u32 %s5, 4
      %s67 = int_to_ptr.hbm [resolvable:$true] %s66
      %s68 = sshll.u32 [#allocation8], 4
      %s69 = int_to_ptr.vmem [resolvable:$true] %s68
      %74 = dma.hbm_to_vmem [thread:$0]  %s67, 32768, %s69, [#allocation9], 256, 256, 16
    $region25: #{discriminator_forward.1} parent=1 // pred_fallthru
      _
    // Predicated region
    $region26: #{discriminator_forward.1} parent=1 // pred_check
      _
    $region27: #{discriminator_forward.1} parent=1 // pred_check_branch
      %76 = sbr.rel (0) target = $region29
    $region28: #{discriminator_forward.1} parent=1 // pred_region
      %78 = vsyncadd [#allocation9], 0
      %s80 = sshll.u32 %s6, 4
      %s81 = int_to_ptr.hbm [resolvable:$true] %s80
      %s82 = sshll.u32 [#allocation10], 4
      %s83 = int_to_ptr.vmem [resolvable:$true] %s82
      %85 = dma.hbm_to_vmem [thread:$0]  %s81, 64, %s83, [#allocation9]
    $region29: #{discriminator_forward.1} parent=1 // pred_fallthru
      _
    // Predicated region
    $region30: #{discriminator_forward.1} parent=1 // pred_check
      _
    $region31: #{discriminator_forward.1} parent=1 // pred_check_branch
      %87 = sbr.rel (0) target = $region33
    $region32: #{discriminator_forward.1} parent=1 // pred_region
      %89 = vsyncadd [#allocation12], 0
      %s90 = sshll.u32 %s7, 4
      %s91 = int_to_ptr.hbm [resolvable:$true] %s90
      %s92 = sshll.u32 [#allocation11], 4
      %s93 = int_to_ptr.vmem [resolvable:$true] %s92
      %98 = dma.hbm_to_vmem [thread:$0]  %s91, 8192, %s93, [#allocation12], 128, 128, 8
    $region33: #{discriminator_forward.1} parent=1 // pred_fallthru
      _
    // Predicated region
    $region34: #{discriminator_forward.1} parent=1 // pred_check
      _
    $region35: #{discriminator_forward.1} parent=1 // pred_check_branch
      %100 = sbr.rel (0) target = $region37
    $region36: #{discriminator_forward.1} parent=1 // pred_region
      %102 = vsyncadd [#allocation12], 0
      %s104 = sshll.u32 %s8, 4
      %s105 = int_to_ptr.hbm [resolvable:$true] %s104
      %s106 = sshll.u32 [#allocation13], 4
      %s107 = int_to_ptr.vmem [resolvable:$true] %s106
      %109 = dma.hbm_to_vmem [thread:$0]  %s105, 32, %s107, [#allocation12]
    $region37: #{discriminator_forward.1} parent=1 // pred_fallthru
      _
    // Predicated region
    $region38: #{discriminator_forward.1} parent=1 // pred_check
      _
    $region39: #{discriminator_forward.1} parent=1 // pred_check_branch
      %111 = sbr.rel (0) target = $region41
    $region40: #{discriminator_forward.1} parent=1 // pred_region
      %113 = vsyncadd [#allocation15], 0
      %s114 = sshll.u32 %s9, 4
      %s115 = int_to_ptr.hbm [resolvable:$true] %s114
      %s116 = sshll.u32 [#allocation14], 4
      %s117 = int_to_ptr.vmem [resolvable:$true] %s116
      %122 = dma.hbm_to_vmem [thread:$0]  %s115, 2048, %s117, [#allocation15], 64, 64, 4
    $region41: #{discriminator_forward.1} parent=1 // pred_fallthru
      _
    // Predicated region
    $region42: #{discriminator_forward.1} parent=1 // pred_check
      _
    $region43: #{discriminator_forward.1} parent=1 // pred_check_branch
      %124 = sbr.rel (0) target = $region45
    $region44: #{discriminator_forward.1} parent=1 // pred_region
      %126 = vsyncadd [#allocation15], 0
      %s128 = sshll.u32 %s10, 4
      %s129 = int_to_ptr.hbm [resolvable:$true] %s128
      %s130 = sshll.u32 [#allocation16], 4
      %s131 = int_to_ptr.vmem [resolvable:$true] %s130
      %133 = dma.hbm_to_vmem [thread:$0]  %s129, 16, %s131, [#allocation15]
    $region45: #{discriminator_forward.1} parent=1 // pred_fallthru
      _
    // Predicated region
    $region46: #{discriminator_forward.1} parent=1 // pred_check
      _
    $region47: #{discriminator_forward.1} parent=1 // pred_check_branch
      %135 = sbr.rel (0) target = $region49
    $region48: #{discriminator_forward.1} parent=1 // pred_region
      %137 = dma.done [#allocation4], 65536
    $region49: #{discriminator_forward.1} parent=1 // pred_fallthru
      _
    // Predicated region
    $region50: #{discriminator_forward.1} parent=1 // pred_check
      _
    $region51: #{discriminator_forward.1} parent=1 // pred_check_branch
      %139 = sbr.rel (0) target = $region53
    $region52: #{discriminator_forward.1} parent=1 // pred_region
      %141 = dma.done [#allocation6], 16384
    $region53: #{discriminator_forward.1} parent=1 // pred_fallthru
      _
    // Predicated region
    $region54: #{discriminator_forward.1} parent=1 // pred_check
      _
    $region55: #{discriminator_forward.1} parent=1 // pred_check_branch
      %143 = sbr.rel (0) target = $region57
    $region56: #{discriminator_forward.1} parent=1 // pred_region
      %145 = dma.done [#allocation6], 128
    $region57: #{discriminator_forward.1} parent=1 // pred_fallthru
      _
    // Predicated region
    $region58: #{discriminator_forward.1} parent=1 // pred_check
      _
    $region59: #{discriminator_forward.1} parent=1 // pred_check_branch
      %147 = sbr.rel (0) target = $region61
    $region60: #{discriminator_forward.1} parent=1 // pred_region
      %149 = dma.done [#allocation9], 32768
    $region61: #{discriminator_forward.1} parent=1 // pred_fallthru
      _
    // Predicated region
    $region62: #{discriminator_forward.1} parent=1 // pred_check
      _
    $region63: #{discriminator_forward.1} parent=1 // pred_check_branch
      %151 = sbr.rel (0) target = $region65
    $region64: #{discriminator_forward.1} parent=1 // pred_region
      %153 = dma.done [#allocation9], 64
    $region65: #{discriminator_forward.1} parent=1 // pred_fallthru
      _
    // Predicated region
    $region66: #{discriminator_forward.1} parent=1 // pred_check
      _
    $region67: #{discriminator_forward.1} parent=1 // pred_check_branch
      %155 = sbr.rel (0) target = $region69
    $region68: #{discriminator_forward.1} parent=1 // pred_region
      %157 = dma.done [#allocation12], 8192
    $region69: #{discriminator_forward.1} parent=1 // pred_fallthru
      _
    // Predicated region
    $region70: #{discriminator_forward.1} parent=1 // pred_check
      _
    $region71: #{discriminator_forward.1} parent=1 // pred_check_branch
      %159 = sbr.rel (0) target = $region73
    $region72: #{discriminator_forward.1} parent=1 // pred_region
      %161 = dma.done [#allocation12], 32
    $region73: #{discriminator_forward.1} parent=1 // pred_fallthru
      _
    // Predicated region
    $region74: #{discriminator_forward.1} parent=1 // pred_check
      _
    $region75: #{discriminator_forward.1} parent=1 // pred_check_branch
      %163 = sbr.rel (0) target = $region77
    $region76: #{discriminator_forward.1} parent=1 // pred_region
      %165 = dma.done [#allocation15], 2048
    $region77: #{discriminator_forward.1} parent=1 // pred_fallthru
      _
    // Predicated region
    $region78: #{discriminator_forward.1} parent=1 // pred_check
      _
    $region79: #{discriminator_forward.1} parent=1 // pred_check_branch
      %167 = sbr.rel (0) target = $region81
    $region80: #{discriminator_forward.1} parent=1 // pred_region
      %169 = dma.done [#allocation15], 16
    $region81: #{discriminator_forward.1} parent=1 // pred_fallthru
      _
    %p170 = scmp.eq.s32.totalorder 0, 0
    // Predicated region
    $region82: #{discriminator_forward.1} parent=1 // pred_check
      %p171 = pneg %p170
    $region83: #{discriminator_forward.1} parent=1 // pred_check_branch
      %173 = sbr.rel (%p171) target = $region85
    $region84: #{discriminator_forward.1} parent=1 // pred_region
      %v174 = vld [vmem:[%s1] sm:$0xff]
      %v175 = vld [vmem:[#allocation5] sm:$0xff]
      %v176 = vld [vmem:[#allocation5 + $0x8] sm:$0xff]
      %v177 = vld [vmem:[#allocation5 + $0x10] sm:$0xff]
      %v178 = vld [vmem:[#allocation5 + $0x18] sm:$0xff]
      %v179 = vld [vmem:[#allocation5 + $0x20] sm:$0xff]
      %v180 = vld [vmem:[#allocation5 + $0x28] sm:$0xff]
      %v181 = vld [vmem:[#allocation5 + $0x30] sm:$0xff]
      %v182 = vld [vmem:[#allocation5 + $0x38] sm:$0xff]
      %v183 = vld [vmem:[#allocation5 + $0x40] sm:$0xff]
      %v184 = vld [vmem:[#allocation5 + $0x48] sm:$0xff]
      %v185 = vld [vmem:[#allocation5 + $0x50] sm:$0xff]
      %v186 = vld [vmem:[#allocation5 + $0x58] sm:$0xff]
      %v187 = vld [vmem:[#allocation5 + $0x60] sm:$0xff]
      %v188 = vld [vmem:[#allocation5 + $0x68] sm:$0xff]
      %v189 = vld [vmem:[#allocation5 + $0x70] sm:$0xff]
      %v190 = vld [vmem:[#allocation5 + $0x78] sm:$0xff]
      %v191 = vld [vmem:[#allocation5 + $0x80] sm:$0xff]
      %v192 = vld [vmem:[#allocation5 + $0x88] sm:$0xff]
      %v193 = vld [vmem:[#allocation5 + $0x90] sm:$0xff]
      %v194 = vld [vmem:[#allocation5 + $0x98] sm:$0xff]
      %v195 = vld [vmem:[#allocation5 + $0xa0] sm:$0xff]
      %v196 = vld [vmem:[#allocation5 + $0xa8] sm:$0xff]
      %v197 = vld [vmem:[#allocation5 + $0xb0] sm:$0xff]
      %v198 = vld [vmem:[#allocation5 + $0xb8] sm:$0xff]
      %v199 = vld [vmem:[#allocation5 + $0xc0] sm:$0xff]
      %v200 = vld [vmem:[#allocation5 + $0xc8] sm:$0xff]
      %v201 = vld [vmem:[#allocation5 + $0xd0] sm:$0xff]
      %v202 = vld [vmem:[#allocation5 + $0xd8] sm:$0xff]
      %v203 = vld [vmem:[#allocation5 + $0xe0] sm:$0xff]
      %v204 = vld [vmem:[#allocation5 + $0xe8] sm:$0xff]
      %v205 = vld [vmem:[#allocation5 + $0xf0] sm:$0xff]
      %v206 = vld [vmem:[#allocation5 + $0xf8] sm:$0xff]
      %v207 = vld [vmem:[#allocation5 + $0x100] sm:$0xff]
      %v208 = vld [vmem:[#allocation5 + $0x108] sm:$0xff]
      %v209 = vld [vmem:[#allocation5 + $0x110] sm:$0xff]
      %v210 = vld [vmem:[#allocation5 + $0x118] sm:$0xff]
      %v211 = vld [vmem:[#allocation5 + $0x120] sm:$0xff]
      %v212 = vld [vmem:[#allocation5 + $0x128] sm:$0xff]
      %v213 = vld [vmem:[#allocation5 + $0x130] sm:$0xff]
      %v214 = vld [vmem:[#allocation5 + $0x138] sm:$0xff]
      %v215 = vld [vmem:[#allocation5 + $0x140] sm:$0xff]
      %v216 = vld [vmem:[#allocation5 + $0x148] sm:$0xff]
      %v217 = vld [vmem:[#allocation5 + $0x150] sm:$0xff]
      %v218 = vld [vmem:[#allocation5 + $0x158] sm:$0xff]
      %v219 = vld [vmem:[#allocation5 + $0x160] sm:$0xff]
      %v220 = vld [vmem:[#allocation5 + $0x168] sm:$0xff]
      %v221 = vld [vmem:[#allocation5 + $0x170] sm:$0xff]
      %v222 = vld [vmem:[#allocation5 + $0x178] sm:$0xff]
      %v223 = vld [vmem:[#allocation5 + $0x180] sm:$0xff]
      %v224 = vld [vmem:[#allocation5 + $0x188] sm:$0xff]
      %v225 = vld [vmem:[#allocation5 + $0x190] sm:$0xff]
      %v226 = vld [vmem:[#allocation5 + $0x198] sm:$0xff]
      %v227 = vld [vmem:[#allocation5 + $0x1a0] sm:$0xff]
      %v228 = vld [vmem:[#allocation5 + $0x1a8] sm:$0xff]
      %v229 = vld [vmem:[#allocation5 + $0x1b0] sm:$0xff]
      %v230 = vld [vmem:[#allocation5 + $0x1b8] sm:$0xff]
      %v231 = vld [vmem:[#allocation5 + $0x1c0] sm:$0xff]
      %v232 = vld [vmem:[#allocation5 + $0x1c8] sm:$0xff]
      %v233 = vld [vmem:[#allocation5 + $0x1d0] sm:$0xff]
      %v234 = vld [vmem:[#allocation5 + $0x1d8] sm:$0xff]
      %v235 = vld [vmem:[#allocation5 + $0x1e0] sm:$0xff]
      %v236 = vld [vmem:[#allocation5 + $0x1e8] sm:$0xff]
      %v237 = vld [vmem:[#allocation5 + $0x1f0] sm:$0xff]
      %v238 = vld [vmem:[#allocation5 + $0x1f8] sm:$0xff]
      %v239 = vld [vmem:[#allocation5 + $0x200] sm:$0xff]
      %v240 = vld [vmem:[#allocation5 + $0x208] sm:$0xff]
      %v241 = vld [vmem:[#allocation5 + $0x210] sm:$0xff]
      %v242 = vld [vmem:[#allocation5 + $0x218] sm:$0xff]
      %v243 = vld [vmem:[#allocation5 + $0x220] sm:$0xff]
      %v244 = vld [vmem:[#allocation5 + $0x228] sm:$0xff]
      %v245 = vld [vmem:[#allocation5 + $0x230] sm:$0xff]
      %v246 = vld [vmem:[#allocation5 + $0x238] sm:$0xff]
      %v247 = vld [vmem:[#allocation5 + $0x240] sm:$0xff]
      %v248 = vld [vmem:[#allocation5 + $0x248] sm:$0xff]
      %v249 = vld [vmem:[#allocation5 + $0x250] sm:$0xff]
      %v250 = vld [vmem:[#allocation5 + $0x258] sm:$0xff]
      %v251 = vld [vmem:[#allocation5 + $0x260] sm:$0xff]
      %v252 = vld [vmem:[#allocation5 + $0x268] sm:$0xff]
      %v253 = vld [vmem:[#allocation5 + $0x270] sm:$0xff]
      %v254 = vld [vmem:[#allocation5 + $0x278] sm:$0xff]
      %v255 = vld [vmem:[#allocation5 + $0x280] sm:$0xff]
      %v256 = vld [vmem:[#allocation5 + $0x288] sm:$0xff]
      %v257 = vld [vmem:[#allocation5 + $0x290] sm:$0xff]
      %v258 = vld [vmem:[#allocation5 + $0x298] sm:$0xff]
      %v259 = vld [vmem:[#allocation5 + $0x2a0] sm:$0xff]
      %v260 = vld [vmem:[#allocation5 + $0x2a8] sm:$0xff]
      %v261 = vld [vmem:[#allocation5 + $0x2b0] sm:$0xff]
      %v262 = vld [vmem:[#allocation5 + $0x2b8] sm:$0xff]
      %v263 = vld [vmem:[#allocation5 + $0x2c0] sm:$0xff]
      %v264 = vld [vmem:[#allocation5 + $0x2c8] sm:$0xff]
      %v265 = vld [vmem:[#allocation5 + $0x2d0] sm:$0xff]
      %v266 = vld [vmem:[#allocation5 + $0x2d8] sm:$0xff]
      %v267 = vld [vmem:[#allocation5 + $0x2e0] sm:$0xff]
      %v268 = vld [vmem:[#allocation5 + $0x2e8] sm:$0xff]
      %v269 = vld [vmem:[#allocation5 + $0x2f0] sm:$0xff]
      %v270 = vld [vmem:[#allocation5 + $0x2f8] sm:$0xff]
      %v271 = vld [vmem:[#allocation5 + $0x300] sm:$0xff]
      %v272 = vld [vmem:[#allocation5 + $0x308] sm:$0xff]
      %v273 = vld [vmem:[#allocation5 + $0x310] sm:$0xff]
      %v274 = vld [vmem:[#allocation5 + $0x318] sm:$0xff]
      %v275 = vld [vmem:[#allocation5 + $0x320] sm:$0xff]
      %v276 = vld [vmem:[#allocation5 + $0x328] sm:$0xff]
      %v277 = vld [vmem:[#allocation5 + $0x330] sm:$0xff]
      %v278 = vld [vmem:[#allocation5 + $0x338] sm:$0xff]
      %v279 = vld [vmem:[#allocation5 + $0x340] sm:$0xff]
      %v280 = vld [vmem:[#allocation5 + $0x348] sm:$0xff]
      %v281 = vld [vmem:[#allocation5 + $0x350] sm:$0xff]
      %v282 = vld [vmem:[#allocation5 + $0x358] sm:$0xff]
      %v283 = vld [vmem:[#allocation5 + $0x360] sm:$0xff]
      %v284 = vld [vmem:[#allocation5 + $0x368] sm:$0xff]
      %v285 = vld [vmem:[#allocation5 + $0x370] sm:$0xff]
      %v286 = vld [vmem:[#allocation5 + $0x378] sm:$0xff]
      %v287 = vld [vmem:[#allocation5 + $0x380] sm:$0xff]
      %v288 = vld [vmem:[#allocation5 + $0x388] sm:$0xff]
      %v289 = vld [vmem:[#allocation5 + $0x390] sm:$0xff]
      %v290 = vld [vmem:[#allocation5 + $0x398] sm:$0xff]
      %v291 = vld [vmem:[#allocation5 + $0x3a0] sm:$0xff]
      %v292 = vld [vmem:[#allocation5 + $0x3a8] sm:$0xff]
      %v293 = vld [vmem:[#allocation5 + $0x3b0] sm:$0xff]
      %v294 = vld [vmem:[#allocation5 + $0x3b8] sm:$0xff]
      %v295 = vld [vmem:[#allocation5 + $0x3c0] sm:$0xff]
      %v296 = vld [vmem:[#allocation5 + $0x3c8] sm:$0xff]
      %v297 = vld [vmem:[#allocation5 + $0x3d0] sm:$0xff]
      %v298 = vld [vmem:[#allocation5 + $0x3d8] sm:$0xff]
      %v299 = vld [vmem:[#allocation5 + $0x3e0] sm:$0xff]
      %v300 = vld [vmem:[#allocation5 + $0x3e8] sm:$0xff]
      %v301 = vld [vmem:[#allocation5 + $0x3f0] sm:$0xff]
      %v302 = vld [vmem:[#allocation5 + $0x3f8] sm:$0xff]
      %v303 = vld [vmem:[#allocation7] sm:$0xff]
      %v305 = vperm.slane %v303, 0
      %v306 = vperm.slane %v303, 1
      %v307 = vperm.slane %v303, 2
      %v308 = vperm.slane %v303, 3
      %v309 = vperm.slane %v303, 4
      %v310 = vperm.slane %v303, 5
      %v311 = vperm.slane %v303, 6
      %v312 = vperm.slane %v303, 7
      %v322 = vunpack.c.l.b16 %v174
      %v323 = vunpack.c.h.b16 %v174
      %v324 = vpack.c.b16 %v322, %v322
      %v325 = vpack.c.b16 %v323, %v323
      %v456 = vunpack.c.l.b16 %v175
      %v457 = vunpack.c.h.b16 %v175
      %v458 = vunpack.c.l.b16 %v176
      %v459 = vunpack.c.h.b16 %v176
      %v460 = vunpack.c.l.b16 %v177
      %v461 = vunpack.c.h.b16 %v177
      %v462 = vunpack.c.l.b16 %v178
      %v463 = vunpack.c.h.b16 %v178
      %v464 = vunpack.c.l.b16 %v179
      %v465 = vunpack.c.h.b16 %v179
      %v466 = vunpack.c.l.b16 %v180
      %v467 = vunpack.c.h.b16 %v180
      %v468 = vunpack.c.l.b16 %v181
      %v469 = vunpack.c.h.b16 %v181
      %v470 = vunpack.c.l.b16 %v182
      %v471 = vunpack.c.h.b16 %v182
      %v472 = vunpack.c.l.b16 %v183
      %v473 = vunpack.c.h.b16 %v183
      %v474 = vunpack.c.l.b16 %v184
      %v475 = vunpack.c.h.b16 %v184
      %v476 = vunpack.c.l.b16 %v185
      %v477 = vunpack.c.h.b16 %v185
      %v478 = vunpack.c.l.b16 %v186
      %v479 = vunpack.c.h.b16 %v186
      %v480 = vunpack.c.l.b16 %v187
      %v481 = vunpack.c.h.b16 %v187
      %v482 = vunpack.c.l.b16 %v188
      %v483 = vunpack.c.h.b16 %v188
      %v484 = vunpack.c.l.b16 %v189
      %v485 = vunpack.c.h.b16 %v189
      %v486 = vunpack.c.l.b16 %v190
      %v487 = vunpack.c.h.b16 %v190
      %v488 = vunpack.c.l.b16 %v191
      %v489 = vunpack.c.h.b16 %v191
      %v490 = vunpack.c.l.b16 %v192
      %v491 = vunpack.c.h.b16 %v192
      %v492 = vunpack.c.l.b16 %v193
      %v493 = vunpack.c.h.b16 %v193
      %v494 = vunpack.c.l.b16 %v194
      %v495 = vunpack.c.h.b16 %v194
      %v496 = vunpack.c.l.b16 %v195
      %v497 = vunpack.c.h.b16 %v195
      %v498 = vunpack.c.l.b16 %v196
      %v499 = vunpack.c.h.b16 %v196
      %v500 = vunpack.c.l.b16 %v197
      %v501 = vunpack.c.h.b16 %v197
      %v502 = vunpack.c.l.b16 %v198
      %v503 = vunpack.c.h.b16 %v198
      %v504 = vunpack.c.l.b16 %v199
      %v505 = vunpack.c.h.b16 %v199
      %v506 = vunpack.c.l.b16 %v200
      %v507 = vunpack.c.h.b16 %v200
      %v508 = vunpack.c.l.b16 %v201
      %v509 = vunpack.c.h.b16 %v201
      %v510 = vunpack.c.l.b16 %v202
      %v511 = vunpack.c.h.b16 %v202
      %v512 = vunpack.c.l.b16 %v203
      %v513 = vunpack.c.h.b16 %v203
      %v514 = vunpack.c.l.b16 %v204
      %v515 = vunpack.c.h.b16 %v204
      %v516 = vunpack.c.l.b16 %v205
      %v517 = vunpack.c.h.b16 %v205
      %v518 = vunpack.c.l.b16 %v206
      %v519 = vunpack.c.h.b16 %v206
      %v520 = vunpack.c.l.b16 %v207
      %v521 = vunpack.c.h.b16 %v207
      %v522 = vunpack.c.l.b16 %v208
      %v523 = vunpack.c.h.b16 %v208
      %v524 = vunpack.c.l.b16 %v209
      %v525 = vunpack.c.h.b16 %v209
      %v526 = vunpack.c.l.b16 %v210
      %v527 = vunpack.c.h.b16 %v210
      %v528 = vunpack.c.l.b16 %v211
      %v529 = vunpack.c.h.b16 %v211
      %v530 = vunpack.c.l.b16 %v212
      %v531 = vunpack.c.h.b16 %v212
      %v532 = vunpack.c.l.b16 %v213
      %v533 = vunpack.c.h.b16 %v213
      %v534 = vunpack.c.l.b16 %v214
      %v535 = vunpack.c.h.b16 %v214
      %v536 = vunpack.c.l.b16 %v215
      %v537 = vunpack.c.h.b16 %v215
      %v538 = vunpack.c.l.b16 %v216
      %v539 = vunpack.c.h.b16 %v216
      %v540 = vunpack.c.l.b16 %v217
      %v541 = vunpack.c.h.b16 %v217
      %v542 = vunpack.c.l.b16 %v218
      %v543 = vunpack.c.h.b16 %v218
      %v544 = vunpack.c.l.b16 %v219
      %v545 = vunpack.c.h.b16 %v219
      %v546 = vunpack.c.l.b16 %v220
      %v547 = vunpack.c.h.b16 %v220
      %v548 = vunpack.c.l.b16 %v221
      %v549 = vunpack.c.h.b16 %v221
      %v550 = vunpack.c.l.b16 %v222
      %v551 = vunpack.c.h.b16 %v222
      %v552 = vunpack.c.l.b16 %v223
      %v553 = vunpack.c.h.b16 %v223
      %v554 = vunpack.c.l.b16 %v224
      %v555 = vunpack.c.h.b16 %v224
      %v556 = vunpack.c.l.b16 %v225
      %v557 = vunpack.c.h.b16 %v225
      %v558 = vunpack.c.l.b16 %v226
      %v559 = vunpack.c.h.b16 %v226
      %v560 = vunpack.c.l.b16 %v227
      %v561 = vunpack.c.h.b16 %v227
      %v562 = vunpack.c.l.b16 %v228
      %v563 = vunpack.c.h.b16 %v228
      %v564 = vunpack.c.l.b16 %v229
      %v565 = vunpack.c.h.b16 %v229
      %v566 = vunpack.c.l.b16 %v230
      %v567 = vunpack.c.h.b16 %v230
      %v568 = vunpack.c.l.b16 %v231
      %v569 = vunpack.c.h.b16 %v231
      %v570 = vunpack.c.l.b16 %v232
      %v571 = vunpack.c.h.b16 %v232
      %v572 = vunpack.c.l.b16 %v233
      %v573 = vunpack.c.h.b16 %v233
      %v574 = vunpack.c.l.b16 %v234
      %v575 = vunpack.c.h.b16 %v234
      %v576 = vunpack.c.l.b16 %v235
      %v577 = vunpack.c.h.b16 %v235
      %v578 = vunpack.c.l.b16 %v236
      %v579 = vunpack.c.h.b16 %v236
      %v580 = vunpack.c.l.b16 %v237
      %v581 = vunpack.c.h.b16 %v237
      %v582 = vunpack.c.l.b16 %v238
      %v583 = vunpack.c.h.b16 %v238
      %v584 = vunpack.c.l.b16 %v239
      %v585 = vunpack.c.h.b16 %v239
      %v586 = vunpack.c.l.b16 %v240
      %v587 = vunpack.c.h.b16 %v240
      %v588 = vunpack.c.l.b16 %v241
      %v589 = vunpack.c.h.b16 %v241
      %v590 = vunpack.c.l.b16 %v242
      %v591 = vunpack.c.h.b16 %v242
      %v592 = vunpack.c.l.b16 %v243
      %v593 = vunpack.c.h.b16 %v243
      %v594 = vunpack.c.l.b16 %v244
      %v595 = vunpack.c.h.b16 %v244
      %v596 = vunpack.c.l.b16 %v245
      %v597 = vunpack.c.h.b16 %v245
      %v598 = vunpack.c.l.b16 %v246
      %v599 = vunpack.c.h.b16 %v246
      %v600 = vunpack.c.l.b16 %v247
      %v601 = vunpack.c.h.b16 %v247
      %v602 = vunpack.c.l.b16 %v248
      %v603 = vunpack.c.h.b16 %v248
      %v604 = vunpack.c.l.b16 %v249
      %v605 = vunpack.c.h.b16 %v249
      %v606 = vunpack.c.l.b16 %v250
      %v607 = vunpack.c.h.b16 %v250
      %v608 = vunpack.c.l.b16 %v251
      %v609 = vunpack.c.h.b16 %v251
      %v610 = vunpack.c.l.b16 %v252
      %v611 = vunpack.c.h.b16 %v252
      %v612 = vunpack.c.l.b16 %v253
      %v613 = vunpack.c.h.b16 %v253
      %v614 = vunpack.c.l.b16 %v254
      %v615 = vunpack.c.h.b16 %v254
      %v616 = vunpack.c.l.b16 %v255
      %v617 = vunpack.c.h.b16 %v255
      %v618 = vunpack.c.l.b16 %v256
      %v619 = vunpack.c.h.b16 %v256
      %v620 = vunpack.c.l.b16 %v257
      %v621 = vunpack.c.h.b16 %v257
      %v622 = vunpack.c.l.b16 %v258
      %v623 = vunpack.c.h.b16 %v258
      %v624 = vunpack.c.l.b16 %v259
      %v625 = vunpack.c.h.b16 %v259
      %v626 = vunpack.c.l.b16 %v260
      %v627 = vunpack.c.h.b16 %v260
      %v628 = vunpack.c.l.b16 %v261
      %v629 = vunpack.c.h.b16 %v261
      %v630 = vunpack.c.l.b16 %v262
      %v631 = vunpack.c.h.b16 %v262
      %v632 = vunpack.c.l.b16 %v263
      %v633 = vunpack.c.h.b16 %v263
      %v634 = vunpack.c.l.b16 %v264
      %v635 = vunpack.c.h.b16 %v264
      %v636 = vunpack.c.l.b16 %v265
      %v637 = vunpack.c.h.b16 %v265
      %v638 = vunpack.c.l.b16 %v266
      %v639 = vunpack.c.h.b16 %v266
      %v640 = vunpack.c.l.b16 %v267
      %v641 = vunpack.c.h.b16 %v267
      %v642 = vunpack.c.l.b16 %v268
      %v643 = vunpack.c.h.b16 %v268
      %v644 = vunpack.c.l.b16 %v269
      %v645 = vunpack.c.h.b16 %v269
      %v646 = vunpack.c.l.b16 %v270
      %v647 = vunpack.c.h.b16 %v270
      %v648 = vunpack.c.l.b16 %v271
      %v649 = vunpack.c.h.b16 %v271
      %v650 = vunpack.c.l.b16 %v272
      %v651 = vunpack.c.h.b16 %v272
      %v652 = vunpack.c.l.b16 %v273
      %v653 = vunpack.c.h.b16 %v273
      %v654 = vunpack.c.l.b16 %v274
      %v655 = vunpack.c.h.b16 %v274
      %v656 = vunpack.c.l.b16 %v275
      %v657 = vunpack.c.h.b16 %v275
      %v658 = vunpack.c.l.b16 %v276
      %v659 = vunpack.c.h.b16 %v276
      %v660 = vunpack.c.l.b16 %v277
      %v661 = vunpack.c.h.b16 %v277
      %v662 = vunpack.c.l.b16 %v278
      %v663 = vunpack.c.h.b16 %v278
      %v664 = vunpack.c.l.b16 %v279
      %v665 = vunpack.c.h.b16 %v279
      %v666 = vunpack.c.l.b16 %v280
      %v667 = vunpack.c.h.b16 %v280
      %v668 = vunpack.c.l.b16 %v281
      %v669 = vunpack.c.h.b16 %v281
      %v670 = vunpack.c.l.b16 %v282
      %v671 = vunpack.c.h.b16 %v282
      %v672 = vunpack.c.l.b16 %v283
      %v673 = vunpack.c.h.b16 %v283
      %v674 = vunpack.c.l.b16 %v284
      %v675 = vunpack.c.h.b16 %v284
      %v676 = vunpack.c.l.b16 %v285
      %v677 = vunpack.c.h.b16 %v285
      %v678 = vunpack.c.l.b16 %v286
      %v679 = vunpack.c.h.b16 %v286
      %v680 = vunpack.c.l.b16 %v287
      %v681 = vunpack.c.h.b16 %v287
      %v682 = vunpack.c.l.b16 %v288
      %v683 = vunpack.c.h.b16 %v288
      %v684 = vunpack.c.l.b16 %v289
      %v685 = vunpack.c.h.b16 %v289
      %v686 = vunpack.c.l.b16 %v290
      %v687 = vunpack.c.h.b16 %v290
      %v688 = vunpack.c.l.b16 %v291
      %v689 = vunpack.c.h.b16 %v291
      %v690 = vunpack.c.l.b16 %v292
      %v691 = vunpack.c.h.b16 %v292
      %v692 = vunpack.c.l.b16 %v293
      %v693 = vunpack.c.h.b16 %v293
      %v694 = vunpack.c.l.b16 %v294
      %v695 = vunpack.c.h.b16 %v294
      %v696 = vunpack.c.l.b16 %v295
      %v697 = vunpack.c.h.b16 %v295
      %v698 = vunpack.c.l.b16 %v296
      %v699 = vunpack.c.h.b16 %v296
      %v700 = vunpack.c.l.b16 %v297
      %v701 = vunpack.c.h.b16 %v297
      %v702 = vunpack.c.l.b16 %v298
      %v703 = vunpack.c.h.b16 %v298
      %v704 = vunpack.c.l.b16 %v299
      %v705 = vunpack.c.h.b16 %v299
      %v706 = vunpack.c.l.b16 %v300
      %v707 = vunpack.c.h.b16 %v300
      %v708 = vunpack.c.l.b16 %v301
      %v709 = vunpack.c.h.b16 %v301
      %v710 = vunpack.c.l.b16 %v302
      %v711 = vunpack.c.h.b16 %v302
      %v712 = vpack.c.b16 %v464, %v456
      %v713 = vpack.c.b16 %v465, %v457
      %v714 = vpack.c.b16 %v466, %v458
      %v715 = vpack.c.b16 %v467, %v459
      %v716 = vpack.c.b16 %v468, %v460
      %v717 = vpack.c.b16 %v469, %v461
      %v718 = vpack.c.b16 %v470, %v462
      %v719 = vpack.c.b16 %v471, %v463
      %v720 = vpack.c.b16 %v480, %v472
      %v721 = vpack.c.b16 %v481, %v473
      %v722 = vpack.c.b16 %v482, %v474
      %v723 = vpack.c.b16 %v483, %v475
      %v724 = vpack.c.b16 %v484, %v476
      %v725 = vpack.c.b16 %v485, %v477
      %v726 = vpack.c.b16 %v486, %v478
      %v727 = vpack.c.b16 %v487, %v479
      %v728 = vpack.c.b16 %v496, %v488
      %v729 = vpack.c.b16 %v497, %v489
      %v730 = vpack.c.b16 %v498, %v490
      %v731 = vpack.c.b16 %v499, %v491
      %v732 = vpack.c.b16 %v500, %v492
      %v733 = vpack.c.b16 %v501, %v493
      %v734 = vpack.c.b16 %v502, %v494
      %v735 = vpack.c.b16 %v503, %v495
      %v736 = vpack.c.b16 %v512, %v504
      %v737 = vpack.c.b16 %v513, %v505
      %v738 = vpack.c.b16 %v514, %v506
      %v739 = vpack.c.b16 %v515, %v507
      %v740 = vpack.c.b16 %v516, %v508
      %v741 = vpack.c.b16 %v517, %v509
      %v742 = vpack.c.b16 %v518, %v510
      %v743 = vpack.c.b16 %v519, %v511
      %v744 = vpack.c.b16 %v528, %v520
      %v745 = vpack.c.b16 %v529, %v521
      %v746 = vpack.c.b16 %v530, %v522
      %v747 = vpack.c.b16 %v531, %v523
      %v748 = vpack.c.b16 %v532, %v524
      %v749 = vpack.c.b16 %v533, %v525
      %v750 = vpack.c.b16 %v534, %v526
      %v751 = vpack.c.b16 %v535, %v527
      %v752 = vpack.c.b16 %v544, %v536
      %v753 = vpack.c.b16 %v545, %v537
      %v754 = vpack.c.b16 %v546, %v538
      %v755 = vpack.c.b16 %v547, %v539
      %v756 = vpack.c.b16 %v548, %v540
      %v757 = vpack.c.b16 %v549, %v541
      %v758 = vpack.c.b16 %v550, %v542
      %v759 = vpack.c.b16 %v551, %v543
      %v760 = vpack.c.b16 %v560, %v552
      %v761 = vpack.c.b16 %v561, %v553
      %v762 = vpack.c.b16 %v562, %v554
      %v763 = vpack.c.b16 %v563, %v555
      %v764 = vpack.c.b16 %v564, %v556
      %v765 = vpack.c.b16 %v565, %v557
      %v766 = vpack.c.b16 %v566, %v558
      %v767 = vpack.c.b16 %v567, %v559
      %v768 = vpack.c.b16 %v576, %v568
      %v769 = vpack.c.b16 %v577, %v569
      %v770 = vpack.c.b16 %v578, %v570
      %v771 = vpack.c.b16 %v579, %v571
      %v772 = vpack.c.b16 %v580, %v572
      %v773 = vpack.c.b16 %v581, %v573
      %v774 = vpack.c.b16 %v582, %v574
      %v775 = vpack.c.b16 %v583, %v575
      %v776 = vpack.c.b16 %v592, %v584
      %v777 = vpack.c.b16 %v593, %v585
      %v778 = vpack.c.b16 %v594, %v586
      %v779 = vpack.c.b16 %v595, %v587
      %v780 = vpack.c.b16 %v596, %v588
      %v781 = vpack.c.b16 %v597, %v589
      %v782 = vpack.c.b16 %v598, %v590
      %v783 = vpack.c.b16 %v599, %v591
      %v784 = vpack.c.b16 %v608, %v600
      %v785 = vpack.c.b16 %v609, %v601
      %v786 = vpack.c.b16 %v610, %v602
      %v787 = vpack.c.b16 %v611, %v603
      %v788 = vpack.c.b16 %v612, %v604
      %v789 = vpack.c.b16 %v613, %v605
      %v790 = vpack.c.b16 %v614, %v606
      %v791 = vpack.c.b16 %v615, %v607
      %v792 = vpack.c.b16 %v624, %v616
      %v793 = vpack.c.b16 %v625, %v617
      %v794 = vpack.c.b16 %v626, %v618
      %v795 = vpack.c.b16 %v627, %v619
      %v796 = vpack.c.b16 %v628, %v620
      %v797 = vpack.c.b16 %v629, %v621
      %v798 = vpack.c.b16 %v630, %v622
      %v799 = vpack.c.b16 %v631, %v623
      %v800 = vpack.c.b16 %v640, %v632
      %v801 = vpack.c.b16 %v641, %v633
      %v802 = vpack.c.b16 %v642, %v634
      %v803 = vpack.c.b16 %v643, %v635
      %v804 = vpack.c.b16 %v644, %v636
      %v805 = vpack.c.b16 %v645, %v637
      %v806 = vpack.c.b16 %v646, %v638
      %v807 = vpack.c.b16 %v647, %v639
      %v808 = vpack.c.b16 %v656, %v648
      %v809 = vpack.c.b16 %v657, %v649
      %v810 = vpack.c.b16 %v658, %v650
      %v811 = vpack.c.b16 %v659, %v651
      %v812 = vpack.c.b16 %v660, %v652
      %v813 = vpack.c.b16 %v661, %v653
      %v814 = vpack.c.b16 %v662, %v654
      %v815 = vpack.c.b16 %v663, %v655
      %v816 = vpack.c.b16 %v672, %v664
      %v817 = vpack.c.b16 %v673, %v665
      %v818 = vpack.c.b16 %v674, %v666
      %v819 = vpack.c.b16 %v675, %v667
      %v820 = vpack.c.b16 %v676, %v668
      %v821 = vpack.c.b16 %v677, %v669
      %v822 = vpack.c.b16 %v678, %v670
      %v823 = vpack.c.b16 %v679, %v671
      %v824 = vpack.c.b16 %v688, %v680
      %v825 = vpack.c.b16 %v689, %v681
      %v826 = vpack.c.b16 %v690, %v682
      %v827 = vpack.c.b16 %v691, %v683
      %v828 = vpack.c.b16 %v692, %v684
      %v829 = vpack.c.b16 %v693, %v685
      %v830 = vpack.c.b16 %v694, %v686
      %v831 = vpack.c.b16 %v695, %v687
      %v832 = vpack.c.b16 %v704, %v696
      %v833 = vpack.c.b16 %v705, %v697
      %v834 = vpack.c.b16 %v706, %v698
      %v835 = vpack.c.b16 %v707, %v699
      %v836 = vpack.c.b16 %v708, %v700
      %v837 = vpack.c.b16 %v709, %v701
      %v838 = vpack.c.b16 %v710, %v702
      %v839 = vpack.c.b16 %v711, %v703
      %968 = vmatpush.bf16.msra.mxu0 %v768
      %969 = vmatpush.bf16.msra.mxu0 %v760
      %970 = vmatpush.bf16.msra.mxu0 %v752
      %971 = vmatpush.bf16.msra.mxu0 %v744
      %972 = vmatpush.bf16.msra.mxu0 %v736
      %973 = vmatpush.bf16.msra.mxu0 %v728
      %974 = vmatpush.bf16.msra.mxu0 %v720
      %975 = vmatpush.bf16.msra.mxu0 %v712
      %976 = vmatmul.bf16.gmra.mxu0 %v324
      %v977 = vpop.f32.mrf.mxu0
      %v978 = vadd.f32 %v305, %v977
      %v979 = vpop.f32.mrf.mxu0
      %980 = vdwg.mxu0
      %981 = vmatpush.bf16.msra.mxu0 %v832
      %982 = vmatpush.bf16.msra.mxu0 %v824
      %983 = vmatpush.bf16.msra.mxu0 %v816
      %984 = vmatpush.bf16.msra.mxu0 %v808
      %985 = vmatpush.bf16.msra.mxu0 %v800
      %986 = vmatpush.bf16.msra.mxu0 %v792
      %987 = vmatpush.bf16.msra.mxu0 %v784
      %988 = vmatpush.bf16.msra.mxu0 %v776
      %989 = vmatmul.bf16.gmra.mxu0 %v325
      %v990 = vpop.f32.mrf.mxu0
      %v991 = vadd.f32 %v978, %v990
      %v992 = vpop.f32.mrf.mxu0
      %993 = vdwg.mxu0
      %994 = vmatpush.bf16.msra.mxu0 %v769
      %995 = vmatpush.bf16.msra.mxu0 %v761
      %996 = vmatpush.bf16.msra.mxu0 %v753
      %997 = vmatpush.bf16.msra.mxu0 %v745
      %998 = vmatpush.bf16.msra.mxu0 %v737
      %999 = vmatpush.bf16.msra.mxu0 %v729
      %1000 = vmatpush.bf16.msra.mxu0 %v721
      %1001 = vmatpush.bf16.msra.mxu0 %v713
      %1002 = vmatmul.bf16.gmra.mxu0 %v324
      %v1003 = vpop.f32.mrf.mxu0
      %v1004 = vadd.f32 %v306, %v1003
      %v1005 = vpop.f32.mrf.mxu0
      %1006 = vdwg.mxu0
      %1007 = vmatpush.bf16.msra.mxu0 %v833
      %1008 = vmatpush.bf16.msra.mxu0 %v825
      %1009 = vmatpush.bf16.msra.mxu0 %v817
      %1010 = vmatpush.bf16.msra.mxu0 %v809
      %1011 = vmatpush.bf16.msra.mxu0 %v801
      %1012 = vmatpush.bf16.msra.mxu0 %v793
      %1013 = vmatpush.bf16.msra.mxu0 %v785
      %1014 = vmatpush.bf16.msra.mxu0 %v777
      %1015 = vmatmul.bf16.gmra.mxu0 %v325
      %v1016 = vpop.f32.mrf.mxu0
      %v1017 = vadd.f32 %v1004, %v1016
      %v1018 = vpop.f32.mrf.mxu0
      %1019 = vdwg.mxu0
      %1020 = vmatpush.bf16.msra.mxu0 %v770
      %1021 = vmatpush.bf16.msra.mxu0 %v762
      %1022 = vmatpush.bf16.msra.mxu0 %v754
      %1023 = vmatpush.bf16.msra.mxu0 %v746
      %1024 = vmatpush.bf16.msra.mxu0 %v738
      %1025 = vmatpush.bf16.msra.mxu0 %v730
      %1026 = vmatpush.bf16.msra.mxu0 %v722
      %1027 = vmatpush.bf16.msra.mxu0 %v714
      %1028 = vmatmul.bf16.gmra.mxu0 %v324
      %v1029 = vpop.f32.mrf.mxu0
      %v1030 = vadd.f32 %v307, %v1029
      %v1031 = vpop.f32.mrf.mxu0
      %1032 = vdwg.mxu0
      %1033 = vmatpush.bf16.msra.mxu0 %v834
      %1034 = vmatpush.bf16.msra.mxu0 %v826
      %1035 = vmatpush.bf16.msra.mxu0 %v818
      %1036 = vmatpush.bf16.msra.mxu0 %v810
      %1037 = vmatpush.bf16.msra.mxu0 %v802
      %1038 = vmatpush.bf16.msra.mxu0 %v794
      %1039 = vmatpush.bf16.msra.mxu0 %v786
      %1040 = vmatpush.bf16.msra.mxu0 %v778
      %1041 = vmatmul.bf16.gmra.mxu0 %v325
      %v1042 = vpop.f32.mrf.mxu0
      %v1043 = vadd.f32 %v1030, %v1042
      %v1044 = vpop.f32.mrf.mxu0
      %1045 = vdwg.mxu0
      %1046 = vmatpush.bf16.msra.mxu0 %v771
      %1047 = vmatpush.bf16.msra.mxu0 %v763
      %1048 = vmatpush.bf16.msra.mxu0 %v755
      %1049 = vmatpush.bf16.msra.mxu0 %v747
      %1050 = vmatpush.bf16.msra.mxu0 %v739
      %1051 = vmatpush.bf16.msra.mxu0 %v731
      %1052 = vmatpush.bf16.msra.mxu0 %v723
      %1053 = vmatpush.bf16.msra.mxu0 %v715
      %1054 = vmatmul.bf16.gmra.mxu0 %v324
      %v1055 = vpop.f32.mrf.mxu0
      %v1056 = vadd.f32 %v308, %v1055
      %v1057 = vpop.f32.mrf.mxu0
      %1058 = vdwg.mxu0
      %1059 = vmatpush.bf16.msra.mxu0 %v835
      %1060 = vmatpush.bf16.msra.mxu0 %v827
      %1061 = vmatpush.bf16.msra.mxu0 %v819
      %1062 = vmatpush.bf16.msra.mxu0 %v811
      %1063 = vmatpush.bf16.msra.mxu0 %v803
      %1064 = vmatpush.bf16.msra.mxu0 %v795
      %1065 = vmatpush.bf16.msra.mxu0 %v787
      %1066 = vmatpush.bf16.msra.mxu0 %v779
      %1067 = vmatmul.bf16.gmra.mxu0 %v325
      %v1068 = vpop.f32.mrf.mxu0
      %v1069 = vadd.f32 %v1056, %v1068
      %v1070 = vpop.f32.mrf.mxu0
      %1071 = vdwg.mxu0
      %1072 = vmatpush.bf16.msra.mxu0 %v772
      %1073 = vmatpush.bf16.msra.mxu0 %v764
      %1074 = vmatpush.bf16.msra.mxu0 %v756
      %1075 = vmatpush.bf16.msra.mxu0 %v748
      %1076 = vmatpush.bf16.msra.mxu0 %v740
      %1077 = vmatpush.bf16.msra.mxu0 %v732
      %1078 = vmatpush.bf16.msra.mxu0 %v724
      %1079 = vmatpush.bf16.msra.mxu0 %v716
      %1080 = vmatmul.bf16.gmra.mxu0 %v324
      %v1081 = vpop.f32.mrf.mxu0
      %v1082 = vadd.f32 %v309, %v1081
      %v1083 = vpop.f32.mrf.mxu0
      %1084 = vdwg.mxu0
      %1085 = vmatpush.bf16.msra.mxu0 %v836
      %1086 = vmatpush.bf16.msra.mxu0 %v828
      %1087 = vmatpush.bf16.msra.mxu0 %v820
      %1088 = vmatpush.bf16.msra.mxu0 %v812
      %1089 = vmatpush.bf16.msra.mxu0 %v804
      %1090 = vmatpush.bf16.msra.mxu0 %v796
      %1091 = vmatpush.bf16.msra.mxu0 %v788
      %1092 = vmatpush.bf16.msra.mxu0 %v780
      %1093 = vmatmul.bf16.gmra.mxu0 %v325
      %v1094 = vpop.f32.mrf.mxu0
      %v1095 = vadd.f32 %v1082, %v1094
      %v1096 = vpop.f32.mrf.mxu0
      %1097 = vdwg.mxu0
      %1098 = vmatpush.bf16.msra.mxu0 %v773
      %1099 = vmatpush.bf16.msra.mxu0 %v765
      %1100 = vmatpush.bf16.msra.mxu0 %v757
      %1101 = vmatpush.bf16.msra.mxu0 %v749
      %1102 = vmatpush.bf16.msra.mxu0 %v741
      %1103 = vmatpush.bf16.msra.mxu0 %v733
      %1104 = vmatpush.bf16.msra.mxu0 %v725
      %1105 = vmatpush.bf16.msra.mxu0 %v717
      %1106 = vmatmul.bf16.gmra.mxu0 %v324
      %v1107 = vpop.f32.mrf.mxu0
      %v1108 = vadd.f32 %v310, %v1107
      %v1109 = vpop.f32.mrf.mxu0
      %1110 = vdwg.mxu0
      %1111 = vmatpush.bf16.msra.mxu0 %v837
      %1112 = vmatpush.bf16.msra.mxu0 %v829
      %1113 = vmatpush.bf16.msra.mxu0 %v821
      %1114 = vmatpush.bf16.msra.mxu0 %v813
      %1115 = vmatpush.bf16.msra.mxu0 %v805
      %1116 = vmatpush.bf16.msra.mxu0 %v797
      %1117 = vmatpush.bf16.msra.mxu0 %v789
      %1118 = vmatpush.bf16.msra.mxu0 %v781
      %1119 = vmatmul.bf16.gmra.mxu0 %v325
      %v1120 = vpop.f32.mrf.mxu0
      %v1121 = vadd.f32 %v1108, %v1120
      %v1122 = vpop.f32.mrf.mxu0
      %1123 = vdwg.mxu0
      %1124 = vmatpush.bf16.msra.mxu0 %v774
      %1125 = vmatpush.bf16.msra.mxu0 %v766
      %1126 = vmatpush.bf16.msra.mxu0 %v758
      %1127 = vmatpush.bf16.msra.mxu0 %v750
      %1128 = vmatpush.bf16.msra.mxu0 %v742
      %1129 = vmatpush.bf16.msra.mxu0 %v734
      %1130 = vmatpush.bf16.msra.mxu0 %v726
      %1131 = vmatpush.bf16.msra.mxu0 %v718
      %1132 = vmatmul.bf16.gmra.mxu0 %v324
      %v1133 = vpop.f32.mrf.mxu0
      %v1134 = vadd.f32 %v311, %v1133
      %v1135 = vpop.f32.mrf.mxu0
      %1136 = vdwg.mxu0
      %1137 = vmatpush.bf16.msra.mxu0 %v838
      %1138 = vmatpush.bf16.msra.mxu0 %v830
      %1139 = vmatpush.bf16.msra.mxu0 %v822
      %1140 = vmatpush.bf16.msra.mxu0 %v814
      %1141 = vmatpush.bf16.msra.mxu0 %v806
      %1142 = vmatpush.bf16.msra.mxu0 %v798
      %1143 = vmatpush.bf16.msra.mxu0 %v790
      %1144 = vmatpush.bf16.msra.mxu0 %v782
      %1145 = vmatmul.bf16.gmra.mxu0 %v325
      %v1146 = vpop.f32.mrf.mxu0
      %v1147 = vadd.f32 %v1134, %v1146
      %v1148 = vpop.f32.mrf.mxu0
      %1149 = vdwg.mxu0
      %1150 = vmatpush.bf16.msra.mxu0 %v775
      %1151 = vmatpush.bf16.msra.mxu0 %v767
      %1152 = vmatpush.bf16.msra.mxu0 %v759
      %1153 = vmatpush.bf16.msra.mxu0 %v751
      %1154 = vmatpush.bf16.msra.mxu0 %v743
      %1155 = vmatpush.bf16.msra.mxu0 %v735
      %1156 = vmatpush.bf16.msra.mxu0 %v727
      %1157 = vmatpush.bf16.msra.mxu0 %v719
      %1158 = vmatmul.bf16.gmra.mxu0 %v324
      %v1159 = vpop.f32.mrf.mxu0
      %v1160 = vadd.f32 %v312, %v1159
      %v1161 = vpop.f32.mrf.mxu0
      %1162 = vdwg.mxu0
      %1163 = vmatpush.bf16.msra.mxu0 %v839
      %1164 = vmatpush.bf16.msra.mxu0 %v831
      %1165 = vmatpush.bf16.msra.mxu0 %v823
      %1166 = vmatpush.bf16.msra.mxu0 %v815
      %1167 = vmatpush.bf16.msra.mxu0 %v807
      %1168 = vmatpush.bf16.msra.mxu0 %v799
      %1169 = vmatpush.bf16.msra.mxu0 %v791
      %1170 = vmatpush.bf16.msra.mxu0 %v783
      %1171 = vmatmul.bf16.gmra.mxu0 %v325
      %v1172 = vpop.f32.mrf.mxu0
      %v1173 = vadd.f32 %v1160, %v1172
      %v1174 = vpop.f32.mrf.mxu0
      %1175 = vdwg.mxu0
      %1176 = vst [vmem:[#allocation2] sm:$0xff] %v991
      %1177 = vst [vmem:[#allocation2 + $0x8] sm:$0xff] %v1017
      %1178 = vst [vmem:[#allocation2 + $0x10] sm:$0xff] %v1043
      %1179 = vst [vmem:[#allocation2 + $0x18] sm:$0xff] %v1069
      %1180 = vst [vmem:[#allocation2 + $0x20] sm:$0xff] %v1095
      %1181 = vst [vmem:[#allocation2 + $0x28] sm:$0xff] %v1121
      %1182 = vst [vmem:[#allocation2 + $0x30] sm:$0xff] %v1147
      %1183 = vst [vmem:[#allocation2 + $0x38] sm:$0xff] %v1173
    $region85: #{discriminator_forward.1} parent=1 // pred_fallthru
      _
    %v1184 = vld [vmem:[#allocation2] sm:$0xff]
    %v1185 = vld [vmem:[#allocation2 + $0x8] sm:$0xff]
    %v1186 = vld [vmem:[#allocation2 + $0x10] sm:$0xff]
    %v1187 = vld [vmem:[#allocation2 + $0x18] sm:$0xff]
    %v1188 = vld [vmem:[#allocation2 + $0x20] sm:$0xff]
    %v1189 = vld [vmem:[#allocation2 + $0x28] sm:$0xff]
    %v1190 = vld [vmem:[#allocation2 + $0x30] sm:$0xff]
    %v1191 = vld [vmem:[#allocation2 + $0x38] sm:$0xff]
    %v1192 = vld [vmem:[%s0] sm:$0xff]
    %v1193 = vld [vmem:[%s0 + $0x8] sm:$0xff]
    %v1194 = vld [vmem:[%s0 + $0x10] sm:$0xff]
    %v1195 = vld [vmem:[%s0 + $0x18] sm:$0xff]
    %v1196 = vld [vmem:[#allocation3] sm:$0xff]
    %v1197 = vld [vmem:[#allocation3 + $0x8] sm:$0xff]
    %v1198 = vld [vmem:[#allocation3 + $0x10] sm:$0xff]
    %v1199 = vld [vmem:[#allocation3 + $0x18] sm:$0xff]
    %v1200 = vld [vmem:[#allocation3 + $0x20] sm:$0xff]
    %v1201 = vld [vmem:[#allocation3 + $0x28] sm:$0xff]
    %v1202 = vld [vmem:[#allocation3 + $0x30] sm:$0xff]
    %v1203 = vld [vmem:[#allocation3 + $0x38] sm:$0xff]
    %v1204 = vld [vmem:[#allocation3 + $0x40] sm:$0xff]
    %v1205 = vld [vmem:[#allocation3 + $0x48] sm:$0xff]
    %v1206 = vld [vmem:[#allocation3 + $0x50] sm:$0xff]
    %v1207 = vld [vmem:[#allocation3 + $0x58] sm:$0xff]
    %v1208 = vld [vmem:[#allocation3 + $0x60] sm:$0xff]
    %v1209 = vld [vmem:[#allocation3 + $0x68] sm:$0xff]
    %v1210 = vld [vmem:[#allocation3 + $0x70] sm:$0xff]
    %v1211 = vld [vmem:[#allocation3 + $0x78] sm:$0xff]
    %v1212 = vld [vmem:[#allocation3 + $0x80] sm:$0xff]
    %v1213 = vld [vmem:[#allocation3 + $0x88] sm:$0xff]
    %v1214 = vld [vmem:[#allocation3 + $0x90] sm:$0xff]
    %v1215 = vld [vmem:[#allocation3 + $0x98] sm:$0xff]
    %v1216 = vld [vmem:[#allocation3 + $0xa0] sm:$0xff]
    %v1217 = vld [vmem:[#allocation3 + $0xa8] sm:$0xff]
    %v1218 = vld [vmem:[#allocation3 + $0xb0] sm:$0xff]
    %v1219 = vld [vmem:[#allocation3 + $0xb8] sm:$0xff]
    %v1220 = vld [vmem:[#allocation3 + $0xc0] sm:$0xff]
    %v1221 = vld [vmem:[#allocation3 + $0xc8] sm:$0xff]
    %v1222 = vld [vmem:[#allocation3 + $0xd0] sm:$0xff]
    %v1223 = vld [vmem:[#allocation3 + $0xd8] sm:$0xff]
    %v1224 = vld [vmem:[#allocation3 + $0xe0] sm:$0xff]
    %v1225 = vld [vmem:[#allocation3 + $0xe8] sm:$0xff]
    %v1226 = vld [vmem:[#allocation3 + $0xf0] sm:$0xff]
    %v1227 = vld [vmem:[#allocation3 + $0xf8] sm:$0xff]
    %v1228 = vld [vmem:[#allocation3 + $0x100] sm:$0xff]
    %v1229 = vld [vmem:[#allocation3 + $0x108] sm:$0xff]
    %v1230 = vld [vmem:[#allocation3 + $0x110] sm:$0xff]
    %v1231 = vld [vmem:[#allocation3 + $0x118] sm:$0xff]
    %v1232 = vld [vmem:[#allocation3 + $0x120] sm:$0xff]
    %v1233 = vld [vmem:[#allocation3 + $0x128] sm:$0xff]
    %v1234 = vld [vmem:[#allocation3 + $0x130] sm:$0xff]
    %v1235 = vld [vmem:[#allocation3 + $0x138] sm:$0xff]
    %v1236 = vld [vmem:[#allocation3 + $0x140] sm:$0xff]
    %v1237 = vld [vmem:[#allocation3 + $0x148] sm:$0xff]
    %v1238 = vld [vmem:[#allocation3 + $0x150] sm:$0xff]
    %v1239 = vld [vmem:[#allocation3 + $0x158] sm:$0xff]
    %v1240 = vld [vmem:[#allocation3 + $0x160] sm:$0xff]
    %v1241 = vld [vmem:[#allocation3 + $0x168] sm:$0xff]
    %v1242 = vld [vmem:[#allocation3 + $0x170] sm:$0xff]
    %v1243 = vld [vmem:[#allocation3 + $0x178] sm:$0xff]
    %v1244 = vld [vmem:[#allocation3 + $0x180] sm:$0xff]
    %v1245 = vld [vmem:[#allocation3 + $0x188] sm:$0xff]
    %v1246 = vld [vmem:[#allocation3 + $0x190] sm:$0xff]
    %v1247 = vld [vmem:[#allocation3 + $0x198] sm:$0xff]
    %v1248 = vld [vmem:[#allocation3 + $0x1a0] sm:$0xff]
    %v1249 = vld [vmem:[#allocation3 + $0x1a8] sm:$0xff]
    %v1250 = vld [vmem:[#allocation3 + $0x1b0] sm:$0xff]
    %v1251 = vld [vmem:[#allocation3 + $0x1b8] sm:$0xff]
    %v1252 = vld [vmem:[#allocation3 + $0x1c0] sm:$0xff]
    %v1253 = vld [vmem:[#allocation3 + $0x1c8] sm:$0xff]
    %v1254 = vld [vmem:[#allocation3 + $0x1d0] sm:$0xff]
    %v1255 = vld [vmem:[#allocation3 + $0x1d8] sm:$0xff]
    %v1256 = vld [vmem:[#allocation3 + $0x1e0] sm:$0xff]
    %v1257 = vld [vmem:[#allocation3 + $0x1e8] sm:$0xff]
    %v1258 = vld [vmem:[#allocation3 + $0x1f0] sm:$0xff]
    %v1259 = vld [vmem:[#allocation3 + $0x1f8] sm:$0xff]
    %v1260 = vld [vmem:[#allocation3 + $0x200] sm:$0xff]
    %v1261 = vld [vmem:[#allocation3 + $0x208] sm:$0xff]
    %v1262 = vld [vmem:[#allocation3 + $0x210] sm:$0xff]
    %v1263 = vld [vmem:[#allocation3 + $0x218] sm:$0xff]
    %v1264 = vld [vmem:[#allocation3 + $0x220] sm:$0xff]
    %v1265 = vld [vmem:[#allocation3 + $0x228] sm:$0xff]
    %v1266 = vld [vmem:[#allocation3 + $0x230] sm:$0xff]
    %v1267 = vld [vmem:[#allocation3 + $0x238] sm:$0xff]
    %v1268 = vld [vmem:[#allocation3 + $0x240] sm:$0xff]
    %v1269 = vld [vmem:[#allocation3 + $0x248] sm:$0xff]
    %v1270 = vld [vmem:[#allocation3 + $0x250] sm:$0xff]
    %v1271 = vld [vmem:[#allocation3 + $0x258] sm:$0xff]
    %v1272 = vld [vmem:[#allocation3 + $0x260] sm:$0xff]
    %v1273 = vld [vmem:[#allocation3 + $0x268] sm:$0xff]
    %v1274 = vld [vmem:[#allocation3 + $0x270] sm:$0xff]
    %v1275 = vld [vmem:[#allocation3 + $0x278] sm:$0xff]
    %v1276 = vld [vmem:[#allocation3 + $0x280] sm:$0xff]
    %v1277 = vld [vmem:[#allocation3 + $0x288] sm:$0xff]
    %v1278 = vld [vmem:[#allocation3 + $0x290] sm:$0xff]
    %v1279 = vld [vmem:[#allocation3 + $0x298] sm:$0xff]
    %v1280 = vld [vmem:[#allocation3 + $0x2a0] sm:$0xff]
    %v1281 = vld [vmem:[#allocation3 + $0x2a8] sm:$0xff]
    %v1282 = vld [vmem:[#allocation3 + $0x2b0] sm:$0xff]
    %v1283 = vld [vmem:[#allocation3 + $0x2b8] sm:$0xff]
    %v1284 = vld [vmem:[#allocation3 + $0x2c0] sm:$0xff]
    %v1285 = vld [vmem:[#allocation3 + $0x2c8] sm:$0xff]
    %v1286 = vld [vmem:[#allocation3 + $0x2d0] sm:$0xff]
    %v1287 = vld [vmem:[#allocation3 + $0x2d8] sm:$0xff]
    %v1288 = vld [vmem:[#allocation3 + $0x2e0] sm:$0xff]
    %v1289 = vld [vmem:[#allocation3 + $0x2e8] sm:$0xff]
    %v1290 = vld [vmem:[#allocation3 + $0x2f0] sm:$0xff]
    %v1291 = vld [vmem:[#allocation3 + $0x2f8] sm:$0xff]
    %v1292 = vld [vmem:[#allocation3 + $0x300] sm:$0xff]
    %v1293 = vld [vmem:[#allocation3 + $0x308] sm:$0xff]
    %v1294 = vld [vmem:[#allocation3 + $0x310] sm:$0xff]
    %v1295 = vld [vmem:[#allocation3 + $0x318] sm:$0xff]
    %v1296 = vld [vmem:[#allocation3 + $0x320] sm:$0xff]
    %v1297 = vld [vmem:[#allocation3 + $0x328] sm:$0xff]
    %v1298 = vld [vmem:[#allocation3 + $0x330] sm:$0xff]
    %v1299 = vld [vmem:[#allocation3 + $0x338] sm:$0xff]
    %v1300 = vld [vmem:[#allocation3 + $0x340] sm:$0xff]
    %v1301 = vld [vmem:[#allocation3 + $0x348] sm:$0xff]
    %v1302 = vld [vmem:[#allocation3 + $0x350] sm:$0xff]
    %v1303 = vld [vmem:[#allocation3 + $0x358] sm:$0xff]
    %v1304 = vld [vmem:[#allocation3 + $0x360] sm:$0xff]
    %v1305 = vld [vmem:[#allocation3 + $0x368] sm:$0xff]
    %v1306 = vld [vmem:[#allocation3 + $0x370] sm:$0xff]
    %v1307 = vld [vmem:[#allocation3 + $0x378] sm:$0xff]
    %v1308 = vld [vmem:[#allocation3 + $0x380] sm:$0xff]
    %v1309 = vld [vmem:[#allocation3 + $0x388] sm:$0xff]
    %v1310 = vld [vmem:[#allocation3 + $0x390] sm:$0xff]
    %v1311 = vld [vmem:[#allocation3 + $0x398] sm:$0xff]
    %v1312 = vld [vmem:[#allocation3 + $0x3a0] sm:$0xff]
    %v1313 = vld [vmem:[#allocation3 + $0x3a8] sm:$0xff]
    %v1314 = vld [vmem:[#allocation3 + $0x3b0] sm:$0xff]
    %v1315 = vld [vmem:[#allocation3 + $0x3b8] sm:$0xff]
    %v1316 = vld [vmem:[#allocation3 + $0x3c0] sm:$0xff]
    %v1317 = vld [vmem:[#allocation3 + $0x3c8] sm:$0xff]
    %v1318 = vld [vmem:[#allocation3 + $0x3d0] sm:$0xff]
    %v1319 = vld [vmem:[#allocation3 + $0x3d8] sm:$0xff]
    %v1320 = vld [vmem:[#allocation3 + $0x3e0] sm:$0xff]
    %v1321 = vld [vmem:[#allocation3 + $0x3e8] sm:$0xff]
    %v1322 = vld [vmem:[#allocation3 + $0x3f0] sm:$0xff]
    %v1323 = vld [vmem:[#allocation3 + $0x3f8] sm:$0xff]
    %v1324 = vld [vmem:[#allocation3 + $0x400] sm:$0xff]
    %v1325 = vld [vmem:[#allocation3 + $0x408] sm:$0xff]
    %v1326 = vld [vmem:[#allocation3 + $0x410] sm:$0xff]
    %v1327 = vld [vmem:[#allocation3 + $0x418] sm:$0xff]
    %v1328 = vld [vmem:[#allocation3 + $0x420] sm:$0xff]
    %v1329 = vld [vmem:[#allocation3 + $0x428] sm:$0xff]
    %v1330 = vld [vmem:[#allocation3 + $0x430] sm:$0xff]
    %v1331 = vld [vmem:[#allocation3 + $0x438] sm:$0xff]
    %v1332 = vld [vmem:[#allocation3 + $0x440] sm:$0xff]
    %v1333 = vld [vmem:[#allocation3 + $0x448] sm:$0xff]
    %v1334 = vld [vmem:[#allocation3 + $0x450] sm:$0xff]
    %v1335 = vld [vmem:[#allocation3 + $0x458] sm:$0xff]
    %v1336 = vld [vmem:[#allocation3 + $0x460] sm:$0xff]
    %v1337 = vld [vmem:[#allocation3 + $0x468] sm:$0xff]
    %v1338 = vld [vmem:[#allocation3 + $0x470] sm:$0xff]
    %v1339 = vld [vmem:[#allocation3 + $0x478] sm:$0xff]
    %v1340 = vld [vmem:[#allocation3 + $0x480] sm:$0xff]
    %v1341 = vld [vmem:[#allocation3 + $0x488] sm:$0xff]
    %v1342 = vld [vmem:[#allocation3 + $0x490] sm:$0xff]
    %v1343 = vld [vmem:[#allocation3 + $0x498] sm:$0xff]
    %v1344 = vld [vmem:[#allocation3 + $0x4a0] sm:$0xff]
    %v1345 = vld [vmem:[#allocation3 + $0x4a8] sm:$0xff]
    %v1346 = vld [vmem:[#allocation3 + $0x4b0] sm:$0xff]
    %v1347 = vld [vmem:[#allocation3 + $0x4b8] sm:$0xff]
    %v1348 = vld [vmem:[#allocation3 + $0x4c0] sm:$0xff]
    %v1349 = vld [vmem:[#allocation3 + $0x4c8] sm:$0xff]
    %v1350 = vld [vmem:[#allocation3 + $0x4d0] sm:$0xff]
    %v1351 = vld [vmem:[#allocation3 + $0x4d8] sm:$0xff]
    %v1352 = vld [vmem:[#allocation3 + $0x4e0] sm:$0xff]
    %v1353 = vld [vmem:[#allocation3 + $0x4e8] sm:$0xff]
    %v1354 = vld [vmem:[#allocation3 + $0x4f0] sm:$0xff]
    %v1355 = vld [vmem:[#allocation3 + $0x4f8] sm:$0xff]
    %v1356 = vld [vmem:[#allocation3 + $0x500] sm:$0xff]
    %v1357 = vld [vmem:[#allocation3 + $0x508] sm:$0xff]
    %v1358 = vld [vmem:[#allocation3 + $0x510] sm:$0xff]
    %v1359 = vld [vmem:[#allocation3 + $0x518] sm:$0xff]
    %v1360 = vld [vmem:[#allocation3 + $0x520] sm:$0xff]
    %v1361 = vld [vmem:[#allocation3 + $0x528] sm:$0xff]
    %v1362 = vld [vmem:[#allocation3 + $0x530] sm:$0xff]
    %v1363 = vld [vmem:[#allocation3 + $0x538] sm:$0xff]
    %v1364 = vld [vmem:[#allocation3 + $0x540] sm:$0xff]
    %v1365 = vld [vmem:[#allocation3 + $0x548] sm:$0xff]
    %v1366 = vld [vmem:[#allocation3 + $0x550] sm:$0xff]
    %v1367 = vld [vmem:[#allocation3 + $0x558] sm:$0xff]
    %v1368 = vld [vmem:[#allocation3 + $0x560] sm:$0xff]
    %v1369 = vld [vmem:[#allocation3 + $0x568] sm:$0xff]
    %v1370 = vld [vmem:[#allocation3 + $0x570] sm:$0xff]
    %v1371 = vld [vmem:[#allocation3 + $0x578] sm:$0xff]
    %v1372 = vld [vmem:[#allocation3 + $0x580] sm:$0xff]
    %v1373 = vld [vmem:[#allocation3 + $0x588] sm:$0xff]
    %v1374 = vld [vmem:[#allocation3 + $0x590] sm:$0xff]
    %v1375 = vld [vmem:[#allocation3 + $0x598] sm:$0xff]
    %v1376 = vld [vmem:[#allocation3 + $0x5a0] sm:$0xff]
    %v1377 = vld [vmem:[#allocation3 + $0x5a8] sm:$0xff]
    %v1378 = vld [vmem:[#allocation3 + $0x5b0] sm:$0xff]
    %v1379 = vld [vmem:[#allocation3 + $0x5b8] sm:$0xff]
    %v1380 = vld [vmem:[#allocation3 + $0x5c0] sm:$0xff]
    %v1381 = vld [vmem:[#allocation3 + $0x5c8] sm:$0xff]
    %v1382 = vld [vmem:[#allocation3 + $0x5d0] sm:$0xff]
    %v1383 = vld [vmem:[#allocation3 + $0x5d8] sm:$0xff]
    %v1384 = vld [vmem:[#allocation3 + $0x5e0] sm:$0xff]
    %v1385 = vld [vmem:[#allocation3 + $0x5e8] sm:$0xff]
    %v1386 = vld [vmem:[#allocation3 + $0x5f0] sm:$0xff]
    %v1387 = vld [vmem:[#allocation3 + $0x5f8] sm:$0xff]
    %v1388 = vld [vmem:[#allocation3 + $0x600] sm:$0xff]
    %v1389 = vld [vmem:[#allocation3 + $0x608] sm:$0xff]
    %v1390 = vld [vmem:[#allocation3 + $0x610] sm:$0xff]
    %v1391 = vld [vmem:[#allocation3 + $0x618] sm:$0xff]
    %v1392 = vld [vmem:[#allocation3 + $0x620] sm:$0xff]
    %v1393 = vld [vmem:[#allocation3 + $0x628] sm:$0xff]
    %v1394 = vld [vmem:[#allocation3 + $0x630] sm:$0xff]
    %v1395 = vld [vmem:[#allocation3 + $0x638] sm:$0xff]
    %v1396 = vld [vmem:[#allocation3 + $0x640] sm:$0xff]
    %v1397 = vld [vmem:[#allocation3 + $0x648] sm:$0xff]
    %v1398 = vld [vmem:[#allocation3 + $0x650] sm:$0xff]
    %v1399 = vld [vmem:[#allocation3 + $0x658] sm:$0xff]
    %v1400 = vld [vmem:[#allocation3 + $0x660] sm:$0xff]
    %v1401 = vld [vmem:[#allocation3 + $0x668] sm:$0xff]
    %v1402 = vld [vmem:[#allocation3 + $0x670] sm:$0xff]
    %v1403 = vld [vmem:[#allocation3 + $0x678] sm:$0xff]
    %v1404 = vld [vmem:[#allocation3 + $0x680] sm:$0xff]
    %v1405 = vld [vmem:[#allocation3 + $0x688] sm:$0xff]
    %v1406 = vld [vmem:[#allocation3 + $0x690] sm:$0xff]
    %v1407 = vld [vmem:[#allocation3 + $0x698] sm:$0xff]
    %v1408 = vld [vmem:[#allocation3 + $0x6a0] sm:$0xff]
    %v1409 = vld [vmem:[#allocation3 + $0x6a8] sm:$0xff]
    %v1410 = vld [vmem:[#allocation3 + $0x6b0] sm:$0xff]
    %v1411 = vld [vmem:[#allocation3 + $0x6b8] sm:$0xff]
    %v1412 = vld [vmem:[#allocation3 + $0x6c0] sm:$0xff]
    %v1413 = vld [vmem:[#allocation3 + $0x6c8] sm:$0xff]
    %v1414 = vld [vmem:[#allocation3 + $0x6d0] sm:$0xff]
    %v1415 = vld [vmem:[#allocation3 + $0x6d8] sm:$0xff]
    %v1416 = vld [vmem:[#allocation3 + $0x6e0] sm:$0xff]
    %v1417 = vld [vmem:[#allocation3 + $0x6e8] sm:$0xff]
    %v1418 = vld [vmem:[#allocation3 + $0x6f0] sm:$0xff]
    %v1419 = vld [vmem:[#allocation3 + $0x6f8] sm:$0xff]
    %v1420 = vld [vmem:[#allocation3 + $0x700] sm:$0xff]
    %v1421 = vld [vmem:[#allocation3 + $0x708] sm:$0xff]
    %v1422 = vld [vmem:[#allocation3 + $0x710] sm:$0xff]
    %v1423 = vld [vmem:[#allocation3 + $0x718] sm:$0xff]
    %v1424 = vld [vmem:[#allocation3 + $0x720] sm:$0xff]
    %v1425 = vld [vmem:[#allocation3 + $0x728] sm:$0xff]
    %v1426 = vld [vmem:[#allocation3 + $0x730] sm:$0xff]
    %v1427 = vld [vmem:[#allocation3 + $0x738] sm:$0xff]
    %v1428 = vld [vmem:[#allocation3 + $0x740] sm:$0xff]
    %v1429 = vld [vmem:[#allocation3 + $0x748] sm:$0xff]
    %v1430 = vld [vmem:[#allocation3 + $0x750] sm:$0xff]
    %v1431 = vld [vmem:[#allocation3 + $0x758] sm:$0xff]
    %v1432 = vld [vmem:[#allocation3 + $0x760] sm:$0xff]
    %v1433 = vld [vmem:[#allocation3 + $0x768] sm:$0xff]
    %v1434 = vld [vmem:[#allocation3 + $0x770] sm:$0xff]
    %v1435 = vld [vmem:[#allocation3 + $0x778] sm:$0xff]
    %v1436 = vld [vmem:[#allocation3 + $0x780] sm:$0xff]
    %v1437 = vld [vmem:[#allocation3 + $0x788] sm:$0xff]
    %v1438 = vld [vmem:[#allocation3 + $0x790] sm:$0xff]
    %v1439 = vld [vmem:[#allocation3 + $0x798] sm:$0xff]
    %v1440 = vld [vmem:[#allocation3 + $0x7a0] sm:$0xff]
    %v1441 = vld [vmem:[#allocation3 + $0x7a8] sm:$0xff]
    %v1442 = vld [vmem:[#allocation3 + $0x7b0] sm:$0xff]
    %v1443 = vld [vmem:[#allocation3 + $0x7b8] sm:$0xff]
    %v1444 = vld [vmem:[#allocation3 + $0x7c0] sm:$0xff]
    %v1445 = vld [vmem:[#allocation3 + $0x7c8] sm:$0xff]
    %v1446 = vld [vmem:[#allocation3 + $0x7d0] sm:$0xff]
    %v1447 = vld [vmem:[#allocation3 + $0x7d8] sm:$0xff]
    %v1448 = vld [vmem:[#allocation3 + $0x7e0] sm:$0xff]
    %v1449 = vld [vmem:[#allocation3 + $0x7e8] sm:$0xff]
    %v1450 = vld [vmem:[#allocation3 + $0x7f0] sm:$0xff]
    %v1451 = vld [vmem:[#allocation3 + $0x7f8] sm:$0xff]
    %v1452 = vld [vmem:[#allocation3 + $0x800] sm:$0xff]
    %v1453 = vld [vmem:[#allocation3 + $0x808] sm:$0xff]
    %v1454 = vld [vmem:[#allocation3 + $0x810] sm:$0xff]
    %v1455 = vld [vmem:[#allocation3 + $0x818] sm:$0xff]
    %v1456 = vld [vmem:[#allocation3 + $0x820] sm:$0xff]
    %v1457 = vld [vmem:[#allocation3 + $0x828] sm:$0xff]
    %v1458 = vld [vmem:[#allocation3 + $0x830] sm:$0xff]
    %v1459 = vld [vmem:[#allocation3 + $0x838] sm:$0xff]
    %v1460 = vld [vmem:[#allocation3 + $0x840] sm:$0xff]
    %v1461 = vld [vmem:[#allocation3 + $0x848] sm:$0xff]
    %v1462 = vld [vmem:[#allocation3 + $0x850] sm:$0xff]
    %v1463 = vld [vmem:[#allocation3 + $0x858] sm:$0xff]
    %v1464 = vld [vmem:[#allocation3 + $0x860] sm:$0xff]
    %v1465 = vld [vmem:[#allocation3 + $0x868] sm:$0xff]
    %v1466 = vld [vmem:[#allocation3 + $0x870] sm:$0xff]
    %v1467 = vld [vmem:[#allocation3 + $0x878] sm:$0xff]
    %v1468 = vld [vmem:[#allocation3 + $0x880] sm:$0xff]
    %v1469 = vld [vmem:[#allocation3 + $0x888] sm:$0xff]
    %v1470 = vld [vmem:[#allocation3 + $0x890] sm:$0xff]
    %v1471 = vld [vmem:[#allocation3 + $0x898] sm:$0xff]
    %v1472 = vld [vmem:[#allocation3 + $0x8a0] sm:$0xff]
    %v1473 = vld [vmem:[#allocation3 + $0x8a8] sm:$0xff]
    %v1474 = vld [vmem:[#allocation3 + $0x8b0] sm:$0xff]
    %v1475 = vld [vmem:[#allocation3 + $0x8b8] sm:$0xff]
    %v1476 = vld [vmem:[#allocation3 + $0x8c0] sm:$0xff]
    %v1477 = vld [vmem:[#allocation3 + $0x8c8] sm:$0xff]
    %v1478 = vld [vmem:[#allocation3 + $0x8d0] sm:$0xff]
    %v1479 = vld [vmem:[#allocation3 + $0x8d8] sm:$0xff]
    %v1480 = vld [vmem:[#allocation3 + $0x8e0] sm:$0xff]
    %v1481 = vld [vmem:[#allocation3 + $0x8e8] sm:$0xff]
    %v1482 = vld [vmem:[#allocation3 + $0x8f0] sm:$0xff]
    %v1483 = vld [vmem:[#allocation3 + $0x8f8] sm:$0xff]
    %v1484 = vld [vmem:[#allocation3 + $0x900] sm:$0xff]
    %v1485 = vld [vmem:[#allocation3 + $0x908] sm:$0xff]
    %v1486 = vld [vmem:[#allocation3 + $0x910] sm:$0xff]
    %v1487 = vld [vmem:[#allocation3 + $0x918] sm:$0xff]
    %v1488 = vld [vmem:[#allocation3 + $0x920] sm:$0xff]
    %v1489 = vld [vmem:[#allocation3 + $0x928] sm:$0xff]
    %v1490 = vld [vmem:[#allocation3 + $0x930] sm:$0xff]
    %v1491 = vld [vmem:[#allocation3 + $0x938] sm:$0xff]
    %v1492 = vld [vmem:[#allocation3 + $0x940] sm:$0xff]
    %v1493 = vld [vmem:[#allocation3 + $0x948] sm:$0xff]
    %v1494 = vld [vmem:[#allocation3 + $0x950] sm:$0xff]
    %v1495 = vld [vmem:[#allocation3 + $0x958] sm:$0xff]
    %v1496 = vld [vmem:[#allocation3 + $0x960] sm:$0xff]
    %v1497 = vld [vmem:[#allocation3 + $0x968] sm:$0xff]
    %v1498 = vld [vmem:[#allocation3 + $0x970] sm:$0xff]
    %v1499 = vld [vmem:[#allocation3 + $0x978] sm:$0xff]
    %v1500 = vld [vmem:[#allocation3 + $0x980] sm:$0xff]
    %v1501 = vld [vmem:[#allocation3 + $0x988] sm:$0xff]
    %v1502 = vld [vmem:[#allocation3 + $0x990] sm:$0xff]
    %v1503 = vld [vmem:[#allocation3 + $0x998] sm:$0xff]
    %v1504 = vld [vmem:[#allocation3 + $0x9a0] sm:$0xff]
    %v1505 = vld [vmem:[#allocation3 + $0x9a8] sm:$0xff]
    %v1506 = vld [vmem:[#allocation3 + $0x9b0] sm:$0xff]
    %v1507 = vld [vmem:[#allocation3 + $0x9b8] sm:$0xff]
    %v1508 = vld [vmem:[#allocation3 + $0x9c0] sm:$0xff]
    %v1509 = vld [vmem:[#allocation3 + $0x9c8] sm:$0xff]
    %v1510 = vld [vmem:[#allocation3 + $0x9d0] sm:$0xff]
    %v1511 = vld [vmem:[#allocation3 + $0x9d8] sm:$0xff]
    %v1512 = vld [vmem:[#allocation3 + $0x9e0] sm:$0xff]
    %v1513 = vld [vmem:[#allocation3 + $0x9e8] sm:$0xff]
    %v1514 = vld [vmem:[#allocation3 + $0x9f0] sm:$0xff]
    %v1515 = vld [vmem:[#allocation3 + $0x9f8] sm:$0xff]
    %v1516 = vld [vmem:[#allocation3 + $0xa00] sm:$0xff]
    %v1517 = vld [vmem:[#allocation3 + $0xa08] sm:$0xff]
    %v1518 = vld [vmem:[#allocation3 + $0xa10] sm:$0xff]
    %v1519 = vld [vmem:[#allocation3 + $0xa18] sm:$0xff]
    %v1520 = vld [vmem:[#allocation3 + $0xa20] sm:$0xff]
    %v1521 = vld [vmem:[#allocation3 + $0xa28] sm:$0xff]
    %v1522 = vld [vmem:[#allocation3 + $0xa30] sm:$0xff]
    %v1523 = vld [vmem:[#allocation3 + $0xa38] sm:$0xff]
    %v1524 = vld [vmem:[#allocation3 + $0xa40] sm:$0xff]
    %v1525 = vld [vmem:[#allocation3 + $0xa48] sm:$0xff]
    %v1526 = vld [vmem:[#allocation3 + $0xa50] sm:$0xff]
    %v1527 = vld [vmem:[#allocation3 + $0xa58] sm:$0xff]
    %v1528 = vld [vmem:[#allocation3 + $0xa60] sm:$0xff]
    %v1529 = vld [vmem:[#allocation3 + $0xa68] sm:$0xff]
    %v1530 = vld [vmem:[#allocation3 + $0xa70] sm:$0xff]
    %v1531 = vld [vmem:[#allocation3 + $0xa78] sm:$0xff]
    %v1532 = vld [vmem:[#allocation3 + $0xa80] sm:$0xff]
    %v1533 = vld [vmem:[#allocation3 + $0xa88] sm:$0xff]
    %v1534 = vld [vmem:[#allocation3 + $0xa90] sm:$0xff]
    %v1535 = vld [vmem:[#allocation3 + $0xa98] sm:$0xff]
    %v1536 = vld [vmem:[#allocation3 + $0xaa0] sm:$0xff]
    %v1537 = vld [vmem:[#allocation3 + $0xaa8] sm:$0xff]
    %v1538 = vld [vmem:[#allocation3 + $0xab0] sm:$0xff]
    %v1539 = vld [vmem:[#allocation3 + $0xab8] sm:$0xff]
    %v1540 = vld [vmem:[#allocation3 + $0xac0] sm:$0xff]
    %v1541 = vld [vmem:[#allocation3 + $0xac8] sm:$0xff]
    %v1542 = vld [vmem:[#allocation3 + $0xad0] sm:$0xff]
    %v1543 = vld [vmem:[#allocation3 + $0xad8] sm:$0xff]
    %v1544 = vld [vmem:[#allocation3 + $0xae0] sm:$0xff]
    %v1545 = vld [vmem:[#allocation3 + $0xae8] sm:$0xff]
    %v1546 = vld [vmem:[#allocation3 + $0xaf0] sm:$0xff]
    %v1547 = vld [vmem:[#allocation3 + $0xaf8] sm:$0xff]
    %v1548 = vld [vmem:[#allocation3 + $0xb00] sm:$0xff]
    %v1549 = vld [vmem:[#allocation3 + $0xb08] sm:$0xff]
    %v1550 = vld [vmem:[#allocation3 + $0xb10] sm:$0xff]
    %v1551 = vld [vmem:[#allocation3 + $0xb18] sm:$0xff]
    %v1552 = vld [vmem:[#allocation3 + $0xb20] sm:$0xff]
    %v1553 = vld [vmem:[#allocation3 + $0xb28] sm:$0xff]
    %v1554 = vld [vmem:[#allocation3 + $0xb30] sm:$0xff]
    %v1555 = vld [vmem:[#allocation3 + $0xb38] sm:$0xff]
    %v1556 = vld [vmem:[#allocation3 + $0xb40] sm:$0xff]
    %v1557 = vld [vmem:[#allocation3 + $0xb48] sm:$0xff]
    %v1558 = vld [vmem:[#allocation3 + $0xb50] sm:$0xff]
    %v1559 = vld [vmem:[#allocation3 + $0xb58] sm:$0xff]
    %v1560 = vld [vmem:[#allocation3 + $0xb60] sm:$0xff]
    %v1561 = vld [vmem:[#allocation3 + $0xb68] sm:$0xff]
    %v1562 = vld [vmem:[#allocation3 + $0xb70] sm:$0xff]
    %v1563 = vld [vmem:[#allocation3 + $0xb78] sm:$0xff]
    %v1564 = vld [vmem:[#allocation3 + $0xb80] sm:$0xff]
    %v1565 = vld [vmem:[#allocation3 + $0xb88] sm:$0xff]
    %v1566 = vld [vmem:[#allocation3 + $0xb90] sm:$0xff]
    %v1567 = vld [vmem:[#allocation3 + $0xb98] sm:$0xff]
    %v1568 = vld [vmem:[#allocation3 + $0xba0] sm:$0xff]
    %v1569 = vld [vmem:[#allocation3 + $0xba8] sm:$0xff]
    %v1570 = vld [vmem:[#allocation3 + $0xbb0] sm:$0xff]
    %v1571 = vld [vmem:[#allocation3 + $0xbb8] sm:$0xff]
    %v1572 = vld [vmem:[#allocation3 + $0xbc0] sm:$0xff]
    %v1573 = vld [vmem:[#allocation3 + $0xbc8] sm:$0xff]
    %v1574 = vld [vmem:[#allocation3 + $0xbd0] sm:$0xff]
    %v1575 = vld [vmem:[#allocation3 + $0xbd8] sm:$0xff]
    %v1576 = vld [vmem:[#allocation3 + $0xbe0] sm:$0xff]
    %v1577 = vld [vmem:[#allocation3 + $0xbe8] sm:$0xff]
    %v1578 = vld [vmem:[#allocation3 + $0xbf0] sm:$0xff]
    %v1579 = vld [vmem:[#allocation3 + $0xbf8] sm:$0xff]
    %v1580 = vld [vmem:[#allocation3 + $0xc00] sm:$0xff]
    %v1581 = vld [vmem:[#allocation3 + $0xc08] sm:$0xff]
    %v1582 = vld [vmem:[#allocation3 + $0xc10] sm:$0xff]
    %v1583 = vld [vmem:[#allocation3 + $0xc18] sm:$0xff]
    %v1584 = vld [vmem:[#allocation3 + $0xc20] sm:$0xff]
    %v1585 = vld [vmem:[#allocation3 + $0xc28] sm:$0xff]
    %v1586 = vld [vmem:[#allocation3 + $0xc30] sm:$0xff]
    %v1587 = vld [vmem:[#allocation3 + $0xc38] sm:$0xff]
    %v1588 = vld [vmem:[#allocation3 + $0xc40] sm:$0xff]
    %v1589 = vld [vmem:[#allocation3 + $0xc48] sm:$0xff]
    %v1590 = vld [vmem:[#allocation3 + $0xc50] sm:$0xff]
    %v1591 = vld [vmem:[#allocation3 + $0xc58] sm:$0xff]
    %v1592 = vld [vmem:[#allocation3 + $0xc60] sm:$0xff]
    %v1593 = vld [vmem:[#allocation3 + $0xc68] sm:$0xff]
    %v1594 = vld [vmem:[#allocation3 + $0xc70] sm:$0xff]
    %v1595 = vld [vmem:[#allocation3 + $0xc78] sm:$0xff]
    %v1596 = vld [vmem:[#allocation3 + $0xc80] sm:$0xff]
    %v1597 = vld [vmem:[#allocation3 + $0xc88] sm:$0xff]
    %v1598 = vld [vmem:[#allocation3 + $0xc90] sm:$0xff]
    %v1599 = vld [vmem:[#allocation3 + $0xc98] sm:$0xff]
    %v1600 = vld [vmem:[#allocation3 + $0xca0] sm:$0xff]
    %v1601 = vld [vmem:[#allocation3 + $0xca8] sm:$0xff]
    %v1602 = vld [vmem:[#allocation3 + $0xcb0] sm:$0xff]
    %v1603 = vld [vmem:[#allocation3 + $0xcb8] sm:$0xff]
    %v1604 = vld [vmem:[#allocation3 + $0xcc0] sm:$0xff]
    %v1605 = vld [vmem:[#allocation3 + $0xcc8] sm:$0xff]
    %v1606 = vld [vmem:[#allocation3 + $0xcd0] sm:$0xff]
    %v1607 = vld [vmem:[#allocation3 + $0xcd8] sm:$0xff]
    %v1608 = vld [vmem:[#allocation3 + $0xce0] sm:$0xff]
    %v1609 = vld [vmem:[#allocation3 + $0xce8] sm:$0xff]
    %v1610 = vld [vmem:[#allocation3 + $0xcf0] sm:$0xff]
    %v1611 = vld [vmem:[#allocation3 + $0xcf8] sm:$0xff]
    %v1612 = vld [vmem:[#allocation3 + $0xd00] sm:$0xff]
    %v1613 = vld [vmem:[#allocation3 + $0xd08] sm:$0xff]
    %v1614 = vld [vmem:[#allocation3 + $0xd10] sm:$0xff]
    %v1615 = vld [vmem:[#allocation3 + $0xd18] sm:$0xff]
    %v1616 = vld [vmem:[#allocation3 + $0xd20] sm:$0xff]
    %v1617 = vld [vmem:[#allocation3 + $0xd28] sm:$0xff]
    %v1618 = vld [vmem:[#allocation3 + $0xd30] sm:$0xff]
    %v1619 = vld [vmem:[#allocation3 + $0xd38] sm:$0xff]
    %v1620 = vld [vmem:[#allocation3 + $0xd40] sm:$0xff]
    %v1621 = vld [vmem:[#allocation3 + $0xd48] sm:$0xff]
    %v1622 = vld [vmem:[#allocation3 + $0xd50] sm:$0xff]
    %v1623 = vld [vmem:[#allocation3 + $0xd58] sm:$0xff]
    %v1624 = vld [vmem:[#allocation3 + $0xd60] sm:$0xff]
    %v1625 = vld [vmem:[#allocation3 + $0xd68] sm:$0xff]
    %v1626 = vld [vmem:[#allocation3 + $0xd70] sm:$0xff]
    %v1627 = vld [vmem:[#allocation3 + $0xd78] sm:$0xff]
    %v1628 = vld [vmem:[#allocation3 + $0xd80] sm:$0xff]
    %v1629 = vld [vmem:[#allocation3 + $0xd88] sm:$0xff]
    %v1630 = vld [vmem:[#allocation3 + $0xd90] sm:$0xff]
    %v1631 = vld [vmem:[#allocation3 + $0xd98] sm:$0xff]
    %v1632 = vld [vmem:[#allocation3 + $0xda0] sm:$0xff]
    %v1633 = vld [vmem:[#allocation3 + $0xda8] sm:$0xff]
    %v1634 = vld [vmem:[#allocation3 + $0xdb0] sm:$0xff]
    %v1635 = vld [vmem:[#allocation3 + $0xdb8] sm:$0xff]
    %v1636 = vld [vmem:[#allocation3 + $0xdc0] sm:$0xff]
    %v1637 = vld [vmem:[#allocation3 + $0xdc8] sm:$0xff]
    %v1638 = vld [vmem:[#allocation3 + $0xdd0] sm:$0xff]
    %v1639 = vld [vmem:[#allocation3 + $0xdd8] sm:$0xff]
    %v1640 = vld [vmem:[#allocation3 + $0xde0] sm:$0xff]
    %v1641 = vld [vmem:[#allocation3 + $0xde8] sm:$0xff]
    %v1642 = vld [vmem:[#allocation3 + $0xdf0] sm:$0xff]
    %v1643 = vld [vmem:[#allocation3 + $0xdf8] sm:$0xff]
    %v1644 = vld [vmem:[#allocation3 + $0xe00] sm:$0xff]
    %v1645 = vld [vmem:[#allocation3 + $0xe08] sm:$0xff]
    %v1646 = vld [vmem:[#allocation3 + $0xe10] sm:$0xff]
    %v1647 = vld [vmem:[#allocation3 + $0xe18] sm:$0xff]
    %v1648 = vld [vmem:[#allocation3 + $0xe20] sm:$0xff]
    %v1649 = vld [vmem:[#allocation3 + $0xe28] sm:$0xff]
    %v1650 = vld [vmem:[#allocation3 + $0xe30] sm:$0xff]
    %v1651 = vld [vmem:[#allocation3 + $0xe38] sm:$0xff]
    %v1652 = vld [vmem:[#allocation3 + $0xe40] sm:$0xff]
    %v1653 = vld [vmem:[#allocation3 + $0xe48] sm:$0xff]
    %v1654 = vld [vmem:[#allocation3 + $0xe50] sm:$0xff]
    %v1655 = vld [vmem:[#allocation3 + $0xe58] sm:$0xff]
    %v1656 = vld [vmem:[#allocation3 + $0xe60] sm:$0xff]
    %v1657 = vld [vmem:[#allocation3 + $0xe68] sm:$0xff]
    %v1658 = vld [vmem:[#allocation3 + $0xe70] sm:$0xff]
    %v1659 = vld [vmem:[#allocation3 + $0xe78] sm:$0xff]
    %v1660 = vld [vmem:[#allocation3 + $0xe80] sm:$0xff]
    %v1661 = vld [vmem:[#allocation3 + $0xe88] sm:$0xff]
    %v1662 = vld [vmem:[#allocation3 + $0xe90] sm:$0xff]
    %v1663 = vld [vmem:[#allocation3 + $0xe98] sm:$0xff]
    %v1664 = vld [vmem:[#allocation3 + $0xea0] sm:$0xff]
    %v1665 = vld [vmem:[#allocation3 + $0xea8] sm:$0xff]
    %v1666 = vld [vmem:[#allocation3 + $0xeb0] sm:$0xff]
    %v1667 = vld [vmem:[#allocation3 + $0xeb8] sm:$0xff]
    %v1668 = vld [vmem:[#allocation3 + $0xec0] sm:$0xff]
    %v1669 = vld [vmem:[#allocation3 + $0xec8] sm:$0xff]
    %v1670 = vld [vmem:[#allocation3 + $0xed0] sm:$0xff]
    %v1671 = vld [vmem:[#allocation3 + $0xed8] sm:$0xff]
    %v1672 = vld [vmem:[#allocation3 + $0xee0] sm:$0xff]
    %v1673 = vld [vmem:[#allocation3 + $0xee8] sm:$0xff]
    %v1674 = vld [vmem:[#allocation3 + $0xef0] sm:$0xff]
    %v1675 = vld [vmem:[#allocation3 + $0xef8] sm:$0xff]
    %v1676 = vld [vmem:[#allocation3 + $0xf00] sm:$0xff]
    %v1677 = vld [vmem:[#allocation3 + $0xf08] sm:$0xff]
    %v1678 = vld [vmem:[#allocation3 + $0xf10] sm:$0xff]
    %v1679 = vld [vmem:[#allocation3 + $0xf18] sm:$0xff]
    %v1680 = vld [vmem:[#allocation3 + $0xf20] sm:$0xff]
    %v1681 = vld [vmem:[#allocation3 + $0xf28] sm:$0xff]
    %v1682 = vld [vmem:[#allocation3 + $0xf30] sm:$0xff]
    %v1683 = vld [vmem:[#allocation3 + $0xf38] sm:$0xff]
    %v1684 = vld [vmem:[#allocation3 + $0xf40] sm:$0xff]
    %v1685 = vld [vmem:[#allocation3 + $0xf48] sm:$0xff]
    %v1686 = vld [vmem:[#allocation3 + $0xf50] sm:$0xff]
    %v1687 = vld [vmem:[#allocation3 + $0xf58] sm:$0xff]
    %v1688 = vld [vmem:[#allocation3 + $0xf60] sm:$0xff]
    %v1689 = vld [vmem:[#allocation3 + $0xf68] sm:$0xff]
    %v1690 = vld [vmem:[#allocation3 + $0xf70] sm:$0xff]
    %v1691 = vld [vmem:[#allocation3 + $0xf78] sm:$0xff]
    %v1692 = vld [vmem:[#allocation3 + $0xf80] sm:$0xff]
    %v1693 = vld [vmem:[#allocation3 + $0xf88] sm:$0xff]
    %v1694 = vld [vmem:[#allocation3 + $0xf90] sm:$0xff]
    %v1695 = vld [vmem:[#allocation3 + $0xf98] sm:$0xff]
    %v1696 = vld [vmem:[#allocation3 + $0xfa0] sm:$0xff]
    %v1697 = vld [vmem:[#allocation3 + $0xfa8] sm:$0xff]
    %v1698 = vld [vmem:[#allocation3 + $0xfb0] sm:$0xff]
    %v1699 = vld [vmem:[#allocation3 + $0xfb8] sm:$0xff]
    %v1700 = vld [vmem:[#allocation3 + $0xfc0] sm:$0xff]
    %v1701 = vld [vmem:[#allocation3 + $0xfc8] sm:$0xff]
    %v1702 = vld [vmem:[#allocation3 + $0xfd0] sm:$0xff]
    %v1703 = vld [vmem:[#allocation3 + $0xfd8] sm:$0xff]
    %v1704 = vld [vmem:[#allocation3 + $0xfe0] sm:$0xff]
    %v1705 = vld [vmem:[#allocation3 + $0xfe8] sm:$0xff]
    %v1706 = vld [vmem:[#allocation3 + $0xff0] sm:$0xff]
    %v1707 = vld [vmem:[#allocation3 + $0xff8] sm:$0xff]
    %v1712 = vunpack.c.l.b16 %v1192
    %v1713 = vunpack.c.h.b16 %v1192
    %v1714 = vunpack.c.l.b16 %v1193
    %v1715 = vunpack.c.h.b16 %v1193
    %v1716 = vunpack.c.l.b16 %v1194
    %v1717 = vunpack.c.h.b16 %v1194
    %v1718 = vunpack.c.l.b16 %v1195
    %v1719 = vunpack.c.h.b16 %v1195
    %v1720 = vpack.c.b16 %v1712, %v1712
    %v1721 = vpack.c.b16 %v1713, %v1713
    %v1722 = vpack.c.b16 %v1714, %v1714
    %v1723 = vpack.c.b16 %v1715, %v1715
    %v1724 = vpack.c.b16 %v1716, %v1716
    %v1725 = vpack.c.b16 %v1717, %v1717
    %v1726 = vpack.c.b16 %v1718, %v1718
    %v1727 = vpack.c.b16 %v1719, %v1719
    %v2248 = vunpack.c.l.b16 %v1196
    %v2249 = vunpack.c.h.b16 %v1196
    %v2250 = vunpack.c.l.b16 %v1197
    %v2251 = vunpack.c.h.b16 %v1197
    %v2252 = vunpack.c.l.b16 %v1198
    %v2253 = vunpack.c.h.b16 %v1198
    %v2254 = vunpack.c.l.b16 %v1199
    %v2255 = vunpack.c.h.b16 %v1199
    %v2256 = vunpack.c.l.b16 %v1200
    %v2257 = vunpack.c.h.b16 %v1200
    %v2258 = vunpack.c.l.b16 %v1201
    %v2259 = vunpack.c.h.b16 %v1201
    %v2260 = vunpack.c.l.b16 %v1202
    %v2261 = vunpack.c.h.b16 %v1202
    %v2262 = vunpack.c.l.b16 %v1203
    %v2263 = vunpack.c.h.b16 %v1203
    %v2264 = vunpack.c.l.b16 %v1204
    %v2265 = vunpack.c.h.b16 %v1204
    %v2266 = vunpack.c.l.b16 %v1205
    %v2267 = vunpack.c.h.b16 %v1205
    %v2268 = vunpack.c.l.b16 %v1206
    %v2269 = vunpack.c.h.b16 %v1206
    %v2270 = vunpack.c.l.b16 %v1207
    %v2271 = vunpack.c.h.b16 %v1207
    %v2272 = vunpack.c.l.b16 %v1208
    %v2273 = vunpack.c.h.b16 %v1208
    %v2274 = vunpack.c.l.b16 %v1209
    %v2275 = vunpack.c.h.b16 %v1209
    %v2276 = vunpack.c.l.b16 %v1210
    %v2277 = vunpack.c.h.b16 %v1210
    %v2278 = vunpack.c.l.b16 %v1211
    %v2279 = vunpack.c.h.b16 %v1211
    %v2280 = vunpack.c.l.b16 %v1212
    %v2281 = vunpack.c.h.b16 %v1212
    %v2282 = vunpack.c.l.b16 %v1213
    %v2283 = vunpack.c.h.b16 %v1213
    %v2284 = vunpack.c.l.b16 %v1214
    %v2285 = vunpack.c.h.b16 %v1214
    %v2286 = vunpack.c.l.b16 %v1215
    %v2287 = vunpack.c.h.b16 %v1215
    %v2288 = vunpack.c.l.b16 %v1216
    %v2289 = vunpack.c.h.b16 %v1216
    %v2290 = vunpack.c.l.b16 %v1217
    %v2291 = vunpack.c.h.b16 %v1217
    %v2292 = vunpack.c.l.b16 %v1218
    %v2293 = vunpack.c.h.b16 %v1218
    %v2294 = vunpack.c.l.b16 %v1219
    %v2295 = vunpack.c.h.b16 %v1219
    %v2296 = vunpack.c.l.b16 %v1220
    %v2297 = vunpack.c.h.b16 %v1220
    %v2298 = vunpack.c.l.b16 %v1221
    %v2299 = vunpack.c.h.b16 %v1221
    %v2300 = vunpack.c.l.b16 %v1222
    %v2301 = vunpack.c.h.b16 %v1222
    %v2302 = vunpack.c.l.b16 %v1223
    %v2303 = vunpack.c.h.b16 %v1223
    %v2304 = vunpack.c.l.b16 %v1224
    %v2305 = vunpack.c.h.b16 %v1224
    %v2306 = vunpack.c.l.b16 %v1225
    %v2307 = vunpack.c.h.b16 %v1225
    %v2308 = vunpack.c.l.b16 %v1226
    %v2309 = vunpack.c.h.b16 %v1226
    %v2310 = vunpack.c.l.b16 %v1227
    %v2311 = vunpack.c.h.b16 %v1227
    %v2312 = vunpack.c.l.b16 %v1228
    %v2313 = vunpack.c.h.b16 %v1228
    %v2314 = vunpack.c.l.b16 %v1229
    %v2315 = vunpack.c.h.b16 %v1229
    %v2316 = vunpack.c.l.b16 %v1230
    %v2317 = vunpack.c.h.b16 %v1230
    %v2318 = vunpack.c.l.b16 %v1231
    %v2319 = vunpack.c.h.b16 %v1231
    %v2320 = vunpack.c.l.b16 %v1232
    %v2321 = vunpack.c.h.b16 %v1232
    %v2322 = vunpack.c.l.b16 %v1233
    %v2323 = vunpack.c.h.b16 %v1233
    %v2324 = vunpack.c.l.b16 %v1234
    %v2325 = vunpack.c.h.b16 %v1234
    %v2326 = vunpack.c.l.b16 %v1235
    %v2327 = vunpack.c.h.b16 %v1235
    %v2328 = vunpack.c.l.b16 %v1236
    %v2329 = vunpack.c.h.b16 %v1236
    %v2330 = vunpack.c.l.b16 %v1237
    %v2331 = vunpack.c.h.b16 %v1237
    %v2332 = vunpack.c.l.b16 %v1238
    %v2333 = vunpack.c.h.b16 %v1238
    %v2334 = vunpack.c.l.b16 %v1239
    %v2335 = vunpack.c.h.b16 %v1239
    %v2336 = vunpack.c.l.b16 %v1240
    %v2337 = vunpack.c.h.b16 %v1240
    %v2338 = vunpack.c.l.b16 %v1241
    %v2339 = vunpack.c.h.b16 %v1241
    %v2340 = vunpack.c.l.b16 %v1242
    %v2341 = vunpack.c.h.b16 %v1242
    %v2342 = vunpack.c.l.b16 %v1243
    %v2343 = vunpack.c.h.b16 %v1243
    %v2344 = vunpack.c.l.b16 %v1244
    %v2345 = vunpack.c.h.b16 %v1244
    %v2346 = vunpack.c.l.b16 %v1245
    %v2347 = vunpack.c.h.b16 %v1245
    %v2348 = vunpack.c.l.b16 %v1246
    %v2349 = vunpack.c.h.b16 %v1246
    %v2350 = vunpack.c.l.b16 %v1247
    %v2351 = vunpack.c.h.b16 %v1247
    %v2352 = vunpack.c.l.b16 %v1248
    %v2353 = vunpack.c.h.b16 %v1248
    %v2354 = vunpack.c.l.b16 %v1249
    %v2355 = vunpack.c.h.b16 %v1249
    %v2356 = vunpack.c.l.b16 %v1250
    %v2357 = vunpack.c.h.b16 %v1250
    %v2358 = vunpack.c.l.b16 %v1251
    %v2359 = vunpack.c.h.b16 %v1251
    %v2360 = vunpack.c.l.b16 %v1252
    %v2361 = vunpack.c.h.b16 %v1252
    %v2362 = vunpack.c.l.b16 %v1253
    %v2363 = vunpack.c.h.b16 %v1253
    %v2364 = vunpack.c.l.b16 %v1254
    %v2365 = vunpack.c.h.b16 %v1254
    %v2366 = vunpack.c.l.b16 %v1255
    %v2367 = vunpack.c.h.b16 %v1255
    %v2368 = vunpack.c.l.b16 %v1256
    %v2369 = vunpack.c.h.b16 %v1256
    %v2370 = vunpack.c.l.b16 %v1257
    %v2371 = vunpack.c.h.b16 %v1257
    %v2372 = vunpack.c.l.b16 %v1258
    %v2373 = vunpack.c.h.b16 %v1258
    %v2374 = vunpack.c.l.b16 %v1259
    %v2375 = vunpack.c.h.b16 %v1259
    %v2376 = vunpack.c.l.b16 %v1260
    %v2377 = vunpack.c.h.b16 %v1260
    %v2378 = vunpack.c.l.b16 %v1261
    %v2379 = vunpack.c.h.b16 %v1261
    %v2380 = vunpack.c.l.b16 %v1262
    %v2381 = vunpack.c.h.b16 %v1262
    %v2382 = vunpack.c.l.b16 %v1263
    %v2383 = vunpack.c.h.b16 %v1263
    %v2384 = vunpack.c.l.b16 %v1264
    %v2385 = vunpack.c.h.b16 %v1264
    %v2386 = vunpack.c.l.b16 %v1265
    %v2387 = vunpack.c.h.b16 %v1265
    %v2388 = vunpack.c.l.b16 %v1266
    %v2389 = vunpack.c.h.b16 %v1266
    %v2390 = vunpack.c.l.b16 %v1267
    %v2391 = vunpack.c.h.b16 %v1267
    %v2392 = vunpack.c.l.b16 %v1268
    %v2393 = vunpack.c.h.b16 %v1268
    %v2394 = vunpack.c.l.b16 %v1269
    %v2395 = vunpack.c.h.b16 %v1269
    %v2396 = vunpack.c.l.b16 %v1270
    %v2397 = vunpack.c.h.b16 %v1270
    %v2398 = vunpack.c.l.b16 %v1271
    %v2399 = vunpack.c.h.b16 %v1271
    %v2400 = vunpack.c.l.b16 %v1272
    %v2401 = vunpack.c.h.b16 %v1272
    %v2402 = vunpack.c.l.b16 %v1273
    %v2403 = vunpack.c.h.b16 %v1273
    %v2404 = vunpack.c.l.b16 %v1274
    %v2405 = vunpack.c.h.b16 %v1274
    %v2406 = vunpack.c.l.b16 %v1275
    %v2407 = vunpack.c.h.b16 %v1275
    %v2408 = vunpack.c.l.b16 %v1276
    %v2409 = vunpack.c.h.b16 %v1276
    %v2410 = vunpack.c.l.b16 %v1277
    %v2411 = vunpack.c.h.b16 %v1277
    %v2412 = vunpack.c.l.b16 %v1278
    %v2413 = vunpack.c.h.b16 %v1278
    %v2414 = vunpack.c.l.b16 %v1279
    %v2415 = vunpack.c.h.b16 %v1279
    %v2416 = vunpack.c.l.b16 %v1280
    %v2417 = vunpack.c.h.b16 %v1280
    %v2418 = vunpack.c.l.b16 %v1281
    %v2419 = vunpack.c.h.b16 %v1281
    %v2420 = vunpack.c.l.b16 %v1282
    %v2421 = vunpack.c.h.b16 %v1282
    %v2422 = vunpack.c.l.b16 %v1283
    %v2423 = vunpack.c.h.b16 %v1283
    %v2424 = vunpack.c.l.b16 %v1284
    %v2425 = vunpack.c.h.b16 %v1284
    %v2426 = vunpack.c.l.b16 %v1285
    %v2427 = vunpack.c.h.b16 %v1285
    %v2428 = vunpack.c.l.b16 %v1286
    %v2429 = vunpack.c.h.b16 %v1286
    %v2430 = vunpack.c.l.b16 %v1287
    %v2431 = vunpack.c.h.b16 %v1287
    %v2432 = vunpack.c.l.b16 %v1288
    %v2433 = vunpack.c.h.b16 %v1288
    %v2434 = vunpack.c.l.b16 %v1289
    %v2435 = vunpack.c.h.b16 %v1289
    %v2436 = vunpack.c.l.b16 %v1290
    %v2437 = vunpack.c.h.b16 %v1290
    %v2438 = vunpack.c.l.b16 %v1291
    %v2439 = vunpack.c.h.b16 %v1291
    %v2440 = vunpack.c.l.b16 %v1292
    %v2441 = vunpack.c.h.b16 %v1292
    %v2442 = vunpack.c.l.b16 %v1293
    %v2443 = vunpack.c.h.b16 %v1293
    %v2444 = vunpack.c.l.b16 %v1294
    %v2445 = vunpack.c.h.b16 %v1294
    %v2446 = vunpack.c.l.b16 %v1295
    %v2447 = vunpack.c.h.b16 %v1295
    %v2448 = vunpack.c.l.b16 %v1296
    %v2449 = vunpack.c.h.b16 %v1296
    %v2450 = vunpack.c.l.b16 %v1297
    %v2451 = vunpack.c.h.b16 %v1297
    %v2452 = vunpack.c.l.b16 %v1298
    %v2453 = vunpack.c.h.b16 %v1298
    %v2454 = vunpack.c.l.b16 %v1299
    %v2455 = vunpack.c.h.b16 %v1299
    %v2456 = vunpack.c.l.b16 %v1300
    %v2457 = vunpack.c.h.b16 %v1300
    %v2458 = vunpack.c.l.b16 %v1301
    %v2459 = vunpack.c.h.b16 %v1301
    %v2460 = vunpack.c.l.b16 %v1302
    %v2461 = vunpack.c.h.b16 %v1302
    %v2462 = vunpack.c.l.b16 %v1303
    %v2463 = vunpack.c.h.b16 %v1303
    %v2464 = vunpack.c.l.b16 %v1304
    %v2465 = vunpack.c.h.b16 %v1304
    %v2466 = vunpack.c.l.b16 %v1305
    %v2467 = vunpack.c.h.b16 %v1305
    %v2468 = vunpack.c.l.b16 %v1306
    %v2469 = vunpack.c.h.b16 %v1306
    %v2470 = vunpack.c.l.b16 %v1307
    %v2471 = vunpack.c.h.b16 %v1307
    %v2472 = vunpack.c.l.b16 %v1308
    %v2473 = vunpack.c.h.b16 %v1308
    %v2474 = vunpack.c.l.b16 %v1309
    %v2475 = vunpack.c.h.b16 %v1309
    %v2476 = vunpack.c.l.b16 %v1310
    %v2477 = vunpack.c.h.b16 %v1310
    %v2478 = vunpack.c.l.b16 %v1311
    %v2479 = vunpack.c.h.b16 %v1311
    %v2480 = vunpack.c.l.b16 %v1312
    %v2481 = vunpack.c.h.b16 %v1312
    %v2482 = vunpack.c.l.b16 %v1313
    %v2483 = vunpack.c.h.b16 %v1313
    %v2484 = vunpack.c.l.b16 %v1314
    %v2485 = vunpack.c.h.b16 %v1314
    %v2486 = vunpack.c.l.b16 %v1315
    %v2487 = vunpack.c.h.b16 %v1315
    %v2488 = vunpack.c.l.b16 %v1316
    %v2489 = vunpack.c.h.b16 %v1316
    %v2490 = vunpack.c.l.b16 %v1317
    %v2491 = vunpack.c.h.b16 %v1317
    %v2492 = vunpack.c.l.b16 %v1318
    %v2493 = vunpack.c.h.b16 %v1318
    %v2494 = vunpack.c.l.b16 %v1319
    %v2495 = vunpack.c.h.b16 %v1319
    %v2496 = vunpack.c.l.b16 %v1320
    %v2497 = vunpack.c.h.b16 %v1320
    %v2498 = vunpack.c.l.b16 %v1321
    %v2499 = vunpack.c.h.b16 %v1321
    %v2500 = vunpack.c.l.b16 %v1322
    %v2501 = vunpack.c.h.b16 %v1322
    %v2502 = vunpack.c.l.b16 %v1323
    %v2503 = vunpack.c.h.b16 %v1323
    %v2504 = vunpack.c.l.b16 %v1324
    %v2505 = vunpack.c.h.b16 %v1324
    %v2506 = vunpack.c.l.b16 %v1325
    %v2507 = vunpack.c.h.b16 %v1325
    %v2508 = vunpack.c.l.b16 %v1326
    %v2509 = vunpack.c.h.b16 %v1326
    %v2510 = vunpack.c.l.b16 %v1327
    %v2511 = vunpack.c.h.b16 %v1327
    %v2512 = vunpack.c.l.b16 %v1328
    %v2513 = vunpack.c.h.b16 %v1328
    %v2514 = vunpack.c.l.b16 %v1329
    %v2515 = vunpack.c.h.b16 %v1329
    %v2516 = vunpack.c.l.b16 %v1330
    %v2517 = vunpack.c.h.b16 %v1330
    %v2518 = vunpack.c.l.b16 %v1331
    %v2519 = vunpack.c.h.b16 %v1331
    %v2520 = vunpack.c.l.b16 %v1332
    %v2521 = vunpack.c.h.b16 %v1332
    %v2522 = vunpack.c.l.b16 %v1333
    %v2523 = vunpack.c.h.b16 %v1333
    %v2524 = vunpack.c.l.b16 %v1334
    %v2525 = vunpack.c.h.b16 %v1334
    %v2526 = vunpack.c.l.b16 %v1335
    %v2527 = vunpack.c.h.b16 %v1335
    %v2528 = vunpack.c.l.b16 %v1336
    %v2529 = vunpack.c.h.b16 %v1336
    %v2530 = vunpack.c.l.b16 %v1337
    %v2531 = vunpack.c.h.b16 %v1337
    %v2532 = vunpack.c.l.b16 %v1338
    %v2533 = vunpack.c.h.b16 %v1338
    %v2534 = vunpack.c.l.b16 %v1339
    %v2535 = vunpack.c.h.b16 %v1339
    %v2536 = vunpack.c.l.b16 %v1340
    %v2537 = vunpack.c.h.b16 %v1340
    %v2538 = vunpack.c.l.b16 %v1341
    %v2539 = vunpack.c.h.b16 %v1341
    %v2540 = vunpack.c.l.b16 %v1342
    %v2541 = vunpack.c.h.b16 %v1342
    %v2542 = vunpack.c.l.b16 %v1343
    %v2543 = vunpack.c.h.b16 %v1343
    %v2544 = vunpack.c.l.b16 %v1344
    %v2545 = vunpack.c.h.b16 %v1344
    %v2546 = vunpack.c.l.b16 %v1345
    %v2547 = vunpack.c.h.b16 %v1345
    %v2548 = vunpack.c.l.b16 %v1346
    %v2549 = vunpack.c.h.b16 %v1346
    %v2550 = vunpack.c.l.b16 %v1347
    %v2551 = vunpack.c.h.b16 %v1347
    %v2552 = vunpack.c.l.b16 %v1348
    %v2553 = vunpack.c.h.b16 %v1348
    %v2554 = vunpack.c.l.b16 %v1349
    %v2555 = vunpack.c.h.b16 %v1349
    %v2556 = vunpack.c.l.b16 %v1350
    %v2557 = vunpack.c.h.b16 %v1350
    %v2558 = vunpack.c.l.b16 %v1351
    %v2559 = vunpack.c.h.b16 %v1351
    %v2560 = vunpack.c.l.b16 %v1352
    %v2561 = vunpack.c.h.b16 %v1352
    %v2562 = vunpack.c.l.b16 %v1353
    %v2563 = vunpack.c.h.b16 %v1353
    %v2564 = vunpack.c.l.b16 %v1354
    %v2565 = vunpack.c.h.b16 %v1354
    %v2566 = vunpack.c.l.b16 %v1355
    %v2567 = vunpack.c.h.b16 %v1355
    %v2568 = vunpack.c.l.b16 %v1356
    %v2569 = vunpack.c.h.b16 %v1356
    %v2570 = vunpack.c.l.b16 %v1357
    %v2571 = vunpack.c.h.b16 %v1357
    %v2572 = vunpack.c.l.b16 %v1358
    %v2573 = vunpack.c.h.b16 %v1358
    %v2574 = vunpack.c.l.b16 %v1359
    %v2575 = vunpack.c.h.b16 %v1359
    %v2576 = vunpack.c.l.b16 %v1360
    %v2577 = vunpack.c.h.b16 %v1360
    %v2578 = vunpack.c.l.b16 %v1361
    %v2579 = vunpack.c.h.b16 %v1361
    %v2580 = vunpack.c.l.b16 %v1362
    %v2581 = vunpack.c.h.b16 %v1362
    %v2582 = vunpack.c.l.b16 %v1363
    %v2583 = vunpack.c.h.b16 %v1363
    %v2584 = vunpack.c.l.b16 %v1364
    %v2585 = vunpack.c.h.b16 %v1364
    %v2586 = vunpack.c.l.b16 %v1365
    %v2587 = vunpack.c.h.b16 %v1365
    %v2588 = vunpack.c.l.b16 %v1366
    %v2589 = vunpack.c.h.b16 %v1366
    %v2590 = vunpack.c.l.b16 %v1367
    %v2591 = vunpack.c.h.b16 %v1367
    %v2592 = vunpack.c.l.b16 %v1368
    %v2593 = vunpack.c.h.b16 %v1368
    %v2594 = vunpack.c.l.b16 %v1369
    %v2595 = vunpack.c.h.b16 %v1369
    %v2596 = vunpack.c.l.b16 %v1370
    %v2597 = vunpack.c.h.b16 %v1370
    %v2598 = vunpack.c.l.b16 %v1371
    %v2599 = vunpack.c.h.b16 %v1371
    %v2600 = vunpack.c.l.b16 %v1372
    %v2601 = vunpack.c.h.b16 %v1372
    %v2602 = vunpack.c.l.b16 %v1373
    %v2603 = vunpack.c.h.b16 %v1373
    %v2604 = vunpack.c.l.b16 %v1374
    %v2605 = vunpack.c.h.b16 %v1374
    %v2606 = vunpack.c.l.b16 %v1375
    %v2607 = vunpack.c.h.b16 %v1375
    %v2608 = vunpack.c.l.b16 %v1376
    %v2609 = vunpack.c.h.b16 %v1376
    %v2610 = vunpack.c.l.b16 %v1377
    %v2611 = vunpack.c.h.b16 %v1377
    %v2612 = vunpack.c.l.b16 %v1378
    %v2613 = vunpack.c.h.b16 %v1378
    %v2614 = vunpack.c.l.b16 %v1379
    %v2615 = vunpack.c.h.b16 %v1379
    %v2616 = vunpack.c.l.b16 %v1380
    %v2617 = vunpack.c.h.b16 %v1380
    %v2618 = vunpack.c.l.b16 %v1381
    %v2619 = vunpack.c.h.b16 %v1381
    %v2620 = vunpack.c.l.b16 %v1382
    %v2621 = vunpack.c.h.b16 %v1382
    %v2622 = vunpack.c.l.b16 %v1383
    %v2623 = vunpack.c.h.b16 %v1383
    %v2624 = vunpack.c.l.b16 %v1384
    %v2625 = vunpack.c.h.b16 %v1384
    %v2626 = vunpack.c.l.b16 %v1385
    %v2627 = vunpack.c.h.b16 %v1385
    %v2628 = vunpack.c.l.b16 %v1386
    %v2629 = vunpack.c.h.b16 %v1386
    %v2630 = vunpack.c.l.b16 %v1387
    %v2631 = vunpack.c.h.b16 %v1387
    %v2632 = vunpack.c.l.b16 %v1388
    %v2633 = vunpack.c.h.b16 %v1388
    %v2634 = vunpack.c.l.b16 %v1389
    %v2635 = vunpack.c.h.b16 %v1389
    %v2636 = vunpack.c.l.b16 %v1390
    %v2637 = vunpack.c.h.b16 %v1390
    %v2638 = vunpack.c.l.b16 %v1391
    %v2639 = vunpack.c.h.b16 %v1391
    %v2640 = vunpack.c.l.b16 %v1392
    %v2641 = vunpack.c.h.b16 %v1392
    %v2642 = vunpack.c.l.b16 %v1393
    %v2643 = vunpack.c.h.b16 %v1393
    %v2644 = vunpack.c.l.b16 %v1394
    %v2645 = vunpack.c.h.b16 %v1394
    %v2646 = vunpack.c.l.b16 %v1395
    %v2647 = vunpack.c.h.b16 %v1395
    %v2648 = vunpack.c.l.b16 %v1396
    %v2649 = vunpack.c.h.b16 %v1396
    %v2650 = vunpack.c.l.b16 %v1397
    %v2651 = vunpack.c.h.b16 %v1397
    %v2652 = vunpack.c.l.b16 %v1398
    %v2653 = vunpack.c.h.b16 %v1398
    %v2654 = vunpack.c.l.b16 %v1399
    %v2655 = vunpack.c.h.b16 %v1399
    %v2656 = vunpack.c.l.b16 %v1400
    %v2657 = vunpack.c.h.b16 %v1400
    %v2658 = vunpack.c.l.b16 %v1401
    %v2659 = vunpack.c.h.b16 %v1401
    %v2660 = vunpack.c.l.b16 %v1402
    %v2661 = vunpack.c.h.b16 %v1402
    %v2662 = vunpack.c.l.b16 %v1403
    %v2663 = vunpack.c.h.b16 %v1403
    %v2664 = vunpack.c.l.b16 %v1404
    %v2665 = vunpack.c.h.b16 %v1404
    %v2666 = vunpack.c.l.b16 %v1405
    %v2667 = vunpack.c.h.b16 %v1405
    %v2668 = vunpack.c.l.b16 %v1406
    %v2669 = vunpack.c.h.b16 %v1406
    %v2670 = vunpack.c.l.b16 %v1407
    %v2671 = vunpack.c.h.b16 %v1407
    %v2672 = vunpack.c.l.b16 %v1408
    %v2673 = vunpack.c.h.b16 %v1408
    %v2674 = vunpack.c.l.b16 %v1409
    %v2675 = vunpack.c.h.b16 %v1409
    %v2676 = vunpack.c.l.b16 %v1410
    %v2677 = vunpack.c.h.b16 %v1410
    %v2678 = vunpack.c.l.b16 %v1411
    %v2679 = vunpack.c.h.b16 %v1411
    %v2680 = vunpack.c.l.b16 %v1412
    %v2681 = vunpack.c.h.b16 %v1412
    %v2682 = vunpack.c.l.b16 %v1413
    %v2683 = vunpack.c.h.b16 %v1413
    %v2684 = vunpack.c.l.b16 %v1414
    %v2685 = vunpack.c.h.b16 %v1414
    %v2686 = vunpack.c.l.b16 %v1415
    %v2687 = vunpack.c.h.b16 %v1415
    %v2688 = vunpack.c.l.b16 %v1416
    %v2689 = vunpack.c.h.b16 %v1416
    %v2690 = vunpack.c.l.b16 %v1417
    %v2691 = vunpack.c.h.b16 %v1417
    %v2692 = vunpack.c.l.b16 %v1418
    %v2693 = vunpack.c.h.b16 %v1418
    %v2694 = vunpack.c.l.b16 %v1419
    %v2695 = vunpack.c.h.b16 %v1419
    %v2696 = vunpack.c.l.b16 %v1420
    %v2697 = vunpack.c.h.b16 %v1420
    %v2698 = vunpack.c.l.b16 %v1421
    %v2699 = vunpack.c.h.b16 %v1421
    %v2700 = vunpack.c.l.b16 %v1422
    %v2701 = vunpack.c.h.b16 %v1422
    %v2702 = vunpack.c.l.b16 %v1423
    %v2703 = vunpack.c.h.b16 %v1423
    %v2704 = vunpack.c.l.b16 %v1424
    %v2705 = vunpack.c.h.b16 %v1424
    %v2706 = vunpack.c.l.b16 %v1425
    %v2707 = vunpack.c.h.b16 %v1425
    %v2708 = vunpack.c.l.b16 %v1426
    %v2709 = vunpack.c.h.b16 %v1426
    %v2710 = vunpack.c.l.b16 %v1427
    %v2711 = vunpack.c.h.b16 %v1427
    %v2712 = vunpack.c.l.b16 %v1428
    %v2713 = vunpack.c.h.b16 %v1428
    %v2714 = vunpack.c.l.b16 %v1429
    %v2715 = vunpack.c.h.b16 %v1429
    %v2716 = vunpack.c.l.b16 %v1430
    %v2717 = vunpack.c.h.b16 %v1430
    %v2718 = vunpack.c.l.b16 %v1431
    %v2719 = vunpack.c.h.b16 %v1431
    %v2720 = vunpack.c.l.b16 %v1432
    %v2721 = vunpack.c.h.b16 %v1432
    %v2722 = vunpack.c.l.b16 %v1433
    %v2723 = vunpack.c.h.b16 %v1433
    %v2724 = vunpack.c.l.b16 %v1434
    %v2725 = vunpack.c.h.b16 %v1434
    %v2726 = vunpack.c.l.b16 %v1435
    %v2727 = vunpack.c.h.b16 %v1435
    %v2728 = vunpack.c.l.b16 %v1436
    %v2729 = vunpack.c.h.b16 %v1436
    %v2730 = vunpack.c.l.b16 %v1437
    %v2731 = vunpack.c.h.b16 %v1437
    %v2732 = vunpack.c.l.b16 %v1438
    %v2733 = vunpack.c.h.b16 %v1438
    %v2734 = vunpack.c.l.b16 %v1439
    %v2735 = vunpack.c.h.b16 %v1439
    %v2736 = vunpack.c.l.b16 %v1440
    %v2737 = vunpack.c.h.b16 %v1440
    %v2738 = vunpack.c.l.b16 %v1441
    %v2739 = vunpack.c.h.b16 %v1441
    %v2740 = vunpack.c.l.b16 %v1442
    %v2741 = vunpack.c.h.b16 %v1442
    %v2742 = vunpack.c.l.b16 %v1443
    %v2743 = vunpack.c.h.b16 %v1443
    %v2744 = vunpack.c.l.b16 %v1444
    %v2745 = vunpack.c.h.b16 %v1444
    %v2746 = vunpack.c.l.b16 %v1445
    %v2747 = vunpack.c.h.b16 %v1445
    %v2748 = vunpack.c.l.b16 %v1446
    %v2749 = vunpack.c.h.b16 %v1446
    %v2750 = vunpack.c.l.b16 %v1447
    %v2751 = vunpack.c.h.b16 %v1447
    %v2752 = vunpack.c.l.b16 %v1448
    %v2753 = vunpack.c.h.b16 %v1448
    %v2754 = vunpack.c.l.b16 %v1449
    %v2755 = vunpack.c.h.b16 %v1449
    %v2756 = vunpack.c.l.b16 %v1450
    %v2757 = vunpack.c.h.b16 %v1450
    %v2758 = vunpack.c.l.b16 %v1451
    %v2759 = vunpack.c.h.b16 %v1451
    %v2760 = vunpack.c.l.b16 %v1452
    %v2761 = vunpack.c.h.b16 %v1452
    %v2762 = vunpack.c.l.b16 %v1453
    %v2763 = vunpack.c.h.b16 %v1453
    %v2764 = vunpack.c.l.b16 %v1454
    %v2765 = vunpack.c.h.b16 %v1454
    %v2766 = vunpack.c.l.b16 %v1455
    %v2767 = vunpack.c.h.b16 %v1455
    %v2768 = vunpack.c.l.b16 %v1456
    %v2769 = vunpack.c.h.b16 %v1456
    %v2770 = vunpack.c.l.b16 %v1457
    %v2771 = vunpack.c.h.b16 %v1457
    %v2772 = vunpack.c.l.b16 %v1458
    %v2773 = vunpack.c.h.b16 %v1458
    %v2774 = vunpack.c.l.b16 %v1459
    %v2775 = vunpack.c.h.b16 %v1459
    %v2776 = vunpack.c.l.b16 %v1460
    %v2777 = vunpack.c.h.b16 %v1460
    %v2778 = vunpack.c.l.b16 %v1461
    %v2779 = vunpack.c.h.b16 %v1461
    %v2780 = vunpack.c.l.b16 %v1462
    %v2781 = vunpack.c.h.b16 %v1462
    %v2782 = vunpack.c.l.b16 %v1463
    %v2783 = vunpack.c.h.b16 %v1463
    %v2784 = vunpack.c.l.b16 %v1464
    %v2785 = vunpack.c.h.b16 %v1464
    %v2786 = vunpack.c.l.b16 %v1465
    %v2787 = vunpack.c.h.b16 %v1465
    %v2788 = vunpack.c.l.b16 %v1466
    %v2789 = vunpack.c.h.b16 %v1466
    %v2790 = vunpack.c.l.b16 %v1467
    %v2791 = vunpack.c.h.b16 %v1467
    %v2792 = vunpack.c.l.b16 %v1468
    %v2793 = vunpack.c.h.b16 %v1468
    %v2794 = vunpack.c.l.b16 %v1469
    %v2795 = vunpack.c.h.b16 %v1469
    %v2796 = vunpack.c.l.b16 %v1470
    %v2797 = vunpack.c.h.b16 %v1470
    %v2798 = vunpack.c.l.b16 %v1471
    %v2799 = vunpack.c.h.b16 %v1471
    %v2800 = vunpack.c.l.b16 %v1472
    %v2801 = vunpack.c.h.b16 %v1472
    %v2802 = vunpack.c.l.b16 %v1473
    %v2803 = vunpack.c.h.b16 %v1473
    %v2804 = vunpack.c.l.b16 %v1474
    %v2805 = vunpack.c.h.b16 %v1474
    %v2806 = vunpack.c.l.b16 %v1475
    %v2807 = vunpack.c.h.b16 %v1475
    %v2808 = vunpack.c.l.b16 %v1476
    %v2809 = vunpack.c.h.b16 %v1476
    %v2810 = vunpack.c.l.b16 %v1477
    %v2811 = vunpack.c.h.b16 %v1477
    %v2812 = vunpack.c.l.b16 %v1478
    %v2813 = vunpack.c.h.b16 %v1478
    %v2814 = vunpack.c.l.b16 %v1479
    %v2815 = vunpack.c.h.b16 %v1479
    %v2816 = vunpack.c.l.b16 %v1480
    %v2817 = vunpack.c.h.b16 %v1480
    %v2818 = vunpack.c.l.b16 %v1481
    %v2819 = vunpack.c.h.b16 %v1481
    %v2820 = vunpack.c.l.b16 %v1482
    %v2821 = vunpack.c.h.b16 %v1482
    %v2822 = vunpack.c.l.b16 %v1483
    %v2823 = vunpack.c.h.b16 %v1483
    %v2824 = vunpack.c.l.b16 %v1484
    %v2825 = vunpack.c.h.b16 %v1484
    %v2826 = vunpack.c.l.b16 %v1485
    %v2827 = vunpack.c.h.b16 %v1485
    %v2828 = vunpack.c.l.b16 %v1486
    %v2829 = vunpack.c.h.b16 %v1486
    %v2830 = vunpack.c.l.b16 %v1487
    %v2831 = vunpack.c.h.b16 %v1487
    %v2832 = vunpack.c.l.b16 %v1488
    %v2833 = vunpack.c.h.b16 %v1488
    %v2834 = vunpack.c.l.b16 %v1489
    %v2835 = vunpack.c.h.b16 %v1489
    %v2836 = vunpack.c.l.b16 %v1490
    %v2837 = vunpack.c.h.b16 %v1490
    %v2838 = vunpack.c.l.b16 %v1491
    %v2839 = vunpack.c.h.b16 %v1491
    %v2840 = vunpack.c.l.b16 %v1492
    %v2841 = vunpack.c.h.b16 %v1492
    %v2842 = vunpack.c.l.b16 %v1493
    %v2843 = vunpack.c.h.b16 %v1493
    %v2844 = vunpack.c.l.b16 %v1494
    %v2845 = vunpack.c.h.b16 %v1494
    %v2846 = vunpack.c.l.b16 %v1495
    %v2847 = vunpack.c.h.b16 %v1495
    %v2848 = vunpack.c.l.b16 %v1496
    %v2849 = vunpack.c.h.b16 %v1496
    %v2850 = vunpack.c.l.b16 %v1497
    %v2851 = vunpack.c.h.b16 %v1497
    %v2852 = vunpack.c.l.b16 %v1498
    %v2853 = vunpack.c.h.b16 %v1498
    %v2854 = vunpack.c.l.b16 %v1499
    %v2855 = vunpack.c.h.b16 %v1499
    %v2856 = vunpack.c.l.b16 %v1500
    %v2857 = vunpack.c.h.b16 %v1500
    %v2858 = vunpack.c.l.b16 %v1501
    %v2859 = vunpack.c.h.b16 %v1501
    %v2860 = vunpack.c.l.b16 %v1502
    %v2861 = vunpack.c.h.b16 %v1502
    %v2862 = vunpack.c.l.b16 %v1503
    %v2863 = vunpack.c.h.b16 %v1503
    %v2864 = vunpack.c.l.b16 %v1504
    %v2865 = vunpack.c.h.b16 %v1504
    %v2866 = vunpack.c.l.b16 %v1505
    %v2867 = vunpack.c.h.b16 %v1505
    %v2868 = vunpack.c.l.b16 %v1506
    %v2869 = vunpack.c.h.b16 %v1506
    %v2870 = vunpack.c.l.b16 %v1507
    %v2871 = vunpack.c.h.b16 %v1507
    %v2872 = vunpack.c.l.b16 %v1508
    %v2873 = vunpack.c.h.b16 %v1508
    %v2874 = vunpack.c.l.b16 %v1509
    %v2875 = vunpack.c.h.b16 %v1509
    %v2876 = vunpack.c.l.b16 %v1510
    %v2877 = vunpack.c.h.b16 %v1510
    %v2878 = vunpack.c.l.b16 %v1511
    %v2879 = vunpack.c.h.b16 %v1511
    %v2880 = vunpack.c.l.b16 %v1512
    %v2881 = vunpack.c.h.b16 %v1512
    %v2882 = vunpack.c.l.b16 %v1513
    %v2883 = vunpack.c.h.b16 %v1513
    %v2884 = vunpack.c.l.b16 %v1514
    %v2885 = vunpack.c.h.b16 %v1514
    %v2886 = vunpack.c.l.b16 %v1515
    %v2887 = vunpack.c.h.b16 %v1515
    %v2888 = vunpack.c.l.b16 %v1516
    %v2889 = vunpack.c.h.b16 %v1516
    %v2890 = vunpack.c.l.b16 %v1517
    %v2891 = vunpack.c.h.b16 %v1517
    %v2892 = vunpack.c.l.b16 %v1518
    %v2893 = vunpack.c.h.b16 %v1518
    %v2894 = vunpack.c.l.b16 %v1519
    %v2895 = vunpack.c.h.b16 %v1519
    %v2896 = vunpack.c.l.b16 %v1520
    %v2897 = vunpack.c.h.b16 %v1520
    %v2898 = vunpack.c.l.b16 %v1521
    %v2899 = vunpack.c.h.b16 %v1521
    %v2900 = vunpack.c.l.b16 %v1522
    %v2901 = vunpack.c.h.b16 %v1522
    %v2902 = vunpack.c.l.b16 %v1523
    %v2903 = vunpack.c.h.b16 %v1523
    %v2904 = vunpack.c.l.b16 %v1524
    %v2905 = vunpack.c.h.b16 %v1524
    %v2906 = vunpack.c.l.b16 %v1525
    %v2907 = vunpack.c.h.b16 %v1525
    %v2908 = vunpack.c.l.b16 %v1526
    %v2909 = vunpack.c.h.b16 %v1526
    %v2910 = vunpack.c.l.b16 %v1527
    %v2911 = vunpack.c.h.b16 %v1527
    %v2912 = vunpack.c.l.b16 %v1528
    %v2913 = vunpack.c.h.b16 %v1528
    %v2914 = vunpack.c.l.b16 %v1529
    %v2915 = vunpack.c.h.b16 %v1529
    %v2916 = vunpack.c.l.b16 %v1530
    %v2917 = vunpack.c.h.b16 %v1530
    %v2918 = vunpack.c.l.b16 %v1531
    %v2919 = vunpack.c.h.b16 %v1531
    %v2920 = vunpack.c.l.b16 %v1532
    %v2921 = vunpack.c.h.b16 %v1532
    %v2922 = vunpack.c.l.b16 %v1533
    %v2923 = vunpack.c.h.b16 %v1533
    %v2924 = vunpack.c.l.b16 %v1534
    %v2925 = vunpack.c.h.b16 %v1534
    %v2926 = vunpack.c.l.b16 %v1535
    %v2927 = vunpack.c.h.b16 %v1535
    %v2928 = vunpack.c.l.b16 %v1536
    %v2929 = vunpack.c.h.b16 %v1536
    %v2930 = vunpack.c.l.b16 %v1537
    %v2931 = vunpack.c.h.b16 %v1537
    %v2932 = vunpack.c.l.b16 %v1538
    %v2933 = vunpack.c.h.b16 %v1538
    %v2934 = vunpack.c.l.b16 %v1539
    %v2935 = vunpack.c.h.b16 %v1539
    %v2936 = vunpack.c.l.b16 %v1540
    %v2937 = vunpack.c.h.b16 %v1540
    %v2938 = vunpack.c.l.b16 %v1541
    %v2939 = vunpack.c.h.b16 %v1541
    %v2940 = vunpack.c.l.b16 %v1542
    %v2941 = vunpack.c.h.b16 %v1542
    %v2942 = vunpack.c.l.b16 %v1543
    %v2943 = vunpack.c.h.b16 %v1543
    %v2944 = vunpack.c.l.b16 %v1544
    %v2945 = vunpack.c.h.b16 %v1544
    %v2946 = vunpack.c.l.b16 %v1545
    %v2947 = vunpack.c.h.b16 %v1545
    %v2948 = vunpack.c.l.b16 %v1546
    %v2949 = vunpack.c.h.b16 %v1546
    %v2950 = vunpack.c.l.b16 %v1547
    %v2951 = vunpack.c.h.b16 %v1547
    %v2952 = vunpack.c.l.b16 %v1548
    %v2953 = vunpack.c.h.b16 %v1548
    %v2954 = vunpack.c.l.b16 %v1549
    %v2955 = vunpack.c.h.b16 %v1549
    %v2956 = vunpack.c.l.b16 %v1550
    %v2957 = vunpack.c.h.b16 %v1550
    %v2958 = vunpack.c.l.b16 %v1551
    %v2959 = vunpack.c.h.b16 %v1551
    %v2960 = vunpack.c.l.b16 %v1552
    %v2961 = vunpack.c.h.b16 %v1552
    %v2962 = vunpack.c.l.b16 %v1553
    %v2963 = vunpack.c.h.b16 %v1553
    %v2964 = vunpack.c.l.b16 %v1554
    %v2965 = vunpack.c.h.b16 %v1554
    %v2966 = vunpack.c.l.b16 %v1555
    %v2967 = vunpack.c.h.b16 %v1555
    %v2968 = vunpack.c.l.b16 %v1556
    %v2969 = vunpack.c.h.b16 %v1556
    %v2970 = vunpack.c.l.b16 %v1557
    %v2971 = vunpack.c.h.b16 %v1557
    %v2972 = vunpack.c.l.b16 %v1558
    %v2973 = vunpack.c.h.b16 %v1558
    %v2974 = vunpack.c.l.b16 %v1559
    %v2975 = vunpack.c.h.b16 %v1559
    %v2976 = vunpack.c.l.b16 %v1560
    %v2977 = vunpack.c.h.b16 %v1560
    %v2978 = vunpack.c.l.b16 %v1561
    %v2979 = vunpack.c.h.b16 %v1561
    %v2980 = vunpack.c.l.b16 %v1562
    %v2981 = vunpack.c.h.b16 %v1562
    %v2982 = vunpack.c.l.b16 %v1563
    %v2983 = vunpack.c.h.b16 %v1563
    %v2984 = vunpack.c.l.b16 %v1564
    %v2985 = vunpack.c.h.b16 %v1564
    %v2986 = vunpack.c.l.b16 %v1565
    %v2987 = vunpack.c.h.b16 %v1565
    %v2988 = vunpack.c.l.b16 %v1566
    %v2989 = vunpack.c.h.b16 %v1566
    %v2990 = vunpack.c.l.b16 %v1567
    %v2991 = vunpack.c.h.b16 %v1567
    %v2992 = vunpack.c.l.b16 %v1568
    %v2993 = vunpack.c.h.b16 %v1568
    %v2994 = vunpack.c.l.b16 %v1569
    %v2995 = vunpack.c.h.b16 %v1569
    %v2996 = vunpack.c.l.b16 %v1570
    %v2997 = vunpack.c.h.b16 %v1570
    %v2998 = vunpack.c.l.b16 %v1571
    %v2999 = vunpack.c.h.b16 %v1571
    %v3000 = vunpack.c.l.b16 %v1572
    %v3001 = vunpack.c.h.b16 %v1572
    %v3002 = vunpack.c.l.b16 %v1573
    %v3003 = vunpack.c.h.b16 %v1573
    %v3004 = vunpack.c.l.b16 %v1574
    %v3005 = vunpack.c.h.b16 %v1574
    %v3006 = vunpack.c.l.b16 %v1575
    %v3007 = vunpack.c.h.b16 %v1575
    %v3008 = vunpack.c.l.b16 %v1576
    %v3009 = vunpack.c.h.b16 %v1576
    %v3010 = vunpack.c.l.b16 %v1577
    %v3011 = vunpack.c.h.b16 %v1577
    %v3012 = vunpack.c.l.b16 %v1578
    %v3013 = vunpack.c.h.b16 %v1578
    %v3014 = vunpack.c.l.b16 %v1579
    %v3015 = vunpack.c.h.b16 %v1579
    %v3016 = vunpack.c.l.b16 %v1580
    %v3017 = vunpack.c.h.b16 %v1580
    %v3018 = vunpack.c.l.b16 %v1581
    %v3019 = vunpack.c.h.b16 %v1581
    %v3020 = vunpack.c.l.b16 %v1582
    %v3021 = vunpack.c.h.b16 %v1582
    %v3022 = vunpack.c.l.b16 %v1583
    %v3023 = vunpack.c.h.b16 %v1583
    %v3024 = vunpack.c.l.b16 %v1584
    %v3025 = vunpack.c.h.b16 %v1584
    %v3026 = vunpack.c.l.b16 %v1585
    %v3027 = vunpack.c.h.b16 %v1585
    %v3028 = vunpack.c.l.b16 %v1586
    %v3029 = vunpack.c.h.b16 %v1586
    %v3030 = vunpack.c.l.b16 %v1587
    %v3031 = vunpack.c.h.b16 %v1587
    %v3032 = vunpack.c.l.b16 %v1588
    %v3033 = vunpack.c.h.b16 %v1588
    %v3034 = vunpack.c.l.b16 %v1589
    %v3035 = vunpack.c.h.b16 %v1589
    %v3036 = vunpack.c.l.b16 %v1590
    %v3037 = vunpack.c.h.b16 %v1590
    %v3038 = vunpack.c.l.b16 %v1591
    %v3039 = vunpack.c.h.b16 %v1591
    %v3040 = vunpack.c.l.b16 %v1592
    %v3041 = vunpack.c.h.b16 %v1592
    %v3042 = vunpack.c.l.b16 %v1593
    %v3043 = vunpack.c.h.b16 %v1593
    %v3044 = vunpack.c.l.b16 %v1594
    %v3045 = vunpack.c.h.b16 %v1594
    %v3046 = vunpack.c.l.b16 %v1595
    %v3047 = vunpack.c.h.b16 %v1595
    %v3048 = vunpack.c.l.b16 %v1596
    %v3049 = vunpack.c.h.b16 %v1596
    %v3050 = vunpack.c.l.b16 %v1597
    %v3051 = vunpack.c.h.b16 %v1597
    %v3052 = vunpack.c.l.b16 %v1598
    %v3053 = vunpack.c.h.b16 %v1598
    %v3054 = vunpack.c.l.b16 %v1599
    %v3055 = vunpack.c.h.b16 %v1599
    %v3056 = vunpack.c.l.b16 %v1600
    %v3057 = vunpack.c.h.b16 %v1600
    %v3058 = vunpack.c.l.b16 %v1601
    %v3059 = vunpack.c.h.b16 %v1601
    %v3060 = vunpack.c.l.b16 %v1602
    %v3061 = vunpack.c.h.b16 %v1602
    %v3062 = vunpack.c.l.b16 %v1603
    %v3063 = vunpack.c.h.b16 %v1603
    %v3064 = vunpack.c.l.b16 %v1604
    %v3065 = vunpack.c.h.b16 %v1604
    %v3066 = vunpack.c.l.b16 %v1605
    %v3067 = vunpack.c.h.b16 %v1605
    %v3068 = vunpack.c.l.b16 %v1606
    %v3069 = vunpack.c.h.b16 %v1606
    %v3070 = vunpack.c.l.b16 %v1607
    %v3071 = vunpack.c.h.b16 %v1607
    %v3072 = vunpack.c.l.b16 %v1608
    %v3073 = vunpack.c.h.b16 %v1608
    %v3074 = vunpack.c.l.b16 %v1609
    %v3075 = vunpack.c.h.b16 %v1609
    %v3076 = vunpack.c.l.b16 %v1610
    %v3077 = vunpack.c.h.b16 %v1610
    %v3078 = vunpack.c.l.b16 %v1611
    %v3079 = vunpack.c.h.b16 %v1611
    %v3080 = vunpack.c.l.b16 %v1612
    %v3081 = vunpack.c.h.b16 %v1612
    %v3082 = vunpack.c.l.b16 %v1613
    %v3083 = vunpack.c.h.b16 %v1613
    %v3084 = vunpack.c.l.b16 %v1614
    %v3085 = vunpack.c.h.b16 %v1614
    %v3086 = vunpack.c.l.b16 %v1615
    %v3087 = vunpack.c.h.b16 %v1615
    %v3088 = vunpack.c.l.b16 %v1616
    %v3089 = vunpack.c.h.b16 %v1616
    %v3090 = vunpack.c.l.b16 %v1617
    %v3091 = vunpack.c.h.b16 %v1617
    %v3092 = vunpack.c.l.b16 %v1618
    %v3093 = vunpack.c.h.b16 %v1618
    %v3094 = vunpack.c.l.b16 %v1619
    %v3095 = vunpack.c.h.b16 %v1619
    %v3096 = vunpack.c.l.b16 %v1620
    %v3097 = vunpack.c.h.b16 %v1620
    %v3098 = vunpack.c.l.b16 %v1621
    %v3099 = vunpack.c.h.b16 %v1621
    %v3100 = vunpack.c.l.b16 %v1622
    %v3101 = vunpack.c.h.b16 %v1622
    %v3102 = vunpack.c.l.b16 %v1623
    %v3103 = vunpack.c.h.b16 %v1623
    %v3104 = vunpack.c.l.b16 %v1624
    %v3105 = vunpack.c.h.b16 %v1624
    %v3106 = vunpack.c.l.b16 %v1625
    %v3107 = vunpack.c.h.b16 %v1625
    %v3108 = vunpack.c.l.b16 %v1626
    %v3109 = vunpack.c.h.b16 %v1626
    %v3110 = vunpack.c.l.b16 %v1627
    %v3111 = vunpack.c.h.b16 %v1627
    %v3112 = vunpack.c.l.b16 %v1628
    %v3113 = vunpack.c.h.b16 %v1628
    %v3114 = vunpack.c.l.b16 %v1629
    %v3115 = vunpack.c.h.b16 %v1629
    %v3116 = vunpack.c.l.b16 %v1630
    %v3117 = vunpack.c.h.b16 %v1630
    %v3118 = vunpack.c.l.b16 %v1631
    %v3119 = vunpack.c.h.b16 %v1631
    %v3120 = vunpack.c.l.b16 %v1632
    %v3121 = vunpack.c.h.b16 %v1632
    %v3122 = vunpack.c.l.b16 %v1633
    %v3123 = vunpack.c.h.b16 %v1633
    %v3124 = vunpack.c.l.b16 %v1634
    %v3125 = vunpack.c.h.b16 %v1634
    %v3126 = vunpack.c.l.b16 %v1635
    %v3127 = vunpack.c.h.b16 %v1635
    %v3128 = vunpack.c.l.b16 %v1636
    %v3129 = vunpack.c.h.b16 %v1636
    %v3130 = vunpack.c.l.b16 %v1637
    %v3131 = vunpack.c.h.b16 %v1637
    %v3132 = vunpack.c.l.b16 %v1638
    %v3133 = vunpack.c.h.b16 %v1638
    %v3134 = vunpack.c.l.b16 %v1639
    %v3135 = vunpack.c.h.b16 %v1639
    %v3136 = vunpack.c.l.b16 %v1640
    %v3137 = vunpack.c.h.b16 %v1640
    %v3138 = vunpack.c.l.b16 %v1641
    %v3139 = vunpack.c.h.b16 %v1641
    %v3140 = vunpack.c.l.b16 %v1642
    %v3141 = vunpack.c.h.b16 %v1642
    %v3142 = vunpack.c.l.b16 %v1643
    %v3143 = vunpack.c.h.b16 %v1643
    %v3144 = vunpack.c.l.b16 %v1644
    %v3145 = vunpack.c.h.b16 %v1644
    %v3146 = vunpack.c.l.b16 %v1645
    %v3147 = vunpack.c.h.b16 %v1645
    %v3148 = vunpack.c.l.b16 %v1646
    %v3149 = vunpack.c.h.b16 %v1646
    %v3150 = vunpack.c.l.b16 %v1647
    %v3151 = vunpack.c.h.b16 %v1647
    %v3152 = vunpack.c.l.b16 %v1648
    %v3153 = vunpack.c.h.b16 %v1648
    %v3154 = vunpack.c.l.b16 %v1649
    %v3155 = vunpack.c.h.b16 %v1649
    %v3156 = vunpack.c.l.b16 %v1650
    %v3157 = vunpack.c.h.b16 %v1650
    %v3158 = vunpack.c.l.b16 %v1651
    %v3159 = vunpack.c.h.b16 %v1651
    %v3160 = vunpack.c.l.b16 %v1652
    %v3161 = vunpack.c.h.b16 %v1652
    %v3162 = vunpack.c.l.b16 %v1653
    %v3163 = vunpack.c.h.b16 %v1653
    %v3164 = vunpack.c.l.b16 %v1654
    %v3165 = vunpack.c.h.b16 %v1654
    %v3166 = vunpack.c.l.b16 %v1655
    %v3167 = vunpack.c.h.b16 %v1655
    %v3168 = vunpack.c.l.b16 %v1656
    %v3169 = vunpack.c.h.b16 %v1656
    %v3170 = vunpack.c.l.b16 %v1657
    %v3171 = vunpack.c.h.b16 %v1657
    %v3172 = vunpack.c.l.b16 %v1658
    %v3173 = vunpack.c.h.b16 %v1658
    %v3174 = vunpack.c.l.b16 %v1659
    %v3175 = vunpack.c.h.b16 %v1659
    %v3176 = vunpack.c.l.b16 %v1660
    %v3177 = vunpack.c.h.b16 %v1660
    %v3178 = vunpack.c.l.b16 %v1661
    %v3179 = vunpack.c.h.b16 %v1661
    %v3180 = vunpack.c.l.b16 %v1662
    %v3181 = vunpack.c.h.b16 %v1662
    %v3182 = vunpack.c.l.b16 %v1663
    %v3183 = vunpack.c.h.b16 %v1663
    %v3184 = vunpack.c.l.b16 %v1664
    %v3185 = vunpack.c.h.b16 %v1664
    %v3186 = vunpack.c.l.b16 %v1665
    %v3187 = vunpack.c.h.b16 %v1665
    %v3188 = vunpack.c.l.b16 %v1666
    %v3189 = vunpack.c.h.b16 %v1666
    %v3190 = vunpack.c.l.b16 %v1667
    %v3191 = vunpack.c.h.b16 %v1667
    %v3192 = vunpack.c.l.b16 %v1668
    %v3193 = vunpack.c.h.b16 %v1668
    %v3194 = vunpack.c.l.b16 %v1669
    %v3195 = vunpack.c.h.b16 %v1669
    %v3196 = vunpack.c.l.b16 %v1670
    %v3197 = vunpack.c.h.b16 %v1670
    %v3198 = vunpack.c.l.b16 %v1671
    %v3199 = vunpack.c.h.b16 %v1671
    %v3200 = vunpack.c.l.b16 %v1672
    %v3201 = vunpack.c.h.b16 %v1672
    %v3202 = vunpack.c.l.b16 %v1673
    %v3203 = vunpack.c.h.b16 %v1673
    %v3204 = vunpack.c.l.b16 %v1674
    %v3205 = vunpack.c.h.b16 %v1674
    %v3206 = vunpack.c.l.b16 %v1675
    %v3207 = vunpack.c.h.b16 %v1675
    %v3208 = vunpack.c.l.b16 %v1676
    %v3209 = vunpack.c.h.b16 %v1676
    %v3210 = vunpack.c.l.b16 %v1677
    %v3211 = vunpack.c.h.b16 %v1677
    %v3212 = vunpack.c.l.b16 %v1678
    %v3213 = vunpack.c.h.b16 %v1678
    %v3214 = vunpack.c.l.b16 %v1679
    %v3215 = vunpack.c.h.b16 %v1679
    %v3216 = vunpack.c.l.b16 %v1680
    %v3217 = vunpack.c.h.b16 %v1680
    %v3218 = vunpack.c.l.b16 %v1681
    %v3219 = vunpack.c.h.b16 %v1681
    %v3220 = vunpack.c.l.b16 %v1682
    %v3221 = vunpack.c.h.b16 %v1682
    %v3222 = vunpack.c.l.b16 %v1683
    %v3223 = vunpack.c.h.b16 %v1683
    %v3224 = vunpack.c.l.b16 %v1684
    %v3225 = vunpack.c.h.b16 %v1684
    %v3226 = vunpack.c.l.b16 %v1685
    %v3227 = vunpack.c.h.b16 %v1685
    %v3228 = vunpack.c.l.b16 %v1686
    %v3229 = vunpack.c.h.b16 %v1686
    %v3230 = vunpack.c.l.b16 %v1687
    %v3231 = vunpack.c.h.b16 %v1687
    %v3232 = vunpack.c.l.b16 %v1688
    %v3233 = vunpack.c.h.b16 %v1688
    %v3234 = vunpack.c.l.b16 %v1689
    %v3235 = vunpack.c.h.b16 %v1689
    %v3236 = vunpack.c.l.b16 %v1690
    %v3237 = vunpack.c.h.b16 %v1690
    %v3238 = vunpack.c.l.b16 %v1691
    %v3239 = vunpack.c.h.b16 %v1691
    %v3240 = vunpack.c.l.b16 %v1692
    %v3241 = vunpack.c.h.b16 %v1692
    %v3242 = vunpack.c.l.b16 %v1693
    %v3243 = vunpack.c.h.b16 %v1693
    %v3244 = vunpack.c.l.b16 %v1694
    %v3245 = vunpack.c.h.b16 %v1694
    %v3246 = vunpack.c.l.b16 %v1695
    %v3247 = vunpack.c.h.b16 %v1695
    %v3248 = vunpack.c.l.b16 %v1696
    %v3249 = vunpack.c.h.b16 %v1696
    %v3250 = vunpack.c.l.b16 %v1697
    %v3251 = vunpack.c.h.b16 %v1697
    %v3252 = vunpack.c.l.b16 %v1698
    %v3253 = vunpack.c.h.b16 %v1698
    %v3254 = vunpack.c.l.b16 %v1699
    %v3255 = vunpack.c.h.b16 %v1699
    %v3256 = vunpack.c.l.b16 %v1700
    %v3257 = vunpack.c.h.b16 %v1700
    %v3258 = vunpack.c.l.b16 %v1701
    %v3259 = vunpack.c.h.b16 %v1701
    %v3260 = vunpack.c.l.b16 %v1702
    %v3261 = vunpack.c.h.b16 %v1702
    %v3262 = vunpack.c.l.b16 %v1703
    %v3263 = vunpack.c.h.b16 %v1703
    %v3264 = vunpack.c.l.b16 %v1704
    %v3265 = vunpack.c.h.b16 %v1704
    %v3266 = vunpack.c.l.b16 %v1705
    %v3267 = vunpack.c.h.b16 %v1705
    %v3268 = vunpack.c.l.b16 %v1706
    %v3269 = vunpack.c.h.b16 %v1706
    %v3270 = vunpack.c.l.b16 %v1707
    %v3271 = vunpack.c.h.b16 %v1707
    %v3272 = vpack.c.b16 %v2256, %v2248
    %v3273 = vpack.c.b16 %v2257, %v2249
    %v3274 = vpack.c.b16 %v2258, %v2250
    %v3275 = vpack.c.b16 %v2259, %v2251
    %v3276 = vpack.c.b16 %v2260, %v2252
    %v3277 = vpack.c.b16 %v2261, %v2253
    %v3278 = vpack.c.b16 %v2262, %v2254
    %v3279 = vpack.c.b16 %v2263, %v2255
    %v3280 = vpack.c.b16 %v2272, %v2264
    %v3281 = vpack.c.b16 %v2273, %v2265
    %v3282 = vpack.c.b16 %v2274, %v2266
    %v3283 = vpack.c.b16 %v2275, %v2267
    %v3284 = vpack.c.b16 %v2276, %v2268
    %v3285 = vpack.c.b16 %v2277, %v2269
    %v3286 = vpack.c.b16 %v2278, %v2270
    %v3287 = vpack.c.b16 %v2279, %v2271
    %v3288 = vpack.c.b16 %v2288, %v2280
    %v3289 = vpack.c.b16 %v2289, %v2281
    %v3290 = vpack.c.b16 %v2290, %v2282
    %v3291 = vpack.c.b16 %v2291, %v2283
    %v3292 = vpack.c.b16 %v2292, %v2284
    %v3293 = vpack.c.b16 %v2293, %v2285
    %v3294 = vpack.c.b16 %v2294, %v2286
    %v3295 = vpack.c.b16 %v2295, %v2287
    %v3296 = vpack.c.b16 %v2304, %v2296
    %v3297 = vpack.c.b16 %v2305, %v2297
    %v3298 = vpack.c.b16 %v2306, %v2298
    %v3299 = vpack.c.b16 %v2307, %v2299
    %v3300 = vpack.c.b16 %v2308, %v2300
    %v3301 = vpack.c.b16 %v2309, %v2301
    %v3302 = vpack.c.b16 %v2310, %v2302
    %v3303 = vpack.c.b16 %v2311, %v2303
    %v3304 = vpack.c.b16 %v2320, %v2312
    %v3305 = vpack.c.b16 %v2321, %v2313
    %v3306 = vpack.c.b16 %v2322, %v2314
    %v3307 = vpack.c.b16 %v2323, %v2315
    %v3308 = vpack.c.b16 %v2324, %v2316
    %v3309 = vpack.c.b16 %v2325, %v2317
    %v3310 = vpack.c.b16 %v2326, %v2318
    %v3311 = vpack.c.b16 %v2327, %v2319
    %v3312 = vpack.c.b16 %v2336, %v2328
    %v3313 = vpack.c.b16 %v2337, %v2329
    %v3314 = vpack.c.b16 %v2338, %v2330
    %v3315 = vpack.c.b16 %v2339, %v2331
    %v3316 = vpack.c.b16 %v2340, %v2332
    %v3317 = vpack.c.b16 %v2341, %v2333
    %v3318 = vpack.c.b16 %v2342, %v2334
    %v3319 = vpack.c.b16 %v2343, %v2335
    %v3320 = vpack.c.b16 %v2352, %v2344
    %v3321 = vpack.c.b16 %v2353, %v2345
    %v3322 = vpack.c.b16 %v2354, %v2346
    %v3323 = vpack.c.b16 %v2355, %v2347
    %v3324 = vpack.c.b16 %v2356, %v2348
    %v3325 = vpack.c.b16 %v2357, %v2349
    %v3326 = vpack.c.b16 %v2358, %v2350
    %v3327 = vpack.c.b16 %v2359, %v2351
    %v3328 = vpack.c.b16 %v2368, %v2360
    %v3329 = vpack.c.b16 %v2369, %v2361
    %v3330 = vpack.c.b16 %v2370, %v2362
    %v3331 = vpack.c.b16 %v2371, %v2363
    %v3332 = vpack.c.b16 %v2372, %v2364
    %v3333 = vpack.c.b16 %v2373, %v2365
    %v3334 = vpack.c.b16 %v2374, %v2366
    %v3335 = vpack.c.b16 %v2375, %v2367
    %v3336 = vpack.c.b16 %v2384, %v2376
    %v3337 = vpack.c.b16 %v2385, %v2377
    %v3338 = vpack.c.b16 %v2386, %v2378
    %v3339 = vpack.c.b16 %v2387, %v2379
    %v3340 = vpack.c.b16 %v2388, %v2380
    %v3341 = vpack.c.b16 %v2389, %v2381
    %v3342 = vpack.c.b16 %v2390, %v2382
    %v3343 = vpack.c.b16 %v2391, %v2383
    %v3344 = vpack.c.b16 %v2400, %v2392
    %v3345 = vpack.c.b16 %v2401, %v2393
    %v3346 = vpack.c.b16 %v2402, %v2394
    %v3347 = vpack.c.b16 %v2403, %v2395
    %v3348 = vpack.c.b16 %v2404, %v2396
    %v3349 = vpack.c.b16 %v2405, %v2397
    %v3350 = vpack.c.b16 %v2406, %v2398
    %v3351 = vpack.c.b16 %v2407, %v2399
    %v3352 = vpack.c.b16 %v2416, %v2408
    %v3353 = vpack.c.b16 %v2417, %v2409
    %v3354 = vpack.c.b16 %v2418, %v2410
    %v3355 = vpack.c.b16 %v2419, %v2411
    %v3356 = vpack.c.b16 %v2420, %v2412
    %v3357 = vpack.c.b16 %v2421, %v2413
    %v3358 = vpack.c.b16 %v2422, %v2414
    %v3359 = vpack.c.b16 %v2423, %v2415
    %v3360 = vpack.c.b16 %v2432, %v2424
    %v3361 = vpack.c.b16 %v2433, %v2425
    %v3362 = vpack.c.b16 %v2434, %v2426
    %v3363 = vpack.c.b16 %v2435, %v2427
    %v3364 = vpack.c.b16 %v2436, %v2428
    %v3365 = vpack.c.b16 %v2437, %v2429
    %v3366 = vpack.c.b16 %v2438, %v2430
    %v3367 = vpack.c.b16 %v2439, %v2431
    %v3368 = vpack.c.b16 %v2448, %v2440
    %v3369 = vpack.c.b16 %v2449, %v2441
    %v3370 = vpack.c.b16 %v2450, %v2442
    %v3371 = vpack.c.b16 %v2451, %v2443
    %v3372 = vpack.c.b16 %v2452, %v2444
    %v3373 = vpack.c.b16 %v2453, %v2445
    %v3374 = vpack.c.b16 %v2454, %v2446
    %v3375 = vpack.c.b16 %v2455, %v2447
    %v3376 = vpack.c.b16 %v2464, %v2456
    %v3377 = vpack.c.b16 %v2465, %v2457
    %v3378 = vpack.c.b16 %v2466, %v2458
    %v3379 = vpack.c.b16 %v2467, %v2459
    %v3380 = vpack.c.b16 %v2468, %v2460
    %v3381 = vpack.c.b16 %v2469, %v2461
    %v3382 = vpack.c.b16 %v2470, %v2462
    %v3383 = vpack.c.b16 %v2471, %v2463
    %v3384 = vpack.c.b16 %v2480, %v2472
    %v3385 = vpack.c.b16 %v2481, %v2473
    %v3386 = vpack.c.b16 %v2482, %v2474
    %v3387 = vpack.c.b16 %v2483, %v2475
    %v3388 = vpack.c.b16 %v2484, %v2476
    %v3389 = vpack.c.b16 %v2485, %v2477
    %v3390 = vpack.c.b16 %v2486, %v2478
    %v3391 = vpack.c.b16 %v2487, %v2479
    %v3392 = vpack.c.b16 %v2496, %v2488
    %v3393 = vpack.c.b16 %v2497, %v2489
    %v3394 = vpack.c.b16 %v2498, %v2490
    %v3395 = vpack.c.b16 %v2499, %v2491
    %v3396 = vpack.c.b16 %v2500, %v2492
    %v3397 = vpack.c.b16 %v2501, %v2493
    %v3398 = vpack.c.b16 %v2502, %v2494
    %v3399 = vpack.c.b16 %v2503, %v2495
    %v3400 = vpack.c.b16 %v2512, %v2504
    %v3401 = vpack.c.b16 %v2513, %v2505
    %v3402 = vpack.c.b16 %v2514, %v2506
    %v3403 = vpack.c.b16 %v2515, %v2507
    %v3404 = vpack.c.b16 %v2516, %v2508
    %v3405 = vpack.c.b16 %v2517, %v2509
    %v3406 = vpack.c.b16 %v2518, %v2510
    %v3407 = vpack.c.b16 %v2519, %v2511
    %v3408 = vpack.c.b16 %v2528, %v2520
    %v3409 = vpack.c.b16 %v2529, %v2521
    %v3410 = vpack.c.b16 %v2530, %v2522
    %v3411 = vpack.c.b16 %v2531, %v2523
    %v3412 = vpack.c.b16 %v2532, %v2524
    %v3413 = vpack.c.b16 %v2533, %v2525
    %v3414 = vpack.c.b16 %v2534, %v2526
    %v3415 = vpack.c.b16 %v2535, %v2527
    %v3416 = vpack.c.b16 %v2544, %v2536
    %v3417 = vpack.c.b16 %v2545, %v2537
    %v3418 = vpack.c.b16 %v2546, %v2538
    %v3419 = vpack.c.b16 %v2547, %v2539
    %v3420 = vpack.c.b16 %v2548, %v2540
    %v3421 = vpack.c.b16 %v2549, %v2541
    %v3422 = vpack.c.b16 %v2550, %v2542
    %v3423 = vpack.c.b16 %v2551, %v2543
    %v3424 = vpack.c.b16 %v2560, %v2552
    %v3425 = vpack.c.b16 %v2561, %v2553
    %v3426 = vpack.c.b16 %v2562, %v2554
    %v3427 = vpack.c.b16 %v2563, %v2555
    %v3428 = vpack.c.b16 %v2564, %v2556
    %v3429 = vpack.c.b16 %v2565, %v2557
    %v3430 = vpack.c.b16 %v2566, %v2558
    %v3431 = vpack.c.b16 %v2567, %v2559
    %v3432 = vpack.c.b16 %v2576, %v2568
    %v3433 = vpack.c.b16 %v2577, %v2569
    %v3434 = vpack.c.b16 %v2578, %v2570
    %v3435 = vpack.c.b16 %v2579, %v2571
    %v3436 = vpack.c.b16 %v2580, %v2572
    %v3437 = vpack.c.b16 %v2581, %v2573
    %v3438 = vpack.c.b16 %v2582, %v2574
    %v3439 = vpack.c.b16 %v2583, %v2575
    %v3440 = vpack.c.b16 %v2592, %v2584
    %v3441 = vpack.c.b16 %v2593, %v2585
    %v3442 = vpack.c.b16 %v2594, %v2586
    %v3443 = vpack.c.b16 %v2595, %v2587
    %v3444 = vpack.c.b16 %v2596, %v2588
    %v3445 = vpack.c.b16 %v2597, %v2589
    %v3446 = vpack.c.b16 %v2598, %v2590
    %v3447 = vpack.c.b16 %v2599, %v2591
    %v3448 = vpack.c.b16 %v2608, %v2600
    %v3449 = vpack.c.b16 %v2609, %v2601
    %v3450 = vpack.c.b16 %v2610, %v2602
    %v3451 = vpack.c.b16 %v2611, %v2603
    %v3452 = vpack.c.b16 %v2612, %v2604
    %v3453 = vpack.c.b16 %v2613, %v2605
    %v3454 = vpack.c.b16 %v2614, %v2606
    %v3455 = vpack.c.b16 %v2615, %v2607
    %v3456 = vpack.c.b16 %v2624, %v2616
    %v3457 = vpack.c.b16 %v2625, %v2617
    %v3458 = vpack.c.b16 %v2626, %v2618
    %v3459 = vpack.c.b16 %v2627, %v2619
    %v3460 = vpack.c.b16 %v2628, %v2620
    %v3461 = vpack.c.b16 %v2629, %v2621
    %v3462 = vpack.c.b16 %v2630, %v2622
    %v3463 = vpack.c.b16 %v2631, %v2623
    %v3464 = vpack.c.b16 %v2640, %v2632
    %v3465 = vpack.c.b16 %v2641, %v2633
    %v3466 = vpack.c.b16 %v2642, %v2634
    %v3467 = vpack.c.b16 %v2643, %v2635
    %v3468 = vpack.c.b16 %v2644, %v2636
    %v3469 = vpack.c.b16 %v2645, %v2637
    %v3470 = vpack.c.b16 %v2646, %v2638
    %v3471 = vpack.c.b16 %v2647, %v2639
    %v3472 = vpack.c.b16 %v2656, %v2648
    %v3473 = vpack.c.b16 %v2657, %v2649
    %v3474 = vpack.c.b16 %v2658, %v2650
    %v3475 = vpack.c.b16 %v2659, %v2651
    %v3476 = vpack.c.b16 %v2660, %v2652
    %v3477 = vpack.c.b16 %v2661, %v2653
    %v3478 = vpack.c.b16 %v2662, %v2654
    %v3479 = vpack.c.b16 %v2663, %v2655
    %v3480 = vpack.c.b16 %v2672, %v2664
    %v3481 = vpack.c.b16 %v2673, %v2665
    %v3482 = vpack.c.b16 %v2674, %v2666
    %v3483 = vpack.c.b16 %v2675, %v2667
    %v3484 = vpack.c.b16 %v2676, %v2668
    %v3485 = vpack.c.b16 %v2677, %v2669
    %v3486 = vpack.c.b16 %v2678, %v2670
    %v3487 = vpack.c.b16 %v2679, %v2671
    %v3488 = vpack.c.b16 %v2688, %v2680
    %v3489 = vpack.c.b16 %v2689, %v2681
    %v3490 = vpack.c.b16 %v2690, %v2682
    %v3491 = vpack.c.b16 %v2691, %v2683
    %v3492 = vpack.c.b16 %v2692, %v2684
    %v3493 = vpack.c.b16 %v2693, %v2685
    %v3494 = vpack.c.b16 %v2694, %v2686
    %v3495 = vpack.c.b16 %v2695, %v2687
    %v3496 = vpack.c.b16 %v2704, %v2696
    %v3497 = vpack.c.b16 %v2705, %v2697
    %v3498 = vpack.c.b16 %v2706, %v2698
    %v3499 = vpack.c.b16 %v2707, %v2699
    %v3500 = vpack.c.b16 %v2708, %v2700
    %v3501 = vpack.c.b16 %v2709, %v2701
    %v3502 = vpack.c.b16 %v2710, %v2702
    %v3503 = vpack.c.b16 %v2711, %v2703
    %v3504 = vpack.c.b16 %v2720, %v2712
    %v3505 = vpack.c.b16 %v2721, %v2713
    %v3506 = vpack.c.b16 %v2722, %v2714
    %v3507 = vpack.c.b16 %v2723, %v2715
    %v3508 = vpack.c.b16 %v2724, %v2716
    %v3509 = vpack.c.b16 %v2725, %v2717
    %v3510 = vpack.c.b16 %v2726, %v2718
    %v3511 = vpack.c.b16 %v2727, %v2719
    %v3512 = vpack.c.b16 %v2736, %v2728
    %v3513 = vpack.c.b16 %v2737, %v2729
    %v3514 = vpack.c.b16 %v2738, %v2730
    %v3515 = vpack.c.b16 %v2739, %v2731
    %v3516 = vpack.c.b16 %v2740, %v2732
    %v3517 = vpack.c.b16 %v2741, %v2733
    %v3518 = vpack.c.b16 %v2742, %v2734
    %v3519 = vpack.c.b16 %v2743, %v2735
    %v3520 = vpack.c.b16 %v2752, %v2744
    %v3521 = vpack.c.b16 %v2753, %v2745
    %v3522 = vpack.c.b16 %v2754, %v2746
    %v3523 = vpack.c.b16 %v2755, %v2747
    %v3524 = vpack.c.b16 %v2756, %v2748
    %v3525 = vpack.c.b16 %v2757, %v2749
    %v3526 = vpack.c.b16 %v2758, %v2750
    %v3527 = vpack.c.b16 %v2759, %v2751
    %v3528 = vpack.c.b16 %v2768, %v2760
    %v3529 = vpack.c.b16 %v2769, %v2761
    %v3530 = vpack.c.b16 %v2770, %v2762
    %v3531 = vpack.c.b16 %v2771, %v2763
    %v3532 = vpack.c.b16 %v2772, %v2764
    %v3533 = vpack.c.b16 %v2773, %v2765
    %v3534 = vpack.c.b16 %v2774, %v2766
    %v3535 = vpack.c.b16 %v2775, %v2767
    %v3536 = vpack.c.b16 %v2784, %v2776
    %v3537 = vpack.c.b16 %v2785, %v2777
    %v3538 = vpack.c.b16 %v2786, %v2778
    %v3539 = vpack.c.b16 %v2787, %v2779
    %v3540 = vpack.c.b16 %v2788, %v2780
    %v3541 = vpack.c.b16 %v2789, %v2781
    %v3542 = vpack.c.b16 %v2790, %v2782
    %v3543 = vpack.c.b16 %v2791, %v2783
    %v3544 = vpack.c.b16 %v2800, %v2792
    %v3545 = vpack.c.b16 %v2801, %v2793
    %v3546 = vpack.c.b16 %v2802, %v2794
    %v3547 = vpack.c.b16 %v2803, %v2795
    %v3548 = vpack.c.b16 %v2804, %v2796
    %v3549 = vpack.c.b16 %v2805, %v2797
    %v3550 = vpack.c.b16 %v2806, %v2798
    %v3551 = vpack.c.b16 %v2807, %v2799
    %v3552 = vpack.c.b16 %v2816, %v2808
    %v3553 = vpack.c.b16 %v2817, %v2809
    %v3554 = vpack.c.b16 %v2818, %v2810
    %v3555 = vpack.c.b16 %v2819, %v2811
    %v3556 = vpack.c.b16 %v2820, %v2812
    %v3557 = vpack.c.b16 %v2821, %v2813
    %v3558 = vpack.c.b16 %v2822, %v2814
    %v3559 = vpack.c.b16 %v2823, %v2815
    %v3560 = vpack.c.b16 %v2832, %v2824
    %v3561 = vpack.c.b16 %v2833, %v2825
    %v3562 = vpack.c.b16 %v2834, %v2826
    %v3563 = vpack.c.b16 %v2835, %v2827
    %v3564 = vpack.c.b16 %v2836, %v2828
    %v3565 = vpack.c.b16 %v2837, %v2829
    %v3566 = vpack.c.b16 %v2838, %v2830
    %v3567 = vpack.c.b16 %v2839, %v2831
    %v3568 = vpack.c.b16 %v2848, %v2840
    %v3569 = vpack.c.b16 %v2849, %v2841
    %v3570 = vpack.c.b16 %v2850, %v2842
    %v3571 = vpack.c.b16 %v2851, %v2843
    %v3572 = vpack.c.b16 %v2852, %v2844
    %v3573 = vpack.c.b16 %v2853, %v2845
    %v3574 = vpack.c.b16 %v2854, %v2846
    %v3575 = vpack.c.b16 %v2855, %v2847
    %v3576 = vpack.c.b16 %v2864, %v2856
    %v3577 = vpack.c.b16 %v2865, %v2857
    %v3578 = vpack.c.b16 %v2866, %v2858
    %v3579 = vpack.c.b16 %v2867, %v2859
    %v3580 = vpack.c.b16 %v2868, %v2860
    %v3581 = vpack.c.b16 %v2869, %v2861
    %v3582 = vpack.c.b16 %v2870, %v2862
    %v3583 = vpack.c.b16 %v2871, %v2863
    %v3584 = vpack.c.b16 %v2880, %v2872
    %v3585 = vpack.c.b16 %v2881, %v2873
    %v3586 = vpack.c.b16 %v2882, %v2874
    %v3587 = vpack.c.b16 %v2883, %v2875
    %v3588 = vpack.c.b16 %v2884, %v2876
    %v3589 = vpack.c.b16 %v2885, %v2877
    %v3590 = vpack.c.b16 %v2886, %v2878
    %v3591 = vpack.c.b16 %v2887, %v2879
    %v3592 = vpack.c.b16 %v2896, %v2888
    %v3593 = vpack.c.b16 %v2897, %v2889
    %v3594 = vpack.c.b16 %v2898, %v2890
    %v3595 = vpack.c.b16 %v2899, %v2891
    %v3596 = vpack.c.b16 %v2900, %v2892
    %v3597 = vpack.c.b16 %v2901, %v2893
    %v3598 = vpack.c.b16 %v2902, %v2894
    %v3599 = vpack.c.b16 %v2903, %v2895
    %v3600 = vpack.c.b16 %v2912, %v2904
    %v3601 = vpack.c.b16 %v2913, %v2905
    %v3602 = vpack.c.b16 %v2914, %v2906
    %v3603 = vpack.c.b16 %v2915, %v2907
    %v3604 = vpack.c.b16 %v2916, %v2908
    %v3605 = vpack.c.b16 %v2917, %v2909
    %v3606 = vpack.c.b16 %v2918, %v2910
    %v3607 = vpack.c.b16 %v2919, %v2911
    %v3608 = vpack.c.b16 %v2928, %v2920
    %v3609 = vpack.c.b16 %v2929, %v2921
    %v3610 = vpack.c.b16 %v2930, %v2922
    %v3611 = vpack.c.b16 %v2931, %v2923
    %v3612 = vpack.c.b16 %v2932, %v2924
    %v3613 = vpack.c.b16 %v2933, %v2925
    %v3614 = vpack.c.b16 %v2934, %v2926
    %v3615 = vpack.c.b16 %v2935, %v2927
    %v3616 = vpack.c.b16 %v2944, %v2936
    %v3617 = vpack.c.b16 %v2945, %v2937
    %v3618 = vpack.c.b16 %v2946, %v2938
    %v3619 = vpack.c.b16 %v2947, %v2939
    %v3620 = vpack.c.b16 %v2948, %v2940
    %v3621 = vpack.c.b16 %v2949, %v2941
    %v3622 = vpack.c.b16 %v2950, %v2942
    %v3623 = vpack.c.b16 %v2951, %v2943
    %v3624 = vpack.c.b16 %v2960, %v2952
    %v3625 = vpack.c.b16 %v2961, %v2953
    %v3626 = vpack.c.b16 %v2962, %v2954
    %v3627 = vpack.c.b16 %v2963, %v2955
    %v3628 = vpack.c.b16 %v2964, %v2956
    %v3629 = vpack.c.b16 %v2965, %v2957
    %v3630 = vpack.c.b16 %v2966, %v2958
    %v3631 = vpack.c.b16 %v2967, %v2959
    %v3632 = vpack.c.b16 %v2976, %v2968
    %v3633 = vpack.c.b16 %v2977, %v2969
    %v3634 = vpack.c.b16 %v2978, %v2970
    %v3635 = vpack.c.b16 %v2979, %v2971
    %v3636 = vpack.c.b16 %v2980, %v2972
    %v3637 = vpack.c.b16 %v2981, %v2973
    %v3638 = vpack.c.b16 %v2982, %v2974
    %v3639 = vpack.c.b16 %v2983, %v2975
    %v3640 = vpack.c.b16 %v2992, %v2984
    %v3641 = vpack.c.b16 %v2993, %v2985
    %v3642 = vpack.c.b16 %v2994, %v2986
    %v3643 = vpack.c.b16 %v2995, %v2987
    %v3644 = vpack.c.b16 %v2996, %v2988
    %v3645 = vpack.c.b16 %v2997, %v2989
    %v3646 = vpack.c.b16 %v2998, %v2990
    %v3647 = vpack.c.b16 %v2999, %v2991
    %v3648 = vpack.c.b16 %v3008, %v3000
    %v3649 = vpack.c.b16 %v3009, %v3001
    %v3650 = vpack.c.b16 %v3010, %v3002
    %v3651 = vpack.c.b16 %v3011, %v3003
    %v3652 = vpack.c.b16 %v3012, %v3004
    %v3653 = vpack.c.b16 %v3013, %v3005
    %v3654 = vpack.c.b16 %v3014, %v3006
    %v3655 = vpack.c.b16 %v3015, %v3007
    %v3656 = vpack.c.b16 %v3024, %v3016
    %v3657 = vpack.c.b16 %v3025, %v3017
    %v3658 = vpack.c.b16 %v3026, %v3018
    %v3659 = vpack.c.b16 %v3027, %v3019
    %v3660 = vpack.c.b16 %v3028, %v3020
    %v3661 = vpack.c.b16 %v3029, %v3021
    %v3662 = vpack.c.b16 %v3030, %v3022
    %v3663 = vpack.c.b16 %v3031, %v3023
    %v3664 = vpack.c.b16 %v3040, %v3032
    %v3665 = vpack.c.b16 %v3041, %v3033
    %v3666 = vpack.c.b16 %v3042, %v3034
    %v3667 = vpack.c.b16 %v3043, %v3035
    %v3668 = vpack.c.b16 %v3044, %v3036
    %v3669 = vpack.c.b16 %v3045, %v3037
    %v3670 = vpack.c.b16 %v3046, %v3038
    %v3671 = vpack.c.b16 %v3047, %v3039
    %v3672 = vpack.c.b16 %v3056, %v3048
    %v3673 = vpack.c.b16 %v3057, %v3049
    %v3674 = vpack.c.b16 %v3058, %v3050
    %v3675 = vpack.c.b16 %v3059, %v3051
    %v3676 = vpack.c.b16 %v3060, %v3052
    %v3677 = vpack.c.b16 %v3061, %v3053
    %v3678 = vpack.c.b16 %v3062, %v3054
    %v3679 = vpack.c.b16 %v3063, %v3055
    %v3680 = vpack.c.b16 %v3072, %v3064
    %v3681 = vpack.c.b16 %v3073, %v3065
    %v3682 = vpack.c.b16 %v3074, %v3066
    %v3683 = vpack.c.b16 %v3075, %v3067
    %v3684 = vpack.c.b16 %v3076, %v3068
    %v3685 = vpack.c.b16 %v3077, %v3069
    %v3686 = vpack.c.b16 %v3078, %v3070
    %v3687 = vpack.c.b16 %v3079, %v3071
    %v3688 = vpack.c.b16 %v3088, %v3080
    %v3689 = vpack.c.b16 %v3089, %v3081
    %v3690 = vpack.c.b16 %v3090, %v3082
    %v3691 = vpack.c.b16 %v3091, %v3083
    %v3692 = vpack.c.b16 %v3092, %v3084
    %v3693 = vpack.c.b16 %v3093, %v3085
    %v3694 = vpack.c.b16 %v3094, %v3086
    %v3695 = vpack.c.b16 %v3095, %v3087
    %v3696 = vpack.c.b16 %v3104, %v3096
    %v3697 = vpack.c.b16 %v3105, %v3097
    %v3698 = vpack.c.b16 %v3106, %v3098
    %v3699 = vpack.c.b16 %v3107, %v3099
    %v3700 = vpack.c.b16 %v3108, %v3100
    %v3701 = vpack.c.b16 %v3109, %v3101
    %v3702 = vpack.c.b16 %v3110, %v3102
    %v3703 = vpack.c.b16 %v3111, %v3103
    %v3704 = vpack.c.b16 %v3120, %v3112
    %v3705 = vpack.c.b16 %v3121, %v3113
    %v3706 = vpack.c.b16 %v3122, %v3114
    %v3707 = vpack.c.b16 %v3123, %v3115
    %v3708 = vpack.c.b16 %v3124, %v3116
    %v3709 = vpack.c.b16 %v3125, %v3117
    %v3710 = vpack.c.b16 %v3126, %v3118
    %v3711 = vpack.c.b16 %v3127, %v3119
    %v3712 = vpack.c.b16 %v3136, %v3128
    %v3713 = vpack.c.b16 %v3137, %v3129
    %v3714 = vpack.c.b16 %v3138, %v3130
    %v3715 = vpack.c.b16 %v3139, %v3131
    %v3716 = vpack.c.b16 %v3140, %v3132
    %v3717 = vpack.c.b16 %v3141, %v3133
    %v3718 = vpack.c.b16 %v3142, %v3134
    %v3719 = vpack.c.b16 %v3143, %v3135
    %v3720 = vpack.c.b16 %v3152, %v3144
    %v3721 = vpack.c.b16 %v3153, %v3145
    %v3722 = vpack.c.b16 %v3154, %v3146
    %v3723 = vpack.c.b16 %v3155, %v3147
    %v3724 = vpack.c.b16 %v3156, %v3148
    %v3725 = vpack.c.b16 %v3157, %v3149
    %v3726 = vpack.c.b16 %v3158, %v3150
    %v3727 = vpack.c.b16 %v3159, %v3151
    %v3728 = vpack.c.b16 %v3168, %v3160
    %v3729 = vpack.c.b16 %v3169, %v3161
    %v3730 = vpack.c.b16 %v3170, %v3162
    %v3731 = vpack.c.b16 %v3171, %v3163
    %v3732 = vpack.c.b16 %v3172, %v3164
    %v3733 = vpack.c.b16 %v3173, %v3165
    %v3734 = vpack.c.b16 %v3174, %v3166
    %v3735 = vpack.c.b16 %v3175, %v3167
    %v3736 = vpack.c.b16 %v3184, %v3176
    %v3737 = vpack.c.b16 %v3185, %v3177
    %v3738 = vpack.c.b16 %v3186, %v3178
    %v3739 = vpack.c.b16 %v3187, %v3179
    %v3740 = vpack.c.b16 %v3188, %v3180
    %v3741 = vpack.c.b16 %v3189, %v3181
    %v3742 = vpack.c.b16 %v3190, %v3182
    %v3743 = vpack.c.b16 %v3191, %v3183
    %v3744 = vpack.c.b16 %v3200, %v3192
    %v3745 = vpack.c.b16 %v3201, %v3193
    %v3746 = vpack.c.b16 %v3202, %v3194
    %v3747 = vpack.c.b16 %v3203, %v3195
    %v3748 = vpack.c.b16 %v3204, %v3196
    %v3749 = vpack.c.b16 %v3205, %v3197
    %v3750 = vpack.c.b16 %v3206, %v3198
    %v3751 = vpack.c.b16 %v3207, %v3199
    %v3752 = vpack.c.b16 %v3216, %v3208
    %v3753 = vpack.c.b16 %v3217, %v3209
    %v3754 = vpack.c.b16 %v3218, %v3210
    %v3755 = vpack.c.b16 %v3219, %v3211
    %v3756 = vpack.c.b16 %v3220, %v3212
    %v3757 = vpack.c.b16 %v3221, %v3213
    %v3758 = vpack.c.b16 %v3222, %v3214
    %v3759 = vpack.c.b16 %v3223, %v3215
    %v3760 = vpack.c.b16 %v3232, %v3224
    %v3761 = vpack.c.b16 %v3233, %v3225
    %v3762 = vpack.c.b16 %v3234, %v3226
    %v3763 = vpack.c.b16 %v3235, %v3227
    %v3764 = vpack.c.b16 %v3236, %v3228
    %v3765 = vpack.c.b16 %v3237, %v3229
    %v3766 = vpack.c.b16 %v3238, %v3230
    %v3767 = vpack.c.b16 %v3239, %v3231
    %v3768 = vpack.c.b16 %v3248, %v3240
    %v3769 = vpack.c.b16 %v3249, %v3241
    %v3770 = vpack.c.b16 %v3250, %v3242
    %v3771 = vpack.c.b16 %v3251, %v3243
    %v3772 = vpack.c.b16 %v3252, %v3244
    %v3773 = vpack.c.b16 %v3253, %v3245
    %v3774 = vpack.c.b16 %v3254, %v3246
    %v3775 = vpack.c.b16 %v3255, %v3247
    %v3776 = vpack.c.b16 %v3264, %v3256
    %v3777 = vpack.c.b16 %v3265, %v3257
    %v3778 = vpack.c.b16 %v3266, %v3258
    %v3779 = vpack.c.b16 %v3267, %v3259
    %v3780 = vpack.c.b16 %v3268, %v3260
    %v3781 = vpack.c.b16 %v3269, %v3261
    %v3782 = vpack.c.b16 %v3270, %v3262
    %v3783 = vpack.c.b16 %v3271, %v3263
    %4296 = vmatpush.bf16.msra.mxu0 %v3328
    %4297 = vmatpush.bf16.msra.mxu0 %v3320
    %4298 = vmatpush.bf16.msra.mxu0 %v3312
    %4299 = vmatpush.bf16.msra.mxu0 %v3304
    %4300 = vmatpush.bf16.msra.mxu0 %v3296
    %4301 = vmatpush.bf16.msra.mxu0 %v3288
    %4302 = vmatpush.bf16.msra.mxu0 %v3280
    %4303 = vmatpush.bf16.msra.mxu0 %v3272
    %4304 = vmatmul.bf16.gmra.mxu0 %v1720
    %v4305 = vpop.f32.mrf.mxu0
    %v4306 = vadd.f32 0.0, %v4305
    %v4307 = vpop.f32.mrf.mxu0
    %4308 = vdwg.mxu0
    %4309 = vmatpush.bf16.msra.mxu0 %v3392
    %4310 = vmatpush.bf16.msra.mxu0 %v3384
    %4311 = vmatpush.bf16.msra.mxu0 %v3376
    %4312 = vmatpush.bf16.msra.mxu0 %v3368
    %4313 = vmatpush.bf16.msra.mxu0 %v3360
    %4314 = vmatpush.bf16.msra.mxu0 %v3352
    %4315 = vmatpush.bf16.msra.mxu0 %v3344
    %4316 = vmatpush.bf16.msra.mxu0 %v3336
    %4317 = vmatmul.bf16.gmra.mxu0 %v1721
    %v4318 = vpop.f32.mrf.mxu0
    %v4319 = vadd.f32 %v4306, %v4318
    %v4320 = vpop.f32.mrf.mxu0
    %4321 = vdwg.mxu0
    %4322 = vmatpush.bf16.msra.mxu0 %v3456
    %4323 = vmatpush.bf16.msra.mxu0 %v3448
    %4324 = vmatpush.bf16.msra.mxu0 %v3440
    %4325 = vmatpush.bf16.msra.mxu0 %v3432
    %4326 = vmatpush.bf16.msra.mxu0 %v3424
    %4327 = vmatpush.bf16.msra.mxu0 %v3416
    %4328 = vmatpush.bf16.msra.mxu0 %v3408
    %4329 = vmatpush.bf16.msra.mxu0 %v3400
    %4330 = vmatmul.bf16.gmra.mxu0 %v1722
    %v4331 = vpop.f32.mrf.mxu0
    %v4332 = vadd.f32 %v4319, %v4331
    %v4333 = vpop.f32.mrf.mxu0
    %4334 = vdwg.mxu0
    %4335 = vmatpush.bf16.msra.mxu0 %v3520
    %4336 = vmatpush.bf16.msra.mxu0 %v3512
    %4337 = vmatpush.bf16.msra.mxu0 %v3504
    %4338 = vmatpush.bf16.msra.mxu0 %v3496
    %4339 = vmatpush.bf16.msra.mxu0 %v3488
    %4340 = vmatpush.bf16.msra.mxu0 %v3480
    %4341 = vmatpush.bf16.msra.mxu0 %v3472
    %4342 = vmatpush.bf16.msra.mxu0 %v3464
    %4343 = vmatmul.bf16.gmra.mxu0 %v1723
    %v4344 = vpop.f32.mrf.mxu0
    %v4345 = vadd.f32 %v4332, %v4344
    %v4346 = vpop.f32.mrf.mxu0
    %4347 = vdwg.mxu0
    %4348 = vmatpush.bf16.msra.mxu0 %v3584
    %4349 = vmatpush.bf16.msra.mxu0 %v3576
    %4350 = vmatpush.bf16.msra.mxu0 %v3568
    %4351 = vmatpush.bf16.msra.mxu0 %v3560
    %4352 = vmatpush.bf16.msra.mxu0 %v3552
    %4353 = vmatpush.bf16.msra.mxu0 %v3544
    %4354 = vmatpush.bf16.msra.mxu0 %v3536
    %4355 = vmatpush.bf16.msra.mxu0 %v3528
    %4356 = vmatmul.bf16.gmra.mxu0 %v1724
    %v4357 = vpop.f32.mrf.mxu0
    %v4358 = vadd.f32 %v4345, %v4357
    %v4359 = vpop.f32.mrf.mxu0
    %4360 = vdwg.mxu0
    %4361 = vmatpush.bf16.msra.mxu0 %v3648
    %4362 = vmatpush.bf16.msra.mxu0 %v3640
    %4363 = vmatpush.bf16.msra.mxu0 %v3632
    %4364 = vmatpush.bf16.msra.mxu0 %v3624
    %4365 = vmatpush.bf16.msra.mxu0 %v3616
    %4366 = vmatpush.bf16.msra.mxu0 %v3608
    %4367 = vmatpush.bf16.msra.mxu0 %v3600
    %4368 = vmatpush.bf16.msra.mxu0 %v3592
    %4369 = vmatmul.bf16.gmra.mxu0 %v1725
    %v4370 = vpop.f32.mrf.mxu0
    %v4371 = vadd.f32 %v4358, %v4370
    %v4372 = vpop.f32.mrf.mxu0
    %4373 = vdwg.mxu0
    %4374 = vmatpush.bf16.msra.mxu0 %v3712
    %4375 = vmatpush.bf16.msra.mxu0 %v3704
    %4376 = vmatpush.bf16.msra.mxu0 %v3696
    %4377 = vmatpush.bf16.msra.mxu0 %v3688
    %4378 = vmatpush.bf16.msra.mxu0 %v3680
    %4379 = vmatpush.bf16.msra.mxu0 %v3672
    %4380 = vmatpush.bf16.msra.mxu0 %v3664
    %4381 = vmatpush.bf16.msra.mxu0 %v3656
    %4382 = vmatmul.bf16.gmra.mxu0 %v1726
    %v4383 = vpop.f32.mrf.mxu0
    %v4384 = vadd.f32 %v4371, %v4383
    %v4385 = vpop.f32.mrf.mxu0
    %4386 = vdwg.mxu0
    %4387 = vmatpush.bf16.msra.mxu0 %v3776
    %4388 = vmatpush.bf16.msra.mxu0 %v3768
    %4389 = vmatpush.bf16.msra.mxu0 %v3760
    %4390 = vmatpush.bf16.msra.mxu0 %v3752
    %4391 = vmatpush.bf16.msra.mxu0 %v3744
    %4392 = vmatpush.bf16.msra.mxu0 %v3736
    %4393 = vmatpush.bf16.msra.mxu0 %v3728
    %4394 = vmatpush.bf16.msra.mxu0 %v3720
    %4395 = vmatmul.bf16.gmra.mxu0 %v1727
    %v4396 = vpop.f32.mrf.mxu0
    %v4397 = vadd.f32 %v4384, %v4396
    %v4398 = vpop.f32.mrf.mxu0
    %4399 = vdwg.mxu0
    %4400 = vmatpush.bf16.msra.mxu0 %v3329
    %4401 = vmatpush.bf16.msra.mxu0 %v3321
    %4402 = vmatpush.bf16.msra.mxu0 %v3313
    %4403 = vmatpush.bf16.msra.mxu0 %v3305
    %4404 = vmatpush.bf16.msra.mxu0 %v3297
    %4405 = vmatpush.bf16.msra.mxu0 %v3289
    %4406 = vmatpush.bf16.msra.mxu0 %v3281
    %4407 = vmatpush.bf16.msra.mxu0 %v3273
    %4408 = vmatmul.bf16.gmra.mxu0 %v1720
    %v4409 = vpop.f32.mrf.mxu0
    %v4410 = vadd.f32 0.0, %v4409
    %v4411 = vpop.f32.mrf.mxu0
    %4412 = vdwg.mxu0
    %4413 = vmatpush.bf16.msra.mxu0 %v3393
    %4414 = vmatpush.bf16.msra.mxu0 %v3385
    %4415 = vmatpush.bf16.msra.mxu0 %v3377
    %4416 = vmatpush.bf16.msra.mxu0 %v3369
    %4417 = vmatpush.bf16.msra.mxu0 %v3361
    %4418 = vmatpush.bf16.msra.mxu0 %v3353
    %4419 = vmatpush.bf16.msra.mxu0 %v3345
    %4420 = vmatpush.bf16.msra.mxu0 %v3337
    %4421 = vmatmul.bf16.gmra.mxu0 %v1721
    %v4422 = vpop.f32.mrf.mxu0
    %v4423 = vadd.f32 %v4410, %v4422
    %v4424 = vpop.f32.mrf.mxu0
    %4425 = vdwg.mxu0
    %4426 = vmatpush.bf16.msra.mxu0 %v3457
    %4427 = vmatpush.bf16.msra.mxu0 %v3449
    %4428 = vmatpush.bf16.msra.mxu0 %v3441
    %4429 = vmatpush.bf16.msra.mxu0 %v3433
    %4430 = vmatpush.bf16.msra.mxu0 %v3425
    %4431 = vmatpush.bf16.msra.mxu0 %v3417
    %4432 = vmatpush.bf16.msra.mxu0 %v3409
    %4433 = vmatpush.bf16.msra.mxu0 %v3401
    %4434 = vmatmul.bf16.gmra.mxu0 %v1722
    %v4435 = vpop.f32.mrf.mxu0
    %v4436 = vadd.f32 %v4423, %v4435
    %v4437 = vpop.f32.mrf.mxu0
    %4438 = vdwg.mxu0
    %4439 = vmatpush.bf16.msra.mxu0 %v3521
    %4440 = vmatpush.bf16.msra.mxu0 %v3513
    %4441 = vmatpush.bf16.msra.mxu0 %v3505
    %4442 = vmatpush.bf16.msra.mxu0 %v3497
    %4443 = vmatpush.bf16.msra.mxu0 %v3489
    %4444 = vmatpush.bf16.msra.mxu0 %v3481
    %4445 = vmatpush.bf16.msra.mxu0 %v3473
    %4446 = vmatpush.bf16.msra.mxu0 %v3465
    %4447 = vmatmul.bf16.gmra.mxu0 %v1723
    %v4448 = vpop.f32.mrf.mxu0
    %v4449 = vadd.f32 %v4436, %v4448
    %v4450 = vpop.f32.mrf.mxu0
    %4451 = vdwg.mxu0
    %4452 = vmatpush.bf16.msra.mxu0 %v3585
    %4453 = vmatpush.bf16.msra.mxu0 %v3577
    %4454 = vmatpush.bf16.msra.mxu0 %v3569
    %4455 = vmatpush.bf16.msra.mxu0 %v3561
    %4456 = vmatpush.bf16.msra.mxu0 %v3553
    %4457 = vmatpush.bf16.msra.mxu0 %v3545
    %4458 = vmatpush.bf16.msra.mxu0 %v3537
    %4459 = vmatpush.bf16.msra.mxu0 %v3529
    %4460 = vmatmul.bf16.gmra.mxu0 %v1724
    %v4461 = vpop.f32.mrf.mxu0
    %v4462 = vadd.f32 %v4449, %v4461
    %v4463 = vpop.f32.mrf.mxu0
    %4464 = vdwg.mxu0
    %4465 = vmatpush.bf16.msra.mxu0 %v3649
    %4466 = vmatpush.bf16.msra.mxu0 %v3641
    %4467 = vmatpush.bf16.msra.mxu0 %v3633
    %4468 = vmatpush.bf16.msra.mxu0 %v3625
    %4469 = vmatpush.bf16.msra.mxu0 %v3617
    %4470 = vmatpush.bf16.msra.mxu0 %v3609
    %4471 = vmatpush.bf16.msra.mxu0 %v3601
    %4472 = vmatpush.bf16.msra.mxu0 %v3593
    %4473 = vmatmul.bf16.gmra.mxu0 %v1725
    %v4474 = vpop.f32.mrf.mxu0
    %v4475 = vadd.f32 %v4462, %v4474
    %v4476 = vpop.f32.mrf.mxu0
    %4477 = vdwg.mxu0
    %4478 = vmatpush.bf16.msra.mxu0 %v3713
    %4479 = vmatpush.bf16.msra.mxu0 %v3705
    %4480 = vmatpush.bf16.msra.mxu0 %v3697
    %4481 = vmatpush.bf16.msra.mxu0 %v3689
    %4482 = vmatpush.bf16.msra.mxu0 %v3681
    %4483 = vmatpush.bf16.msra.mxu0 %v3673
    %4484 = vmatpush.bf16.msra.mxu0 %v3665
    %4485 = vmatpush.bf16.msra.mxu0 %v3657
    %4486 = vmatmul.bf16.gmra.mxu0 %v1726
    %v4487 = vpop.f32.mrf.mxu0
    %v4488 = vadd.f32 %v4475, %v4487
    %v4489 = vpop.f32.mrf.mxu0
    %4490 = vdwg.mxu0
    %4491 = vmatpush.bf16.msra.mxu0 %v3777
    %4492 = vmatpush.bf16.msra.mxu0 %v3769
    %4493 = vmatpush.bf16.msra.mxu0 %v3761
    %4494 = vmatpush.bf16.msra.mxu0 %v3753
    %4495 = vmatpush.bf16.msra.mxu0 %v3745
    %4496 = vmatpush.bf16.msra.mxu0 %v3737
    %4497 = vmatpush.bf16.msra.mxu0 %v3729
    %4498 = vmatpush.bf16.msra.mxu0 %v3721
    %4499 = vmatmul.bf16.gmra.mxu0 %v1727
    %v4500 = vpop.f32.mrf.mxu0
    %v4501 = vadd.f32 %v4488, %v4500
    %v4502 = vpop.f32.mrf.mxu0
    %4503 = vdwg.mxu0
    %4504 = vmatpush.bf16.msra.mxu0 %v3330
    %4505 = vmatpush.bf16.msra.mxu0 %v3322
    %4506 = vmatpush.bf16.msra.mxu0 %v3314
    %4507 = vmatpush.bf16.msra.mxu0 %v3306
    %4508 = vmatpush.bf16.msra.mxu0 %v3298
    %4509 = vmatpush.bf16.msra.mxu0 %v3290
    %4510 = vmatpush.bf16.msra.mxu0 %v3282
    %4511 = vmatpush.bf16.msra.mxu0 %v3274
    %4512 = vmatmul.bf16.gmra.mxu0 %v1720
    %v4513 = vpop.f32.mrf.mxu0
    %v4514 = vadd.f32 0.0, %v4513
    %v4515 = vpop.f32.mrf.mxu0
    %4516 = vdwg.mxu0
    %4517 = vmatpush.bf16.msra.mxu0 %v3394
    %4518 = vmatpush.bf16.msra.mxu0 %v3386
    %4519 = vmatpush.bf16.msra.mxu0 %v3378
    %4520 = vmatpush.bf16.msra.mxu0 %v3370
    %4521 = vmatpush.bf16.msra.mxu0 %v3362
    %4522 = vmatpush.bf16.msra.mxu0 %v3354
    %4523 = vmatpush.bf16.msra.mxu0 %v3346
    %4524 = vmatpush.bf16.msra.mxu0 %v3338
    %4525 = vmatmul.bf16.gmra.mxu0 %v1721
    %v4526 = vpop.f32.mrf.mxu0
    %v4527 = vadd.f32 %v4514, %v4526
    %v4528 = vpop.f32.mrf.mxu0
    %4529 = vdwg.mxu0
    %4530 = vmatpush.bf16.msra.mxu0 %v3458
    %4531 = vmatpush.bf16.msra.mxu0 %v3450
    %4532 = vmatpush.bf16.msra.mxu0 %v3442
    %4533 = vmatpush.bf16.msra.mxu0 %v3434
    %4534 = vmatpush.bf16.msra.mxu0 %v3426
    %4535 = vmatpush.bf16.msra.mxu0 %v3418
    %4536 = vmatpush.bf16.msra.mxu0 %v3410
    %4537 = vmatpush.bf16.msra.mxu0 %v3402
    %4538 = vmatmul.bf16.gmra.mxu0 %v1722
    %v4539 = vpop.f32.mrf.mxu0
    %v4540 = vadd.f32 %v4527, %v4539
    %v4541 = vpop.f32.mrf.mxu0
    %4542 = vdwg.mxu0
    %4543 = vmatpush.bf16.msra.mxu0 %v3522
    %4544 = vmatpush.bf16.msra.mxu0 %v3514
    %4545 = vmatpush.bf16.msra.mxu0 %v3506
    %4546 = vmatpush.bf16.msra.mxu0 %v3498
    %4547 = vmatpush.bf16.msra.mxu0 %v3490
    %4548 = vmatpush.bf16.msra.mxu0 %v3482
    %4549 = vmatpush.bf16.msra.mxu0 %v3474
    %4550 = vmatpush.bf16.msra.mxu0 %v3466
    %4551 = vmatmul.bf16.gmra.mxu0 %v1723
    %v4552 = vpop.f32.mrf.mxu0
    %v4553 = vadd.f32 %v4540, %v4552
    %v4554 = vpop.f32.mrf.mxu0
    %4555 = vdwg.mxu0
    %4556 = vmatpush.bf16.msra.mxu0 %v3586
    %4557 = vmatpush.bf16.msra.mxu0 %v3578
    %4558 = vmatpush.bf16.msra.mxu0 %v3570
    %4559 = vmatpush.bf16.msra.mxu0 %v3562
    %4560 = vmatpush.bf16.msra.mxu0 %v3554
    %4561 = vmatpush.bf16.msra.mxu0 %v3546
    %4562 = vmatpush.bf16.msra.mxu0 %v3538
    %4563 = vmatpush.bf16.msra.mxu0 %v3530
    %4564 = vmatmul.bf16.gmra.mxu0 %v1724
    %v4565 = vpop.f32.mrf.mxu0
    %v4566 = vadd.f32 %v4553, %v4565
    %v4567 = vpop.f32.mrf.mxu0
    %4568 = vdwg.mxu0
    %4569 = vmatpush.bf16.msra.mxu0 %v3650
    %4570 = vmatpush.bf16.msra.mxu0 %v3642
    %4571 = vmatpush.bf16.msra.mxu0 %v3634
    %4572 = vmatpush.bf16.msra.mxu0 %v3626
    %4573 = vmatpush.bf16.msra.mxu0 %v3618
    %4574 = vmatpush.bf16.msra.mxu0 %v3610
    %4575 = vmatpush.bf16.msra.mxu0 %v3602
    %4576 = vmatpush.bf16.msra.mxu0 %v3594
    %4577 = vmatmul.bf16.gmra.mxu0 %v1725
    %v4578 = vpop.f32.mrf.mxu0
    %v4579 = vadd.f32 %v4566, %v4578
    %v4580 = vpop.f32.mrf.mxu0
    %4581 = vdwg.mxu0
    %4582 = vmatpush.bf16.msra.mxu0 %v3714
    %4583 = vmatpush.bf16.msra.mxu0 %v3706
    %4584 = vmatpush.bf16.msra.mxu0 %v3698
    %4585 = vmatpush.bf16.msra.mxu0 %v3690
    %4586 = vmatpush.bf16.msra.mxu0 %v3682
    %4587 = vmatpush.bf16.msra.mxu0 %v3674
    %4588 = vmatpush.bf16.msra.mxu0 %v3666
    %4589 = vmatpush.bf16.msra.mxu0 %v3658
    %4590 = vmatmul.bf16.gmra.mxu0 %v1726
    %v4591 = vpop.f32.mrf.mxu0
    %v4592 = vadd.f32 %v4579, %v4591
    %v4593 = vpop.f32.mrf.mxu0
    %4594 = vdwg.mxu0
    %4595 = vmatpush.bf16.msra.mxu0 %v3778
    %4596 = vmatpush.bf16.msra.mxu0 %v3770
    %4597 = vmatpush.bf16.msra.mxu0 %v3762
    %4598 = vmatpush.bf16.msra.mxu0 %v3754
    %4599 = vmatpush.bf16.msra.mxu0 %v3746
    %4600 = vmatpush.bf16.msra.mxu0 %v3738
    %4601 = vmatpush.bf16.msra.mxu0 %v3730
    %4602 = vmatpush.bf16.msra.mxu0 %v3722
    %4603 = vmatmul.bf16.gmra.mxu0 %v1727
    %v4604 = vpop.f32.mrf.mxu0
    %v4605 = vadd.f32 %v4592, %v4604
    %v4606 = vpop.f32.mrf.mxu0
    %4607 = vdwg.mxu0
    %4608 = vmatpush.bf16.msra.mxu0 %v3331
    %4609 = vmatpush.bf16.msra.mxu0 %v3323
    %4610 = vmatpush.bf16.msra.mxu0 %v3315
    %4611 = vmatpush.bf16.msra.mxu0 %v3307
    %4612 = vmatpush.bf16.msra.mxu0 %v3299
    %4613 = vmatpush.bf16.msra.mxu0 %v3291
    %4614 = vmatpush.bf16.msra.mxu0 %v3283
    %4615 = vmatpush.bf16.msra.mxu0 %v3275
    %4616 = vmatmul.bf16.gmra.mxu0 %v1720
    %v4617 = vpop.f32.mrf.mxu0
    %v4618 = vadd.f32 0.0, %v4617
    %v4619 = vpop.f32.mrf.mxu0
    %4620 = vdwg.mxu0
    %4621 = vmatpush.bf16.msra.mxu0 %v3395
    %4622 = vmatpush.bf16.msra.mxu0 %v3387
    %4623 = vmatpush.bf16.msra.mxu0 %v3379
    %4624 = vmatpush.bf16.msra.mxu0 %v3371
    %4625 = vmatpush.bf16.msra.mxu0 %v3363
    %4626 = vmatpush.bf16.msra.mxu0 %v3355
    %4627 = vmatpush.bf16.msra.mxu0 %v3347
    %4628 = vmatpush.bf16.msra.mxu0 %v3339
    %4629 = vmatmul.bf16.gmra.mxu0 %v1721
    %v4630 = vpop.f32.mrf.mxu0
    %v4631 = vadd.f32 %v4618, %v4630
    %v4632 = vpop.f32.mrf.mxu0
    %4633 = vdwg.mxu0
    %4634 = vmatpush.bf16.msra.mxu0 %v3459
    %4635 = vmatpush.bf16.msra.mxu0 %v3451
    %4636 = vmatpush.bf16.msra.mxu0 %v3443
    %4637 = vmatpush.bf16.msra.mxu0 %v3435
    %4638 = vmatpush.bf16.msra.mxu0 %v3427
    %4639 = vmatpush.bf16.msra.mxu0 %v3419
    %4640 = vmatpush.bf16.msra.mxu0 %v3411
    %4641 = vmatpush.bf16.msra.mxu0 %v3403
    %4642 = vmatmul.bf16.gmra.mxu0 %v1722
    %v4643 = vpop.f32.mrf.mxu0
    %v4644 = vadd.f32 %v4631, %v4643
    %v4645 = vpop.f32.mrf.mxu0
    %4646 = vdwg.mxu0
    %4647 = vmatpush.bf16.msra.mxu0 %v3523
    %4648 = vmatpush.bf16.msra.mxu0 %v3515
    %4649 = vmatpush.bf16.msra.mxu0 %v3507
    %4650 = vmatpush.bf16.msra.mxu0 %v3499
    %4651 = vmatpush.bf16.msra.mxu0 %v3491
    %4652 = vmatpush.bf16.msra.mxu0 %v3483
    %4653 = vmatpush.bf16.msra.mxu0 %v3475
    %4654 = vmatpush.bf16.msra.mxu0 %v3467
    %4655 = vmatmul.bf16.gmra.mxu0 %v1723
    %v4656 = vpop.f32.mrf.mxu0
    %v4657 = vadd.f32 %v4644, %v4656
    %v4658 = vpop.f32.mrf.mxu0
    %4659 = vdwg.mxu0
    %4660 = vmatpush.bf16.msra.mxu0 %v3587
    %4661 = vmatpush.bf16.msra.mxu0 %v3579
    %4662 = vmatpush.bf16.msra.mxu0 %v3571
    %4663 = vmatpush.bf16.msra.mxu0 %v3563
    %4664 = vmatpush.bf16.msra.mxu0 %v3555
    %4665 = vmatpush.bf16.msra.mxu0 %v3547
    %4666 = vmatpush.bf16.msra.mxu0 %v3539
    %4667 = vmatpush.bf16.msra.mxu0 %v3531
    %4668 = vmatmul.bf16.gmra.mxu0 %v1724
    %v4669 = vpop.f32.mrf.mxu0
    %v4670 = vadd.f32 %v4657, %v4669
    %v4671 = vpop.f32.mrf.mxu0
    %4672 = vdwg.mxu0
    %4673 = vmatpush.bf16.msra.mxu0 %v3651
    %4674 = vmatpush.bf16.msra.mxu0 %v3643
    %4675 = vmatpush.bf16.msra.mxu0 %v3635
    %4676 = vmatpush.bf16.msra.mxu0 %v3627
    %4677 = vmatpush.bf16.msra.mxu0 %v3619
    %4678 = vmatpush.bf16.msra.mxu0 %v3611
    %4679 = vmatpush.bf16.msra.mxu0 %v3603
    %4680 = vmatpush.bf16.msra.mxu0 %v3595
    %4681 = vmatmul.bf16.gmra.mxu0 %v1725
    %v4682 = vpop.f32.mrf.mxu0
    %v4683 = vadd.f32 %v4670, %v4682
    %v4684 = vpop.f32.mrf.mxu0
    %4685 = vdwg.mxu0
    %4686 = vmatpush.bf16.msra.mxu0 %v3715
    %4687 = vmatpush.bf16.msra.mxu0 %v3707
    %4688 = vmatpush.bf16.msra.mxu0 %v3699
    %4689 = vmatpush.bf16.msra.mxu0 %v3691
    %4690 = vmatpush.bf16.msra.mxu0 %v3683
    %4691 = vmatpush.bf16.msra.mxu0 %v3675
    %4692 = vmatpush.bf16.msra.mxu0 %v3667
    %4693 = vmatpush.bf16.msra.mxu0 %v3659
    %4694 = vmatmul.bf16.gmra.mxu0 %v1726
    %v4695 = vpop.f32.mrf.mxu0
    %v4696 = vadd.f32 %v4683, %v4695
    %v4697 = vpop.f32.mrf.mxu0
    %4698 = vdwg.mxu0
    %4699 = vmatpush.bf16.msra.mxu0 %v3779
    %4700 = vmatpush.bf16.msra.mxu0 %v3771
    %4701 = vmatpush.bf16.msra.mxu0 %v3763
    %4702 = vmatpush.bf16.msra.mxu0 %v3755
    %4703 = vmatpush.bf16.msra.mxu0 %v3747
    %4704 = vmatpush.bf16.msra.mxu0 %v3739
    %4705 = vmatpush.bf16.msra.mxu0 %v3731
    %4706 = vmatpush.bf16.msra.mxu0 %v3723
    %4707 = vmatmul.bf16.gmra.mxu0 %v1727
    %v4708 = vpop.f32.mrf.mxu0
    %v4709 = vadd.f32 %v4696, %v4708
    %v4710 = vpop.f32.mrf.mxu0
    %4711 = vdwg.mxu0
    %4712 = vmatpush.bf16.msra.mxu0 %v3332
    %4713 = vmatpush.bf16.msra.mxu0 %v3324
    %4714 = vmatpush.bf16.msra.mxu0 %v3316
    %4715 = vmatpush.bf16.msra.mxu0 %v3308
    %4716 = vmatpush.bf16.msra.mxu0 %v3300
    %4717 = vmatpush.bf16.msra.mxu0 %v3292
    %4718 = vmatpush.bf16.msra.mxu0 %v3284
    %4719 = vmatpush.bf16.msra.mxu0 %v3276
    %4720 = vmatmul.bf16.gmra.mxu0 %v1720
    %v4721 = vpop.f32.mrf.mxu0
    %v4722 = vadd.f32 0.0, %v4721
    %v4723 = vpop.f32.mrf.mxu0
    %4724 = vdwg.mxu0
    %4725 = vmatpush.bf16.msra.mxu0 %v3396
    %4726 = vmatpush.bf16.msra.mxu0 %v3388
    %4727 = vmatpush.bf16.msra.mxu0 %v3380
    %4728 = vmatpush.bf16.msra.mxu0 %v3372
    %4729 = vmatpush.bf16.msra.mxu0 %v3364
    %4730 = vmatpush.bf16.msra.mxu0 %v3356
    %4731 = vmatpush.bf16.msra.mxu0 %v3348
    %4732 = vmatpush.bf16.msra.mxu0 %v3340
    %4733 = vmatmul.bf16.gmra.mxu0 %v1721
    %v4734 = vpop.f32.mrf.mxu0
    %v4735 = vadd.f32 %v4722, %v4734
    %v4736 = vpop.f32.mrf.mxu0
    %4737 = vdwg.mxu0
    %4738 = vmatpush.bf16.msra.mxu0 %v3460
    %4739 = vmatpush.bf16.msra.mxu0 %v3452
    %4740 = vmatpush.bf16.msra.mxu0 %v3444
    %4741 = vmatpush.bf16.msra.mxu0 %v3436
    %4742 = vmatpush.bf16.msra.mxu0 %v3428
    %4743 = vmatpush.bf16.msra.mxu0 %v3420
    %4744 = vmatpush.bf16.msra.mxu0 %v3412
    %4745 = vmatpush.bf16.msra.mxu0 %v3404
    %4746 = vmatmul.bf16.gmra.mxu0 %v1722
    %v4747 = vpop.f32.mrf.mxu0
    %v4748 = vadd.f32 %v4735, %v4747
    %v4749 = vpop.f32.mrf.mxu0
    %4750 = vdwg.mxu0
    %4751 = vmatpush.bf16.msra.mxu0 %v3524
    %4752 = vmatpush.bf16.msra.mxu0 %v3516
    %4753 = vmatpush.bf16.msra.mxu0 %v3508
    %4754 = vmatpush.bf16.msra.mxu0 %v3500
    %4755 = vmatpush.bf16.msra.mxu0 %v3492
    %4756 = vmatpush.bf16.msra.mxu0 %v3484
    %4757 = vmatpush.bf16.msra.mxu0 %v3476
    %4758 = vmatpush.bf16.msra.mxu0 %v3468
    %4759 = vmatmul.bf16.gmra.mxu0 %v1723
    %v4760 = vpop.f32.mrf.mxu0
    %v4761 = vadd.f32 %v4748, %v4760
    %v4762 = vpop.f32.mrf.mxu0
    %4763 = vdwg.mxu0
    %4764 = vmatpush.bf16.msra.mxu0 %v3588
    %4765 = vmatpush.bf16.msra.mxu0 %v3580
    %4766 = vmatpush.bf16.msra.mxu0 %v3572
    %4767 = vmatpush.bf16.msra.mxu0 %v3564
    %4768 = vmatpush.bf16.msra.mxu0 %v3556
    %4769 = vmatpush.bf16.msra.mxu0 %v3548
    %4770 = vmatpush.bf16.msra.mxu0 %v3540
    %4771 = vmatpush.bf16.msra.mxu0 %v3532
    %4772 = vmatmul.bf16.gmra.mxu0 %v1724
    %v4773 = vpop.f32.mrf.mxu0
    %v4774 = vadd.f32 %v4761, %v4773
    %v4775 = vpop.f32.mrf.mxu0
    %4776 = vdwg.mxu0
    %4777 = vmatpush.bf16.msra.mxu0 %v3652
    %4778 = vmatpush.bf16.msra.mxu0 %v3644
    %4779 = vmatpush.bf16.msra.mxu0 %v3636
    %4780 = vmatpush.bf16.msra.mxu0 %v3628
    %4781 = vmatpush.bf16.msra.mxu0 %v3620
    %4782 = vmatpush.bf16.msra.mxu0 %v3612
    %4783 = vmatpush.bf16.msra.mxu0 %v3604
    %4784 = vmatpush.bf16.msra.mxu0 %v3596
    %4785 = vmatmul.bf16.gmra.mxu0 %v1725
    %v4786 = vpop.f32.mrf.mxu0
    %v4787 = vadd.f32 %v4774, %v4786
    %v4788 = vpop.f32.mrf.mxu0
    %4789 = vdwg.mxu0
    %4790 = vmatpush.bf16.msra.mxu0 %v3716
    %4791 = vmatpush.bf16.msra.mxu0 %v3708
    %4792 = vmatpush.bf16.msra.mxu0 %v3700
    %4793 = vmatpush.bf16.msra.mxu0 %v3692
    %4794 = vmatpush.bf16.msra.mxu0 %v3684
    %4795 = vmatpush.bf16.msra.mxu0 %v3676
    %4796 = vmatpush.bf16.msra.mxu0 %v3668
    %4797 = vmatpush.bf16.msra.mxu0 %v3660
    %4798 = vmatmul.bf16.gmra.mxu0 %v1726
    %v4799 = vpop.f32.mrf.mxu0
    %v4800 = vadd.f32 %v4787, %v4799
    %v4801 = vpop.f32.mrf.mxu0
    %4802 = vdwg.mxu0
    %4803 = vmatpush.bf16.msra.mxu0 %v3780
    %4804 = vmatpush.bf16.msra.mxu0 %v3772
    %4805 = vmatpush.bf16.msra.mxu0 %v3764
    %4806 = vmatpush.bf16.msra.mxu0 %v3756
    %4807 = vmatpush.bf16.msra.mxu0 %v3748
    %4808 = vmatpush.bf16.msra.mxu0 %v3740
    %4809 = vmatpush.bf16.msra.mxu0 %v3732
    %4810 = vmatpush.bf16.msra.mxu0 %v3724
    %4811 = vmatmul.bf16.gmra.mxu0 %v1727
    %v4812 = vpop.f32.mrf.mxu0
    %v4813 = vadd.f32 %v4800, %v4812
    %v4814 = vpop.f32.mrf.mxu0
    %4815 = vdwg.mxu0
    %4816 = vmatpush.bf16.msra.mxu0 %v3333
    %4817 = vmatpush.bf16.msra.mxu0 %v3325
    %4818 = vmatpush.bf16.msra.mxu0 %v3317
    %4819 = vmatpush.bf16.msra.mxu0 %v3309
    %4820 = vmatpush.bf16.msra.mxu0 %v3301
    %4821 = vmatpush.bf16.msra.mxu0 %v3293
    %4822 = vmatpush.bf16.msra.mxu0 %v3285
    %4823 = vmatpush.bf16.msra.mxu0 %v3277
    %4824 = vmatmul.bf16.gmra.mxu0 %v1720
    %v4825 = vpop.f32.mrf.mxu0
    %v4826 = vadd.f32 0.0, %v4825
    %v4827 = vpop.f32.mrf.mxu0
    %4828 = vdwg.mxu0
    %4829 = vmatpush.bf16.msra.mxu0 %v3397
    %4830 = vmatpush.bf16.msra.mxu0 %v3389
    %4831 = vmatpush.bf16.msra.mxu0 %v3381
    %4832 = vmatpush.bf16.msra.mxu0 %v3373
    %4833 = vmatpush.bf16.msra.mxu0 %v3365
    %4834 = vmatpush.bf16.msra.mxu0 %v3357
    %4835 = vmatpush.bf16.msra.mxu0 %v3349
    %4836 = vmatpush.bf16.msra.mxu0 %v3341
    %4837 = vmatmul.bf16.gmra.mxu0 %v1721
    %v4838 = vpop.f32.mrf.mxu0
    %v4839 = vadd.f32 %v4826, %v4838
    %v4840 = vpop.f32.mrf.mxu0
    %4841 = vdwg.mxu0
    %4842 = vmatpush.bf16.msra.mxu0 %v3461
    %4843 = vmatpush.bf16.msra.mxu0 %v3453
    %4844 = vmatpush.bf16.msra.mxu0 %v3445
    %4845 = vmatpush.bf16.msra.mxu0 %v3437
    %4846 = vmatpush.bf16.msra.mxu0 %v3429
    %4847 = vmatpush.bf16.msra.mxu0 %v3421
    %4848 = vmatpush.bf16.msra.mxu0 %v3413
    %4849 = vmatpush.bf16.msra.mxu0 %v3405
    %4850 = vmatmul.bf16.gmra.mxu0 %v1722
    %v4851 = vpop.f32.mrf.mxu0
    %v4852 = vadd.f32 %v4839, %v4851
    %v4853 = vpop.f32.mrf.mxu0
    %4854 = vdwg.mxu0
    %4855 = vmatpush.bf16.msra.mxu0 %v3525
    %4856 = vmatpush.bf16.msra.mxu0 %v3517
    %4857 = vmatpush.bf16.msra.mxu0 %v3509
    %4858 = vmatpush.bf16.msra.mxu0 %v3501
    %4859 = vmatpush.bf16.msra.mxu0 %v3493
    %4860 = vmatpush.bf16.msra.mxu0 %v3485
    %4861 = vmatpush.bf16.msra.mxu0 %v3477
    %4862 = vmatpush.bf16.msra.mxu0 %v3469
    %4863 = vmatmul.bf16.gmra.mxu0 %v1723
    %v4864 = vpop.f32.mrf.mxu0
    %v4865 = vadd.f32 %v4852, %v4864
    %v4866 = vpop.f32.mrf.mxu0
    %4867 = vdwg.mxu0
    %4868 = vmatpush.bf16.msra.mxu0 %v3589
    %4869 = vmatpush.bf16.msra.mxu0 %v3581
    %4870 = vmatpush.bf16.msra.mxu0 %v3573
    %4871 = vmatpush.bf16.msra.mxu0 %v3565
    %4872 = vmatpush.bf16.msra.mxu0 %v3557
    %4873 = vmatpush.bf16.msra.mxu0 %v3549
    %4874 = vmatpush.bf16.msra.mxu0 %v3541
    %4875 = vmatpush.bf16.msra.mxu0 %v3533
    %4876 = vmatmul.bf16.gmra.mxu0 %v1724
    %v4877 = vpop.f32.mrf.mxu0
    %v4878 = vadd.f32 %v4865, %v4877
    %v4879 = vpop.f32.mrf.mxu0
    %4880 = vdwg.mxu0
    %4881 = vmatpush.bf16.msra.mxu0 %v3653
    %4882 = vmatpush.bf16.msra.mxu0 %v3645
    %4883 = vmatpush.bf16.msra.mxu0 %v3637
    %4884 = vmatpush.bf16.msra.mxu0 %v3629
    %4885 = vmatpush.bf16.msra.mxu0 %v3621
    %4886 = vmatpush.bf16.msra.mxu0 %v3613
    %4887 = vmatpush.bf16.msra.mxu0 %v3605
    %4888 = vmatpush.bf16.msra.mxu0 %v3597
    %4889 = vmatmul.bf16.gmra.mxu0 %v1725
    %v4890 = vpop.f32.mrf.mxu0
    %v4891 = vadd.f32 %v4878, %v4890
    %v4892 = vpop.f32.mrf.mxu0
    %4893 = vdwg.mxu0
    %4894 = vmatpush.bf16.msra.mxu0 %v3717
    %4895 = vmatpush.bf16.msra.mxu0 %v3709
    %4896 = vmatpush.bf16.msra.mxu0 %v3701
    %4897 = vmatpush.bf16.msra.mxu0 %v3693
    %4898 = vmatpush.bf16.msra.mxu0 %v3685
    %4899 = vmatpush.bf16.msra.mxu0 %v3677
    %4900 = vmatpush.bf16.msra.mxu0 %v3669
    %4901 = vmatpush.bf16.msra.mxu0 %v3661
    %4902 = vmatmul.bf16.gmra.mxu0 %v1726
    %v4903 = vpop.f32.mrf.mxu0
    %v4904 = vadd.f32 %v4891, %v4903
    %v4905 = vpop.f32.mrf.mxu0
    %4906 = vdwg.mxu0
    %4907 = vmatpush.bf16.msra.mxu0 %v3781
    %4908 = vmatpush.bf16.msra.mxu0 %v3773
    %4909 = vmatpush.bf16.msra.mxu0 %v3765
    %4910 = vmatpush.bf16.msra.mxu0 %v3757
    %4911 = vmatpush.bf16.msra.mxu0 %v3749
    %4912 = vmatpush.bf16.msra.mxu0 %v3741
    %4913 = vmatpush.bf16.msra.mxu0 %v3733
    %4914 = vmatpush.bf16.msra.mxu0 %v3725
    %4915 = vmatmul.bf16.gmra.mxu0 %v1727
    %v4916 = vpop.f32.mrf.mxu0
    %v4917 = vadd.f32 %v4904, %v4916
    %v4918 = vpop.f32.mrf.mxu0
    %4919 = vdwg.mxu0
    %4920 = vmatpush.bf16.msra.mxu0 %v3334
    %4921 = vmatpush.bf16.msra.mxu0 %v3326
    %4922 = vmatpush.bf16.msra.mxu0 %v3318
    %4923 = vmatpush.bf16.msra.mxu0 %v3310
    %4924 = vmatpush.bf16.msra.mxu0 %v3302
    %4925 = vmatpush.bf16.msra.mxu0 %v3294
    %4926 = vmatpush.bf16.msra.mxu0 %v3286
    %4927 = vmatpush.bf16.msra.mxu0 %v3278
    %4928 = vmatmul.bf16.gmra.mxu0 %v1720
    %v4929 = vpop.f32.mrf.mxu0
    %v4930 = vadd.f32 0.0, %v4929
    %v4931 = vpop.f32.mrf.mxu0
    %4932 = vdwg.mxu0
    %4933 = vmatpush.bf16.msra.mxu0 %v3398
    %4934 = vmatpush.bf16.msra.mxu0 %v3390
    %4935 = vmatpush.bf16.msra.mxu0 %v3382
    %4936 = vmatpush.bf16.msra.mxu0 %v3374
    %4937 = vmatpush.bf16.msra.mxu0 %v3366
    %4938 = vmatpush.bf16.msra.mxu0 %v3358
    %4939 = vmatpush.bf16.msra.mxu0 %v3350
    %4940 = vmatpush.bf16.msra.mxu0 %v3342
    %4941 = vmatmul.bf16.gmra.mxu0 %v1721
    %v4942 = vpop.f32.mrf.mxu0
    %v4943 = vadd.f32 %v4930, %v4942
    %v4944 = vpop.f32.mrf.mxu0
    %4945 = vdwg.mxu0
    %4946 = vmatpush.bf16.msra.mxu0 %v3462
    %4947 = vmatpush.bf16.msra.mxu0 %v3454
    %4948 = vmatpush.bf16.msra.mxu0 %v3446
    %4949 = vmatpush.bf16.msra.mxu0 %v3438
    %4950 = vmatpush.bf16.msra.mxu0 %v3430
    %4951 = vmatpush.bf16.msra.mxu0 %v3422
    %4952 = vmatpush.bf16.msra.mxu0 %v3414
    %4953 = vmatpush.bf16.msra.mxu0 %v3406
    %4954 = vmatmul.bf16.gmra.mxu0 %v1722
    %v4955 = vpop.f32.mrf.mxu0
    %v4956 = vadd.f32 %v4943, %v4955
    %v4957 = vpop.f32.mrf.mxu0
    %4958 = vdwg.mxu0
    %4959 = vmatpush.bf16.msra.mxu0 %v3526
    %4960 = vmatpush.bf16.msra.mxu0 %v3518
    %4961 = vmatpush.bf16.msra.mxu0 %v3510
    %4962 = vmatpush.bf16.msra.mxu0 %v3502
    %4963 = vmatpush.bf16.msra.mxu0 %v3494
    %4964 = vmatpush.bf16.msra.mxu0 %v3486
    %4965 = vmatpush.bf16.msra.mxu0 %v3478
    %4966 = vmatpush.bf16.msra.mxu0 %v3470
    %4967 = vmatmul.bf16.gmra.mxu0 %v1723
    %v4968 = vpop.f32.mrf.mxu0
    %v4969 = vadd.f32 %v4956, %v4968
    %v4970 = vpop.f32.mrf.mxu0
    %4971 = vdwg.mxu0
    %4972 = vmatpush.bf16.msra.mxu0 %v3590
    %4973 = vmatpush.bf16.msra.mxu0 %v3582
    %4974 = vmatpush.bf16.msra.mxu0 %v3574
    %4975 = vmatpush.bf16.msra.mxu0 %v3566
    %4976 = vmatpush.bf16.msra.mxu0 %v3558
    %4977 = vmatpush.bf16.msra.mxu0 %v3550
    %4978 = vmatpush.bf16.msra.mxu0 %v3542
    %4979 = vmatpush.bf16.msra.mxu0 %v3534
    %4980 = vmatmul.bf16.gmra.mxu0 %v1724
    %v4981 = vpop.f32.mrf.mxu0
    %v4982 = vadd.f32 %v4969, %v4981
    %v4983 = vpop.f32.mrf.mxu0
    %4984 = vdwg.mxu0
    %4985 = vmatpush.bf16.msra.mxu0 %v3654
    %4986 = vmatpush.bf16.msra.mxu0 %v3646
    %4987 = vmatpush.bf16.msra.mxu0 %v3638
    %4988 = vmatpush.bf16.msra.mxu0 %v3630
    %4989 = vmatpush.bf16.msra.mxu0 %v3622
    %4990 = vmatpush.bf16.msra.mxu0 %v3614
    %4991 = vmatpush.bf16.msra.mxu0 %v3606
    %4992 = vmatpush.bf16.msra.mxu0 %v3598
    %4993 = vmatmul.bf16.gmra.mxu0 %v1725
    %v4994 = vpop.f32.mrf.mxu0
    %v4995 = vadd.f32 %v4982, %v4994
    %v4996 = vpop.f32.mrf.mxu0
    %4997 = vdwg.mxu0
    %4998 = vmatpush.bf16.msra.mxu0 %v3718
    %4999 = vmatpush.bf16.msra.mxu0 %v3710
    %5000 = vmatpush.bf16.msra.mxu0 %v3702
    %5001 = vmatpush.bf16.msra.mxu0 %v3694
    %5002 = vmatpush.bf16.msra.mxu0 %v3686
    %5003 = vmatpush.bf16.msra.mxu0 %v3678
    %5004 = vmatpush.bf16.msra.mxu0 %v3670
    %5005 = vmatpush.bf16.msra.mxu0 %v3662
    %5006 = vmatmul.bf16.gmra.mxu0 %v1726
    %v5007 = vpop.f32.mrf.mxu0
    %v5008 = vadd.f32 %v4995, %v5007
    %v5009 = vpop.f32.mrf.mxu0
    %5010 = vdwg.mxu0
    %5011 = vmatpush.bf16.msra.mxu0 %v3782
    %5012 = vmatpush.bf16.msra.mxu0 %v3774
    %5013 = vmatpush.bf16.msra.mxu0 %v3766
    %5014 = vmatpush.bf16.msra.mxu0 %v3758
    %5015 = vmatpush.bf16.msra.mxu0 %v3750
    %5016 = vmatpush.bf16.msra.mxu0 %v3742
    %5017 = vmatpush.bf16.msra.mxu0 %v3734
    %5018 = vmatpush.bf16.msra.mxu0 %v3726
    %5019 = vmatmul.bf16.gmra.mxu0 %v1727
    %v5020 = vpop.f32.mrf.mxu0
    %v5021 = vadd.f32 %v5008, %v5020
    %v5022 = vpop.f32.mrf.mxu0
    %5023 = vdwg.mxu0
    %5024 = vmatpush.bf16.msra.mxu0 %v3335
    %5025 = vmatpush.bf16.msra.mxu0 %v3327
    %5026 = vmatpush.bf16.msra.mxu0 %v3319
    %5027 = vmatpush.bf16.msra.mxu0 %v3311
    %5028 = vmatpush.bf16.msra.mxu0 %v3303
    %5029 = vmatpush.bf16.msra.mxu0 %v3295
    %5030 = vmatpush.bf16.msra.mxu0 %v3287
    %5031 = vmatpush.bf16.msra.mxu0 %v3279
    %5032 = vmatmul.bf16.gmra.mxu0 %v1720
    %v5033 = vpop.f32.mrf.mxu0
    %v5034 = vadd.f32 0.0, %v5033
    %v5035 = vpop.f32.mrf.mxu0
    %5036 = vdwg.mxu0
    %5037 = vmatpush.bf16.msra.mxu0 %v3399
    %5038 = vmatpush.bf16.msra.mxu0 %v3391
    %5039 = vmatpush.bf16.msra.mxu0 %v3383
    %5040 = vmatpush.bf16.msra.mxu0 %v3375
    %5041 = vmatpush.bf16.msra.mxu0 %v3367
    %5042 = vmatpush.bf16.msra.mxu0 %v3359
    %5043 = vmatpush.bf16.msra.mxu0 %v3351
    %5044 = vmatpush.bf16.msra.mxu0 %v3343
    %5045 = vmatmul.bf16.gmra.mxu0 %v1721
    %v5046 = vpop.f32.mrf.mxu0
    %v5047 = vadd.f32 %v5034, %v5046
    %v5048 = vpop.f32.mrf.mxu0
    %5049 = vdwg.mxu0
    %5050 = vmatpush.bf16.msra.mxu0 %v3463
    %5051 = vmatpush.bf16.msra.mxu0 %v3455
    %5052 = vmatpush.bf16.msra.mxu0 %v3447
    %5053 = vmatpush.bf16.msra.mxu0 %v3439
    %5054 = vmatpush.bf16.msra.mxu0 %v3431
    %5055 = vmatpush.bf16.msra.mxu0 %v3423
    %5056 = vmatpush.bf16.msra.mxu0 %v3415
    %5057 = vmatpush.bf16.msra.mxu0 %v3407
    %5058 = vmatmul.bf16.gmra.mxu0 %v1722
    %v5059 = vpop.f32.mrf.mxu0
    %v5060 = vadd.f32 %v5047, %v5059
    %v5061 = vpop.f32.mrf.mxu0
    %5062 = vdwg.mxu0
    %5063 = vmatpush.bf16.msra.mxu0 %v3527
    %5064 = vmatpush.bf16.msra.mxu0 %v3519
    %5065 = vmatpush.bf16.msra.mxu0 %v3511
    %5066 = vmatpush.bf16.msra.mxu0 %v3503
    %5067 = vmatpush.bf16.msra.mxu0 %v3495
    %5068 = vmatpush.bf16.msra.mxu0 %v3487
    %5069 = vmatpush.bf16.msra.mxu0 %v3479
    %5070 = vmatpush.bf16.msra.mxu0 %v3471
    %5071 = vmatmul.bf16.gmra.mxu0 %v1723
    %v5072 = vpop.f32.mrf.mxu0
    %v5073 = vadd.f32 %v5060, %v5072
    %v5074 = vpop.f32.mrf.mxu0
    %5075 = vdwg.mxu0
    %5076 = vmatpush.bf16.msra.mxu0 %v3591
    %5077 = vmatpush.bf16.msra.mxu0 %v3583
    %5078 = vmatpush.bf16.msra.mxu0 %v3575
    %5079 = vmatpush.bf16.msra.mxu0 %v3567
    %5080 = vmatpush.bf16.msra.mxu0 %v3559
    %5081 = vmatpush.bf16.msra.mxu0 %v3551
    %5082 = vmatpush.bf16.msra.mxu0 %v3543
    %5083 = vmatpush.bf16.msra.mxu0 %v3535
    %5084 = vmatmul.bf16.gmra.mxu0 %v1724
    %v5085 = vpop.f32.mrf.mxu0
    %v5086 = vadd.f32 %v5073, %v5085
    %v5087 = vpop.f32.mrf.mxu0
    %5088 = vdwg.mxu0
    %5089 = vmatpush.bf16.msra.mxu0 %v3655
    %5090 = vmatpush.bf16.msra.mxu0 %v3647
    %5091 = vmatpush.bf16.msra.mxu0 %v3639
    %5092 = vmatpush.bf16.msra.mxu0 %v3631
    %5093 = vmatpush.bf16.msra.mxu0 %v3623
    %5094 = vmatpush.bf16.msra.mxu0 %v3615
    %5095 = vmatpush.bf16.msra.mxu0 %v3607
    %5096 = vmatpush.bf16.msra.mxu0 %v3599
    %5097 = vmatmul.bf16.gmra.mxu0 %v1725
    %v5098 = vpop.f32.mrf.mxu0
    %v5099 = vadd.f32 %v5086, %v5098
    %v5100 = vpop.f32.mrf.mxu0
    %5101 = vdwg.mxu0
    %5102 = vmatpush.bf16.msra.mxu0 %v3719
    %5103 = vmatpush.bf16.msra.mxu0 %v3711
    %5104 = vmatpush.bf16.msra.mxu0 %v3703
    %5105 = vmatpush.bf16.msra.mxu0 %v3695
    %5106 = vmatpush.bf16.msra.mxu0 %v3687
    %5107 = vmatpush.bf16.msra.mxu0 %v3679
    %5108 = vmatpush.bf16.msra.mxu0 %v3671
    %5109 = vmatpush.bf16.msra.mxu0 %v3663
    %5110 = vmatmul.bf16.gmra.mxu0 %v1726
    %v5111 = vpop.f32.mrf.mxu0
    %v5112 = vadd.f32 %v5099, %v5111
    %v5113 = vpop.f32.mrf.mxu0
    %5114 = vdwg.mxu0
    %5115 = vmatpush.bf16.msra.mxu0 %v3783
    %5116 = vmatpush.bf16.msra.mxu0 %v3775
    %5117 = vmatpush.bf16.msra.mxu0 %v3767
    %5118 = vmatpush.bf16.msra.mxu0 %v3759
    %5119 = vmatpush.bf16.msra.mxu0 %v3751
    %5120 = vmatpush.bf16.msra.mxu0 %v3743
    %5121 = vmatpush.bf16.msra.mxu0 %v3735
    %5122 = vmatpush.bf16.msra.mxu0 %v3727
    %5123 = vmatmul.bf16.gmra.mxu0 %v1727
    %v5124 = vpop.f32.mrf.mxu0
    %v5125 = vadd.f32 %v5112, %v5124
    %v5126 = vpop.f32.mrf.mxu0
    %5127 = vdwg.mxu0
    %v5128 = vadd.f32 %v1184, %v4397
    %v5129 = vadd.f32 %v1185, %v4501
    %v5130 = vadd.f32 %v1186, %v4605
    %v5131 = vadd.f32 %v1187, %v4709
    %v5132 = vadd.f32 %v1188, %v4813
    %v5133 = vadd.f32 %v1189, %v4917
    %v5134 = vadd.f32 %v1190, %v5021
    %v5135 = vadd.f32 %v1191, %v5125
    %5136 = vst [vmem:[#allocation2] sm:$0xff] %v5128
    %5137 = vst [vmem:[#allocation2 + $0x8] sm:$0xff] %v5129
    %5138 = vst [vmem:[#allocation2 + $0x10] sm:$0xff] %v5130
    %5139 = vst [vmem:[#allocation2 + $0x18] sm:$0xff] %v5131
    %5140 = vst [vmem:[#allocation2 + $0x20] sm:$0xff] %v5132
    %5141 = vst [vmem:[#allocation2 + $0x28] sm:$0xff] %v5133
    %5142 = vst [vmem:[#allocation2 + $0x30] sm:$0xff] %v5134
    %5143 = vst [vmem:[#allocation2 + $0x38] sm:$0xff] %v5135
    // Predicated region
    $region86: #{discriminator_forward.1} parent=1 // pred_check
      %p5144 = pneg %p170
    $region87: #{discriminator_forward.1} parent=1 // pred_check_branch
      %5146 = sbr.rel (%p5144) target = $region89
    $region88: #{discriminator_forward.1} parent=1 // pred_region
      %v5147 = vld [vmem:[#allocation2] sm:$0xff]
      %v5148 = vld [vmem:[#allocation2 + $0x8] sm:$0xff]
      %v5149 = vld [vmem:[#allocation2 + $0x10] sm:$0xff]
      %v5150 = vld [vmem:[#allocation2 + $0x18] sm:$0xff]
      %v5151 = vld [vmem:[#allocation2 + $0x20] sm:$0xff]
      %v5152 = vld [vmem:[#allocation2 + $0x28] sm:$0xff]
      %v5153 = vld [vmem:[#allocation2 + $0x30] sm:$0xff]
      %v5154 = vld [vmem:[#allocation2 + $0x38] sm:$0xff]
      %v5155 = vmax.f32 %v5147, 0.0
      %v5156 = vmax.f32 %v5148, 0.0
      %v5157 = vmax.f32 %v5149, 0.0
      %v5158 = vmax.f32 %v5150, 0.0
      %v5159 = vmax.f32 %v5151, 0.0
      %v5160 = vmax.f32 %v5152, 0.0
      %v5161 = vmax.f32 %v5153, 0.0
      %v5162 = vmax.f32 %v5154, 0.0
      %v5163 = vpack.c.bf16 %v5155, %v5155
      %v5164 = vpack.c.bf16 %v5156, %v5156
      %v5165 = vpack.c.bf16 %v5157, %v5157
      %v5166 = vpack.c.bf16 %v5158, %v5158
      %v5167 = vpack.c.bf16 %v5159, %v5159
      %v5168 = vpack.c.bf16 %v5160, %v5160
      %v5169 = vpack.c.bf16 %v5161, %v5161
      %v5170 = vpack.c.bf16 %v5162, %v5162
      %v5171 = vld [vmem:[#allocation8] sm:$0xff]
      %v5172 = vld [vmem:[#allocation8 + $0x8] sm:$0xff]
      %v5173 = vld [vmem:[#allocation8 + $0x10] sm:$0xff]
      %v5174 = vld [vmem:[#allocation8 + $0x18] sm:$0xff]
      %v5175 = vld [vmem:[#allocation8 + $0x20] sm:$0xff]
      %v5176 = vld [vmem:[#allocation8 + $0x28] sm:$0xff]
      %v5177 = vld [vmem:[#allocation8 + $0x30] sm:$0xff]
      %v5178 = vld [vmem:[#allocation8 + $0x38] sm:$0xff]
      %v5179 = vld [vmem:[#allocation8 + $0x40] sm:$0xff]
      %v5180 = vld [vmem:[#allocation8 + $0x48] sm:$0xff]
      %v5181 = vld [vmem:[#allocation8 + $0x50] sm:$0xff]
      %v5182 = vld [vmem:[#allocation8 + $0x58] sm:$0xff]
      %v5183 = vld [vmem:[#allocation8 + $0x60] sm:$0xff]
      %v5184 = vld [vmem:[#allocation8 + $0x68] sm:$0xff]
      %v5185 = vld [vmem:[#allocation8 + $0x70] sm:$0xff]
      %v5186 = vld [vmem:[#allocation8 + $0x78] sm:$0xff]
      %v5187 = vld [vmem:[#allocation8 + $0x80] sm:$0xff]
      %v5188 = vld [vmem:[#allocation8 + $0x88] sm:$0xff]
      %v5189 = vld [vmem:[#allocation8 + $0x90] sm:$0xff]
      %v5190 = vld [vmem:[#allocation8 + $0x98] sm:$0xff]
      %v5191 = vld [vmem:[#allocation8 + $0xa0] sm:$0xff]
      %v5192 = vld [vmem:[#allocation8 + $0xa8] sm:$0xff]
      %v5193 = vld [vmem:[#allocation8 + $0xb0] sm:$0xff]
      %v5194 = vld [vmem:[#allocation8 + $0xb8] sm:$0xff]
      %v5195 = vld [vmem:[#allocation8 + $0xc0] sm:$0xff]
      %v5196 = vld [vmem:[#allocation8 + $0xc8] sm:$0xff]
      %v5197 = vld [vmem:[#allocation8 + $0xd0] sm:$0xff]
      %v5198 = vld [vmem:[#allocation8 + $0xd8] sm:$0xff]
      %v5199 = vld [vmem:[#allocation8 + $0xe0] sm:$0xff]
      %v5200 = vld [vmem:[#allocation8 + $0xe8] sm:$0xff]
      %v5201 = vld [vmem:[#allocation8 + $0xf0] sm:$0xff]
      %v5202 = vld [vmem:[#allocation8 + $0xf8] sm:$0xff]
      %v5203 = vld [vmem:[#allocation8 + $0x100] sm:$0xff]
      %v5204 = vld [vmem:[#allocation8 + $0x108] sm:$0xff]
      %v5205 = vld [vmem:[#allocation8 + $0x110] sm:$0xff]
      %v5206 = vld [vmem:[#allocation8 + $0x118] sm:$0xff]
      %v5207 = vld [vmem:[#allocation8 + $0x120] sm:$0xff]
      %v5208 = vld [vmem:[#allocation8 + $0x128] sm:$0xff]
      %v5209 = vld [vmem:[#allocation8 + $0x130] sm:$0xff]
      %v5210 = vld [vmem:[#allocation8 + $0x138] sm:$0xff]
      %v5211 = vld [vmem:[#allocation8 + $0x140] sm:$0xff]
      %v5212 = vld [vmem:[#allocation8 + $0x148] sm:$0xff]
      %v5213 = vld [vmem:[#allocation8 + $0x150] sm:$0xff]
      %v5214 = vld [vmem:[#allocation8 + $0x158] sm:$0xff]
      %v5215 = vld [vmem:[#allocation8 + $0x160] sm:$0xff]
      %v5216 = vld [vmem:[#allocation8 + $0x168] sm:$0xff]
      %v5217 = vld [vmem:[#allocation8 + $0x170] sm:$0xff]
      %v5218 = vld [vmem:[#allocation8 + $0x178] sm:$0xff]
      %v5219 = vld [vmem:[#allocation8 + $0x180] sm:$0xff]
      %v5220 = vld [vmem:[#allocation8 + $0x188] sm:$0xff]
      %v5221 = vld [vmem:[#allocation8 + $0x190] sm:$0xff]
      %v5222 = vld [vmem:[#allocation8 + $0x198] sm:$0xff]
      %v5223 = vld [vmem:[#allocation8 + $0x1a0] sm:$0xff]
      %v5224 = vld [vmem:[#allocation8 + $0x1a8] sm:$0xff]
      %v5225 = vld [vmem:[#allocation8 + $0x1b0] sm:$0xff]
      %v5226 = vld [vmem:[#allocation8 + $0x1b8] sm:$0xff]
      %v5227 = vld [vmem:[#allocation8 + $0x1c0] sm:$0xff]
      %v5228 = vld [vmem:[#allocation8 + $0x1c8] sm:$0xff]
      %v5229 = vld [vmem:[#allocation8 + $0x1d0] sm:$0xff]
      %v5230 = vld [vmem:[#allocation8 + $0x1d8] sm:$0xff]
      %v5231 = vld [vmem:[#allocation8 + $0x1e0] sm:$0xff]
      %v5232 = vld [vmem:[#allocation8 + $0x1e8] sm:$0xff]
      %v5233 = vld [vmem:[#allocation8 + $0x1f0] sm:$0xff]
      %v5234 = vld [vmem:[#allocation8 + $0x1f8] sm:$0xff]
      %v5235 = vld [vmem:[#allocation8 + $0x200] sm:$0xff]
      %v5236 = vld [vmem:[#allocation8 + $0x208] sm:$0xff]
      %v5237 = vld [vmem:[#allocation8 + $0x210] sm:$0xff]
      %v5238 = vld [vmem:[#allocation8 + $0x218] sm:$0xff]
      %v5239 = vld [vmem:[#allocation8 + $0x220] sm:$0xff]
      %v5240 = vld [vmem:[#allocation8 + $0x228] sm:$0xff]
      %v5241 = vld [vmem:[#allocation8 + $0x230] sm:$0xff]
      %v5242 = vld [vmem:[#allocation8 + $0x238] sm:$0xff]
      %v5243 = vld [vmem:[#allocation8 + $0x240] sm:$0xff]
      %v5244 = vld [vmem:[#allocation8 + $0x248] sm:$0xff]
      %v5245 = vld [vmem:[#allocation8 + $0x250] sm:$0xff]
      %v5246 = vld [vmem:[#allocation8 + $0x258] sm:$0xff]
      %v5247 = vld [vmem:[#allocation8 + $0x260] sm:$0xff]
      %v5248 = vld [vmem:[#allocation8 + $0x268] sm:$0xff]
      %v5249 = vld [vmem:[#allocation8 + $0x270] sm:$0xff]
      %v5250 = vld [vmem:[#allocation8 + $0x278] sm:$0xff]
      %v5251 = vld [vmem:[#allocation8 + $0x280] sm:$0xff]
      %v5252 = vld [vmem:[#allocation8 + $0x288] sm:$0xff]
      %v5253 = vld [vmem:[#allocation8 + $0x290] sm:$0xff]
      %v5254 = vld [vmem:[#allocation8 + $0x298] sm:$0xff]
      %v5255 = vld [vmem:[#allocation8 + $0x2a0] sm:$0xff]
      %v5256 = vld [vmem:[#allocation8 + $0x2a8] sm:$0xff]
      %v5257 = vld [vmem:[#allocation8 + $0x2b0] sm:$0xff]
      %v5258 = vld [vmem:[#allocation8 + $0x2b8] sm:$0xff]
      %v5259 = vld [vmem:[#allocation8 + $0x2c0] sm:$0xff]
      %v5260 = vld [vmem:[#allocation8 + $0x2c8] sm:$0xff]
      %v5261 = vld [vmem:[#allocation8 + $0x2d0] sm:$0xff]
      %v5262 = vld [vmem:[#allocation8 + $0x2d8] sm:$0xff]
      %v5263 = vld [vmem:[#allocation8 + $0x2e0] sm:$0xff]
      %v5264 = vld [vmem:[#allocation8 + $0x2e8] sm:$0xff]
      %v5265 = vld [vmem:[#allocation8 + $0x2f0] sm:$0xff]
      %v5266 = vld [vmem:[#allocation8 + $0x2f8] sm:$0xff]
      %v5267 = vld [vmem:[#allocation8 + $0x300] sm:$0xff]
      %v5268 = vld [vmem:[#allocation8 + $0x308] sm:$0xff]
      %v5269 = vld [vmem:[#allocation8 + $0x310] sm:$0xff]
      %v5270 = vld [vmem:[#allocation8 + $0x318] sm:$0xff]
      %v5271 = vld [vmem:[#allocation8 + $0x320] sm:$0xff]
      %v5272 = vld [vmem:[#allocation8 + $0x328] sm:$0xff]
      %v5273 = vld [vmem:[#allocation8 + $0x330] sm:$0xff]
      %v5274 = vld [vmem:[#allocation8 + $0x338] sm:$0xff]
      %v5275 = vld [vmem:[#allocation8 + $0x340] sm:$0xff]
      %v5276 = vld [vmem:[#allocation8 + $0x348] sm:$0xff]
      %v5277 = vld [vmem:[#allocation8 + $0x350] sm:$0xff]
      %v5278 = vld [vmem:[#allocation8 + $0x358] sm:$0xff]
      %v5279 = vld [vmem:[#allocation8 + $0x360] sm:$0xff]
      %v5280 = vld [vmem:[#allocation8 + $0x368] sm:$0xff]
      %v5281 = vld [vmem:[#allocation8 + $0x370] sm:$0xff]
      %v5282 = vld [vmem:[#allocation8 + $0x378] sm:$0xff]
      %v5283 = vld [vmem:[#allocation8 + $0x380] sm:$0xff]
      %v5284 = vld [vmem:[#allocation8 + $0x388] sm:$0xff]
      %v5285 = vld [vmem:[#allocation8 + $0x390] sm:$0xff]
      %v5286 = vld [vmem:[#allocation8 + $0x398] sm:$0xff]
      %v5287 = vld [vmem:[#allocation8 + $0x3a0] sm:$0xff]
      %v5288 = vld [vmem:[#allocation8 + $0x3a8] sm:$0xff]
      %v5289 = vld [vmem:[#allocation8 + $0x3b0] sm:$0xff]
      %v5290 = vld [vmem:[#allocation8 + $0x3b8] sm:$0xff]
      %v5291 = vld [vmem:[#allocation8 + $0x3c0] sm:$0xff]
      %v5292 = vld [vmem:[#allocation8 + $0x3c8] sm:$0xff]
      %v5293 = vld [vmem:[#allocation8 + $0x3d0] sm:$0xff]
      %v5294 = vld [vmem:[#allocation8 + $0x3d8] sm:$0xff]
      %v5295 = vld [vmem:[#allocation8 + $0x3e0] sm:$0xff]
      %v5296 = vld [vmem:[#allocation8 + $0x3e8] sm:$0xff]
      %v5297 = vld [vmem:[#allocation8 + $0x3f0] sm:$0xff]
      %v5298 = vld [vmem:[#allocation8 + $0x3f8] sm:$0xff]
      %v5299 = vld [vmem:[#allocation8 + $0x400] sm:$0xff]
      %v5300 = vld [vmem:[#allocation8 + $0x408] sm:$0xff]
      %v5301 = vld [vmem:[#allocation8 + $0x410] sm:$0xff]
      %v5302 = vld [vmem:[#allocation8 + $0x418] sm:$0xff]
      %v5303 = vld [vmem:[#allocation8 + $0x420] sm:$0xff]
      %v5304 = vld [vmem:[#allocation8 + $0x428] sm:$0xff]
      %v5305 = vld [vmem:[#allocation8 + $0x430] sm:$0xff]
      %v5306 = vld [vmem:[#allocation8 + $0x438] sm:$0xff]
      %v5307 = vld [vmem:[#allocation8 + $0x440] sm:$0xff]
      %v5308 = vld [vmem:[#allocation8 + $0x448] sm:$0xff]
      %v5309 = vld [vmem:[#allocation8 + $0x450] sm:$0xff]
      %v5310 = vld [vmem:[#allocation8 + $0x458] sm:$0xff]
      %v5311 = vld [vmem:[#allocation8 + $0x460] sm:$0xff]
      %v5312 = vld [vmem:[#allocation8 + $0x468] sm:$0xff]
      %v5313 = vld [vmem:[#allocation8 + $0x470] sm:$0xff]
      %v5314 = vld [vmem:[#allocation8 + $0x478] sm:$0xff]
      %v5315 = vld [vmem:[#allocation8 + $0x480] sm:$0xff]
      %v5316 = vld [vmem:[#allocation8 + $0x488] sm:$0xff]
      %v5317 = vld [vmem:[#allocation8 + $0x490] sm:$0xff]
      %v5318 = vld [vmem:[#allocation8 + $0x498] sm:$0xff]
      %v5319 = vld [vmem:[#allocation8 + $0x4a0] sm:$0xff]
      %v5320 = vld [vmem:[#allocation8 + $0x4a8] sm:$0xff]
      %v5321 = vld [vmem:[#allocation8 + $0x4b0] sm:$0xff]
      %v5322 = vld [vmem:[#allocation8 + $0x4b8] sm:$0xff]
      %v5323 = vld [vmem:[#allocation8 + $0x4c0] sm:$0xff]
      %v5324 = vld [vmem:[#allocation8 + $0x4c8] sm:$0xff]
      %v5325 = vld [vmem:[#allocation8 + $0x4d0] sm:$0xff]
      %v5326 = vld [vmem:[#allocation8 + $0x4d8] sm:$0xff]
      %v5327 = vld [vmem:[#allocation8 + $0x4e0] sm:$0xff]
      %v5328 = vld [vmem:[#allocation8 + $0x4e8] sm:$0xff]
      %v5329 = vld [vmem:[#allocation8 + $0x4f0] sm:$0xff]
      %v5330 = vld [vmem:[#allocation8 + $0x4f8] sm:$0xff]
      %v5331 = vld [vmem:[#allocation8 + $0x500] sm:$0xff]
      %v5332 = vld [vmem:[#allocation8 + $0x508] sm:$0xff]
      %v5333 = vld [vmem:[#allocation8 + $0x510] sm:$0xff]
      %v5334 = vld [vmem:[#allocation8 + $0x518] sm:$0xff]
      %v5335 = vld [vmem:[#allocation8 + $0x520] sm:$0xff]
      %v5336 = vld [vmem:[#allocation8 + $0x528] sm:$0xff]
      %v5337 = vld [vmem:[#allocation8 + $0x530] sm:$0xff]
      %v5338 = vld [vmem:[#allocation8 + $0x538] sm:$0xff]
      %v5339 = vld [vmem:[#allocation8 + $0x540] sm:$0xff]
      %v5340 = vld [vmem:[#allocation8 + $0x548] sm:$0xff]
      %v5341 = vld [vmem:[#allocation8 + $0x550] sm:$0xff]
      %v5342 = vld [vmem:[#allocation8 + $0x558] sm:$0xff]
      %v5343 = vld [vmem:[#allocation8 + $0x560] sm:$0xff]
      %v5344 = vld [vmem:[#allocation8 + $0x568] sm:$0xff]
      %v5345 = vld [vmem:[#allocation8 + $0x570] sm:$0xff]
      %v5346 = vld [vmem:[#allocation8 + $0x578] sm:$0xff]
      %v5347 = vld [vmem:[#allocation8 + $0x580] sm:$0xff]
      %v5348 = vld [vmem:[#allocation8 + $0x588] sm:$0xff]
      %v5349 = vld [vmem:[#allocation8 + $0x590] sm:$0xff]
      %v5350 = vld [vmem:[#allocation8 + $0x598] sm:$0xff]
      %v5351 = vld [vmem:[#allocation8 + $0x5a0] sm:$0xff]
      %v5352 = vld [vmem:[#allocation8 + $0x5a8] sm:$0xff]
      %v5353 = vld [vmem:[#allocation8 + $0x5b0] sm:$0xff]
      %v5354 = vld [vmem:[#allocation8 + $0x5b8] sm:$0xff]
      %v5355 = vld [vmem:[#allocation8 + $0x5c0] sm:$0xff]
      %v5356 = vld [vmem:[#allocation8 + $0x5c8] sm:$0xff]
      %v5357 = vld [vmem:[#allocation8 + $0x5d0] sm:$0xff]
      %v5358 = vld [vmem:[#allocation8 + $0x5d8] sm:$0xff]
      %v5359 = vld [vmem:[#allocation8 + $0x5e0] sm:$0xff]
      %v5360 = vld [vmem:[#allocation8 + $0x5e8] sm:$0xff]
      %v5361 = vld [vmem:[#allocation8 + $0x5f0] sm:$0xff]
      %v5362 = vld [vmem:[#allocation8 + $0x5f8] sm:$0xff]
      %v5363 = vld [vmem:[#allocation8 + $0x600] sm:$0xff]
      %v5364 = vld [vmem:[#allocation8 + $0x608] sm:$0xff]
      %v5365 = vld [vmem:[#allocation8 + $0x610] sm:$0xff]
      %v5366 = vld [vmem:[#allocation8 + $0x618] sm:$0xff]
      %v5367 = vld [vmem:[#allocation8 + $0x620] sm:$0xff]
      %v5368 = vld [vmem:[#allocation8 + $0x628] sm:$0xff]
      %v5369 = vld [vmem:[#allocation8 + $0x630] sm:$0xff]
      %v5370 = vld [vmem:[#allocation8 + $0x638] sm:$0xff]
      %v5371 = vld [vmem:[#allocation8 + $0x640] sm:$0xff]
      %v5372 = vld [vmem:[#allocation8 + $0x648] sm:$0xff]
      %v5373 = vld [vmem:[#allocation8 + $0x650] sm:$0xff]
      %v5374 = vld [vmem:[#allocation8 + $0x658] sm:$0xff]
      %v5375 = vld [vmem:[#allocation8 + $0x660] sm:$0xff]
      %v5376 = vld [vmem:[#allocation8 + $0x668] sm:$0xff]
      %v5377 = vld [vmem:[#allocation8 + $0x670] sm:$0xff]
      %v5378 = vld [vmem:[#allocation8 + $0x678] sm:$0xff]
      %v5379 = vld [vmem:[#allocation8 + $0x680] sm:$0xff]
      %v5380 = vld [vmem:[#allocation8 + $0x688] sm:$0xff]
      %v5381 = vld [vmem:[#allocation8 + $0x690] sm:$0xff]
      %v5382 = vld [vmem:[#allocation8 + $0x698] sm:$0xff]
      %v5383 = vld [vmem:[#allocation8 + $0x6a0] sm:$0xff]
      %v5384 = vld [vmem:[#allocation8 + $0x6a8] sm:$0xff]
      %v5385 = vld [vmem:[#allocation8 + $0x6b0] sm:$0xff]
      %v5386 = vld [vmem:[#allocation8 + $0x6b8] sm:$0xff]
      %v5387 = vld [vmem:[#allocation8 + $0x6c0] sm:$0xff]
      %v5388 = vld [vmem:[#allocation8 + $0x6c8] sm:$0xff]
      %v5389 = vld [vmem:[#allocation8 + $0x6d0] sm:$0xff]
      %v5390 = vld [vmem:[#allocation8 + $0x6d8] sm:$0xff]
      %v5391 = vld [vmem:[#allocation8 + $0x6e0] sm:$0xff]
      %v5392 = vld [vmem:[#allocation8 + $0x6e8] sm:$0xff]
      %v5393 = vld [vmem:[#allocation8 + $0x6f0] sm:$0xff]
      %v5394 = vld [vmem:[#allocation8 + $0x6f8] sm:$0xff]
      %v5395 = vld [vmem:[#allocation8 + $0x700] sm:$0xff]
      %v5396 = vld [vmem:[#allocation8 + $0x708] sm:$0xff]
      %v5397 = vld [vmem:[#allocation8 + $0x710] sm:$0xff]
      %v5398 = vld [vmem:[#allocation8 + $0x718] sm:$0xff]
      %v5399 = vld [vmem:[#allocation8 + $0x720] sm:$0xff]
      %v5400 = vld [vmem:[#allocation8 + $0x728] sm:$0xff]
      %v5401 = vld [vmem:[#allocation8 + $0x730] sm:$0xff]
      %v5402 = vld [vmem:[#allocation8 + $0x738] sm:$0xff]
      %v5403 = vld [vmem:[#allocation8 + $0x740] sm:$0xff]
      %v5404 = vld [vmem:[#allocation8 + $0x748] sm:$0xff]
      %v5405 = vld [vmem:[#allocation8 + $0x750] sm:$0xff]
      %v5406 = vld [vmem:[#allocation8 + $0x758] sm:$0xff]
      %v5407 = vld [vmem:[#allocation8 + $0x760] sm:$0xff]
      %v5408 = vld [vmem:[#allocation8 + $0x768] sm:$0xff]
      %v5409 = vld [vmem:[#allocation8 + $0x770] sm:$0xff]
      %v5410 = vld [vmem:[#allocation8 + $0x778] sm:$0xff]
      %v5411 = vld [vmem:[#allocation8 + $0x780] sm:$0xff]
      %v5412 = vld [vmem:[#allocation8 + $0x788] sm:$0xff]
      %v5413 = vld [vmem:[#allocation8 + $0x790] sm:$0xff]
      %v5414 = vld [vmem:[#allocation8 + $0x798] sm:$0xff]
      %v5415 = vld [vmem:[#allocation8 + $0x7a0] sm:$0xff]
      %v5416 = vld [vmem:[#allocation8 + $0x7a8] sm:$0xff]
      %v5417 = vld [vmem:[#allocation8 + $0x7b0] sm:$0xff]
      %v5418 = vld [vmem:[#allocation8 + $0x7b8] sm:$0xff]
      %v5419 = vld [vmem:[#allocation8 + $0x7c0] sm:$0xff]
      %v5420 = vld [vmem:[#allocation8 + $0x7c8] sm:$0xff]
      %v5421 = vld [vmem:[#allocation8 + $0x7d0] sm:$0xff]
      %v5422 = vld [vmem:[#allocation8 + $0x7d8] sm:$0xff]
      %v5423 = vld [vmem:[#allocation8 + $0x7e0] sm:$0xff]
      %v5424 = vld [vmem:[#allocation8 + $0x7e8] sm:$0xff]
      %v5425 = vld [vmem:[#allocation8 + $0x7f0] sm:$0xff]
      %v5426 = vld [vmem:[#allocation8 + $0x7f8] sm:$0xff]
      %v5427 = vld [vmem:[#allocation10] sm:$0xf]
      %v5429 = vperm.slane %v5427, 0
      %v5430 = vperm.slane %v5427, 1
      %v5431 = vperm.slane %v5427, 2
      %v5432 = vperm.slane %v5427, 3
      %v5693 = vunpack.c.l.b16 %v5171
      %v5694 = vunpack.c.h.b16 %v5171
      %v5695 = vunpack.c.l.b16 %v5172
      %v5696 = vunpack.c.h.b16 %v5172
      %v5697 = vunpack.c.l.b16 %v5173
      %v5698 = vunpack.c.h.b16 %v5173
      %v5699 = vunpack.c.l.b16 %v5174
      %v5700 = vunpack.c.h.b16 %v5174
      %v5701 = vunpack.c.l.b16 %v5175
      %v5702 = vunpack.c.h.b16 %v5175
      %v5703 = vunpack.c.l.b16 %v5176
      %v5704 = vunpack.c.h.b16 %v5176
      %v5705 = vunpack.c.l.b16 %v5177
      %v5706 = vunpack.c.h.b16 %v5177
      %v5707 = vunpack.c.l.b16 %v5178
      %v5708 = vunpack.c.h.b16 %v5178
      %v5709 = vunpack.c.l.b16 %v5179
      %v5710 = vunpack.c.h.b16 %v5179
      %v5711 = vunpack.c.l.b16 %v5180
      %v5712 = vunpack.c.h.b16 %v5180
      %v5713 = vunpack.c.l.b16 %v5181
      %v5714 = vunpack.c.h.b16 %v5181
      %v5715 = vunpack.c.l.b16 %v5182
      %v5716 = vunpack.c.h.b16 %v5182
      %v5717 = vunpack.c.l.b16 %v5183
      %v5718 = vunpack.c.h.b16 %v5183
      %v5719 = vunpack.c.l.b16 %v5184
      %v5720 = vunpack.c.h.b16 %v5184
      %v5721 = vunpack.c.l.b16 %v5185
      %v5722 = vunpack.c.h.b16 %v5185
      %v5723 = vunpack.c.l.b16 %v5186
      %v5724 = vunpack.c.h.b16 %v5186
      %v5725 = vunpack.c.l.b16 %v5187
      %v5726 = vunpack.c.h.b16 %v5187
      %v5727 = vunpack.c.l.b16 %v5188
      %v5728 = vunpack.c.h.b16 %v5188
      %v5729 = vunpack.c.l.b16 %v5189
      %v5730 = vunpack.c.h.b16 %v5189
      %v5731 = vunpack.c.l.b16 %v5190
      %v5732 = vunpack.c.h.b16 %v5190
      %v5733 = vunpack.c.l.b16 %v5191
      %v5734 = vunpack.c.h.b16 %v5191
      %v5735 = vunpack.c.l.b16 %v5192
      %v5736 = vunpack.c.h.b16 %v5192
      %v5737 = vunpack.c.l.b16 %v5193
      %v5738 = vunpack.c.h.b16 %v5193
      %v5739 = vunpack.c.l.b16 %v5194
      %v5740 = vunpack.c.h.b16 %v5194
      %v5741 = vunpack.c.l.b16 %v5195
      %v5742 = vunpack.c.h.b16 %v5195
      %v5743 = vunpack.c.l.b16 %v5196
      %v5744 = vunpack.c.h.b16 %v5196
      %v5745 = vunpack.c.l.b16 %v5197
      %v5746 = vunpack.c.h.b16 %v5197
      %v5747 = vunpack.c.l.b16 %v5198
      %v5748 = vunpack.c.h.b16 %v5198
      %v5749 = vunpack.c.l.b16 %v5199
      %v5750 = vunpack.c.h.b16 %v5199
      %v5751 = vunpack.c.l.b16 %v5200
      %v5752 = vunpack.c.h.b16 %v5200
      %v5753 = vunpack.c.l.b16 %v5201
      %v5754 = vunpack.c.h.b16 %v5201
      %v5755 = vunpack.c.l.b16 %v5202
      %v5756 = vunpack.c.h.b16 %v5202
      %v5757 = vunpack.c.l.b16 %v5203
      %v5758 = vunpack.c.h.b16 %v5203
      %v5759 = vunpack.c.l.b16 %v5204
      %v5760 = vunpack.c.h.b16 %v5204
      %v5761 = vunpack.c.l.b16 %v5205
      %v5762 = vunpack.c.h.b16 %v5205
      %v5763 = vunpack.c.l.b16 %v5206
      %v5764 = vunpack.c.h.b16 %v5206
      %v5765 = vunpack.c.l.b16 %v5207
      %v5766 = vunpack.c.h.b16 %v5207
      %v5767 = vunpack.c.l.b16 %v5208
      %v5768 = vunpack.c.h.b16 %v5208
      %v5769 = vunpack.c.l.b16 %v5209
      %v5770 = vunpack.c.h.b16 %v5209
      %v5771 = vunpack.c.l.b16 %v5210
      %v5772 = vunpack.c.h.b16 %v5210
      %v5773 = vunpack.c.l.b16 %v5211
      %v5774 = vunpack.c.h.b16 %v5211
      %v5775 = vunpack.c.l.b16 %v5212
      %v5776 = vunpack.c.h.b16 %v5212
      %v5777 = vunpack.c.l.b16 %v5213
      %v5778 = vunpack.c.h.b16 %v5213
      %v5779 = vunpack.c.l.b16 %v5214
      %v5780 = vunpack.c.h.b16 %v5214
      %v5781 = vunpack.c.l.b16 %v5215
      %v5782 = vunpack.c.h.b16 %v5215
      %v5783 = vunpack.c.l.b16 %v5216
      %v5784 = vunpack.c.h.b16 %v5216
      %v5785 = vunpack.c.l.b16 %v5217
      %v5786 = vunpack.c.h.b16 %v5217
      %v5787 = vunpack.c.l.b16 %v5218
      %v5788 = vunpack.c.h.b16 %v5218
      %v5789 = vunpack.c.l.b16 %v5219
      %v5790 = vunpack.c.h.b16 %v5219
      %v5791 = vunpack.c.l.b16 %v5220
      %v5792 = vunpack.c.h.b16 %v5220
      %v5793 = vunpack.c.l.b16 %v5221
      %v5794 = vunpack.c.h.b16 %v5221
      %v5795 = vunpack.c.l.b16 %v5222
      %v5796 = vunpack.c.h.b16 %v5222
      %v5797 = vunpack.c.l.b16 %v5223
      %v5798 = vunpack.c.h.b16 %v5223
      %v5799 = vunpack.c.l.b16 %v5224
      %v5800 = vunpack.c.h.b16 %v5224
      %v5801 = vunpack.c.l.b16 %v5225
      %v5802 = vunpack.c.h.b16 %v5225
      %v5803 = vunpack.c.l.b16 %v5226
      %v5804 = vunpack.c.h.b16 %v5226
      %v5805 = vunpack.c.l.b16 %v5227
      %v5806 = vunpack.c.h.b16 %v5227
      %v5807 = vunpack.c.l.b16 %v5228
      %v5808 = vunpack.c.h.b16 %v5228
      %v5809 = vunpack.c.l.b16 %v5229
      %v5810 = vunpack.c.h.b16 %v5229
      %v5811 = vunpack.c.l.b16 %v5230
      %v5812 = vunpack.c.h.b16 %v5230
      %v5813 = vunpack.c.l.b16 %v5231
      %v5814 = vunpack.c.h.b16 %v5231
      %v5815 = vunpack.c.l.b16 %v5232
      %v5816 = vunpack.c.h.b16 %v5232
      %v5817 = vunpack.c.l.b16 %v5233
      %v5818 = vunpack.c.h.b16 %v5233
      %v5819 = vunpack.c.l.b16 %v5234
      %v5820 = vunpack.c.h.b16 %v5234
      %v5821 = vunpack.c.l.b16 %v5235
      %v5822 = vunpack.c.h.b16 %v5235
      %v5823 = vunpack.c.l.b16 %v5236
      %v5824 = vunpack.c.h.b16 %v5236
      %v5825 = vunpack.c.l.b16 %v5237
      %v5826 = vunpack.c.h.b16 %v5237
      %v5827 = vunpack.c.l.b16 %v5238
      %v5828 = vunpack.c.h.b16 %v5238
      %v5829 = vunpack.c.l.b16 %v5239
      %v5830 = vunpack.c.h.b16 %v5239
      %v5831 = vunpack.c.l.b16 %v5240
      %v5832 = vunpack.c.h.b16 %v5240
      %v5833 = vunpack.c.l.b16 %v5241
      %v5834 = vunpack.c.h.b16 %v5241
      %v5835 = vunpack.c.l.b16 %v5242
      %v5836 = vunpack.c.h.b16 %v5242
      %v5837 = vunpack.c.l.b16 %v5243
      %v5838 = vunpack.c.h.b16 %v5243
      %v5839 = vunpack.c.l.b16 %v5244
      %v5840 = vunpack.c.h.b16 %v5244
      %v5841 = vunpack.c.l.b16 %v5245
      %v5842 = vunpack.c.h.b16 %v5245
      %v5843 = vunpack.c.l.b16 %v5246
      %v5844 = vunpack.c.h.b16 %v5246
      %v5845 = vunpack.c.l.b16 %v5247
      %v5846 = vunpack.c.h.b16 %v5247
      %v5847 = vunpack.c.l.b16 %v5248
      %v5848 = vunpack.c.h.b16 %v5248
      %v5849 = vunpack.c.l.b16 %v5249
      %v5850 = vunpack.c.h.b16 %v5249
      %v5851 = vunpack.c.l.b16 %v5250
      %v5852 = vunpack.c.h.b16 %v5250
      %v5853 = vunpack.c.l.b16 %v5251
      %v5854 = vunpack.c.h.b16 %v5251
      %v5855 = vunpack.c.l.b16 %v5252
      %v5856 = vunpack.c.h.b16 %v5252
      %v5857 = vunpack.c.l.b16 %v5253
      %v5858 = vunpack.c.h.b16 %v5253
      %v5859 = vunpack.c.l.b16 %v5254
      %v5860 = vunpack.c.h.b16 %v5254
      %v5861 = vunpack.c.l.b16 %v5255
      %v5862 = vunpack.c.h.b16 %v5255
      %v5863 = vunpack.c.l.b16 %v5256
      %v5864 = vunpack.c.h.b16 %v5256
      %v5865 = vunpack.c.l.b16 %v5257
      %v5866 = vunpack.c.h.b16 %v5257
      %v5867 = vunpack.c.l.b16 %v5258
      %v5868 = vunpack.c.h.b16 %v5258
      %v5869 = vunpack.c.l.b16 %v5259
      %v5870 = vunpack.c.h.b16 %v5259
      %v5871 = vunpack.c.l.b16 %v5260
      %v5872 = vunpack.c.h.b16 %v5260
      %v5873 = vunpack.c.l.b16 %v5261
      %v5874 = vunpack.c.h.b16 %v5261
      %v5875 = vunpack.c.l.b16 %v5262
      %v5876 = vunpack.c.h.b16 %v5262
      %v5877 = vunpack.c.l.b16 %v5263
      %v5878 = vunpack.c.h.b16 %v5263
      %v5879 = vunpack.c.l.b16 %v5264
      %v5880 = vunpack.c.h.b16 %v5264
      %v5881 = vunpack.c.l.b16 %v5265
      %v5882 = vunpack.c.h.b16 %v5265
      %v5883 = vunpack.c.l.b16 %v5266
      %v5884 = vunpack.c.h.b16 %v5266
      %v5885 = vunpack.c.l.b16 %v5267
      %v5886 = vunpack.c.h.b16 %v5267
      %v5887 = vunpack.c.l.b16 %v5268
      %v5888 = vunpack.c.h.b16 %v5268
      %v5889 = vunpack.c.l.b16 %v5269
      %v5890 = vunpack.c.h.b16 %v5269
      %v5891 = vunpack.c.l.b16 %v5270
      %v5892 = vunpack.c.h.b16 %v5270
      %v5893 = vunpack.c.l.b16 %v5271
      %v5894 = vunpack.c.h.b16 %v5271
      %v5895 = vunpack.c.l.b16 %v5272
      %v5896 = vunpack.c.h.b16 %v5272
      %v5897 = vunpack.c.l.b16 %v5273
      %v5898 = vunpack.c.h.b16 %v5273
      %v5899 = vunpack.c.l.b16 %v5274
      %v5900 = vunpack.c.h.b16 %v5274
      %v5901 = vunpack.c.l.b16 %v5275
      %v5902 = vunpack.c.h.b16 %v5275
      %v5903 = vunpack.c.l.b16 %v5276
      %v5904 = vunpack.c.h.b16 %v5276
      %v5905 = vunpack.c.l.b16 %v5277
      %v5906 = vunpack.c.h.b16 %v5277
      %v5907 = vunpack.c.l.b16 %v5278
      %v5908 = vunpack.c.h.b16 %v5278
      %v5909 = vunpack.c.l.b16 %v5279
      %v5910 = vunpack.c.h.b16 %v5279
      %v5911 = vunpack.c.l.b16 %v5280
      %v5912 = vunpack.c.h.b16 %v5280
      %v5913 = vunpack.c.l.b16 %v5281
      %v5914 = vunpack.c.h.b16 %v5281
      %v5915 = vunpack.c.l.b16 %v5282
      %v5916 = vunpack.c.h.b16 %v5282
      %v5917 = vunpack.c.l.b16 %v5283
      %v5918 = vunpack.c.h.b16 %v5283
      %v5919 = vunpack.c.l.b16 %v5284
      %v5920 = vunpack.c.h.b16 %v5284
      %v5921 = vunpack.c.l.b16 %v5285
      %v5922 = vunpack.c.h.b16 %v5285
      %v5923 = vunpack.c.l.b16 %v5286
      %v5924 = vunpack.c.h.b16 %v5286
      %v5925 = vunpack.c.l.b16 %v5287
      %v5926 = vunpack.c.h.b16 %v5287
      %v5927 = vunpack.c.l.b16 %v5288
      %v5928 = vunpack.c.h.b16 %v5288
      %v5929 = vunpack.c.l.b16 %v5289
      %v5930 = vunpack.c.h.b16 %v5289
      %v5931 = vunpack.c.l.b16 %v5290
      %v5932 = vunpack.c.h.b16 %v5290
      %v5933 = vunpack.c.l.b16 %v5291
      %v5934 = vunpack.c.h.b16 %v5291
      %v5935 = vunpack.c.l.b16 %v5292
      %v5936 = vunpack.c.h.b16 %v5292
      %v5937 = vunpack.c.l.b16 %v5293
      %v5938 = vunpack.c.h.b16 %v5293
      %v5939 = vunpack.c.l.b16 %v5294
      %v5940 = vunpack.c.h.b16 %v5294
      %v5941 = vunpack.c.l.b16 %v5295
      %v5942 = vunpack.c.h.b16 %v5295
      %v5943 = vunpack.c.l.b16 %v5296
      %v5944 = vunpack.c.h.b16 %v5296
      %v5945 = vunpack.c.l.b16 %v5297
      %v5946 = vunpack.c.h.b16 %v5297
      %v5947 = vunpack.c.l.b16 %v5298
      %v5948 = vunpack.c.h.b16 %v5298
      %v5949 = vunpack.c.l.b16 %v5299
      %v5950 = vunpack.c.h.b16 %v5299
      %v5951 = vunpack.c.l.b16 %v5300
      %v5952 = vunpack.c.h.b16 %v5300
      %v5953 = vunpack.c.l.b16 %v5301
      %v5954 = vunpack.c.h.b16 %v5301
      %v5955 = vunpack.c.l.b16 %v5302
      %v5956 = vunpack.c.h.b16 %v5302
      %v5957 = vunpack.c.l.b16 %v5303
      %v5958 = vunpack.c.h.b16 %v5303
      %v5959 = vunpack.c.l.b16 %v5304
      %v5960 = vunpack.c.h.b16 %v5304
      %v5961 = vunpack.c.l.b16 %v5305
      %v5962 = vunpack.c.h.b16 %v5305
      %v5963 = vunpack.c.l.b16 %v5306
      %v5964 = vunpack.c.h.b16 %v5306
      %v5965 = vunpack.c.l.b16 %v5307
      %v5966 = vunpack.c.h.b16 %v5307
      %v5967 = vunpack.c.l.b16 %v5308
      %v5968 = vunpack.c.h.b16 %v5308
      %v5969 = vunpack.c.l.b16 %v5309
      %v5970 = vunpack.c.h.b16 %v5309
      %v5971 = vunpack.c.l.b16 %v5310
      %v5972 = vunpack.c.h.b16 %v5310
      %v5973 = vunpack.c.l.b16 %v5311
      %v5974 = vunpack.c.h.b16 %v5311
      %v5975 = vunpack.c.l.b16 %v5312
      %v5976 = vunpack.c.h.b16 %v5312
      %v5977 = vunpack.c.l.b16 %v5313
      %v5978 = vunpack.c.h.b16 %v5313
      %v5979 = vunpack.c.l.b16 %v5314
      %v5980 = vunpack.c.h.b16 %v5314
      %v5981 = vunpack.c.l.b16 %v5315
      %v5982 = vunpack.c.h.b16 %v5315
      %v5983 = vunpack.c.l.b16 %v5316
      %v5984 = vunpack.c.h.b16 %v5316
      %v5985 = vunpack.c.l.b16 %v5317
      %v5986 = vunpack.c.h.b16 %v5317
      %v5987 = vunpack.c.l.b16 %v5318
      %v5988 = vunpack.c.h.b16 %v5318
      %v5989 = vunpack.c.l.b16 %v5319
      %v5990 = vunpack.c.h.b16 %v5319
      %v5991 = vunpack.c.l.b16 %v5320
      %v5992 = vunpack.c.h.b16 %v5320
      %v5993 = vunpack.c.l.b16 %v5321
      %v5994 = vunpack.c.h.b16 %v5321
      %v5995 = vunpack.c.l.b16 %v5322
      %v5996 = vunpack.c.h.b16 %v5322
      %v5997 = vunpack.c.l.b16 %v5323
      %v5998 = vunpack.c.h.b16 %v5323
      %v5999 = vunpack.c.l.b16 %v5324
      %v6000 = vunpack.c.h.b16 %v5324
      %v6001 = vunpack.c.l.b16 %v5325
      %v6002 = vunpack.c.h.b16 %v5325
      %v6003 = vunpack.c.l.b16 %v5326
      %v6004 = vunpack.c.h.b16 %v5326
      %v6005 = vunpack.c.l.b16 %v5327
      %v6006 = vunpack.c.h.b16 %v5327
      %v6007 = vunpack.c.l.b16 %v5328
      %v6008 = vunpack.c.h.b16 %v5328
      %v6009 = vunpack.c.l.b16 %v5329
      %v6010 = vunpack.c.h.b16 %v5329
      %v6011 = vunpack.c.l.b16 %v5330
      %v6012 = vunpack.c.h.b16 %v5330
      %v6013 = vunpack.c.l.b16 %v5331
      %v6014 = vunpack.c.h.b16 %v5331
      %v6015 = vunpack.c.l.b16 %v5332
      %v6016 = vunpack.c.h.b16 %v5332
      %v6017 = vunpack.c.l.b16 %v5333
      %v6018 = vunpack.c.h.b16 %v5333
      %v6019 = vunpack.c.l.b16 %v5334
      %v6020 = vunpack.c.h.b16 %v5334
      %v6021 = vunpack.c.l.b16 %v5335
      %v6022 = vunpack.c.h.b16 %v5335
      %v6023 = vunpack.c.l.b16 %v5336
      %v6024 = vunpack.c.h.b16 %v5336
      %v6025 = vunpack.c.l.b16 %v5337
      %v6026 = vunpack.c.h.b16 %v5337
      %v6027 = vunpack.c.l.b16 %v5338
      %v6028 = vunpack.c.h.b16 %v5338
      %v6029 = vunpack.c.l.b16 %v5339
      %v6030 = vunpack.c.h.b16 %v5339
      %v6031 = vunpack.c.l.b16 %v5340
      %v6032 = vunpack.c.h.b16 %v5340
      %v6033 = vunpack.c.l.b16 %v5341
      %v6034 = vunpack.c.h.b16 %v5341
      %v6035 = vunpack.c.l.b16 %v5342
      %v6036 = vunpack.c.h.b16 %v5342
      %v6037 = vunpack.c.l.b16 %v5343
      %v6038 = vunpack.c.h.b16 %v5343
      %v6039 = vunpack.c.l.b16 %v5344
      %v6040 = vunpack.c.h.b16 %v5344
      %v6041 = vunpack.c.l.b16 %v5345
      %v6042 = vunpack.c.h.b16 %v5345
      %v6043 = vunpack.c.l.b16 %v5346
      %v6044 = vunpack.c.h.b16 %v5346
      %v6045 = vunpack.c.l.b16 %v5347
      %v6046 = vunpack.c.h.b16 %v5347
      %v6047 = vunpack.c.l.b16 %v5348
      %v6048 = vunpack.c.h.b16 %v5348
      %v6049 = vunpack.c.l.b16 %v5349
      %v6050 = vunpack.c.h.b16 %v5349
      %v6051 = vunpack.c.l.b16 %v5350
      %v6052 = vunpack.c.h.b16 %v5350
      %v6053 = vunpack.c.l.b16 %v5351
      %v6054 = vunpack.c.h.b16 %v5351
      %v6055 = vunpack.c.l.b16 %v5352
      %v6056 = vunpack.c.h.b16 %v5352
      %v6057 = vunpack.c.l.b16 %v5353
      %v6058 = vunpack.c.h.b16 %v5353
      %v6059 = vunpack.c.l.b16 %v5354
      %v6060 = vunpack.c.h.b16 %v5354
      %v6061 = vunpack.c.l.b16 %v5355
      %v6062 = vunpack.c.h.b16 %v5355
      %v6063 = vunpack.c.l.b16 %v5356
      %v6064 = vunpack.c.h.b16 %v5356
      %v6065 = vunpack.c.l.b16 %v5357
      %v6066 = vunpack.c.h.b16 %v5357
      %v6067 = vunpack.c.l.b16 %v5358
      %v6068 = vunpack.c.h.b16 %v5358
      %v6069 = vunpack.c.l.b16 %v5359
      %v6070 = vunpack.c.h.b16 %v5359
      %v6071 = vunpack.c.l.b16 %v5360
      %v6072 = vunpack.c.h.b16 %v5360
      %v6073 = vunpack.c.l.b16 %v5361
      %v6074 = vunpack.c.h.b16 %v5361
      %v6075 = vunpack.c.l.b16 %v5362
      %v6076 = vunpack.c.h.b16 %v5362
      %v6077 = vunpack.c.l.b16 %v5363
      %v6078 = vunpack.c.h.b16 %v5363
      %v6079 = vunpack.c.l.b16 %v5364
      %v6080 = vunpack.c.h.b16 %v5364
      %v6081 = vunpack.c.l.b16 %v5365
      %v6082 = vunpack.c.h.b16 %v5365
      %v6083 = vunpack.c.l.b16 %v5366
      %v6084 = vunpack.c.h.b16 %v5366
      %v6085 = vunpack.c.l.b16 %v5367
      %v6086 = vunpack.c.h.b16 %v5367
      %v6087 = vunpack.c.l.b16 %v5368
      %v6088 = vunpack.c.h.b16 %v5368
      %v6089 = vunpack.c.l.b16 %v5369
      %v6090 = vunpack.c.h.b16 %v5369
      %v6091 = vunpack.c.l.b16 %v5370
      %v6092 = vunpack.c.h.b16 %v5370
      %v6093 = vunpack.c.l.b16 %v5371
      %v6094 = vunpack.c.h.b16 %v5371
      %v6095 = vunpack.c.l.b16 %v5372
      %v6096 = vunpack.c.h.b16 %v5372
      %v6097 = vunpack.c.l.b16 %v5373
      %v6098 = vunpack.c.h.b16 %v5373
      %v6099 = vunpack.c.l.b16 %v5374
      %v6100 = vunpack.c.h.b16 %v5374
      %v6101 = vunpack.c.l.b16 %v5375
      %v6102 = vunpack.c.h.b16 %v5375
      %v6103 = vunpack.c.l.b16 %v5376
      %v6104 = vunpack.c.h.b16 %v5376
      %v6105 = vunpack.c.l.b16 %v5377
      %v6106 = vunpack.c.h.b16 %v5377
      %v6107 = vunpack.c.l.b16 %v5378
      %v6108 = vunpack.c.h.b16 %v5378
      %v6109 = vunpack.c.l.b16 %v5379
      %v6110 = vunpack.c.h.b16 %v5379
      %v6111 = vunpack.c.l.b16 %v5380
      %v6112 = vunpack.c.h.b16 %v5380
      %v6113 = vunpack.c.l.b16 %v5381
      %v6114 = vunpack.c.h.b16 %v5381
      %v6115 = vunpack.c.l.b16 %v5382
      %v6116 = vunpack.c.h.b16 %v5382
      %v6117 = vunpack.c.l.b16 %v5383
      %v6118 = vunpack.c.h.b16 %v5383
      %v6119 = vunpack.c.l.b16 %v5384
      %v6120 = vunpack.c.h.b16 %v5384
      %v6121 = vunpack.c.l.b16 %v5385
      %v6122 = vunpack.c.h.b16 %v5385
      %v6123 = vunpack.c.l.b16 %v5386
      %v6124 = vunpack.c.h.b16 %v5386
      %v6125 = vunpack.c.l.b16 %v5387
      %v6126 = vunpack.c.h.b16 %v5387
      %v6127 = vunpack.c.l.b16 %v5388
      %v6128 = vunpack.c.h.b16 %v5388
      %v6129 = vunpack.c.l.b16 %v5389
      %v6130 = vunpack.c.h.b16 %v5389
      %v6131 = vunpack.c.l.b16 %v5390
      %v6132 = vunpack.c.h.b16 %v5390
      %v6133 = vunpack.c.l.b16 %v5391
      %v6134 = vunpack.c.h.b16 %v5391
      %v6135 = vunpack.c.l.b16 %v5392
      %v6136 = vunpack.c.h.b16 %v5392
      %v6137 = vunpack.c.l.b16 %v5393
      %v6138 = vunpack.c.h.b16 %v5393
      %v6139 = vunpack.c.l.b16 %v5394
      %v6140 = vunpack.c.h.b16 %v5394
      %v6141 = vunpack.c.l.b16 %v5395
      %v6142 = vunpack.c.h.b16 %v5395
      %v6143 = vunpack.c.l.b16 %v5396
      %v6144 = vunpack.c.h.b16 %v5396
      %v6145 = vunpack.c.l.b16 %v5397
      %v6146 = vunpack.c.h.b16 %v5397
      %v6147 = vunpack.c.l.b16 %v5398
      %v6148 = vunpack.c.h.b16 %v5398
      %v6149 = vunpack.c.l.b16 %v5399
      %v6150 = vunpack.c.h.b16 %v5399
      %v6151 = vunpack.c.l.b16 %v5400
      %v6152 = vunpack.c.h.b16 %v5400
      %v6153 = vunpack.c.l.b16 %v5401
      %v6154 = vunpack.c.h.b16 %v5401
      %v6155 = vunpack.c.l.b16 %v5402
      %v6156 = vunpack.c.h.b16 %v5402
      %v6157 = vunpack.c.l.b16 %v5403
      %v6158 = vunpack.c.h.b16 %v5403
      %v6159 = vunpack.c.l.b16 %v5404
      %v6160 = vunpack.c.h.b16 %v5404
      %v6161 = vunpack.c.l.b16 %v5405
      %v6162 = vunpack.c.h.b16 %v5405
      %v6163 = vunpack.c.l.b16 %v5406
      %v6164 = vunpack.c.h.b16 %v5406
      %v6165 = vunpack.c.l.b16 %v5407
      %v6166 = vunpack.c.h.b16 %v5407
      %v6167 = vunpack.c.l.b16 %v5408
      %v6168 = vunpack.c.h.b16 %v5408
      %v6169 = vunpack.c.l.b16 %v5409
      %v6170 = vunpack.c.h.b16 %v5409
      %v6171 = vunpack.c.l.b16 %v5410
      %v6172 = vunpack.c.h.b16 %v5410
      %v6173 = vunpack.c.l.b16 %v5411
      %v6174 = vunpack.c.h.b16 %v5411
      %v6175 = vunpack.c.l.b16 %v5412
      %v6176 = vunpack.c.h.b16 %v5412
      %v6177 = vunpack.c.l.b16 %v5413
      %v6178 = vunpack.c.h.b16 %v5413
      %v6179 = vunpack.c.l.b16 %v5414
      %v6180 = vunpack.c.h.b16 %v5414
      %v6181 = vunpack.c.l.b16 %v5415
      %v6182 = vunpack.c.h.b16 %v5415
      %v6183 = vunpack.c.l.b16 %v5416
      %v6184 = vunpack.c.h.b16 %v5416
      %v6185 = vunpack.c.l.b16 %v5417
      %v6186 = vunpack.c.h.b16 %v5417
      %v6187 = vunpack.c.l.b16 %v5418
      %v6188 = vunpack.c.h.b16 %v5418
      %v6189 = vunpack.c.l.b16 %v5419
      %v6190 = vunpack.c.h.b16 %v5419
      %v6191 = vunpack.c.l.b16 %v5420
      %v6192 = vunpack.c.h.b16 %v5420
      %v6193 = vunpack.c.l.b16 %v5421
      %v6194 = vunpack.c.h.b16 %v5421
      %v6195 = vunpack.c.l.b16 %v5422
      %v6196 = vunpack.c.h.b16 %v5422
      %v6197 = vunpack.c.l.b16 %v5423
      %v6198 = vunpack.c.h.b16 %v5423
      %v6199 = vunpack.c.l.b16 %v5424
      %v6200 = vunpack.c.h.b16 %v5424
      %v6201 = vunpack.c.l.b16 %v5425
      %v6202 = vunpack.c.h.b16 %v5425
      %v6203 = vunpack.c.l.b16 %v5426
      %v6204 = vunpack.c.h.b16 %v5426
      %v6205 = vpack.c.b16 %v5697, %v5693
      %v6206 = vpack.c.b16 %v5698, %v5694
      %v6207 = vpack.c.b16 %v5699, %v5695
      %v6208 = vpack.c.b16 %v5700, %v5696
      %v6209 = vpack.c.b16 %v5705, %v5701
      %v6210 = vpack.c.b16 %v5706, %v5702
      %v6211 = vpack.c.b16 %v5707, %v5703
      %v6212 = vpack.c.b16 %v5708, %v5704
      %v6213 = vpack.c.b16 %v5713, %v5709
      %v6214 = vpack.c.b16 %v5714, %v5710
      %v6215 = vpack.c.b16 %v5715, %v5711
      %v6216 = vpack.c.b16 %v5716, %v5712
      %v6217 = vpack.c.b16 %v5721, %v5717
      %v6218 = vpack.c.b16 %v5722, %v5718
      %v6219 = vpack.c.b16 %v5723, %v5719
      %v6220 = vpack.c.b16 %v5724, %v5720
      %v6221 = vpack.c.b16 %v5729, %v5725
      %v6222 = vpack.c.b16 %v5730, %v5726
      %v6223 = vpack.c.b16 %v5731, %v5727
      %v6224 = vpack.c.b16 %v5732, %v5728
      %v6225 = vpack.c.b16 %v5737, %v5733
      %v6226 = vpack.c.b16 %v5738, %v5734
      %v6227 = vpack.c.b16 %v5739, %v5735
      %v6228 = vpack.c.b16 %v5740, %v5736
      %v6229 = vpack.c.b16 %v5745, %v5741
      %v6230 = vpack.c.b16 %v5746, %v5742
      %v6231 = vpack.c.b16 %v5747, %v5743
      %v6232 = vpack.c.b16 %v5748, %v5744
      %v6233 = vpack.c.b16 %v5753, %v5749
      %v6234 = vpack.c.b16 %v5754, %v5750
      %v6235 = vpack.c.b16 %v5755, %v5751
      %v6236 = vpack.c.b16 %v5756, %v5752
      %v6237 = vpack.c.b16 %v5761, %v5757
      %v6238 = vpack.c.b16 %v5762, %v5758
      %v6239 = vpack.c.b16 %v5763, %v5759
      %v6240 = vpack.c.b16 %v5764, %v5760
      %v6241 = vpack.c.b16 %v5769, %v5765
      %v6242 = vpack.c.b16 %v5770, %v5766
      %v6243 = vpack.c.b16 %v5771, %v5767
      %v6244 = vpack.c.b16 %v5772, %v5768
      %v6245 = vpack.c.b16 %v5777, %v5773
      %v6246 = vpack.c.b16 %v5778, %v5774
      %v6247 = vpack.c.b16 %v5779, %v5775
      %v6248 = vpack.c.b16 %v5780, %v5776
      %v6249 = vpack.c.b16 %v5785, %v5781
      %v6250 = vpack.c.b16 %v5786, %v5782
      %v6251 = vpack.c.b16 %v5787, %v5783
      %v6252 = vpack.c.b16 %v5788, %v5784
      %v6253 = vpack.c.b16 %v5793, %v5789
      %v6254 = vpack.c.b16 %v5794, %v5790
      %v6255 = vpack.c.b16 %v5795, %v5791
      %v6256 = vpack.c.b16 %v5796, %v5792
      %v6257 = vpack.c.b16 %v5801, %v5797
      %v6258 = vpack.c.b16 %v5802, %v5798
      %v6259 = vpack.c.b16 %v5803, %v5799
      %v6260 = vpack.c.b16 %v5804, %v5800
      %v6261 = vpack.c.b16 %v5809, %v5805
      %v6262 = vpack.c.b16 %v5810, %v5806
      %v6263 = vpack.c.b16 %v5811, %v5807
      %v6264 = vpack.c.b16 %v5812, %v5808
      %v6265 = vpack.c.b16 %v5817, %v5813
      %v6266 = vpack.c.b16 %v5818, %v5814
      %v6267 = vpack.c.b16 %v5819, %v5815
      %v6268 = vpack.c.b16 %v5820, %v5816
      %v6269 = vpack.c.b16 %v5825, %v5821
      %v6270 = vpack.c.b16 %v5826, %v5822
      %v6271 = vpack.c.b16 %v5827, %v5823
      %v6272 = vpack.c.b16 %v5828, %v5824
      %v6273 = vpack.c.b16 %v5833, %v5829
      %v6274 = vpack.c.b16 %v5834, %v5830
      %v6275 = vpack.c.b16 %v5835, %v5831
      %v6276 = vpack.c.b16 %v5836, %v5832
      %v6277 = vpack.c.b16 %v5841, %v5837
      %v6278 = vpack.c.b16 %v5842, %v5838
      %v6279 = vpack.c.b16 %v5843, %v5839
      %v6280 = vpack.c.b16 %v5844, %v5840
      %v6281 = vpack.c.b16 %v5849, %v5845
      %v6282 = vpack.c.b16 %v5850, %v5846
      %v6283 = vpack.c.b16 %v5851, %v5847
      %v6284 = vpack.c.b16 %v5852, %v5848
      %v6285 = vpack.c.b16 %v5857, %v5853
      %v6286 = vpack.c.b16 %v5858, %v5854
      %v6287 = vpack.c.b16 %v5859, %v5855
      %v6288 = vpack.c.b16 %v5860, %v5856
      %v6289 = vpack.c.b16 %v5865, %v5861
      %v6290 = vpack.c.b16 %v5866, %v5862
      %v6291 = vpack.c.b16 %v5867, %v5863
      %v6292 = vpack.c.b16 %v5868, %v5864
      %v6293 = vpack.c.b16 %v5873, %v5869
      %v6294 = vpack.c.b16 %v5874, %v5870
      %v6295 = vpack.c.b16 %v5875, %v5871
      %v6296 = vpack.c.b16 %v5876, %v5872
      %v6297 = vpack.c.b16 %v5881, %v5877
      %v6298 = vpack.c.b16 %v5882, %v5878
      %v6299 = vpack.c.b16 %v5883, %v5879
      %v6300 = vpack.c.b16 %v5884, %v5880
      %v6301 = vpack.c.b16 %v5889, %v5885
      %v6302 = vpack.c.b16 %v5890, %v5886
      %v6303 = vpack.c.b16 %v5891, %v5887
      %v6304 = vpack.c.b16 %v5892, %v5888
      %v6305 = vpack.c.b16 %v5897, %v5893
      %v6306 = vpack.c.b16 %v5898, %v5894
      %v6307 = vpack.c.b16 %v5899, %v5895
      %v6308 = vpack.c.b16 %v5900, %v5896
      %v6309 = vpack.c.b16 %v5905, %v5901
      %v6310 = vpack.c.b16 %v5906, %v5902
      %v6311 = vpack.c.b16 %v5907, %v5903
      %v6312 = vpack.c.b16 %v5908, %v5904
      %v6313 = vpack.c.b16 %v5913, %v5909
      %v6314 = vpack.c.b16 %v5914, %v5910
      %v6315 = vpack.c.b16 %v5915, %v5911
      %v6316 = vpack.c.b16 %v5916, %v5912
      %v6317 = vpack.c.b16 %v5921, %v5917
      %v6318 = vpack.c.b16 %v5922, %v5918
      %v6319 = vpack.c.b16 %v5923, %v5919
      %v6320 = vpack.c.b16 %v5924, %v5920
      %v6321 = vpack.c.b16 %v5929, %v5925
      %v6322 = vpack.c.b16 %v5930, %v5926
      %v6323 = vpack.c.b16 %v5931, %v5927
      %v6324 = vpack.c.b16 %v5932, %v5928
      %v6325 = vpack.c.b16 %v5937, %v5933
      %v6326 = vpack.c.b16 %v5938, %v5934
      %v6327 = vpack.c.b16 %v5939, %v5935
      %v6328 = vpack.c.b16 %v5940, %v5936
      %v6329 = vpack.c.b16 %v5945, %v5941
      %v6330 = vpack.c.b16 %v5946, %v5942
      %v6331 = vpack.c.b16 %v5947, %v5943
      %v6332 = vpack.c.b16 %v5948, %v5944
      %v6333 = vpack.c.b16 %v5953, %v5949
      %v6334 = vpack.c.b16 %v5954, %v5950
      %v6335 = vpack.c.b16 %v5955, %v5951
      %v6336 = vpack.c.b16 %v5956, %v5952
      %v6337 = vpack.c.b16 %v5961, %v5957
      %v6338 = vpack.c.b16 %v5962, %v5958
      %v6339 = vpack.c.b16 %v5963, %v5959
      %v6340 = vpack.c.b16 %v5964, %v5960
      %v6341 = vpack.c.b16 %v5969, %v5965
      %v6342 = vpack.c.b16 %v5970, %v5966
      %v6343 = vpack.c.b16 %v5971, %v5967
      %v6344 = vpack.c.b16 %v5972, %v5968
      %v6345 = vpack.c.b16 %v5977, %v5973
      %v6346 = vpack.c.b16 %v5978, %v5974
      %v6347 = vpack.c.b16 %v5979, %v5975
      %v6348 = vpack.c.b16 %v5980, %v5976
      %v6349 = vpack.c.b16 %v5985, %v5981
      %v6350 = vpack.c.b16 %v5986, %v5982
      %v6351 = vpack.c.b16 %v5987, %v5983
      %v6352 = vpack.c.b16 %v5988, %v5984
      %v6353 = vpack.c.b16 %v5993, %v5989
      %v6354 = vpack.c.b16 %v5994, %v5990
      %v6355 = vpack.c.b16 %v5995, %v5991
      %v6356 = vpack.c.b16 %v5996, %v5992
      %v6357 = vpack.c.b16 %v6001, %v5997
      %v6358 = vpack.c.b16 %v6002, %v5998
      %v6359 = vpack.c.b16 %v6003, %v5999
      %v6360 = vpack.c.b16 %v6004, %v6000
      %v6361 = vpack.c.b16 %v6009, %v6005
      %v6362 = vpack.c.b16 %v6010, %v6006
      %v6363 = vpack.c.b16 %v6011, %v6007
      %v6364 = vpack.c.b16 %v6012, %v6008
      %v6365 = vpack.c.b16 %v6017, %v6013
      %v6366 = vpack.c.b16 %v6018, %v6014
      %v6367 = vpack.c.b16 %v6019, %v6015
      %v6368 = vpack.c.b16 %v6020, %v6016
      %v6369 = vpack.c.b16 %v6025, %v6021
      %v6370 = vpack.c.b16 %v6026, %v6022
      %v6371 = vpack.c.b16 %v6027, %v6023
      %v6372 = vpack.c.b16 %v6028, %v6024
      %v6373 = vpack.c.b16 %v6033, %v6029
      %v6374 = vpack.c.b16 %v6034, %v6030
      %v6375 = vpack.c.b16 %v6035, %v6031
      %v6376 = vpack.c.b16 %v6036, %v6032
      %v6377 = vpack.c.b16 %v6041, %v6037
      %v6378 = vpack.c.b16 %v6042, %v6038
      %v6379 = vpack.c.b16 %v6043, %v6039
      %v6380 = vpack.c.b16 %v6044, %v6040
      %v6381 = vpack.c.b16 %v6049, %v6045
      %v6382 = vpack.c.b16 %v6050, %v6046
      %v6383 = vpack.c.b16 %v6051, %v6047
      %v6384 = vpack.c.b16 %v6052, %v6048
      %v6385 = vpack.c.b16 %v6057, %v6053
      %v6386 = vpack.c.b16 %v6058, %v6054
      %v6387 = vpack.c.b16 %v6059, %v6055
      %v6388 = vpack.c.b16 %v6060, %v6056
      %v6389 = vpack.c.b16 %v6065, %v6061
      %v6390 = vpack.c.b16 %v6066, %v6062
      %v6391 = vpack.c.b16 %v6067, %v6063
      %v6392 = vpack.c.b16 %v6068, %v6064
      %v6393 = vpack.c.b16 %v6073, %v6069
      %v6394 = vpack.c.b16 %v6074, %v6070
      %v6395 = vpack.c.b16 %v6075, %v6071
      %v6396 = vpack.c.b16 %v6076, %v6072
      %v6397 = vpack.c.b16 %v6081, %v6077
      %v6398 = vpack.c.b16 %v6082, %v6078
      %v6399 = vpack.c.b16 %v6083, %v6079
      %v6400 = vpack.c.b16 %v6084, %v6080
      %v6401 = vpack.c.b16 %v6089, %v6085
      %v6402 = vpack.c.b16 %v6090, %v6086
      %v6403 = vpack.c.b16 %v6091, %v6087
      %v6404 = vpack.c.b16 %v6092, %v6088
      %v6405 = vpack.c.b16 %v6097, %v6093
      %v6406 = vpack.c.b16 %v6098, %v6094
      %v6407 = vpack.c.b16 %v6099, %v6095
      %v6408 = vpack.c.b16 %v6100, %v6096
      %v6409 = vpack.c.b16 %v6105, %v6101
      %v6410 = vpack.c.b16 %v6106, %v6102
      %v6411 = vpack.c.b16 %v6107, %v6103
      %v6412 = vpack.c.b16 %v6108, %v6104
      %v6413 = vpack.c.b16 %v6113, %v6109
      %v6414 = vpack.c.b16 %v6114, %v6110
      %v6415 = vpack.c.b16 %v6115, %v6111
      %v6416 = vpack.c.b16 %v6116, %v6112
      %v6417 = vpack.c.b16 %v6121, %v6117
      %v6418 = vpack.c.b16 %v6122, %v6118
      %v6419 = vpack.c.b16 %v6123, %v6119
      %v6420 = vpack.c.b16 %v6124, %v6120
      %v6421 = vpack.c.b16 %v6129, %v6125
      %v6422 = vpack.c.b16 %v6130, %v6126
      %v6423 = vpack.c.b16 %v6131, %v6127
      %v6424 = vpack.c.b16 %v6132, %v6128
      %v6425 = vpack.c.b16 %v6137, %v6133
      %v6426 = vpack.c.b16 %v6138, %v6134
      %v6427 = vpack.c.b16 %v6139, %v6135
      %v6428 = vpack.c.b16 %v6140, %v6136
      %v6429 = vpack.c.b16 %v6145, %v6141
      %v6430 = vpack.c.b16 %v6146, %v6142
      %v6431 = vpack.c.b16 %v6147, %v6143
      %v6432 = vpack.c.b16 %v6148, %v6144
      %v6433 = vpack.c.b16 %v6153, %v6149
      %v6434 = vpack.c.b16 %v6154, %v6150
      %v6435 = vpack.c.b16 %v6155, %v6151
      %v6436 = vpack.c.b16 %v6156, %v6152
      %v6437 = vpack.c.b16 %v6161, %v6157
      %v6438 = vpack.c.b16 %v6162, %v6158
      %v6439 = vpack.c.b16 %v6163, %v6159
      %v6440 = vpack.c.b16 %v6164, %v6160
      %v6441 = vpack.c.b16 %v6169, %v6165
      %v6442 = vpack.c.b16 %v6170, %v6166
      %v6443 = vpack.c.b16 %v6171, %v6167
      %v6444 = vpack.c.b16 %v6172, %v6168
      %v6445 = vpack.c.b16 %v6177, %v6173
      %v6446 = vpack.c.b16 %v6178, %v6174
      %v6447 = vpack.c.b16 %v6179, %v6175
      %v6448 = vpack.c.b16 %v6180, %v6176
      %v6449 = vpack.c.b16 %v6185, %v6181
      %v6450 = vpack.c.b16 %v6186, %v6182
      %v6451 = vpack.c.b16 %v6187, %v6183
      %v6452 = vpack.c.b16 %v6188, %v6184
      %v6453 = vpack.c.b16 %v6193, %v6189
      %v6454 = vpack.c.b16 %v6194, %v6190
      %v6455 = vpack.c.b16 %v6195, %v6191
      %v6456 = vpack.c.b16 %v6196, %v6192
      %v6457 = vpack.c.b16 %v6201, %v6197
      %v6458 = vpack.c.b16 %v6202, %v6198
      %v6459 = vpack.c.b16 %v6203, %v6199
      %v6460 = vpack.c.b16 %v6204, %v6200
      %6717 = vmatpush.bf16.msra.mxu0 %v6233
      %6718 = vmatpush.bf16.msra.mxu0 %v6229
      %6719 = vmatpush.bf16.msra.mxu0 %v6225
      %6720 = vmatpush.bf16.msra.mxu0 %v6221
      %6721 = vmatpush.bf16.msra.mxu0 %v6217
      %6722 = vmatpush.bf16.msra.mxu0 %v6213
      %6723 = vmatpush.bf16.msra.mxu0 %v6209
      %6724 = vmatpush.bf16.msra.mxu0 %v6205
      %6725 = vmatmul.bf16.gmra.mxu0 %v5163
      %v6726 = vpop.f32.mrf.mxu0
      %v6727 = vadd.f32 %v5429, %v6726
      %v6728 = vpop.f32.mrf.mxu0
      %6729 = vdwg.mxu0
      %6730 = vmatpush.bf16.msra.mxu0 %v6265
      %6731 = vmatpush.bf16.msra.mxu0 %v6261
      %6732 = vmatpush.bf16.msra.mxu0 %v6257
      %6733 = vmatpush.bf16.msra.mxu0 %v6253
      %6734 = vmatpush.bf16.msra.mxu0 %v6249
      %6735 = vmatpush.bf16.msra.mxu0 %v6245
      %6736 = vmatpush.bf16.msra.mxu0 %v6241
      %6737 = vmatpush.bf16.msra.mxu0 %v6237
      %6738 = vmatmul.bf16.gmra.mxu0 %v5164
      %v6739 = vpop.f32.mrf.mxu0
      %v6740 = vadd.f32 %v6727, %v6739
      %v6741 = vpop.f32.mrf.mxu0
      %6742 = vdwg.mxu0
      %6743 = vmatpush.bf16.msra.mxu0 %v6297
      %6744 = vmatpush.bf16.msra.mxu0 %v6293
      %6745 = vmatpush.bf16.msra.mxu0 %v6289
      %6746 = vmatpush.bf16.msra.mxu0 %v6285
      %6747 = vmatpush.bf16.msra.mxu0 %v6281
      %6748 = vmatpush.bf16.msra.mxu0 %v6277
      %6749 = vmatpush.bf16.msra.mxu0 %v6273
      %6750 = vmatpush.bf16.msra.mxu0 %v6269
      %6751 = vmatmul.bf16.gmra.mxu0 %v5165
      %v6752 = vpop.f32.mrf.mxu0
      %v6753 = vadd.f32 %v6740, %v6752
      %v6754 = vpop.f32.mrf.mxu0
      %6755 = vdwg.mxu0
      %6756 = vmatpush.bf16.msra.mxu0 %v6329
      %6757 = vmatpush.bf16.msra.mxu0 %v6325
      %6758 = vmatpush.bf16.msra.mxu0 %v6321
      %6759 = vmatpush.bf16.msra.mxu0 %v6317
      %6760 = vmatpush.bf16.msra.mxu0 %v6313
      %6761 = vmatpush.bf16.msra.mxu0 %v6309
      %6762 = vmatpush.bf16.msra.mxu0 %v6305
      %6763 = vmatpush.bf16.msra.mxu0 %v6301
      %6764 = vmatmul.bf16.gmra.mxu0 %v5166
      %v6765 = vpop.f32.mrf.mxu0
      %v6766 = vadd.f32 %v6753, %v6765
      %v6767 = vpop.f32.mrf.mxu0
      %6768 = vdwg.mxu0
      %6769 = vmatpush.bf16.msra.mxu0 %v6361
      %6770 = vmatpush.bf16.msra.mxu0 %v6357
      %6771 = vmatpush.bf16.msra.mxu0 %v6353
      %6772 = vmatpush.bf16.msra.mxu0 %v6349
      %6773 = vmatpush.bf16.msra.mxu0 %v6345
      %6774 = vmatpush.bf16.msra.mxu0 %v6341
      %6775 = vmatpush.bf16.msra.mxu0 %v6337
      %6776 = vmatpush.bf16.msra.mxu0 %v6333
      %6777 = vmatmul.bf16.gmra.mxu0 %v5167
      %v6778 = vpop.f32.mrf.mxu0
      %v6779 = vadd.f32 %v6766, %v6778
      %v6780 = vpop.f32.mrf.mxu0
      %6781 = vdwg.mxu0
      %6782 = vmatpush.bf16.msra.mxu0 %v6393
      %6783 = vmatpush.bf16.msra.mxu0 %v6389
      %6784 = vmatpush.bf16.msra.mxu0 %v6385
      %6785 = vmatpush.bf16.msra.mxu0 %v6381
      %6786 = vmatpush.bf16.msra.mxu0 %v6377
      %6787 = vmatpush.bf16.msra.mxu0 %v6373
      %6788 = vmatpush.bf16.msra.mxu0 %v6369
      %6789 = vmatpush.bf16.msra.mxu0 %v6365
      %6790 = vmatmul.bf16.gmra.mxu0 %v5168
      %v6791 = vpop.f32.mrf.mxu0
      %v6792 = vadd.f32 %v6779, %v6791
      %v6793 = vpop.f32.mrf.mxu0
      %6794 = vdwg.mxu0
      %6795 = vmatpush.bf16.msra.mxu0 %v6425
      %6796 = vmatpush.bf16.msra.mxu0 %v6421
      %6797 = vmatpush.bf16.msra.mxu0 %v6417
      %6798 = vmatpush.bf16.msra.mxu0 %v6413
      %6799 = vmatpush.bf16.msra.mxu0 %v6409
      %6800 = vmatpush.bf16.msra.mxu0 %v6405
      %6801 = vmatpush.bf16.msra.mxu0 %v6401
      %6802 = vmatpush.bf16.msra.mxu0 %v6397
      %6803 = vmatmul.bf16.gmra.mxu0 %v5169
      %v6804 = vpop.f32.mrf.mxu0
      %v6805 = vadd.f32 %v6792, %v6804
      %v6806 = vpop.f32.mrf.mxu0
      %6807 = vdwg.mxu0
      %6808 = vmatpush.bf16.msra.mxu0 %v6457
      %6809 = vmatpush.bf16.msra.mxu0 %v6453
      %6810 = vmatpush.bf16.msra.mxu0 %v6449
      %6811 = vmatpush.bf16.msra.mxu0 %v6445
      %6812 = vmatpush.bf16.msra.mxu0 %v6441
      %6813 = vmatpush.bf16.msra.mxu0 %v6437
      %6814 = vmatpush.bf16.msra.mxu0 %v6433
      %6815 = vmatpush.bf16.msra.mxu0 %v6429
      %6816 = vmatmul.bf16.gmra.mxu0 %v5170
      %v6817 = vpop.f32.mrf.mxu0
      %v6818 = vadd.f32 %v6805, %v6817
      %v6819 = vpop.f32.mrf.mxu0
      %6820 = vdwg.mxu0
      %6821 = vmatpush.bf16.msra.mxu0 %v6234
      %6822 = vmatpush.bf16.msra.mxu0 %v6230
      %6823 = vmatpush.bf16.msra.mxu0 %v6226
      %6824 = vmatpush.bf16.msra.mxu0 %v6222
      %6825 = vmatpush.bf16.msra.mxu0 %v6218
      %6826 = vmatpush.bf16.msra.mxu0 %v6214
      %6827 = vmatpush.bf16.msra.mxu0 %v6210
      %6828 = vmatpush.bf16.msra.mxu0 %v6206
      %6829 = vmatmul.bf16.gmra.mxu0 %v5163
      %v6830 = vpop.f32.mrf.mxu0
      %v6831 = vadd.f32 %v5430, %v6830
      %v6832 = vpop.f32.mrf.mxu0
      %6833 = vdwg.mxu0
      %6834 = vmatpush.bf16.msra.mxu0 %v6266
      %6835 = vmatpush.bf16.msra.mxu0 %v6262
      %6836 = vmatpush.bf16.msra.mxu0 %v6258
      %6837 = vmatpush.bf16.msra.mxu0 %v6254
      %6838 = vmatpush.bf16.msra.mxu0 %v6250
      %6839 = vmatpush.bf16.msra.mxu0 %v6246
      %6840 = vmatpush.bf16.msra.mxu0 %v6242
      %6841 = vmatpush.bf16.msra.mxu0 %v6238
      %6842 = vmatmul.bf16.gmra.mxu0 %v5164
      %v6843 = vpop.f32.mrf.mxu0
      %v6844 = vadd.f32 %v6831, %v6843
      %v6845 = vpop.f32.mrf.mxu0
      %6846 = vdwg.mxu0
      %6847 = vmatpush.bf16.msra.mxu0 %v6298
      %6848 = vmatpush.bf16.msra.mxu0 %v6294
      %6849 = vmatpush.bf16.msra.mxu0 %v6290
      %6850 = vmatpush.bf16.msra.mxu0 %v6286
      %6851 = vmatpush.bf16.msra.mxu0 %v6282
      %6852 = vmatpush.bf16.msra.mxu0 %v6278
      %6853 = vmatpush.bf16.msra.mxu0 %v6274
      %6854 = vmatpush.bf16.msra.mxu0 %v6270
      %6855 = vmatmul.bf16.gmra.mxu0 %v5165
      %v6856 = vpop.f32.mrf.mxu0
      %v6857 = vadd.f32 %v6844, %v6856
      %v6858 = vpop.f32.mrf.mxu0
      %6859 = vdwg.mxu0
      %6860 = vmatpush.bf16.msra.mxu0 %v6330
      %6861 = vmatpush.bf16.msra.mxu0 %v6326
      %6862 = vmatpush.bf16.msra.mxu0 %v6322
      %6863 = vmatpush.bf16.msra.mxu0 %v6318
      %6864 = vmatpush.bf16.msra.mxu0 %v6314
      %6865 = vmatpush.bf16.msra.mxu0 %v6310
      %6866 = vmatpush.bf16.msra.mxu0 %v6306
      %6867 = vmatpush.bf16.msra.mxu0 %v6302
      %6868 = vmatmul.bf16.gmra.mxu0 %v5166
      %v6869 = vpop.f32.mrf.mxu0
      %v6870 = vadd.f32 %v6857, %v6869
      %v6871 = vpop.f32.mrf.mxu0
      %6872 = vdwg.mxu0
      %6873 = vmatpush.bf16.msra.mxu0 %v6362
      %6874 = vmatpush.bf16.msra.mxu0 %v6358
      %6875 = vmatpush.bf16.msra.mxu0 %v6354
      %6876 = vmatpush.bf16.msra.mxu0 %v6350
      %6877 = vmatpush.bf16.msra.mxu0 %v6346
      %6878 = vmatpush.bf16.msra.mxu0 %v6342
      %6879 = vmatpush.bf16.msra.mxu0 %v6338
      %6880 = vmatpush.bf16.msra.mxu0 %v6334
      %6881 = vmatmul.bf16.gmra.mxu0 %v5167
      %v6882 = vpop.f32.mrf.mxu0
      %v6883 = vadd.f32 %v6870, %v6882
      %v6884 = vpop.f32.mrf.mxu0
      %6885 = vdwg.mxu0
      %6886 = vmatpush.bf16.msra.mxu0 %v6394
      %6887 = vmatpush.bf16.msra.mxu0 %v6390
      %6888 = vmatpush.bf16.msra.mxu0 %v6386
      %6889 = vmatpush.bf16.msra.mxu0 %v6382
      %6890 = vmatpush.bf16.msra.mxu0 %v6378
      %6891 = vmatpush.bf16.msra.mxu0 %v6374
      %6892 = vmatpush.bf16.msra.mxu0 %v6370
      %6893 = vmatpush.bf16.msra.mxu0 %v6366
      %6894 = vmatmul.bf16.gmra.mxu0 %v5168
      %v6895 = vpop.f32.mrf.mxu0
      %v6896 = vadd.f32 %v6883, %v6895
      %v6897 = vpop.f32.mrf.mxu0
      %6898 = vdwg.mxu0
      %6899 = vmatpush.bf16.msra.mxu0 %v6426
      %6900 = vmatpush.bf16.msra.mxu0 %v6422
      %6901 = vmatpush.bf16.msra.mxu0 %v6418
      %6902 = vmatpush.bf16.msra.mxu0 %v6414
      %6903 = vmatpush.bf16.msra.mxu0 %v6410
      %6904 = vmatpush.bf16.msra.mxu0 %v6406
      %6905 = vmatpush.bf16.msra.mxu0 %v6402
      %6906 = vmatpush.bf16.msra.mxu0 %v6398
      %6907 = vmatmul.bf16.gmra.mxu0 %v5169
      %v6908 = vpop.f32.mrf.mxu0
      %v6909 = vadd.f32 %v6896, %v6908
      %v6910 = vpop.f32.mrf.mxu0
      %6911 = vdwg.mxu0
      %6912 = vmatpush.bf16.msra.mxu0 %v6458
      %6913 = vmatpush.bf16.msra.mxu0 %v6454
      %6914 = vmatpush.bf16.msra.mxu0 %v6450
      %6915 = vmatpush.bf16.msra.mxu0 %v6446
      %6916 = vmatpush.bf16.msra.mxu0 %v6442
      %6917 = vmatpush.bf16.msra.mxu0 %v6438
      %6918 = vmatpush.bf16.msra.mxu0 %v6434
      %6919 = vmatpush.bf16.msra.mxu0 %v6430
      %6920 = vmatmul.bf16.gmra.mxu0 %v5170
      %v6921 = vpop.f32.mrf.mxu0
      %v6922 = vadd.f32 %v6909, %v6921
      %v6923 = vpop.f32.mrf.mxu0
      %6924 = vdwg.mxu0
      %6925 = vmatpush.bf16.msra.mxu0 %v6235
      %6926 = vmatpush.bf16.msra.mxu0 %v6231
      %6927 = vmatpush.bf16.msra.mxu0 %v6227
      %6928 = vmatpush.bf16.msra.mxu0 %v6223
      %6929 = vmatpush.bf16.msra.mxu0 %v6219
      %6930 = vmatpush.bf16.msra.mxu0 %v6215
      %6931 = vmatpush.bf16.msra.mxu0 %v6211
      %6932 = vmatpush.bf16.msra.mxu0 %v6207
      %6933 = vmatmul.bf16.gmra.mxu0 %v5163
      %v6934 = vpop.f32.mrf.mxu0
      %v6935 = vadd.f32 %v5431, %v6934
      %v6936 = vpop.f32.mrf.mxu0
      %6937 = vdwg.mxu0
      %6938 = vmatpush.bf16.msra.mxu0 %v6267
      %6939 = vmatpush.bf16.msra.mxu0 %v6263
      %6940 = vmatpush.bf16.msra.mxu0 %v6259
      %6941 = vmatpush.bf16.msra.mxu0 %v6255
      %6942 = vmatpush.bf16.msra.mxu0 %v6251
      %6943 = vmatpush.bf16.msra.mxu0 %v6247
      %6944 = vmatpush.bf16.msra.mxu0 %v6243
      %6945 = vmatpush.bf16.msra.mxu0 %v6239
      %6946 = vmatmul.bf16.gmra.mxu0 %v5164
      %v6947 = vpop.f32.mrf.mxu0
      %v6948 = vadd.f32 %v6935, %v6947
      %v6949 = vpop.f32.mrf.mxu0
      %6950 = vdwg.mxu0
      %6951 = vmatpush.bf16.msra.mxu0 %v6299
      %6952 = vmatpush.bf16.msra.mxu0 %v6295
      %6953 = vmatpush.bf16.msra.mxu0 %v6291
      %6954 = vmatpush.bf16.msra.mxu0 %v6287
      %6955 = vmatpush.bf16.msra.mxu0 %v6283
      %6956 = vmatpush.bf16.msra.mxu0 %v6279
      %6957 = vmatpush.bf16.msra.mxu0 %v6275
      %6958 = vmatpush.bf16.msra.mxu0 %v6271
      %6959 = vmatmul.bf16.gmra.mxu0 %v5165
      %v6960 = vpop.f32.mrf.mxu0
      %v6961 = vadd.f32 %v6948, %v6960
      %v6962 = vpop.f32.mrf.mxu0
      %6963 = vdwg.mxu0
      %6964 = vmatpush.bf16.msra.mxu0 %v6331
      %6965 = vmatpush.bf16.msra.mxu0 %v6327
      %6966 = vmatpush.bf16.msra.mxu0 %v6323
      %6967 = vmatpush.bf16.msra.mxu0 %v6319
      %6968 = vmatpush.bf16.msra.mxu0 %v6315
      %6969 = vmatpush.bf16.msra.mxu0 %v6311
      %6970 = vmatpush.bf16.msra.mxu0 %v6307
      %6971 = vmatpush.bf16.msra.mxu0 %v6303
      %6972 = vmatmul.bf16.gmra.mxu0 %v5166
      %v6973 = vpop.f32.mrf.mxu0
      %v6974 = vadd.f32 %v6961, %v6973
      %v6975 = vpop.f32.mrf.mxu0
      %6976 = vdwg.mxu0
      %6977 = vmatpush.bf16.msra.mxu0 %v6363
      %6978 = vmatpush.bf16.msra.mxu0 %v6359
      %6979 = vmatpush.bf16.msra.mxu0 %v6355
      %6980 = vmatpush.bf16.msra.mxu0 %v6351
      %6981 = vmatpush.bf16.msra.mxu0 %v6347
      %6982 = vmatpush.bf16.msra.mxu0 %v6343
      %6983 = vmatpush.bf16.msra.mxu0 %v6339
      %6984 = vmatpush.bf16.msra.mxu0 %v6335
      %6985 = vmatmul.bf16.gmra.mxu0 %v5167
      %v6986 = vpop.f32.mrf.mxu0
      %v6987 = vadd.f32 %v6974, %v6986
      %v6988 = vpop.f32.mrf.mxu0
      %6989 = vdwg.mxu0
      %6990 = vmatpush.bf16.msra.mxu0 %v6395
      %6991 = vmatpush.bf16.msra.mxu0 %v6391
      %6992 = vmatpush.bf16.msra.mxu0 %v6387
      %6993 = vmatpush.bf16.msra.mxu0 %v6383
      %6994 = vmatpush.bf16.msra.mxu0 %v6379
      %6995 = vmatpush.bf16.msra.mxu0 %v6375
      %6996 = vmatpush.bf16.msra.mxu0 %v6371
      %6997 = vmatpush.bf16.msra.mxu0 %v6367
      %6998 = vmatmul.bf16.gmra.mxu0 %v5168
      %v6999 = vpop.f32.mrf.mxu0
      %v7000 = vadd.f32 %v6987, %v6999
      %v7001 = vpop.f32.mrf.mxu0
      %7002 = vdwg.mxu0
      %7003 = vmatpush.bf16.msra.mxu0 %v6427
      %7004 = vmatpush.bf16.msra.mxu0 %v6423
      %7005 = vmatpush.bf16.msra.mxu0 %v6419
      %7006 = vmatpush.bf16.msra.mxu0 %v6415
      %7007 = vmatpush.bf16.msra.mxu0 %v6411
      %7008 = vmatpush.bf16.msra.mxu0 %v6407
      %7009 = vmatpush.bf16.msra.mxu0 %v6403
      %7010 = vmatpush.bf16.msra.mxu0 %v6399
      %7011 = vmatmul.bf16.gmra.mxu0 %v5169
      %v7012 = vpop.f32.mrf.mxu0
      %v7013 = vadd.f32 %v7000, %v7012
      %v7014 = vpop.f32.mrf.mxu0
      %7015 = vdwg.mxu0
      %7016 = vmatpush.bf16.msra.mxu0 %v6459
      %7017 = vmatpush.bf16.msra.mxu0 %v6455
      %7018 = vmatpush.bf16.msra.mxu0 %v6451
      %7019 = vmatpush.bf16.msra.mxu0 %v6447
      %7020 = vmatpush.bf16.msra.mxu0 %v6443
      %7021 = vmatpush.bf16.msra.mxu0 %v6439
      %7022 = vmatpush.bf16.msra.mxu0 %v6435
      %7023 = vmatpush.bf16.msra.mxu0 %v6431
      %7024 = vmatmul.bf16.gmra.mxu0 %v5170
      %v7025 = vpop.f32.mrf.mxu0
      %v7026 = vadd.f32 %v7013, %v7025
      %v7027 = vpop.f32.mrf.mxu0
      %7028 = vdwg.mxu0
      %7029 = vmatpush.bf16.msra.mxu0 %v6236
      %7030 = vmatpush.bf16.msra.mxu0 %v6232
      %7031 = vmatpush.bf16.msra.mxu0 %v6228
      %7032 = vmatpush.bf16.msra.mxu0 %v6224
      %7033 = vmatpush.bf16.msra.mxu0 %v6220
      %7034 = vmatpush.bf16.msra.mxu0 %v6216
      %7035 = vmatpush.bf16.msra.mxu0 %v6212
      %7036 = vmatpush.bf16.msra.mxu0 %v6208
      %7037 = vmatmul.bf16.gmra.mxu0 %v5163
      %v7038 = vpop.f32.mrf.mxu0
      %v7039 = vadd.f32 %v5432, %v7038
      %v7040 = vpop.f32.mrf.mxu0
      %7041 = vdwg.mxu0
      %7042 = vmatpush.bf16.msra.mxu0 %v6268
      %7043 = vmatpush.bf16.msra.mxu0 %v6264
      %7044 = vmatpush.bf16.msra.mxu0 %v6260
      %7045 = vmatpush.bf16.msra.mxu0 %v6256
      %7046 = vmatpush.bf16.msra.mxu0 %v6252
      %7047 = vmatpush.bf16.msra.mxu0 %v6248
      %7048 = vmatpush.bf16.msra.mxu0 %v6244
      %7049 = vmatpush.bf16.msra.mxu0 %v6240
      %7050 = vmatmul.bf16.gmra.mxu0 %v5164
      %v7051 = vpop.f32.mrf.mxu0
      %v7052 = vadd.f32 %v7039, %v7051
      %v7053 = vpop.f32.mrf.mxu0
      %7054 = vdwg.mxu0
      %7055 = vmatpush.bf16.msra.mxu0 %v6300
      %7056 = vmatpush.bf16.msra.mxu0 %v6296
      %7057 = vmatpush.bf16.msra.mxu0 %v6292
      %7058 = vmatpush.bf16.msra.mxu0 %v6288
      %7059 = vmatpush.bf16.msra.mxu0 %v6284
      %7060 = vmatpush.bf16.msra.mxu0 %v6280
      %7061 = vmatpush.bf16.msra.mxu0 %v6276
      %7062 = vmatpush.bf16.msra.mxu0 %v6272
      %7063 = vmatmul.bf16.gmra.mxu0 %v5165
      %v7064 = vpop.f32.mrf.mxu0
      %v7065 = vadd.f32 %v7052, %v7064
      %v7066 = vpop.f32.mrf.mxu0
      %7067 = vdwg.mxu0
      %7068 = vmatpush.bf16.msra.mxu0 %v6332
      %7069 = vmatpush.bf16.msra.mxu0 %v6328
      %7070 = vmatpush.bf16.msra.mxu0 %v6324
      %7071 = vmatpush.bf16.msra.mxu0 %v6320
      %7072 = vmatpush.bf16.msra.mxu0 %v6316
      %7073 = vmatpush.bf16.msra.mxu0 %v6312
      %7074 = vmatpush.bf16.msra.mxu0 %v6308
      %7075 = vmatpush.bf16.msra.mxu0 %v6304
      %7076 = vmatmul.bf16.gmra.mxu0 %v5166
      %v7077 = vpop.f32.mrf.mxu0
      %v7078 = vadd.f32 %v7065, %v7077
      %v7079 = vpop.f32.mrf.mxu0
      %7080 = vdwg.mxu0
      %7081 = vmatpush.bf16.msra.mxu0 %v6364
      %7082 = vmatpush.bf16.msra.mxu0 %v6360
      %7083 = vmatpush.bf16.msra.mxu0 %v6356
      %7084 = vmatpush.bf16.msra.mxu0 %v6352
      %7085 = vmatpush.bf16.msra.mxu0 %v6348
      %7086 = vmatpush.bf16.msra.mxu0 %v6344
      %7087 = vmatpush.bf16.msra.mxu0 %v6340
      %7088 = vmatpush.bf16.msra.mxu0 %v6336
      %7089 = vmatmul.bf16.gmra.mxu0 %v5167
      %v7090 = vpop.f32.mrf.mxu0
      %v7091 = vadd.f32 %v7078, %v7090
      %v7092 = vpop.f32.mrf.mxu0
      %7093 = vdwg.mxu0
      %7094 = vmatpush.bf16.msra.mxu0 %v6396
      %7095 = vmatpush.bf16.msra.mxu0 %v6392
      %7096 = vmatpush.bf16.msra.mxu0 %v6388
      %7097 = vmatpush.bf16.msra.mxu0 %v6384
      %7098 = vmatpush.bf16.msra.mxu0 %v6380
      %7099 = vmatpush.bf16.msra.mxu0 %v6376
      %7100 = vmatpush.bf16.msra.mxu0 %v6372
      %7101 = vmatpush.bf16.msra.mxu0 %v6368
      %7102 = vmatmul.bf16.gmra.mxu0 %v5168
      %v7103 = vpop.f32.mrf.mxu0
      %v7104 = vadd.f32 %v7091, %v7103
      %v7105 = vpop.f32.mrf.mxu0
      %7106 = vdwg.mxu0
      %7107 = vmatpush.bf16.msra.mxu0 %v6428
      %7108 = vmatpush.bf16.msra.mxu0 %v6424
      %7109 = vmatpush.bf16.msra.mxu0 %v6420
      %7110 = vmatpush.bf16.msra.mxu0 %v6416
      %7111 = vmatpush.bf16.msra.mxu0 %v6412
      %7112 = vmatpush.bf16.msra.mxu0 %v6408
      %7113 = vmatpush.bf16.msra.mxu0 %v6404
      %7114 = vmatpush.bf16.msra.mxu0 %v6400
      %7115 = vmatmul.bf16.gmra.mxu0 %v5169
      %v7116 = vpop.f32.mrf.mxu0
      %v7117 = vadd.f32 %v7104, %v7116
      %v7118 = vpop.f32.mrf.mxu0
      %7119 = vdwg.mxu0
      %7120 = vmatpush.bf16.msra.mxu0 %v6460
      %7121 = vmatpush.bf16.msra.mxu0 %v6456
      %7122 = vmatpush.bf16.msra.mxu0 %v6452
      %7123 = vmatpush.bf16.msra.mxu0 %v6448
      %7124 = vmatpush.bf16.msra.mxu0 %v6444
      %7125 = vmatpush.bf16.msra.mxu0 %v6440
      %7126 = vmatpush.bf16.msra.mxu0 %v6436
      %7127 = vmatpush.bf16.msra.mxu0 %v6432
      %7128 = vmatmul.bf16.gmra.mxu0 %v5170
      %v7129 = vpop.f32.mrf.mxu0
      %v7130 = vadd.f32 %v7117, %v7129
      %v7131 = vpop.f32.mrf.mxu0
      %7132 = vdwg.mxu0
      %v7133 = vmax.f32 %v6818, 0.0
      %v7134 = vmax.f32 %v6922, 0.0
      %v7135 = vmax.f32 %v7026, 0.0
      %v7136 = vmax.f32 %v7130, 0.0
      %v7137 = vpack.c.bf16 %v7133, %v7133
      %v7138 = vpack.c.bf16 %v7134, %v7134
      %v7139 = vpack.c.bf16 %v7135, %v7135
      %v7140 = vpack.c.bf16 %v7136, %v7136
      %v7141 = vld [vmem:[#allocation11] sm:$0xff]
      %v7142 = vld [vmem:[#allocation11 + $0x8] sm:$0xff]
      %v7143 = vld [vmem:[#allocation11 + $0x10] sm:$0xff]
      %v7144 = vld [vmem:[#allocation11 + $0x18] sm:$0xff]
      %v7145 = vld [vmem:[#allocation11 + $0x20] sm:$0xff]
      %v7146 = vld [vmem:[#allocation11 + $0x28] sm:$0xff]
      %v7147 = vld [vmem:[#allocation11 + $0x30] sm:$0xff]
      %v7148 = vld [vmem:[#allocation11 + $0x38] sm:$0xff]
      %v7149 = vld [vmem:[#allocation11 + $0x40] sm:$0xff]
      %v7150 = vld [vmem:[#allocation11 + $0x48] sm:$0xff]
      %v7151 = vld [vmem:[#allocation11 + $0x50] sm:$0xff]
      %v7152 = vld [vmem:[#allocation11 + $0x58] sm:$0xff]
      %v7153 = vld [vmem:[#allocation11 + $0x60] sm:$0xff]
      %v7154 = vld [vmem:[#allocation11 + $0x68] sm:$0xff]
      %v7155 = vld [vmem:[#allocation11 + $0x70] sm:$0xff]
      %v7156 = vld [vmem:[#allocation11 + $0x78] sm:$0xff]
      %v7157 = vld [vmem:[#allocation11 + $0x80] sm:$0xff]
      %v7158 = vld [vmem:[#allocation11 + $0x88] sm:$0xff]
      %v7159 = vld [vmem:[#allocation11 + $0x90] sm:$0xff]
      %v7160 = vld [vmem:[#allocation11 + $0x98] sm:$0xff]
      %v7161 = vld [vmem:[#allocation11 + $0xa0] sm:$0xff]
      %v7162 = vld [vmem:[#allocation11 + $0xa8] sm:$0xff]
      %v7163 = vld [vmem:[#allocation11 + $0xb0] sm:$0xff]
      %v7164 = vld [vmem:[#allocation11 + $0xb8] sm:$0xff]
      %v7165 = vld [vmem:[#allocation11 + $0xc0] sm:$0xff]
      %v7166 = vld [vmem:[#allocation11 + $0xc8] sm:$0xff]
      %v7167 = vld [vmem:[#allocation11 + $0xd0] sm:$0xff]
      %v7168 = vld [vmem:[#allocation11 + $0xd8] sm:$0xff]
      %v7169 = vld [vmem:[#allocation11 + $0xe0] sm:$0xff]
      %v7170 = vld [vmem:[#allocation11 + $0xe8] sm:$0xff]
      %v7171 = vld [vmem:[#allocation11 + $0xf0] sm:$0xff]
      %v7172 = vld [vmem:[#allocation11 + $0xf8] sm:$0xff]
      %v7173 = vld [vmem:[#allocation11 + $0x100] sm:$0xff]
      %v7174 = vld [vmem:[#allocation11 + $0x108] sm:$0xff]
      %v7175 = vld [vmem:[#allocation11 + $0x110] sm:$0xff]
      %v7176 = vld [vmem:[#allocation11 + $0x118] sm:$0xff]
      %v7177 = vld [vmem:[#allocation11 + $0x120] sm:$0xff]
      %v7178 = vld [vmem:[#allocation11 + $0x128] sm:$0xff]
      %v7179 = vld [vmem:[#allocation11 + $0x130] sm:$0xff]
      %v7180 = vld [vmem:[#allocation11 + $0x138] sm:$0xff]
      %v7181 = vld [vmem:[#allocation11 + $0x140] sm:$0xff]
      %v7182 = vld [vmem:[#allocation11 + $0x148] sm:$0xff]
      %v7183 = vld [vmem:[#allocation11 + $0x150] sm:$0xff]
      %v7184 = vld [vmem:[#allocation11 + $0x158] sm:$0xff]
      %v7185 = vld [vmem:[#allocation11 + $0x160] sm:$0xff]
      %v7186 = vld [vmem:[#allocation11 + $0x168] sm:$0xff]
      %v7187 = vld [vmem:[#allocation11 + $0x170] sm:$0xff]
      %v7188 = vld [vmem:[#allocation11 + $0x178] sm:$0xff]
      %v7189 = vld [vmem:[#allocation11 + $0x180] sm:$0xff]
      %v7190 = vld [vmem:[#allocation11 + $0x188] sm:$0xff]
      %v7191 = vld [vmem:[#allocation11 + $0x190] sm:$0xff]
      %v7192 = vld [vmem:[#allocation11 + $0x198] sm:$0xff]
      %v7193 = vld [vmem:[#allocation11 + $0x1a0] sm:$0xff]
      %v7194 = vld [vmem:[#allocation11 + $0x1a8] sm:$0xff]
      %v7195 = vld [vmem:[#allocation11 + $0x1b0] sm:$0xff]
      %v7196 = vld [vmem:[#allocation11 + $0x1b8] sm:$0xff]
      %v7197 = vld [vmem:[#allocation11 + $0x1c0] sm:$0xff]
      %v7198 = vld [vmem:[#allocation11 + $0x1c8] sm:$0xff]
      %v7199 = vld [vmem:[#allocation11 + $0x1d0] sm:$0xff]
      %v7200 = vld [vmem:[#allocation11 + $0x1d8] sm:$0xff]
      %v7201 = vld [vmem:[#allocation11 + $0x1e0] sm:$0xff]
      %v7202 = vld [vmem:[#allocation11 + $0x1e8] sm:$0xff]
      %v7203 = vld [vmem:[#allocation11 + $0x1f0] sm:$0xff]
      %v7204 = vld [vmem:[#allocation11 + $0x1f8] sm:$0xff]
      %v7205 = vld [vmem:[#allocation13] sm:$0x3]
      %v7207 = vperm.slane %v7205, 0
      %v7208 = vperm.slane %v7205, 1
      %v7275 = vunpack.c.l.b16 %v7141
      %v7276 = vunpack.c.h.b16 %v7141
      %v7277 = vunpack.c.l.b16 %v7142
      %v7278 = vunpack.c.h.b16 %v7142
      %v7279 = vunpack.c.l.b16 %v7143
      %v7280 = vunpack.c.h.b16 %v7143
      %v7281 = vunpack.c.l.b16 %v7144
      %v7282 = vunpack.c.h.b16 %v7144
      %v7283 = vunpack.c.l.b16 %v7145
      %v7284 = vunpack.c.h.b16 %v7145
      %v7285 = vunpack.c.l.b16 %v7146
      %v7286 = vunpack.c.h.b16 %v7146
      %v7287 = vunpack.c.l.b16 %v7147
      %v7288 = vunpack.c.h.b16 %v7147
      %v7289 = vunpack.c.l.b16 %v7148
      %v7290 = vunpack.c.h.b16 %v7148
      %v7291 = vunpack.c.l.b16 %v7149
      %v7292 = vunpack.c.h.b16 %v7149
      %v7293 = vunpack.c.l.b16 %v7150
      %v7294 = vunpack.c.h.b16 %v7150
      %v7295 = vunpack.c.l.b16 %v7151
      %v7296 = vunpack.c.h.b16 %v7151
      %v7297 = vunpack.c.l.b16 %v7152
      %v7298 = vunpack.c.h.b16 %v7152
      %v7299 = vunpack.c.l.b16 %v7153
      %v7300 = vunpack.c.h.b16 %v7153
      %v7301 = vunpack.c.l.b16 %v7154
      %v7302 = vunpack.c.h.b16 %v7154
      %v7303 = vunpack.c.l.b16 %v7155
      %v7304 = vunpack.c.h.b16 %v7155
      %v7305 = vunpack.c.l.b16 %v7156
      %v7306 = vunpack.c.h.b16 %v7156
      %v7307 = vunpack.c.l.b16 %v7157
      %v7308 = vunpack.c.h.b16 %v7157
      %v7309 = vunpack.c.l.b16 %v7158
      %v7310 = vunpack.c.h.b16 %v7158
      %v7311 = vunpack.c.l.b16 %v7159
      %v7312 = vunpack.c.h.b16 %v7159
      %v7313 = vunpack.c.l.b16 %v7160
      %v7314 = vunpack.c.h.b16 %v7160
      %v7315 = vunpack.c.l.b16 %v7161
      %v7316 = vunpack.c.h.b16 %v7161
      %v7317 = vunpack.c.l.b16 %v7162
      %v7318 = vunpack.c.h.b16 %v7162
      %v7319 = vunpack.c.l.b16 %v7163
      %v7320 = vunpack.c.h.b16 %v7163
      %v7321 = vunpack.c.l.b16 %v7164
      %v7322 = vunpack.c.h.b16 %v7164
      %v7323 = vunpack.c.l.b16 %v7165
      %v7324 = vunpack.c.h.b16 %v7165
      %v7325 = vunpack.c.l.b16 %v7166
      %v7326 = vunpack.c.h.b16 %v7166
      %v7327 = vunpack.c.l.b16 %v7167
      %v7328 = vunpack.c.h.b16 %v7167
      %v7329 = vunpack.c.l.b16 %v7168
      %v7330 = vunpack.c.h.b16 %v7168
      %v7331 = vunpack.c.l.b16 %v7169
      %v7332 = vunpack.c.h.b16 %v7169
      %v7333 = vunpack.c.l.b16 %v7170
      %v7334 = vunpack.c.h.b16 %v7170
      %v7335 = vunpack.c.l.b16 %v7171
      %v7336 = vunpack.c.h.b16 %v7171
      %v7337 = vunpack.c.l.b16 %v7172
      %v7338 = vunpack.c.h.b16 %v7172
      %v7339 = vunpack.c.l.b16 %v7173
      %v7340 = vunpack.c.h.b16 %v7173
      %v7341 = vunpack.c.l.b16 %v7174
      %v7342 = vunpack.c.h.b16 %v7174
      %v7343 = vunpack.c.l.b16 %v7175
      %v7344 = vunpack.c.h.b16 %v7175
      %v7345 = vunpack.c.l.b16 %v7176
      %v7346 = vunpack.c.h.b16 %v7176
      %v7347 = vunpack.c.l.b16 %v7177
      %v7348 = vunpack.c.h.b16 %v7177
      %v7349 = vunpack.c.l.b16 %v7178
      %v7350 = vunpack.c.h.b16 %v7178
      %v7351 = vunpack.c.l.b16 %v7179
      %v7352 = vunpack.c.h.b16 %v7179
      %v7353 = vunpack.c.l.b16 %v7180
      %v7354 = vunpack.c.h.b16 %v7180
      %v7355 = vunpack.c.l.b16 %v7181
      %v7356 = vunpack.c.h.b16 %v7181
      %v7357 = vunpack.c.l.b16 %v7182
      %v7358 = vunpack.c.h.b16 %v7182
      %v7359 = vunpack.c.l.b16 %v7183
      %v7360 = vunpack.c.h.b16 %v7183
      %v7361 = vunpack.c.l.b16 %v7184
      %v7362 = vunpack.c.h.b16 %v7184
      %v7363 = vunpack.c.l.b16 %v7185
      %v7364 = vunpack.c.h.b16 %v7185
      %v7365 = vunpack.c.l.b16 %v7186
      %v7366 = vunpack.c.h.b16 %v7186
      %v7367 = vunpack.c.l.b16 %v7187
      %v7368 = vunpack.c.h.b16 %v7187
      %v7369 = vunpack.c.l.b16 %v7188
      %v7370 = vunpack.c.h.b16 %v7188
      %v7371 = vunpack.c.l.b16 %v7189
      %v7372 = vunpack.c.h.b16 %v7189
      %v7373 = vunpack.c.l.b16 %v7190
      %v7374 = vunpack.c.h.b16 %v7190
      %v7375 = vunpack.c.l.b16 %v7191
      %v7376 = vunpack.c.h.b16 %v7191
      %v7377 = vunpack.c.l.b16 %v7192
      %v7378 = vunpack.c.h.b16 %v7192
      %v7379 = vunpack.c.l.b16 %v7193
      %v7380 = vunpack.c.h.b16 %v7193
      %v7381 = vunpack.c.l.b16 %v7194
      %v7382 = vunpack.c.h.b16 %v7194
      %v7383 = vunpack.c.l.b16 %v7195
      %v7384 = vunpack.c.h.b16 %v7195
      %v7385 = vunpack.c.l.b16 %v7196
      %v7386 = vunpack.c.h.b16 %v7196
      %v7387 = vunpack.c.l.b16 %v7197
      %v7388 = vunpack.c.h.b16 %v7197
      %v7389 = vunpack.c.l.b16 %v7198
      %v7390 = vunpack.c.h.b16 %v7198
      %v7391 = vunpack.c.l.b16 %v7199
      %v7392 = vunpack.c.h.b16 %v7199
      %v7393 = vunpack.c.l.b16 %v7200
      %v7394 = vunpack.c.h.b16 %v7200
      %v7395 = vunpack.c.l.b16 %v7201
      %v7396 = vunpack.c.h.b16 %v7201
      %v7397 = vunpack.c.l.b16 %v7202
      %v7398 = vunpack.c.h.b16 %v7202
      %v7399 = vunpack.c.l.b16 %v7203
      %v7400 = vunpack.c.h.b16 %v7203
      %v7401 = vunpack.c.l.b16 %v7204
      %v7402 = vunpack.c.h.b16 %v7204
      %v7403 = vpack.c.b16 %v7277, %v7275
      %v7404 = vpack.c.b16 %v7278, %v7276
      %v7405 = vpack.c.b16 %v7281, %v7279
      %v7406 = vpack.c.b16 %v7282, %v7280
      %v7407 = vpack.c.b16 %v7285, %v7283
      %v7408 = vpack.c.b16 %v7286, %v7284
      %v7409 = vpack.c.b16 %v7289, %v7287
      %v7410 = vpack.c.b16 %v7290, %v7288
      %v7411 = vpack.c.b16 %v7293, %v7291
      %v7412 = vpack.c.b16 %v7294, %v7292
      %v7413 = vpack.c.b16 %v7297, %v7295
      %v7414 = vpack.c.b16 %v7298, %v7296
      %v7415 = vpack.c.b16 %v7301, %v7299
      %v7416 = vpack.c.b16 %v7302, %v7300
      %v7417 = vpack.c.b16 %v7305, %v7303
      %v7418 = vpack.c.b16 %v7306, %v7304
      %v7419 = vpack.c.b16 %v7309, %v7307
      %v7420 = vpack.c.b16 %v7310, %v7308
      %v7421 = vpack.c.b16 %v7313, %v7311
      %v7422 = vpack.c.b16 %v7314, %v7312
      %v7423 = vpack.c.b16 %v7317, %v7315
      %v7424 = vpack.c.b16 %v7318, %v7316
      %v7425 = vpack.c.b16 %v7321, %v7319
      %v7426 = vpack.c.b16 %v7322, %v7320
      %v7427 = vpack.c.b16 %v7325, %v7323
      %v7428 = vpack.c.b16 %v7326, %v7324
      %v7429 = vpack.c.b16 %v7329, %v7327
      %v7430 = vpack.c.b16 %v7330, %v7328
      %v7431 = vpack.c.b16 %v7333, %v7331
      %v7432 = vpack.c.b16 %v7334, %v7332
      %v7433 = vpack.c.b16 %v7337, %v7335
      %v7434 = vpack.c.b16 %v7338, %v7336
      %v7435 = vpack.c.b16 %v7341, %v7339
      %v7436 = vpack.c.b16 %v7342, %v7340
      %v7437 = vpack.c.b16 %v7345, %v7343
      %v7438 = vpack.c.b16 %v7346, %v7344
      %v7439 = vpack.c.b16 %v7349, %v7347
      %v7440 = vpack.c.b16 %v7350, %v7348
      %v7441 = vpack.c.b16 %v7353, %v7351
      %v7442 = vpack.c.b16 %v7354, %v7352
      %v7443 = vpack.c.b16 %v7357, %v7355
      %v7444 = vpack.c.b16 %v7358, %v7356
      %v7445 = vpack.c.b16 %v7361, %v7359
      %v7446 = vpack.c.b16 %v7362, %v7360
      %v7447 = vpack.c.b16 %v7365, %v7363
      %v7448 = vpack.c.b16 %v7366, %v7364
      %v7449 = vpack.c.b16 %v7369, %v7367
      %v7450 = vpack.c.b16 %v7370, %v7368
      %v7451 = vpack.c.b16 %v7373, %v7371
      %v7452 = vpack.c.b16 %v7374, %v7372
      %v7453 = vpack.c.b16 %v7377, %v7375
      %v7454 = vpack.c.b16 %v7378, %v7376
      %v7455 = vpack.c.b16 %v7381, %v7379
      %v7456 = vpack.c.b16 %v7382, %v7380
      %v7457 = vpack.c.b16 %v7385, %v7383
      %v7458 = vpack.c.b16 %v7386, %v7384
      %v7459 = vpack.c.b16 %v7389, %v7387
      %v7460 = vpack.c.b16 %v7390, %v7388
      %v7461 = vpack.c.b16 %v7393, %v7391
      %v7462 = vpack.c.b16 %v7394, %v7392
      %v7463 = vpack.c.b16 %v7397, %v7395
      %v7464 = vpack.c.b16 %v7398, %v7396
      %v7465 = vpack.c.b16 %v7401, %v7399
      %v7466 = vpack.c.b16 %v7402, %v7400
      %7531 = vmatpush.bf16.msra.mxu0 %v7417
      %7532 = vmatpush.bf16.msra.mxu0 %v7415
      %7533 = vmatpush.bf16.msra.mxu0 %v7413
      %7534 = vmatpush.bf16.msra.mxu0 %v7411
      %7535 = vmatpush.bf16.msra.mxu0 %v7409
      %7536 = vmatpush.bf16.msra.mxu0 %v7407
      %7537 = vmatpush.bf16.msra.mxu0 %v7405
      %7538 = vmatpush.bf16.msra.mxu0 %v7403
      %7539 = vmatmul.bf16.gmra.mxu0 %v7137
      %v7540 = vpop.f32.mrf.mxu0
      %v7541 = vadd.f32 %v7207, %v7540
      %v7542 = vpop.f32.mrf.mxu0
      %7543 = vdwg.mxu0
      %7544 = vmatpush.bf16.msra.mxu0 %v7433
      %7545 = vmatpush.bf16.msra.mxu0 %v7431
      %7546 = vmatpush.bf16.msra.mxu0 %v7429
      %7547 = vmatpush.bf16.msra.mxu0 %v7427
      %7548 = vmatpush.bf16.msra.mxu0 %v7425
      %7549 = vmatpush.bf16.msra.mxu0 %v7423
      %7550 = vmatpush.bf16.msra.mxu0 %v7421
      %7551 = vmatpush.bf16.msra.mxu0 %v7419
      %7552 = vmatmul.bf16.gmra.mxu0 %v7138
      %v7553 = vpop.f32.mrf.mxu0
      %v7554 = vadd.f32 %v7541, %v7553
      %v7555 = vpop.f32.mrf.mxu0
      %7556 = vdwg.mxu0
      %7557 = vmatpush.bf16.msra.mxu0 %v7449
      %7558 = vmatpush.bf16.msra.mxu0 %v7447
      %7559 = vmatpush.bf16.msra.mxu0 %v7445
      %7560 = vmatpush.bf16.msra.mxu0 %v7443
      %7561 = vmatpush.bf16.msra.mxu0 %v7441
      %7562 = vmatpush.bf16.msra.mxu0 %v7439
      %7563 = vmatpush.bf16.msra.mxu0 %v7437
      %7564 = vmatpush.bf16.msra.mxu0 %v7435
      %7565 = vmatmul.bf16.gmra.mxu0 %v7139
      %v7566 = vpop.f32.mrf.mxu0
      %v7567 = vadd.f32 %v7554, %v7566
      %v7568 = vpop.f32.mrf.mxu0
      %7569 = vdwg.mxu0
      %7570 = vmatpush.bf16.msra.mxu0 %v7465
      %7571 = vmatpush.bf16.msra.mxu0 %v7463
      %7572 = vmatpush.bf16.msra.mxu0 %v7461
      %7573 = vmatpush.bf16.msra.mxu0 %v7459
      %7574 = vmatpush.bf16.msra.mxu0 %v7457
      %7575 = vmatpush.bf16.msra.mxu0 %v7455
      %7576 = vmatpush.bf16.msra.mxu0 %v7453
      %7577 = vmatpush.bf16.msra.mxu0 %v7451
      %7578 = vmatmul.bf16.gmra.mxu0 %v7140
      %v7579 = vpop.f32.mrf.mxu0
      %v7580 = vadd.f32 %v7567, %v7579
      %v7581 = vpop.f32.mrf.mxu0
      %7582 = vdwg.mxu0
      %7583 = vmatpush.bf16.msra.mxu0 %v7418
      %7584 = vmatpush.bf16.msra.mxu0 %v7416
      %7585 = vmatpush.bf16.msra.mxu0 %v7414
      %7586 = vmatpush.bf16.msra.mxu0 %v7412
      %7587 = vmatpush.bf16.msra.mxu0 %v7410
      %7588 = vmatpush.bf16.msra.mxu0 %v7408
      %7589 = vmatpush.bf16.msra.mxu0 %v7406
      %7590 = vmatpush.bf16.msra.mxu0 %v7404
      %7591 = vmatmul.bf16.gmra.mxu0 %v7137
      %v7592 = vpop.f32.mrf.mxu0
      %v7593 = vadd.f32 %v7208, %v7592
      %v7594 = vpop.f32.mrf.mxu0
      %7595 = vdwg.mxu0
      %7596 = vmatpush.bf16.msra.mxu0 %v7434
      %7597 = vmatpush.bf16.msra.mxu0 %v7432
      %7598 = vmatpush.bf16.msra.mxu0 %v7430
      %7599 = vmatpush.bf16.msra.mxu0 %v7428
      %7600 = vmatpush.bf16.msra.mxu0 %v7426
      %7601 = vmatpush.bf16.msra.mxu0 %v7424
      %7602 = vmatpush.bf16.msra.mxu0 %v7422
      %7603 = vmatpush.bf16.msra.mxu0 %v7420
      %7604 = vmatmul.bf16.gmra.mxu0 %v7138
      %v7605 = vpop.f32.mrf.mxu0
      %v7606 = vadd.f32 %v7593, %v7605
      %v7607 = vpop.f32.mrf.mxu0
      %7608 = vdwg.mxu0
      %7609 = vmatpush.bf16.msra.mxu0 %v7450
      %7610 = vmatpush.bf16.msra.mxu0 %v7448
      %7611 = vmatpush.bf16.msra.mxu0 %v7446
      %7612 = vmatpush.bf16.msra.mxu0 %v7444
      %7613 = vmatpush.bf16.msra.mxu0 %v7442
      %7614 = vmatpush.bf16.msra.mxu0 %v7440
      %7615 = vmatpush.bf16.msra.mxu0 %v7438
      %7616 = vmatpush.bf16.msra.mxu0 %v7436
      %7617 = vmatmul.bf16.gmra.mxu0 %v7139
      %v7618 = vpop.f32.mrf.mxu0
      %v7619 = vadd.f32 %v7606, %v7618
      %v7620 = vpop.f32.mrf.mxu0
      %7621 = vdwg.mxu0
      %7622 = vmatpush.bf16.msra.mxu0 %v7466
      %7623 = vmatpush.bf16.msra.mxu0 %v7464
      %7624 = vmatpush.bf16.msra.mxu0 %v7462
      %7625 = vmatpush.bf16.msra.mxu0 %v7460
      %7626 = vmatpush.bf16.msra.mxu0 %v7458
      %7627 = vmatpush.bf16.msra.mxu0 %v7456
      %7628 = vmatpush.bf16.msra.mxu0 %v7454
      %7629 = vmatpush.bf16.msra.mxu0 %v7452
      %7630 = vmatmul.bf16.gmra.mxu0 %v7140
      %v7631 = vpop.f32.mrf.mxu0
      %v7632 = vadd.f32 %v7619, %v7631
      %v7633 = vpop.f32.mrf.mxu0
      %7634 = vdwg.mxu0
      %v7635 = vmax.f32 %v7580, 0.0
      %v7636 = vmax.f32 %v7632, 0.0
      %v7637 = vpack.c.bf16 %v7635, %v7635
      %v7638 = vpack.c.bf16 %v7636, %v7636
      %v7639 = vld [vmem:[#allocation14] sm:$0xf]
      %v7640 = vld [vmem:[#allocation14 + $0x4] sm:$0xf]
      %v7641 = vld [vmem:[#allocation14 + $0x8] sm:$0xf]
      %v7642 = vld [vmem:[#allocation14 + $0xc] sm:$0xf]
      %v7643 = vld [vmem:[#allocation14 + $0x10] sm:$0xf]
      %v7644 = vld [vmem:[#allocation14 + $0x14] sm:$0xf]
      %v7645 = vld [vmem:[#allocation14 + $0x18] sm:$0xf]
      %v7646 = vld [vmem:[#allocation14 + $0x1c] sm:$0xf]
      %v7647 = vld [vmem:[#allocation14 + $0x20] sm:$0xf]
      %v7648 = vld [vmem:[#allocation14 + $0x24] sm:$0xf]
      %v7649 = vld [vmem:[#allocation14 + $0x28] sm:$0xf]
      %v7650 = vld [vmem:[#allocation14 + $0x2c] sm:$0xf]
      %v7651 = vld [vmem:[#allocation14 + $0x30] sm:$0xf]
      %v7652 = vld [vmem:[#allocation14 + $0x34] sm:$0xf]
      %v7653 = vld [vmem:[#allocation14 + $0x38] sm:$0xf]
      %v7654 = vld [vmem:[#allocation14 + $0x3c] sm:$0xf]
      %v7655 = vld [vmem:[#allocation14 + $0x40] sm:$0xf]
      %v7656 = vld [vmem:[#allocation14 + $0x44] sm:$0xf]
      %v7657 = vld [vmem:[#allocation14 + $0x48] sm:$0xf]
      %v7658 = vld [vmem:[#allocation14 + $0x4c] sm:$0xf]
      %v7659 = vld [vmem:[#allocation14 + $0x50] sm:$0xf]
      %v7660 = vld [vmem:[#allocation14 + $0x54] sm:$0xf]
      %v7661 = vld [vmem:[#allocation14 + $0x58] sm:$0xf]
      %v7662 = vld [vmem:[#allocation14 + $0x5c] sm:$0xf]
      %v7663 = vld [vmem:[#allocation14 + $0x60] sm:$0xf]
      %v7664 = vld [vmem:[#allocation14 + $0x64] sm:$0xf]
      %v7665 = vld [vmem:[#allocation14 + $0x68] sm:$0xf]
      %v7666 = vld [vmem:[#allocation14 + $0x6c] sm:$0xf]
      %v7667 = vld [vmem:[#allocation14 + $0x70] sm:$0xf]
      %v7668 = vld [vmem:[#allocation14 + $0x74] sm:$0xf]
      %v7669 = vld [vmem:[#allocation14 + $0x78] sm:$0xf]
      %v7670 = vld [vmem:[#allocation14 + $0x7c] sm:$0xf]
      %v7671 = vld [vmem:[#allocation16] sm:$0x1]
      %v7673 = vperm.slane %v7671, 0
      %v7707 = vunpack.c.l.b16 %v7639
      %v7708 = vunpack.c.l.b16 %v7640
      %v7709 = vunpack.c.l.b16 %v7641
      %v7710 = vunpack.c.l.b16 %v7642
      %v7711 = vunpack.c.l.b16 %v7643
      %v7712 = vunpack.c.l.b16 %v7644
      %v7713 = vunpack.c.l.b16 %v7645
      %v7714 = vunpack.c.l.b16 %v7646
      %v7715 = vunpack.c.l.b16 %v7647
      %v7716 = vunpack.c.l.b16 %v7648
      %v7717 = vunpack.c.l.b16 %v7649
      %v7718 = vunpack.c.l.b16 %v7650
      %v7719 = vunpack.c.l.b16 %v7651
      %v7720 = vunpack.c.l.b16 %v7652
      %v7721 = vunpack.c.l.b16 %v7653
      %v7722 = vunpack.c.l.b16 %v7654
      %v7723 = vunpack.c.l.b16 %v7655
      %v7724 = vunpack.c.l.b16 %v7656
      %v7725 = vunpack.c.l.b16 %v7657
      %v7726 = vunpack.c.l.b16 %v7658
      %v7727 = vunpack.c.l.b16 %v7659
      %v7728 = vunpack.c.l.b16 %v7660
      %v7729 = vunpack.c.l.b16 %v7661
      %v7730 = vunpack.c.l.b16 %v7662
      %v7731 = vunpack.c.l.b16 %v7663
      %v7732 = vunpack.c.l.b16 %v7664
      %v7733 = vunpack.c.l.b16 %v7665
      %v7734 = vunpack.c.l.b16 %v7666
      %v7735 = vunpack.c.l.b16 %v7667
      %v7736 = vunpack.c.l.b16 %v7668
      %v7737 = vunpack.c.l.b16 %v7669
      %v7738 = vunpack.c.l.b16 %v7670
      %v7739 = vpack.c.b16 %v7708, %v7707
      %v7740 = vpack.c.b16 %v7710, %v7709
      %v7741 = vpack.c.b16 %v7712, %v7711
      %v7742 = vpack.c.b16 %v7714, %v7713
      %v7743 = vpack.c.b16 %v7716, %v7715
      %v7744 = vpack.c.b16 %v7718, %v7717
      %v7745 = vpack.c.b16 %v7720, %v7719
      %v7746 = vpack.c.b16 %v7722, %v7721
      %v7747 = vpack.c.b16 %v7724, %v7723
      %v7748 = vpack.c.b16 %v7726, %v7725
      %v7749 = vpack.c.b16 %v7728, %v7727
      %v7750 = vpack.c.b16 %v7730, %v7729
      %v7751 = vpack.c.b16 %v7732, %v7731
      %v7752 = vpack.c.b16 %v7734, %v7733
      %v7753 = vpack.c.b16 %v7736, %v7735
      %v7754 = vpack.c.b16 %v7738, %v7737
      %7771 = vmatpush.bf16.msra.mxu0 %v7746
      %7772 = vmatpush.bf16.msra.mxu0 %v7745
      %7773 = vmatpush.bf16.msra.mxu0 %v7744
      %7774 = vmatpush.bf16.msra.mxu0 %v7743
      %7775 = vmatpush.bf16.msra.mxu0 %v7742
      %7776 = vmatpush.bf16.msra.mxu0 %v7741
      %7777 = vmatpush.bf16.msra.mxu0 %v7740
      %7778 = vmatpush.bf16.msra.mxu0 %v7739
      %7779 = vmatmul.bf16.gmra.mxu0 %v7637
      %v7780 = vpop.f32.mrf.mxu0
      %v7781 = vadd.f32 %v7673, %v7780
      %v7782 = vpop.f32.mrf.mxu0
      %7783 = vdwg.mxu0
      %7784 = vmatpush.bf16.msra.mxu0 %v7754
      %7785 = vmatpush.bf16.msra.mxu0 %v7753
      %7786 = vmatpush.bf16.msra.mxu0 %v7752
      %7787 = vmatpush.bf16.msra.mxu0 %v7751
      %7788 = vmatpush.bf16.msra.mxu0 %v7750
      %7789 = vmatpush.bf16.msra.mxu0 %v7749
      %7790 = vmatpush.bf16.msra.mxu0 %v7748
      %7791 = vmatpush.bf16.msra.mxu0 %v7747
      %7792 = vmatmul.bf16.gmra.mxu0 %v7638
      %v7793 = vpop.f32.mrf.mxu0
      %v7794 = vadd.f32 %v7781, %v7793
      %v7795 = vpop.f32.mrf.mxu0
      %7796 = vdwg.mxu0
      %v7797 = vsub.f32 0.0, %v7794
      %v7798 = vmul.f32 %v7797, 1.442695
      %v7799 = vpow.pop %v7798
      %v7800 = vadd.f32 %v7799, 1.0
      %v7801 = vrcp.pop %v7800
      %7802 = vst [vmem:[%s11] sm:$0xff] %v7801
    $region89: #{discriminator_forward.1} parent=1 // pred_fallthru
      _
    // Predicated region
    $region90: #{discriminator_forward.1} parent=1 // pred_check
      _
    $region91: #{discriminator_forward.1} parent=1 // pred_check_branch
      %7804 = sbr.rel (0) target = $region93
    $region92: #{discriminator_forward.1} parent=1 // pred_region
      _
    $region93: #{discriminator_forward.1} parent=1 // pred_fallthru
      _
    // Predicated region
    $region94: #{discriminator_forward.1} parent=1 // pred_check
      _
    $region95: #{discriminator_forward.1} parent=1 // pred_check_branch
      %7806 = sbr.rel (0) target = $region97
    $region96: #{discriminator_forward.1} parent=1 // pred_region
      _
    $region97: #{discriminator_forward.1} parent=1 // pred_fallthru
      _
    %7807 = vsyncpa [#allocation4], 1
    %7808 = vsyncpa [#allocation6], 1
    %7809 = vsyncpa [#allocation9], 1
    %7810 = vsyncpa [#allocation12], 1
    %7811 = vsyncpa [#allocation15], 1

</llo_original>
